<compile_context>
chip_gen: v7x
topology: tpu7x:2x2x1
jax: 0.10.0
libtpu: 0.0.40
codegen_flags: <defaults>
</compile_context>

<pallas_src>
import math

import numpy as np
import jax
import jax.numpy as jnp
from jax import lax
from jax.experimental import pallas as pl
from jax.experimental.pallas import tpu as pltpu

EPS = 1e-5  # PyTorch BatchNorm2d default eps


def _round_up(x, m):
    return ((x + m - 1) // m) * m


# ---------------------------------------------------------------------------
# Pallas kernel: `bn` batch elements (NHWC) per grid step.
# ---------------------------------------------------------------------------
def _block_kernel(x_ref, s1_ref, t1_ref, w1_ref, t2_ref, w2_ref, out_ref, pad_ref):
    bn, H, W, Cin = x_ref.shape
    _, Hp, Wp, C = pad_ref.shape          # Hp == H + 2, C == Cin == Cout
    Cout = w1_ref.shape[-1]
    bdt = pad_ref.dtype                   # bf16

    def store_padded(h):
        # Cast once to bf16, build the zero halo in-register, one aligned full store.
        hb = h.astype(bdt)
        zl = jnp.zeros((bn, H, 1, C), bdt)
        zr = jnp.zeros((bn, H, Wp - W - 1, C), bdt)
        hb = jnp.concatenate([zl, hb, zr], axis=2)                  # (bn, H, Wp, C)
        zrow = jnp.zeros((bn, 1, Wp, C), bdt)
        pad_ref[...] = jnp.concatenate([zrow, hb, zrow], axis=1)    # (bn, Hp, Wp, C)

    def conv3x3(w_ref):
        # Single MXU dot with K = 9*C: concat all 9 shifted taps along channels.
        taps = [pad_ref[:, ky:ky + H, kx:kx + W, :]
                for ky in range(3) for kx in range(3)]
        patch = jnp.concatenate(taps, axis=-1).reshape(bn * H * W, 9 * C)
        return jnp.dot(patch, w_ref[...], preferred_element_type=jnp.float32)

    # ---- BN1 (pre-folded scale/shift) + ReLU, f32 on the VPU ----
    h1 = jnp.maximum(x_ref[...] * s1_ref[...] + t1_ref[...], 0.0)

    # ---- conv1: ConvTranspose(3, s=1, p=1) == SAME conv with flipped kernel ----
    store_padded(h1)
    acc1 = conv3x3(w1_ref)                # (bn*H*W, Cout); BN2 scale folded into w1

    # ---- Dropout2d(0.3): identity in inference mode ----
    # TODO(synk): training-mode stochastic per-(sample, channel) dropout not implemented.

    # ---- BN2 shift (scale already folded into w1) + ReLU ----
    h2 = jnp.maximum(acc1.reshape(bn, H, W, Cout) + t2_ref[...], 0.0)

    # ---- conv2 (reuses the same padded scratch buffer) ----
    store_padded(h2)
    acc2 = conv3x3(w2_ref)

    # ---- identity residual (right=None, re-read from VMEM) + final ReLU ----
    out_ref[...] = jnp.maximum(acc2.reshape(bn, H, W, Cout) + x_ref[...], 0.0)


# ---------------------------------------------------------------------------
# Parameter prep (done once in the wrapper, outside the kernel).
# ---------------------------------------------------------------------------
def _prep_params(params):
    g1, b1, m1, v1, wt1, g2, b2, m2, v2, wt2 = params
    Cin, Cout = wt1.shape[0], wt1.shape[1]

    # BN -> affine scale/shift (inference mode, running stats).
    s1 = (g1 * lax.rsqrt(v1 + EPS)).astype(jnp.float32)
    t1 = (b1 - m1 * s1).astype(jnp.float32)
    s2 = (g2 * lax.rsqrt(v2 + EPS)).astype(jnp.float32)
    t2 = (b2 - m2 * s2).astype(jnp.float32)

    # ConvTranspose weight (Cin, Cout, 3, 3) -> equivalent SAME-conv HWIO (3, 3, Cin, Cout).
    wk1 = jnp.transpose(wt1[:, :, ::-1, ::-1], (2, 3, 0, 1)).astype(jnp.float32)
    wk2 = jnp.transpose(wt2[:, :, ::-1, ::-1], (2, 3, 0, 1)).astype(jnp.float32)

    # Fold BN2's per-channel scale into conv1's output channels.
    wk1 = wk1 * s2[None, None, None, :]

    # Fused-K weights (9*Cin, Cout), bf16 for the MXU; row order (ky, kx, ci)
    # matches the in-kernel 9-tap concat order.
    w1f = wk1.reshape(9 * Cin, Cout).astype(jnp.bfloat16)
    w2f = wk2.reshape(9 * Cout, Cout).astype(jnp.bfloat16)

    return (s1.reshape(1, Cin), t1.reshape(1, Cin), w1f,
            t2.reshape(1, Cout), w2f)


def _pick_batch_block(B, H, W, C, budget_bytes=2 << 20, max_bn=8):
    """Largest divisor of B (<= max_bn) whose per-block f32 image footprint fits the budget."""
    bn = 1
    for cand in range(1, min(B, max_bn) + 1):
        if B % cand == 0 and cand * H * W * C * 4 <= budget_bytes:
            bn = cand
    return bn


# ---------------------------------------------------------------------------
# Wrapper: NCHW (PyTorch) or NHWC in/out, pallas_call.
# ---------------------------------------------------------------------------
def _forward_nhwc_pallas(x, params):
    B, H, W, Cin = x.shape
    s1, t1, w1f, t2, w2f = _prep_params(params)
    Cout = w1f.shape[-1]
    assert Cin == Cout, "identity residual (shortcut=None) requires inC == outC"

    bn = _pick_batch_block(B, H, W, Cin)
    Wp = _round_up(W + 2, 16)            # bf16 sublane tile along the padded width

    def const_spec(shape):
        n = len(shape)
        return pl.BlockSpec(shape, lambda b, _n=n: (0,) * _n)

    in_specs = [
        pl.BlockSpec((bn, H, W, Cin), lambda b: (b, 0, 0, 0)),   # bn images per step
        const_spec((1, Cin)), const_spec((1, Cin)),              # BN1 scale / shift
        const_spec((9 * Cin, Cout)),                             # conv1 (BN2-scaled), bf16
        const_spec((1, Cout)),                                   # BN2 shift
        const_spec((9 * Cout, Cout)),                            # conv2, bf16
    ]
    out_spec = pl.BlockSpec((bn, H, W, Cout), lambda b: (b, 0, 0, 0))

    # VMEM footprint estimate: double-buffered I/O + weights + bf16 scratch +
    # lane-padded in-kernel temporaries (patch bf16 + f32 acc/h values).
    lanes = 128
    est = (2 * bn * H * W * (Cin + Cout) * 4
           + 2 * (w1f.size + w2f.size) * 2
           + bn * (H + 2) * Wp * Cin * 2
           + bn * H * W * lanes * (2 + 2 * 4))
    vmem_limit = int(min(64 * 2 ** 20, max(32 * 2 ** 20, 2 * est)))

    flops = 2 * B * H * W * 9 * (Cin * Cout + Cout * Cout)
    bytes_accessed = int(x.size * 4 + B * H * W * Cout * 4
                         + (w1f.size + w2f.size) * 2 + (2 * Cin + Cout) * 4)
    cost = pl.CostEstimate(flops=flops, transcendentals=0,
                           bytes_accessed=bytes_accessed)

    return pl.pallas_call(
        _block_kernel,
        out_shape=jax.ShapeDtypeStruct((B, H, W, Cout), jnp.float32),
        grid_spec=pltpu.PrefetchScalarGridSpec(
            num_scalar_prefetch=0,
            grid=(B // bn,),
            in_specs=in_specs,
            out_specs=out_spec,
            scratch_shapes=[
                # One bf16 padded-activation buffer, reused by both convs.
                pltpu.VMEM((bn, H + 2, Wp, Cin), jnp.bfloat16),
            ],
        ),
        compiler_params=pltpu.CompilerParams(
            dimension_semantics=("parallel",),     # batch axis: pipelined + megacore-shardable
            vmem_limit_bytes=vmem_limit,
        ),
        cost_estimate=cost,
    )(x, s1, t1, w1f, t2, w2f)


def re_residual_block(x, params, data_format="NCHW"):
    """Forward pass of ReResidualBlock. Accepts NCHW (PyTorch) or NHWC input."""
    if data_format == "NCHW":
        x_nhwc = jnp.transpose(x, (0, 2, 3, 1)).astype(jnp.float32)
    elif data_format == "NHWC":
        x_nhwc = x.astype(jnp.float32)
    else:
        raise ValueError(f"unknown data_format: {data_format}")

    out_nhwc = _forward_nhwc_pallas(x_nhwc, params)

    if data_format == "NCHW":
        return jnp.transpose(out_nhwc, (0, 3, 1, 2))
    return out_nhwc


# ---------------------------------------------------------------------------
# Pure-JAX references for silent numerical checks.
# ---------------------------------------------------------------------------
def _ref_forward_matched(x_nchw, params):
    """Reference using the same folded params and bf16 matmul rounding as the kernel."""
    x = jnp.transpose(x_nchw, (0, 2, 3, 1)).astype(jnp.float32)
    Cin = x.shape[-1]
    s1, t1, w1f, t2, w2f = _prep_params(params)
    Cout = w1f.shape[-1]
    w1 = w1f.reshape(3, 3, Cin, Cout)          # bf16, BN2 scale folded
    w2 = w2f.reshape(3, 3, Cout, Cout)         # bf16

    def conv(h, w):
        dn = lax.conv_dimension_numbers(h.shape, w.shape, ('NHWC', 'HWIO', 'NHWC'))
        return lax.conv_general_dilated(h.astype(jnp.bfloat16), w, (1, 1), 'SAME',
                                        dimension_numbers=dn,
                                        preferred_element_type=jnp.float32)

    h = jnp.maximum(x * s1.astype(jnp.float32) + t1.astype(jnp.float32), 0.0)
    h = conv(h, w1)
    h = jnp.maximum(h + t2.astype(jnp.float32), 0.0)
    h = conv(h, w2)
    out = jnp.maximum(h + x, 0.0)
    return jnp.transpose(out, (0, 3, 1, 2))


def _convT_via_vjp(h_nhwc, wt):
    """ConvTranspose2d(k=3, s=1, p=1, bias=False) via the VJP of the corresponding Conv2d.

    Independent of the flip/transpose weight transform used by the kernel.
    wt: PyTorch ConvTranspose2d weight (Cin, Cout, 3, 3), which equals the Conv2d
    weight of the conv this op is the input-gradient of (OIHW with O=Cin, I=Cout).
    """
    N, H, W, _ = h_nhwc.shape
    Cout = wt.shape[1]

    def fwd(u_nhwc):  # Conv2d(in=Cout, out=Cin), SAME == padding 1 for k=3, s=1
        dn = lax.conv_dimension_numbers(u_nhwc.shape, wt.shape, ('NHWC', 'OIHW', 'NHWC'))
        return lax.conv_general_dilated(u_nhwc, wt, (1, 1), 'SAME',
                                        dimension_numbers=dn)

    u0 = jnp.zeros((N, H, W, Cout), h_nhwc.dtype)
    _, vjp = jax.vjp(fwd, u0)
    (y,) = vjp(h_nhwc)
    return y


def _ref_forward_independent(x_nchw, params):
    """Full-f32 reference built directly from the PyTorch definition."""
    g1, b1, m1, v1, wt1, g2, b2, m2, v2, wt2 = params
    x = jnp.transpose(x_nchw, (0, 2, 3, 1)).astype(jnp.float32)

    def bn(h, g, b, m, v):
        return (h - m) * (g * lax.rsqrt(v + EPS)) + b

    h = jnp.maximum(bn(x, g1, b1, m1, v1), 0.0)
    h = _convT_via_vjp(h, wt1)
    h = jnp.maximum(bn(h, g2, b2, m2, v2), 0.0)   # Dropout2d(0.3) identity in eval mode
    h = _convT_via_vjp(h, wt2)
    out = jnp.maximum(h + x, 0.0)
    return jnp.transpose(out, (0, 3, 1, 2))


def init_params(key, cin, cout):
    ks = jax.random.split(key, 10)
    fan1 = 1.0 / math.sqrt(cin * 9)
    fan2 = 1.0 / math.sqrt(cout * 9)
    g1 = 1.0 + 0.1 * jax.random.normal(ks[0], (cin,), jnp.float32)
    b1 = 0.1 * jax.random.normal(ks[1], (cin,), jnp.float32)
    m1 = 0.1 * jax.random.normal(ks[2], (cin,), jnp.float32)
    v1 = jax.random.uniform(ks[3], (cin,), jnp.float32, 0.5, 1.5)
    wt1 = fan1 * jax.random.normal(ks[4], (cin, cout, 3, 3), jnp.float32)
    g2 = 1.0 + 0.1 * jax.random.normal(ks[5], (cout,), jnp.float32)
    b2 = 0.1 * jax.random.normal(ks[6], (cout,), jnp.float32)
    m2 = 0.1 * jax.random.normal(ks[7], (cout,), jnp.float32)
    v2 = jax.random.uniform(ks[8], (cout,), jnp.float32, 0.5, 1.5)
    wt2 = fan2 * jax.random.normal(ks[9], (cout, cout, 3, 3), jnp.float32)
    return (g1, b1, m1, v1, wt1, g2, b2, m2, v2, wt2)


if __name__ == "__main__":
    key = jax.random.PRNGKey(0)
    kx, kp = jax.random.split(key)

    B, C, H, W = 2, 4, 16, 16                       # NCHW, inchannel == outchannel
    x = jax.random.normal(kx, (B, C, H, W), jnp.float32)
    params = init_params(kp, C, C)

    out = jax.block_until_ready(re_residual_block(x, params))

    # Tight check vs. a reference with the same bf16 operand rounding (f32 accumulation),
    # and a looser check vs. an independent full-f32 reference that implements
    # ConvTranspose2d via the VJP of the corresponding Conv2d.
    ref_bf16 = _ref_forward_matched(x, params)
    ref_f32 = _ref_forward_independent(x, params)
    np.testing.assert_allclose(np.asarray(out), np.asarray(ref_bf16),
                               rtol=1e-2, atol=1e-2)
    np.testing.assert_allclose(np.asarray(out), np.asarray(ref_f32),
                               rtol=5e-2, atol=5e-2)

    print("KERNEL_OK")
</pallas_src>

<mosaic_0001>
module attributes {stable_mosaic.version = 11 : i64} {
  func.func @_block_kernel(%arg0: i32, %arg1: memref<2x16x16x4xf32, #tpu.memory_space<vmem>>, %arg2: memref<1x4xf32, #tpu.memory_space<vmem>>, %arg3: memref<1x4xf32, #tpu.memory_space<vmem>>, %arg4: memref<36x4xbf16, #tpu.memory_space<vmem>>, %arg5: memref<1x4xf32, #tpu.memory_space<vmem>>, %arg6: memref<36x4xbf16, #tpu.memory_space<vmem>>, %arg7: memref<2x16x16x4xf32, #tpu.memory_space<vmem>>, %arg8: memref<2x18x32x4xbf16, #tpu.memory_space<vmem>>) attributes {dimension_semantics = [#tpu.dimension_semantics<parallel>], iteration_bounds = array<i64: 1>, scalar_prefetch = 0 : i64, scratch_operands = 1 : i64, tpu.core_type = #tpu.core_type<tc>, window_params = [{transform_indices = @transform_0, window_bounds = array<i64: 2, 16, 16, 4>}, {pipeline_mode = #tpu.pipeline_mode<synchronous>, transform_indices = @transform_1, window_bounds = array<i64: 1, 4>}, {pipeline_mode = #tpu.pipeline_mode<synchronous>, transform_indices = @transform_2, window_bounds = array<i64: 1, 4>}, {pipeline_mode = #tpu.pipeline_mode<synchronous>, transform_indices = @transform_3, window_bounds = array<i64: 36, 4>}, {pipeline_mode = #tpu.pipeline_mode<synchronous>, transform_indices = @transform_4, window_bounds = array<i64: 1, 4>}, {pipeline_mode = #tpu.pipeline_mode<synchronous>, transform_indices = @transform_5, window_bounds = array<i64: 36, 4>}, {transform_indices = @transform_6, window_bounds = array<i64: 2, 16, 16, 4>}]} {
    %c0 = arith.constant 0 : index
    %c0_0 = arith.constant 0 : index
    %c0_1 = arith.constant 0 : index
    %c0_2 = arith.constant 0 : index
    %0 = vector.load %arg1[%c0, %c0_0, %c0_1, %c0_2] : memref<2x16x16x4xf32, #tpu.memory_space<vmem>>, vector<2x16x16x4xf32>
    %c0_3 = arith.constant 0 : index
    %c0_4 = arith.constant 0 : index
    %1 = vector.load %arg2[%c0_3, %c0_4] : memref<1x4xf32, #tpu.memory_space<vmem>>, vector<1x4xf32>
    %2 = vector.shape_cast %1 : vector<1x4xf32> to vector<1x1x1x4xf32>
    %3 = vector.broadcast %2 : vector<1x1x1x4xf32> to vector<2x16x16x4xf32>
    %4 = arith.mulf %0, %3 : vector<2x16x16x4xf32>
    %c0_5 = arith.constant 0 : index
    %c0_6 = arith.constant 0 : index
    %5 = vector.load %arg3[%c0_5, %c0_6] : memref<1x4xf32, #tpu.memory_space<vmem>>, vector<1x4xf32>
    %6 = vector.shape_cast %5 : vector<1x4xf32> to vector<1x1x1x4xf32>
    %7 = vector.broadcast %6 : vector<1x1x1x4xf32> to vector<2x16x16x4xf32>
    %8 = arith.addf %4, %7 : vector<2x16x16x4xf32>
    %cst = arith.constant 0.000000e+00 : f32
    %9 = vector.broadcast %cst : f32 to vector<2x16x16x4xf32>
    %10 = arith.maximumf %8, %9 : vector<2x16x16x4xf32>
    %11 = arith.truncf %10 : vector<2x16x16x4xf32> to vector<2x16x16x4xbf16>
    %cst_7 = arith.constant 0.000000e+00 : bf16
    %12 = vector.broadcast %cst_7 : bf16 to vector<2x16x1x4xbf16>
    %cst_8 = arith.constant 0.000000e+00 : bf16
    %13 = vector.broadcast %cst_8 : bf16 to vector<2x16x15x4xbf16>
    %14 = tpu.concatenate %12, %11, %13 in 2 : vector<2x16x1x4xbf16>, vector<2x16x16x4xbf16>, vector<2x16x15x4xbf16> -> vector<2x16x32x4xbf16>
    %cst_9 = arith.constant 0.000000e+00 : bf16
    %15 = vector.broadcast %cst_9 : bf16 to vector<2x1x32x4xbf16>
    %16 = tpu.concatenate %15, %14, %15 in 1 : vector<2x1x32x4xbf16>, vector<2x16x32x4xbf16>, vector<2x1x32x4xbf16> -> vector<2x18x32x4xbf16>
    %c0_10 = arith.constant 0 : index
    %c0_11 = arith.constant 0 : index
    %c0_12 = arith.constant 0 : index
    %c0_13 = arith.constant 0 : index
    %17 = vector.load %arg8[%c0_10, %c0_11, %c0_12, %c0_13] : memref<2x18x32x4xbf16, #tpu.memory_space<vmem>>, vector<2x18x32x4xbf16>
    tpu.vector_store %arg8[%c0_10, %c0_11, %c0_12, %c0_13], %16 {strides = array<i32>} : memref<2x18x32x4xbf16, #tpu.memory_space<vmem>>, vector<2x18x32x4xbf16>,
    %c0_14 = arith.constant 0 : index
    %c0_15 = arith.constant 0 : index
    %c0_16 = arith.constant 0 : index
    %c0_17 = arith.constant 0 : index
    %18 = vector.load %arg8[%c0_14, %c0_15, %c0_16, %c0_17] : memref<2x18x32x4xbf16, #tpu.memory_space<vmem>>, vector<2x16x16x4xbf16>
    %c0_18 = arith.constant 0 : index
    %c0_19 = arith.constant 0 : index
    %c1 = arith.constant 1 : index
    %c0_20 = arith.constant 0 : index
    %19 = vector.load %arg8[%c0_18, %c0_19, %c1, %c0_20] : memref<2x18x32x4xbf16, #tpu.memory_space<vmem>>, vector<2x16x16x4xbf16>
    %c0_21 = arith.constant 0 : index
    %c0_22 = arith.constant 0 : index
    %c2 = arith.constant 2 : index
    %c0_23 = arith.constant 0 : index
    %20 = vector.load %arg8[%c0_21, %c0_22, %c2, %c0_23] : memref<2x18x32x4xbf16, #tpu.memory_space<vmem>>, vector<2x16x16x4xbf16>
    %c0_24 = arith.constant 0 : index
    %c1_25 = arith.constant 1 : index
    %c0_26 = arith.constant 0 : index
    %c0_27 = arith.constant 0 : index
    %21 = vector.load %arg8[%c0_24, %c1_25, %c0_26, %c0_27] : memref<2x18x32x4xbf16, #tpu.memory_space<vmem>>, vector<2x16x16x4xbf16>
    %c0_28 = arith.constant 0 : index
    %c1_29 = arith.constant 1 : index
    %c1_30 = arith.constant 1 : index
    %c0_31 = arith.constant 0 : index
    %22 = vector.load %arg8[%c0_28, %c1_29, %c1_30, %c0_31] : memref<2x18x32x4xbf16, #tpu.memory_space<vmem>>, vector<2x16x16x4xbf16>
    %c0_32 = arith.constant 0 : index
    %c1_33 = arith.constant 1 : index
    %c2_34 = arith.constant 2 : index
    %c0_35 = arith.constant 0 : index
    %23 = vector.load %arg8[%c0_32, %c1_33, %c2_34, %c0_35] : memref<2x18x32x4xbf16, #tpu.memory_space<vmem>>, vector<2x16x16x4xbf16>
    %c0_36 = arith.constant 0 : index
    %c2_37 = arith.constant 2 : index
    %c0_38 = arith.constant 0 : index
    %c0_39 = arith.constant 0 : index
    %24 = vector.load %arg8[%c0_36, %c2_37, %c0_38, %c0_39] : memref<2x18x32x4xbf16, #tpu.memory_space<vmem>>, vector<2x16x16x4xbf16>
    %c0_40 = arith.constant 0 : index
    %c2_41 = arith.constant 2 : index
    %c1_42 = arith.constant 1 : index
    %c0_43 = arith.constant 0 : index
    %25 = vector.load %arg8[%c0_40, %c2_41, %c1_42, %c0_43] : memref<2x18x32x4xbf16, #tpu.memory_space<vmem>>, vector<2x16x16x4xbf16>
    %c0_44 = arith.constant 0 : index
    %c2_45 = arith.constant 2 : index
    %c2_46 = arith.constant 2 : index
    %c0_47 = arith.constant 0 : index
    %26 = vector.load %arg8[%c0_44, %c2_45, %c2_46, %c0_47] : memref<2x18x32x4xbf16, #tpu.memory_space<vmem>>, vector<2x16x16x4xbf16>
    %27 = tpu.concatenate %18, %19, %20, %21, %22, %23, %24, %25, %26 in 3 : vector<2x16x16x4xbf16>, vector<2x16x16x4xbf16>, vector<2x16x16x4xbf16>, vector<2x16x16x4xbf16>, vector<2x16x16x4xbf16>, vector<2x16x16x4xbf16>, vector<2x16x16x4xbf16>, vector<2x16x16x4xbf16>, vector<2x16x16x4xbf16> -> vector<2x16x16x36xbf16>
    %28 = vector.shape_cast %27 : vector<2x16x16x36xbf16> to vector<512x36xbf16>
    %c0_48 = arith.constant 0 : index
    %c0_49 = arith.constant 0 : index
    %29 = vector.load %arg4[%c0_48, %c0_49] : memref<36x4xbf16, #tpu.memory_space<vmem>>, vector<36x4xbf16>
    %cst_50 = arith.constant dense<0.000000e+00> : vector<512x4xf32>
    %30 = tpu.matmul %28, %29, %cst_50 {dimension_numbers = #tpu.dot_dimension_numbers<[1], [0], [0], [1], [0, 0, 1, 1], [], []>} : vector<512x36xbf16>, vector<36x4xbf16>, vector<512x4xf32> -> vector<512x4xf32>
    %31 = vector.shape_cast %30 : vector<512x4xf32> to vector<2x16x16x4xf32>
    %c0_51 = arith.constant 0 : index
    %c0_52 = arith.constant 0 : index
    %32 = vector.load %arg5[%c0_51, %c0_52] : memref<1x4xf32, #tpu.memory_space<vmem>>, vector<1x4xf32>
    %33 = vector.shape_cast %32 : vector<1x4xf32> to vector<1x1x1x4xf32>
    %34 = vector.broadcast %33 : vector<1x1x1x4xf32> to vector<2x16x16x4xf32>
    %35 = arith.addf %31, %34 : vector<2x16x16x4xf32>
    %cst_53 = arith.constant 0.000000e+00 : f32
    %36 = vector.broadcast %cst_53 : f32 to vector<2x16x16x4xf32>
    %37 = arith.maximumf %35, %36 : vector<2x16x16x4xf32>
    %38 = arith.truncf %37 : vector<2x16x16x4xf32> to vector<2x16x16x4xbf16>
    %cst_54 = arith.constant 0.000000e+00 : bf16
    %39 = vector.broadcast %cst_54 : bf16 to vector<2x16x1x4xbf16>
    %cst_55 = arith.constant 0.000000e+00 : bf16
    %40 = vector.broadcast %cst_55 : bf16 to vector<2x16x15x4xbf16>
    %41 = tpu.concatenate %39, %38, %40 in 2 : vector<2x16x1x4xbf16>, vector<2x16x16x4xbf16>, vector<2x16x15x4xbf16> -> vector<2x16x32x4xbf16>
    %cst_56 = arith.constant 0.000000e+00 : bf16
    %42 = vector.broadcast %cst_56 : bf16 to vector<2x1x32x4xbf16>
    %43 = tpu.concatenate %42, %41, %42 in 1 : vector<2x1x32x4xbf16>, vector<2x16x32x4xbf16>, vector<2x1x32x4xbf16> -> vector<2x18x32x4xbf16>
    %c0_57 = arith.constant 0 : index
    %c0_58 = arith.constant 0 : index
    %c0_59 = arith.constant 0 : index
    %c0_60 = arith.constant 0 : index
    %44 = vector.load %arg8[%c0_57, %c0_58, %c0_59, %c0_60] : memref<2x18x32x4xbf16, #tpu.memory_space<vmem>>, vector<2x18x32x4xbf16>
    tpu.vector_store %arg8[%c0_57, %c0_58, %c0_59, %c0_60], %43 {strides = array<i32>} : memref<2x18x32x4xbf16, #tpu.memory_space<vmem>>, vector<2x18x32x4xbf16>,
    %c0_61 = arith.constant 0 : index
    %c0_62 = arith.constant 0 : index
    %c0_63 = arith.constant 0 : index
    %c0_64 = arith.constant 0 : index
    %45 = vector.load %arg8[%c0_61, %c0_62, %c0_63, %c0_64] : memref<2x18x32x4xbf16, #tpu.memory_space<vmem>>, vector<2x16x16x4xbf16>
    %c0_65 = arith.constant 0 : index
    %c0_66 = arith.constant 0 : index
    %c1_67 = arith.constant 1 : index
    %c0_68 = arith.constant 0 : index
    %46 = vector.load %arg8[%c0_65, %c0_66, %c1_67, %c0_68] : memref<2x18x32x4xbf16, #tpu.memory_space<vmem>>, vector<2x16x16x4xbf16>
    %c0_69 = arith.constant 0 : index
    %c0_70 = arith.constant 0 : index
    %c2_71 = arith.constant 2 : index
    %c0_72 = arith.constant 0 : index
    %47 = vector.load %arg8[%c0_69, %c0_70, %c2_71, %c0_72] : memref<2x18x32x4xbf16, #tpu.memory_space<vmem>>, vector<2x16x16x4xbf16>
    %c0_73 = arith.constant 0 : index
    %c1_74 = arith.constant 1 : index
    %c0_75 = arith.constant 0 : index
    %c0_76 = arith.constant 0 : index
    %48 = vector.load %arg8[%c0_73, %c1_74, %c0_75, %c0_76] : memref<2x18x32x4xbf16, #tpu.memory_space<vmem>>, vector<2x16x16x4xbf16>
    %c0_77 = arith.constant 0 : index
    %c1_78 = arith.constant 1 : index
    %c1_79 = arith.constant 1 : index
    %c0_80 = arith.constant 0 : index
    %49 = vector.load %arg8[%c0_77, %c1_78, %c1_79, %c0_80] : memref<2x18x32x4xbf16, #tpu.memory_space<vmem>>, vector<2x16x16x4xbf16>
    %c0_81 = arith.constant 0 : index
    %c1_82 = arith.constant 1 : index
    %c2_83 = arith.constant 2 : index
    %c0_84 = arith.constant 0 : index
    %50 = vector.load %arg8[%c0_81, %c1_82, %c2_83, %c0_84] : memref<2x18x32x4xbf16, #tpu.memory_space<vmem>>, vector<2x16x16x4xbf16>
    %c0_85 = arith.constant 0 : index
    %c2_86 = arith.constant 2 : index
    %c0_87 = arith.constant 0 : index
    %c0_88 = arith.constant 0 : index
    %51 = vector.load %arg8[%c0_85, %c2_86, %c0_87, %c0_88] : memref<2x18x32x4xbf16, #tpu.memory_space<vmem>>, vector<2x16x16x4xbf16>
    %c0_89 = arith.constant 0 : index
    %c2_90 = arith.constant 2 : index
    %c1_91 = arith.constant 1 : index
    %c0_92 = arith.constant 0 : index
    %52 = vector.load %arg8[%c0_89, %c2_90, %c1_91, %c0_92] : memref<2x18x32x4xbf16, #tpu.memory_space<vmem>>, vector<2x16x16x4xbf16>
    %c0_93 = arith.constant 0 : index
    %c2_94 = arith.constant 2 : index
    %c2_95 = arith.constant 2 : index
    %c0_96 = arith.constant 0 : index
    %53 = vector.load %arg8[%c0_93, %c2_94, %c2_95, %c0_96] : memref<2x18x32x4xbf16, #tpu.memory_space<vmem>>, vector<2x16x16x4xbf16>
    %54 = tpu.concatenate %45, %46, %47, %48, %49, %50, %51, %52, %53 in 3 : vector<2x16x16x4xbf16>, vector<2x16x16x4xbf16>, vector<2x16x16x4xbf16>, vector<2x16x16x4xbf16>, vector<2x16x16x4xbf16>, vector<2x16x16x4xbf16>, vector<2x16x16x4xbf16>, vector<2x16x16x4xbf16>, vector<2x16x16x4xbf16> -> vector<2x16x16x36xbf16>
    %55 = vector.shape_cast %54 : vector<2x16x16x36xbf16> to vector<512x36xbf16>
    %c0_97 = arith.constant 0 : index
    %c0_98 = arith.constant 0 : index
    %56 = vector.load %arg6[%c0_97, %c0_98] : memref<36x4xbf16, #tpu.memory_space<vmem>>, vector<36x4xbf16>
    %cst_99 = arith.constant dense<0.000000e+00> : vector<512x4xf32>
    %57 = tpu.matmul %55, %56, %cst_99 {dimension_numbers = #tpu.dot_dimension_numbers<[1], [0], [0], [1], [0, 0, 1, 1], [], []>} : vector<512x36xbf16>, vector<36x4xbf16>, vector<512x4xf32> -> vector<512x4xf32>
    %58 = vector.shape_cast %57 : vector<512x4xf32> to vector<2x16x16x4xf32>
    %c0_100 = arith.constant 0 : index
    %c0_101 = arith.constant 0 : index
    %c0_102 = arith.constant 0 : index
    %c0_103 = arith.constant 0 : index
    %59 = vector.load %arg1[%c0_100, %c0_101, %c0_102, %c0_103] : memref<2x16x16x4xf32, #tpu.memory_space<vmem>>, vector<2x16x16x4xf32>
    %60 = arith.addf %58, %59 : vector<2x16x16x4xf32>
    %cst_104 = arith.constant 0.000000e+00 : f32
    %61 = vector.broadcast %cst_104 : f32 to vector<2x16x16x4xf32>
    %62 = arith.maximumf %60, %61 : vector<2x16x16x4xf32>
    %c0_105 = arith.constant 0 : index
    %c0_106 = arith.constant 0 : index
    %c0_107 = arith.constant 0 : index
    %c0_108 = arith.constant 0 : index
    %63 = vector.load %arg7[%c0_105, %c0_106, %c0_107, %c0_108] : memref<2x16x16x4xf32, #tpu.memory_space<vmem>>, vector<2x16x16x4xf32>
    tpu.vector_store %arg7[%c0_105, %c0_106, %c0_107, %c0_108], %62 {strides = array<i32>} : memref<2x16x16x4xf32, #tpu.memory_space<vmem>>, vector<2x16x16x4xf32>,
    return
  }
  func.func @transform_0(%arg0: i32) -> (i32, i32, i32, i32) {
    %c0_i32 = arith.constant 0 : i32
    %c0_i32_0 = arith.constant 0 : i32
    %c0_i32_1 = arith.constant 0 : i32
    %c0_i32_2 = arith.constant 0 : i32
    return %arg0, %c0_i32, %c0_i32_0, %c0_i32_1 : i32, i32, i32, i32
  }
  func.func @transform_1(%arg0: i32) -> (i32, i32) {
    %c0_i32 = arith.constant 0 : i32
    %c0_i32_0 = arith.constant 0 : i32
    %c0_i32_1 = arith.constant 0 : i32
    return %c0_i32, %c0_i32_0 : i32, i32
  }
  func.func @transform_2(%arg0: i32) -> (i32, i32) {
    %c0_i32 = arith.constant 0 : i32
    %c0_i32_0 = arith.constant 0 : i32
    %c0_i32_1 = arith.constant 0 : i32
    return %c0_i32, %c0_i32_0 : i32, i32
  }
  func.func @transform_3(%arg0: i32) -> (i32, i32) {
    %c0_i32 = arith.constant 0 : i32
    %c0_i32_0 = arith.constant 0 : i32
    %c0_i32_1 = arith.constant 0 : i32
    return %c0_i32, %c0_i32_0 : i32, i32
  }
  func.func @transform_4(%arg0: i32) -> (i32, i32) {
    %c0_i32 = arith.constant 0 : i32
    %c0_i32_0 = arith.constant 0 : i32
    %c0_i32_1 = arith.constant 0 : i32
    return %c0_i32, %c0_i32_0 : i32, i32
  }
  func.func @transform_5(%arg0: i32) -> (i32, i32) {
    %c0_i32 = arith.constant 0 : i32
    %c0_i32_0 = arith.constant 0 : i32
    %c0_i32_1 = arith.constant 0 : i32
    return %c0_i32, %c0_i32_0 : i32, i32
  }
  func.func @transform_6(%arg0: i32) -> (i32, i32, i32, i32) {
    %c0_i32 = arith.constant 0 : i32
    %c0_i32_0 = arith.constant 0 : i32
    %c0_i32_1 = arith.constant 0 : i32
    %c0_i32_2 = arith.constant 0 : i32
    return %arg0, %c0_i32, %c0_i32_0, %c0_i32_1 : i32, i32, i32, i32
  }
}

</mosaic_0001>

<llo_original>
// kernel: tpu_custom_call.1
$region0: #{tpu_custom_call.1}
  #allocation0 [shape = 'u32[]', space=smem, size = 0x4, offset = 0x4, fixed_abs, tag = 'smem constant byte address 0x4 - core index']
  #allocation1 [shape = 'u32[144,128]{1,0:T(1,128)}', space=vmem, size = 0x12000, scoped, tag = 'internal scratch']
  #allocation2 [shape = 'bf16[2,18,32,4]{3,2,1,0:T(16,128)(2,1)}', space=vmem, size = 0x48000, scoped, tag = 'scratch operand']
  %s0 = inlined_call_operand.vmem [shape: f32[2,16,16,4], index: 0, kind: input, shape index: {}]
  %s1 = inlined_call_operand.vmem [shape: f32[1,4], index: 1, kind: input, shape index: {}]
  %s2 = inlined_call_operand.vmem [shape: f32[1,4], index: 2, kind: input, shape index: {}]
  %s3 = inlined_call_operand.vmem [shape: bf16[36,4], index: 3, kind: input, shape index: {}]
  %s4 = inlined_call_operand.vmem [shape: f32[1,4], index: 4, kind: input, shape index: {}]
  %s5 = inlined_call_operand.vmem [shape: bf16[36,4], index: 5, kind: input, shape index: {}]
  %s6 = inlined_call_operand.vmem [shape: f32[2,16,16,4], index: 6, kind: output, shape index: {}]
  %s7 = sld [smem:[#allocation0]]
  $region34: #{tpu_custom_call.1} parent=0
    _
  %s9 = ssub.s32 1, %s7
  %s10 = scalar_select 0, %s9, %s7
  // Predicated region
  $region2: #{tpu_custom_call.1} parent=0 // pred_check
    _
  $region3: #{tpu_custom_call.1} parent=0 // pred_check_branch
    %12 = sbr.rel (0) target = $region5
  $region4: #{tpu_custom_call.1} parent=0 // pred_region
    _
  $region5: #{tpu_custom_call.1} parent=0 // pred_fallthru
    _
  // Predicated region
  $region6: #{tpu_custom_call.1} parent=0 // pred_check
    _
  $region7: #{tpu_custom_call.1} parent=0 // pred_check_branch
    %14 = sbr.rel (0) target = $region9
  $region8: #{tpu_custom_call.1} parent=0 // pred_region
    _
  $region9: #{tpu_custom_call.1} parent=0 // pred_fallthru
    _
  // Predicated region
  $region10: #{tpu_custom_call.1} parent=0 // pred_check
    _
  $region11: #{tpu_custom_call.1} parent=0 // pred_check_branch
    %16 = sbr.rel (0) target = $region13
  $region12: #{tpu_custom_call.1} parent=0 // pred_region
    _
  $region13: #{tpu_custom_call.1} parent=0 // pred_fallthru
    _
  // Predicated region
  $region14: #{tpu_custom_call.1} parent=0 // pred_check
    _
  $region15: #{tpu_custom_call.1} parent=0 // pred_check_branch
    %18 = sbr.rel (0) target = $region17
  $region16: #{tpu_custom_call.1} parent=0 // pred_region
    _
  $region17: #{tpu_custom_call.1} parent=0 // pred_fallthru
    _
  // Predicated region
  $region18: #{tpu_custom_call.1} parent=0 // pred_check
    _
  $region19: #{tpu_custom_call.1} parent=0 // pred_check_branch
    %20 = sbr.rel (0) target = $region21
  $region20: #{tpu_custom_call.1} parent=0 // pred_region
    _
  $region21: #{tpu_custom_call.1} parent=0 // pred_fallthru
    _
  // Predicated region
  $region22: #{tpu_custom_call.1} parent=0 // pred_check
    _
  $region23: #{tpu_custom_call.1} parent=0 // pred_check_branch
    %22 = sbr.rel (0) target = $region25
  $region24: #{tpu_custom_call.1} parent=0 // pred_region
    _
  $region25: #{tpu_custom_call.1} parent=0 // pred_fallthru
    _
  %v24 = vld [vmem:[%s0] sm:$0xff]
  %v25 = vld [vmem:[%s0 + $0x8] sm:$0xff]
  %v26 = vld [vmem:[%s0 + $0x10] sm:$0xff]
  %v27 = vld [vmem:[%s0 + $0x18] sm:$0xff]
  %v28 = vld [vmem:[%s0 + $0x20] sm:$0xff]
  %v29 = vld [vmem:[%s0 + $0x28] sm:$0xff]
  %v30 = vld [vmem:[%s0 + $0x30] sm:$0xff]
  %v31 = vld [vmem:[%s0 + $0x38] sm:$0xff]
  %v32 = vld [vmem:[%s0 + $0x40] sm:$0xff]
  %v33 = vld [vmem:[%s0 + $0x48] sm:$0xff]
  %v34 = vld [vmem:[%s0 + $0x50] sm:$0xff]
  %v35 = vld [vmem:[%s0 + $0x58] sm:$0xff]
  %v36 = vld [vmem:[%s0 + $0x60] sm:$0xff]
  %v37 = vld [vmem:[%s0 + $0x68] sm:$0xff]
  %v38 = vld [vmem:[%s0 + $0x70] sm:$0xff]
  %v39 = vld [vmem:[%s0 + $0x78] sm:$0xff]
  %v40 = vld [vmem:[%s0 + $0x80] sm:$0xff]
  %v41 = vld [vmem:[%s0 + $0x88] sm:$0xff]
  %v42 = vld [vmem:[%s0 + $0x90] sm:$0xff]
  %v43 = vld [vmem:[%s0 + $0x98] sm:$0xff]
  %v44 = vld [vmem:[%s0 + $0xa0] sm:$0xff]
  %v45 = vld [vmem:[%s0 + $0xa8] sm:$0xff]
  %v46 = vld [vmem:[%s0 + $0xb0] sm:$0xff]
  %v47 = vld [vmem:[%s0 + $0xb8] sm:$0xff]
  %v48 = vld [vmem:[%s0 + $0xc0] sm:$0xff]
  %v49 = vld [vmem:[%s0 + $0xc8] sm:$0xff]
  %v50 = vld [vmem:[%s0 + $0xd0] sm:$0xff]
  %v51 = vld [vmem:[%s0 + $0xd8] sm:$0xff]
  %v52 = vld [vmem:[%s0 + $0xe0] sm:$0xff]
  %v53 = vld [vmem:[%s0 + $0xe8] sm:$0xff]
  %v54 = vld [vmem:[%s0 + $0xf0] sm:$0xff]
  %v55 = vld [vmem:[%s0 + $0xf8] sm:$0xff]
  %v56 = vld [vmem:[%s0 + $0x100] sm:$0xff]
  %v57 = vld [vmem:[%s0 + $0x108] sm:$0xff]
  %v58 = vld [vmem:[%s0 + $0x110] sm:$0xff]
  %v59 = vld [vmem:[%s0 + $0x118] sm:$0xff]
  %v60 = vld [vmem:[%s0 + $0x120] sm:$0xff]
  %v61 = vld [vmem:[%s0 + $0x128] sm:$0xff]
  %v62 = vld [vmem:[%s0 + $0x130] sm:$0xff]
  %v63 = vld [vmem:[%s0 + $0x138] sm:$0xff]
  %v64 = vld [vmem:[%s0 + $0x140] sm:$0xff]
  %v65 = vld [vmem:[%s0 + $0x148] sm:$0xff]
  %v66 = vld [vmem:[%s0 + $0x150] sm:$0xff]
  %v67 = vld [vmem:[%s0 + $0x158] sm:$0xff]
  %v68 = vld [vmem:[%s0 + $0x160] sm:$0xff]
  %v69 = vld [vmem:[%s0 + $0x168] sm:$0xff]
  %v70 = vld [vmem:[%s0 + $0x170] sm:$0xff]
  %v71 = vld [vmem:[%s0 + $0x178] sm:$0xff]
  %v72 = vld [vmem:[%s0 + $0x180] sm:$0xff]
  %v73 = vld [vmem:[%s0 + $0x188] sm:$0xff]
  %v74 = vld [vmem:[%s0 + $0x190] sm:$0xff]
  %v75 = vld [vmem:[%s0 + $0x198] sm:$0xff]
  %v76 = vld [vmem:[%s0 + $0x1a0] sm:$0xff]
  %v77 = vld [vmem:[%s0 + $0x1a8] sm:$0xff]
  %v78 = vld [vmem:[%s0 + $0x1b0] sm:$0xff]
  %v79 = vld [vmem:[%s0 + $0x1b8] sm:$0xff]
  %v80 = vld [vmem:[%s0 + $0x1c0] sm:$0xff]
  %v81 = vld [vmem:[%s0 + $0x1c8] sm:$0xff]
  %v82 = vld [vmem:[%s0 + $0x1d0] sm:$0xff]
  %v83 = vld [vmem:[%s0 + $0x1d8] sm:$0xff]
  %v84 = vld [vmem:[%s0 + $0x1e0] sm:$0xff]
  %v85 = vld [vmem:[%s0 + $0x1e8] sm:$0xff]
  %v86 = vld [vmem:[%s0 + $0x1f0] sm:$0xff]
  %v87 = vld [vmem:[%s0 + $0x1f8] sm:$0xff]
  %v88 = vld [vmem:[%s1] sm:$0x1]
  %v90 = vlaneseq
  %v91 = vshrl.u32 %v90, 7
  %v92 = vsub.s32 0, %v91
  %v93 = vrot.slane %v88, %v92
  %v95 = vmul.f32 %v24, %v93
  %v96 = vmul.f32 %v25, %v93
  %v97 = vmul.f32 %v26, %v93
  %v98 = vmul.f32 %v27, %v93
  %v99 = vmul.f32 %v28, %v93
  %v100 = vmul.f32 %v29, %v93
  %v101 = vmul.f32 %v30, %v93
  %v102 = vmul.f32 %v31, %v93
  %v103 = vmul.f32 %v32, %v93
  %v104 = vmul.f32 %v33, %v93
  %v105 = vmul.f32 %v34, %v93
  %v106 = vmul.f32 %v35, %v93
  %v107 = vmul.f32 %v36, %v93
  %v108 = vmul.f32 %v37, %v93
  %v109 = vmul.f32 %v38, %v93
  %v110 = vmul.f32 %v39, %v93
  %v111 = vmul.f32 %v40, %v93
  %v112 = vmul.f32 %v41, %v93
  %v113 = vmul.f32 %v42, %v93
  %v114 = vmul.f32 %v43, %v93
  %v115 = vmul.f32 %v44, %v93
  %v116 = vmul.f32 %v45, %v93
  %v117 = vmul.f32 %v46, %v93
  %v118 = vmul.f32 %v47, %v93
  %v119 = vmul.f32 %v48, %v93
  %v120 = vmul.f32 %v49, %v93
  %v121 = vmul.f32 %v50, %v93
  %v122 = vmul.f32 %v51, %v93
  %v123 = vmul.f32 %v52, %v93
  %v124 = vmul.f32 %v53, %v93
  %v125 = vmul.f32 %v54, %v93
  %v126 = vmul.f32 %v55, %v93
  %v127 = vmul.f32 %v56, %v93
  %v128 = vmul.f32 %v57, %v93
  %v129 = vmul.f32 %v58, %v93
  %v130 = vmul.f32 %v59, %v93
  %v131 = vmul.f32 %v60, %v93
  %v132 = vmul.f32 %v61, %v93
  %v133 = vmul.f32 %v62, %v93
  %v134 = vmul.f32 %v63, %v93
  %v135 = vmul.f32 %v64, %v93
  %v136 = vmul.f32 %v65, %v93
  %v137 = vmul.f32 %v66, %v93
  %v138 = vmul.f32 %v67, %v93
  %v139 = vmul.f32 %v68, %v93
  %v140 = vmul.f32 %v69, %v93
  %v141 = vmul.f32 %v70, %v93
  %v142 = vmul.f32 %v71, %v93
  %v143 = vmul.f32 %v72, %v93
  %v144 = vmul.f32 %v73, %v93
  %v145 = vmul.f32 %v74, %v93
  %v146 = vmul.f32 %v75, %v93
  %v147 = vmul.f32 %v76, %v93
  %v148 = vmul.f32 %v77, %v93
  %v149 = vmul.f32 %v78, %v93
  %v150 = vmul.f32 %v79, %v93
  %v151 = vmul.f32 %v80, %v93
  %v152 = vmul.f32 %v81, %v93
  %v153 = vmul.f32 %v82, %v93
  %v154 = vmul.f32 %v83, %v93
  %v155 = vmul.f32 %v84, %v93
  %v156 = vmul.f32 %v85, %v93
  %v157 = vmul.f32 %v86, %v93
  %v158 = vmul.f32 %v87, %v93
  %v159 = vld [vmem:[%s2] sm:$0x1]
  %v161 = vlaneseq
  %v162 = vshrl.u32 %v161, 7
  %v163 = vsub.s32 0, %v162
  %v164 = vrot.slane %v159, %v163
  %v166 = vadd.f32 %v95, %v164
  %v167 = vadd.f32 %v96, %v164
  %v168 = vadd.f32 %v97, %v164
  %v169 = vadd.f32 %v98, %v164
  %v170 = vadd.f32 %v99, %v164
  %v171 = vadd.f32 %v100, %v164
  %v172 = vadd.f32 %v101, %v164
  %v173 = vadd.f32 %v102, %v164
  %v174 = vadd.f32 %v103, %v164
  %v175 = vadd.f32 %v104, %v164
  %v176 = vadd.f32 %v105, %v164
  %v177 = vadd.f32 %v106, %v164
  %v178 = vadd.f32 %v107, %v164
  %v179 = vadd.f32 %v108, %v164
  %v180 = vadd.f32 %v109, %v164
  %v181 = vadd.f32 %v110, %v164
  %v182 = vadd.f32 %v111, %v164
  %v183 = vadd.f32 %v112, %v164
  %v184 = vadd.f32 %v113, %v164
  %v185 = vadd.f32 %v114, %v164
  %v186 = vadd.f32 %v115, %v164
  %v187 = vadd.f32 %v116, %v164
  %v188 = vadd.f32 %v117, %v164
  %v189 = vadd.f32 %v118, %v164
  %v190 = vadd.f32 %v119, %v164
  %v191 = vadd.f32 %v120, %v164
  %v192 = vadd.f32 %v121, %v164
  %v193 = vadd.f32 %v122, %v164
  %v194 = vadd.f32 %v123, %v164
  %v195 = vadd.f32 %v124, %v164
  %v196 = vadd.f32 %v125, %v164
  %v197 = vadd.f32 %v126, %v164
  %v198 = vadd.f32 %v127, %v164
  %v199 = vadd.f32 %v128, %v164
  %v200 = vadd.f32 %v129, %v164
  %v201 = vadd.f32 %v130, %v164
  %v202 = vadd.f32 %v131, %v164
  %v203 = vadd.f32 %v132, %v164
  %v204 = vadd.f32 %v133, %v164
  %v205 = vadd.f32 %v134, %v164
  %v206 = vadd.f32 %v135, %v164
  %v207 = vadd.f32 %v136, %v164
  %v208 = vadd.f32 %v137, %v164
  %v209 = vadd.f32 %v138, %v164
  %v210 = vadd.f32 %v139, %v164
  %v211 = vadd.f32 %v140, %v164
  %v212 = vadd.f32 %v141, %v164
  %v213 = vadd.f32 %v142, %v164
  %v214 = vadd.f32 %v143, %v164
  %v215 = vadd.f32 %v144, %v164
  %v216 = vadd.f32 %v145, %v164
  %v217 = vadd.f32 %v146, %v164
  %v218 = vadd.f32 %v147, %v164
  %v219 = vadd.f32 %v148, %v164
  %v220 = vadd.f32 %v149, %v164
  %v221 = vadd.f32 %v150, %v164
  %v222 = vadd.f32 %v151, %v164
  %v223 = vadd.f32 %v152, %v164
  %v224 = vadd.f32 %v153, %v164
  %v225 = vadd.f32 %v154, %v164
  %v226 = vadd.f32 %v155, %v164
  %v227 = vadd.f32 %v156, %v164
  %v228 = vadd.f32 %v157, %v164
  %v229 = vadd.f32 %v158, %v164
  %v230 = vmax.f32 %v166, 0.0
  %v231 = vmax.f32 %v167, 0.0
  %v232 = vmax.f32 %v168, 0.0
  %v233 = vmax.f32 %v169, 0.0
  %v234 = vmax.f32 %v170, 0.0
  %v235 = vmax.f32 %v171, 0.0
  %v236 = vmax.f32 %v172, 0.0
  %v237 = vmax.f32 %v173, 0.0
  %v238 = vmax.f32 %v174, 0.0
  %v239 = vmax.f32 %v175, 0.0
  %v240 = vmax.f32 %v176, 0.0
  %v241 = vmax.f32 %v177, 0.0
  %v242 = vmax.f32 %v178, 0.0
  %v243 = vmax.f32 %v179, 0.0
  %v244 = vmax.f32 %v180, 0.0
  %v245 = vmax.f32 %v181, 0.0
  %v246 = vmax.f32 %v182, 0.0
  %v247 = vmax.f32 %v183, 0.0
  %v248 = vmax.f32 %v184, 0.0
  %v249 = vmax.f32 %v185, 0.0
  %v250 = vmax.f32 %v186, 0.0
  %v251 = vmax.f32 %v187, 0.0
  %v252 = vmax.f32 %v188, 0.0
  %v253 = vmax.f32 %v189, 0.0
  %v254 = vmax.f32 %v190, 0.0
  %v255 = vmax.f32 %v191, 0.0
  %v256 = vmax.f32 %v192, 0.0
  %v257 = vmax.f32 %v193, 0.0
  %v258 = vmax.f32 %v194, 0.0
  %v259 = vmax.f32 %v195, 0.0
  %v260 = vmax.f32 %v196, 0.0
  %v261 = vmax.f32 %v197, 0.0
  %v262 = vmax.f32 %v198, 0.0
  %v263 = vmax.f32 %v199, 0.0
  %v264 = vmax.f32 %v200, 0.0
  %v265 = vmax.f32 %v201, 0.0
  %v266 = vmax.f32 %v202, 0.0
  %v267 = vmax.f32 %v203, 0.0
  %v268 = vmax.f32 %v204, 0.0
  %v269 = vmax.f32 %v205, 0.0
  %v270 = vmax.f32 %v206, 0.0
  %v271 = vmax.f32 %v207, 0.0
  %v272 = vmax.f32 %v208, 0.0
  %v273 = vmax.f32 %v209, 0.0
  %v274 = vmax.f32 %v210, 0.0
  %v275 = vmax.f32 %v211, 0.0
  %v276 = vmax.f32 %v212, 0.0
  %v277 = vmax.f32 %v213, 0.0
  %v278 = vmax.f32 %v214, 0.0
  %v279 = vmax.f32 %v215, 0.0
  %v280 = vmax.f32 %v216, 0.0
  %v281 = vmax.f32 %v217, 0.0
  %v282 = vmax.f32 %v218, 0.0
  %v283 = vmax.f32 %v219, 0.0
  %v284 = vmax.f32 %v220, 0.0
  %v285 = vmax.f32 %v221, 0.0
  %v286 = vmax.f32 %v222, 0.0
  %v287 = vmax.f32 %v223, 0.0
  %v288 = vmax.f32 %v224, 0.0
  %v289 = vmax.f32 %v225, 0.0
  %v290 = vmax.f32 %v226, 0.0
  %v291 = vmax.f32 %v227, 0.0
  %v292 = vmax.f32 %v228, 0.0
  %v293 = vmax.f32 %v229, 0.0
  %v294 = vpack.c.bf16 %v231, %v230
  %v295 = vpack.c.bf16 %v233, %v232
  %v296 = vpack.c.bf16 %v235, %v234
  %v297 = vpack.c.bf16 %v237, %v236
  %v298 = vpack.c.bf16 %v239, %v238
  %v299 = vpack.c.bf16 %v241, %v240
  %v300 = vpack.c.bf16 %v243, %v242
  %v301 = vpack.c.bf16 %v245, %v244
  %v302 = vpack.c.bf16 %v247, %v246
  %v303 = vpack.c.bf16 %v249, %v248
  %v304 = vpack.c.bf16 %v251, %v250
  %v305 = vpack.c.bf16 %v253, %v252
  %v306 = vpack.c.bf16 %v255, %v254
  %v307 = vpack.c.bf16 %v257, %v256
  %v308 = vpack.c.bf16 %v259, %v258
  %v309 = vpack.c.bf16 %v261, %v260
  %v310 = vpack.c.bf16 %v263, %v262
  %v311 = vpack.c.bf16 %v265, %v264
  %v312 = vpack.c.bf16 %v267, %v266
  %v313 = vpack.c.bf16 %v269, %v268
  %v314 = vpack.c.bf16 %v271, %v270
  %v315 = vpack.c.bf16 %v273, %v272
  %v316 = vpack.c.bf16 %v275, %v274
  %v317 = vpack.c.bf16 %v277, %v276
  %v318 = vpack.c.bf16 %v279, %v278
  %v319 = vpack.c.bf16 %v281, %v280
  %v320 = vpack.c.bf16 %v283, %v282
  %v321 = vpack.c.bf16 %v285, %v284
  %v322 = vpack.c.bf16 %v287, %v286
  %v323 = vpack.c.bf16 %v289, %v288
  %v324 = vpack.c.bf16 %v291, %v290
  %v325 = vpack.c.bf16 %v293, %v292
  %v327 = vshrl.u32 %v294, 16
  %v329 = vrot.slane %v327, 7
  %v330 = vshll.u32 %v294, 16
  %v332 = vor.u32 %v329, %v330
  %v334 = vshrl.u32 %v295, 16
  %v336 = vrot.slane %v334, 7
  %v337 = vshll.u32 %v295, 16
  %v339 = vor.u32 %v336, %v337
  %v341 = vshrl.u32 %v296, 16
  %v343 = vrot.slane %v341, 7
  %v344 = vshll.u32 %v296, 16
  %v346 = vor.u32 %v343, %v344
  %v348 = vshrl.u32 %v297, 16
  %v350 = vrot.slane %v348, 7
  %v351 = vshll.u32 %v297, 16
  %v353 = vor.u32 %v350, %v351
  %v355 = vshrl.u32 %v298, 16
  %v357 = vrot.slane %v355, 7
  %v358 = vshll.u32 %v298, 16
  %v360 = vor.u32 %v357, %v358
  %v362 = vshrl.u32 %v299, 16
  %v364 = vrot.slane %v362, 7
  %v365 = vshll.u32 %v299, 16
  %v367 = vor.u32 %v364, %v365
  %v369 = vshrl.u32 %v300, 16
  %v371 = vrot.slane %v369, 7
  %v372 = vshll.u32 %v300, 16
  %v374 = vor.u32 %v371, %v372
  %v376 = vshrl.u32 %v301, 16
  %v378 = vrot.slane %v376, 7
  %v379 = vshll.u32 %v301, 16
  %v381 = vor.u32 %v378, %v379
  %v383 = vshrl.u32 %v302, 16
  %v385 = vrot.slane %v383, 7
  %v386 = vshll.u32 %v302, 16
  %v388 = vor.u32 %v385, %v386
  %v390 = vshrl.u32 %v303, 16
  %v392 = vrot.slane %v390, 7
  %v393 = vshll.u32 %v303, 16
  %v395 = vor.u32 %v392, %v393
  %v397 = vshrl.u32 %v304, 16
  %v399 = vrot.slane %v397, 7
  %v400 = vshll.u32 %v304, 16
  %v402 = vor.u32 %v399, %v400
  %v404 = vshrl.u32 %v305, 16
  %v406 = vrot.slane %v404, 7
  %v407 = vshll.u32 %v305, 16
  %v409 = vor.u32 %v406, %v407
  %v411 = vshrl.u32 %v306, 16
  %v413 = vrot.slane %v411, 7
  %v414 = vshll.u32 %v306, 16
  %v416 = vor.u32 %v413, %v414
  %v418 = vshrl.u32 %v307, 16
  %v420 = vrot.slane %v418, 7
  %v421 = vshll.u32 %v307, 16
  %v423 = vor.u32 %v420, %v421
  %v425 = vshrl.u32 %v308, 16
  %v427 = vrot.slane %v425, 7
  %v428 = vshll.u32 %v308, 16
  %v430 = vor.u32 %v427, %v428
  %v432 = vshrl.u32 %v309, 16
  %v434 = vrot.slane %v432, 7
  %v435 = vshll.u32 %v309, 16
  %v437 = vor.u32 %v434, %v435
  %v439 = vshrl.u32 %v310, 16
  %v441 = vrot.slane %v439, 7
  %v442 = vshll.u32 %v310, 16
  %v444 = vor.u32 %v441, %v442
  %v446 = vshrl.u32 %v311, 16
  %v448 = vrot.slane %v446, 7
  %v449 = vshll.u32 %v311, 16
  %v451 = vor.u32 %v448, %v449
  %v453 = vshrl.u32 %v312, 16
  %v455 = vrot.slane %v453, 7
  %v456 = vshll.u32 %v312, 16
  %v458 = vor.u32 %v455, %v456
  %v460 = vshrl.u32 %v313, 16
  %v462 = vrot.slane %v460, 7
  %v463 = vshll.u32 %v313, 16
  %v465 = vor.u32 %v462, %v463
  %v467 = vshrl.u32 %v314, 16
  %v469 = vrot.slane %v467, 7
  %v470 = vshll.u32 %v314, 16
  %v472 = vor.u32 %v469, %v470
  %v474 = vshrl.u32 %v315, 16
  %v476 = vrot.slane %v474, 7
  %v477 = vshll.u32 %v315, 16
  %v479 = vor.u32 %v476, %v477
  %v481 = vshrl.u32 %v316, 16
  %v483 = vrot.slane %v481, 7
  %v484 = vshll.u32 %v316, 16
  %v486 = vor.u32 %v483, %v484
  %v488 = vshrl.u32 %v317, 16
  %v490 = vrot.slane %v488, 7
  %v491 = vshll.u32 %v317, 16
  %v493 = vor.u32 %v490, %v491
  %v495 = vshrl.u32 %v318, 16
  %v497 = vrot.slane %v495, 7
  %v498 = vshll.u32 %v318, 16
  %v500 = vor.u32 %v497, %v498
  %v502 = vshrl.u32 %v319, 16
  %v504 = vrot.slane %v502, 7
  %v505 = vshll.u32 %v319, 16
  %v507 = vor.u32 %v504, %v505
  %v509 = vshrl.u32 %v320, 16
  %v511 = vrot.slane %v509, 7
  %v512 = vshll.u32 %v320, 16
  %v514 = vor.u32 %v511, %v512
  %v516 = vshrl.u32 %v321, 16
  %v518 = vrot.slane %v516, 7
  %v519 = vshll.u32 %v321, 16
  %v521 = vor.u32 %v518, %v519
  %v523 = vshrl.u32 %v322, 16
  %v525 = vrot.slane %v523, 7
  %v526 = vshll.u32 %v322, 16
  %v528 = vor.u32 %v525, %v526
  %v530 = vshrl.u32 %v323, 16
  %v532 = vrot.slane %v530, 7
  %v533 = vshll.u32 %v323, 16
  %v535 = vor.u32 %v532, %v533
  %v537 = vshrl.u32 %v324, 16
  %v539 = vrot.slane %v537, 7
  %v540 = vshll.u32 %v324, 16
  %v542 = vor.u32 %v539, %v540
  %v544 = vshrl.u32 %v325, 16
  %v546 = vrot.slane %v544, 7
  %v547 = vshll.u32 %v325, 16
  %v549 = vor.u32 %v546, %v547
  %vm614 = vcmask 1040384
  %vm615 = vsmask.f32 256
  %vm616 = vmand %vm614, %vm615
  %v617 = vsel %vm616, 0, %v332
  %v618 = vsel %vm616, 0, %v339
  %v619 = vsel %vm616, 0, %v346
  %v620 = vsel %vm616, 0, %v353
  %v621 = vsel %vm616, 0, %v360
  %v622 = vsel %vm616, 0, %v367
  %v623 = vsel %vm616, 0, %v374
  %v624 = vsel %vm616, 0, %v381
  %v625 = vsel %vm616, 0, %v388
  %v626 = vsel %vm616, 0, %v395
  %v627 = vsel %vm616, 0, %v402
  %v628 = vsel %vm616, 0, %v409
  %v629 = vsel %vm616, 0, %v416
  %v630 = vsel %vm616, 0, %v423
  %v631 = vsel %vm616, 0, %v430
  %v632 = vsel %vm616, 0, %v437
  %v633 = vsel %vm616, 0, %v444
  %v634 = vsel %vm616, 0, %v451
  %v635 = vsel %vm616, 0, %v458
  %v636 = vsel %vm616, 0, %v465
  %v637 = vsel %vm616, 0, %v472
  %v638 = vsel %vm616, 0, %v479
  %v639 = vsel %vm616, 0, %v486
  %v640 = vsel %vm616, 0, %v493
  %v641 = vsel %vm616, 0, %v500
  %v642 = vsel %vm616, 0, %v507
  %v643 = vsel %vm616, 0, %v514
  %v644 = vsel %vm616, 0, %v521
  %v645 = vsel %vm616, 0, %v528
  %v646 = vsel %vm616, 0, %v535
  %v647 = vsel %vm616, 0, %v542
  %v648 = vsel %vm616, 0, %v549
  %v649 = vsel %vm616, %v329, 0
  %v650 = vsel %vm616, %v336, 0
  %v651 = vsel %vm616, %v343, 0
  %v652 = vsel %vm616, %v350, 0
  %v653 = vsel %vm616, %v357, 0
  %v654 = vsel %vm616, %v364, 0
  %v655 = vsel %vm616, %v371, 0
  %v656 = vsel %vm616, %v378, 0
  %v657 = vsel %vm616, %v385, 0
  %v658 = vsel %vm616, %v392, 0
  %v659 = vsel %vm616, %v399, 0
  %v660 = vsel %vm616, %v406, 0
  %v661 = vsel %vm616, %v413, 0
  %v662 = vsel %vm616, %v420, 0
  %v663 = vsel %vm616, %v427, 0
  %v664 = vsel %vm616, %v434, 0
  %v665 = vsel %vm616, %v441, 0
  %v666 = vsel %vm616, %v448, 0
  %v667 = vsel %vm616, %v455, 0
  %v668 = vsel %vm616, %v462, 0
  %v669 = vsel %vm616, %v469, 0
  %v670 = vsel %vm616, %v476, 0
  %v671 = vsel %vm616, %v483, 0
  %v672 = vsel %vm616, %v490, 0
  %v673 = vsel %vm616, %v497, 0
  %v674 = vsel %vm616, %v504, 0
  %v675 = vsel %vm616, %v511, 0
  %v676 = vsel %vm616, %v518, 0
  %v677 = vsel %vm616, %v525, 0
  %v678 = vsel %vm616, %v532, 0
  %v679 = vsel %vm616, %v539, 0
  %v680 = vsel %vm616, %v546, 0
  %vm681 = vcmask 31744
  %682 = vst.msk [vmem:[#allocation2] sm:$0xff] %vm681, 0
  %683 = vst.msk [vmem:[#allocation2 + $0x8] sm:$0xff] %vm681, 0
  %684 = vst.msk [vmem:[#allocation2 + $0x10] sm:$0xff] %vm681, %v617
  %685 = vst.msk [vmem:[#allocation2 + $0x18] sm:$0xff] %vm681, %v649
  %686 = vst.msk [vmem:[#allocation2 + $0x20] sm:$0xff] %vm681, %v618
  %687 = vst.msk [vmem:[#allocation2 + $0x28] sm:$0xff] %vm681, %v650
  %688 = vst.msk [vmem:[#allocation2 + $0x30] sm:$0xff] %vm681, %v619
  %689 = vst.msk [vmem:[#allocation2 + $0x38] sm:$0xff] %vm681, %v651
  %690 = vst.msk [vmem:[#allocation2 + $0x40] sm:$0xff] %vm681, %v620
  %691 = vst.msk [vmem:[#allocation2 + $0x48] sm:$0xff] %vm681, %v652
  %692 = vst.msk [vmem:[#allocation2 + $0x50] sm:$0xff] %vm681, %v621
  %693 = vst.msk [vmem:[#allocation2 + $0x58] sm:$0xff] %vm681, %v653
  %694 = vst.msk [vmem:[#allocation2 + $0x60] sm:$0xff] %vm681, %v622
  %695 = vst.msk [vmem:[#allocation2 + $0x68] sm:$0xff] %vm681, %v654
  %696 = vst.msk [vmem:[#allocation2 + $0x70] sm:$0xff] %vm681, %v623
  %697 = vst.msk [vmem:[#allocation2 + $0x78] sm:$0xff] %vm681, %v655
  %698 = vst.msk [vmem:[#allocation2 + $0x80] sm:$0xff] %vm681, %v624
  %699 = vst.msk [vmem:[#allocation2 + $0x88] sm:$0xff] %vm681, %v656
  %700 = vst.msk [vmem:[#allocation2 + $0x90] sm:$0xff] %vm681, %v625
  %701 = vst.msk [vmem:[#allocation2 + $0x98] sm:$0xff] %vm681, %v657
  %702 = vst.msk [vmem:[#allocation2 + $0xa0] sm:$0xff] %vm681, %v626
  %703 = vst.msk [vmem:[#allocation2 + $0xa8] sm:$0xff] %vm681, %v658
  %704 = vst.msk [vmem:[#allocation2 + $0xb0] sm:$0xff] %vm681, %v627
  %705 = vst.msk [vmem:[#allocation2 + $0xb8] sm:$0xff] %vm681, %v659
  %706 = vst.msk [vmem:[#allocation2 + $0xc0] sm:$0xff] %vm681, %v628
  %707 = vst.msk [vmem:[#allocation2 + $0xc8] sm:$0xff] %vm681, %v660
  %708 = vst.msk [vmem:[#allocation2 + $0xd0] sm:$0xff] %vm681, %v629
  %709 = vst.msk [vmem:[#allocation2 + $0xd8] sm:$0xff] %vm681, %v661
  %710 = vst.msk [vmem:[#allocation2 + $0xe0] sm:$0xff] %vm681, %v630
  %711 = vst.msk [vmem:[#allocation2 + $0xe8] sm:$0xff] %vm681, %v662
  %712 = vst.msk [vmem:[#allocation2 + $0xf0] sm:$0xff] %vm681, %v631
  %713 = vst.msk [vmem:[#allocation2 + $0xf8] sm:$0xff] %vm681, %v663
  %714 = vst.msk [vmem:[#allocation2 + $0x100] sm:$0xff] %vm681, %v632
  %715 = vst.msk [vmem:[#allocation2 + $0x108] sm:$0xff] %vm681, %v664
  %716 = vst.msk [vmem:[#allocation2 + $0x110] sm:$0xff] %vm681, 0
  %717 = vst.msk [vmem:[#allocation2 + $0x118] sm:$0xff] %vm681, 0
  %718 = vst.msk [vmem:[#allocation2 + $0x120] sm:$0xff] %vm681, 0
  %719 = vst.msk [vmem:[#allocation2 + $0x128] sm:$0xff] %vm681, 0
  %720 = vst.msk [vmem:[#allocation2 + $0x130] sm:$0xff] %vm681, %v633
  %721 = vst.msk [vmem:[#allocation2 + $0x138] sm:$0xff] %vm681, %v665
  %722 = vst.msk [vmem:[#allocation2 + $0x140] sm:$0xff] %vm681, %v634
  %723 = vst.msk [vmem:[#allocation2 + $0x148] sm:$0xff] %vm681, %v666
  %724 = vst.msk [vmem:[#allocation2 + $0x150] sm:$0xff] %vm681, %v635
  %725 = vst.msk [vmem:[#allocation2 + $0x158] sm:$0xff] %vm681, %v667
  %726 = vst.msk [vmem:[#allocation2 + $0x160] sm:$0xff] %vm681, %v636
  %727 = vst.msk [vmem:[#allocation2 + $0x168] sm:$0xff] %vm681, %v668
  %728 = vst.msk [vmem:[#allocation2 + $0x170] sm:$0xff] %vm681, %v637
  %729 = vst.msk [vmem:[#allocation2 + $0x178] sm:$0xff] %vm681, %v669
  %730 = vst.msk [vmem:[#allocation2 + $0x180] sm:$0xff] %vm681, %v638
  %731 = vst.msk [vmem:[#allocation2 + $0x188] sm:$0xff] %vm681, %v670
  %732 = vst.msk [vmem:[#allocation2 + $0x190] sm:$0xff] %vm681, %v639
  %733 = vst.msk [vmem:[#allocation2 + $0x198] sm:$0xff] %vm681, %v671
  %734 = vst.msk [vmem:[#allocation2 + $0x1a0] sm:$0xff] %vm681, %v640
  %735 = vst.msk [vmem:[#allocation2 + $0x1a8] sm:$0xff] %vm681, %v672
  %736 = vst.msk [vmem:[#allocation2 + $0x1b0] sm:$0xff] %vm681, %v641
  %737 = vst.msk [vmem:[#allocation2 + $0x1b8] sm:$0xff] %vm681, %v673
  %738 = vst.msk [vmem:[#allocation2 + $0x1c0] sm:$0xff] %vm681, %v642
  %739 = vst.msk [vmem:[#allocation2 + $0x1c8] sm:$0xff] %vm681, %v674
  %740 = vst.msk [vmem:[#allocation2 + $0x1d0] sm:$0xff] %vm681, %v643
  %741 = vst.msk [vmem:[#allocation2 + $0x1d8] sm:$0xff] %vm681, %v675
  %742 = vst.msk [vmem:[#allocation2 + $0x1e0] sm:$0xff] %vm681, %v644
  %743 = vst.msk [vmem:[#allocation2 + $0x1e8] sm:$0xff] %vm681, %v676
  %744 = vst.msk [vmem:[#allocation2 + $0x1f0] sm:$0xff] %vm681, %v645
  %745 = vst.msk [vmem:[#allocation2 + $0x1f8] sm:$0xff] %vm681, %v677
  %746 = vst.msk [vmem:[#allocation2 + $0x200] sm:$0xff] %vm681, %v646
  %747 = vst.msk [vmem:[#allocation2 + $0x208] sm:$0xff] %vm681, %v678
  %748 = vst.msk [vmem:[#allocation2 + $0x210] sm:$0xff] %vm681, %v647
  %749 = vst.msk [vmem:[#allocation2 + $0x218] sm:$0xff] %vm681, %v679
  %750 = vst.msk [vmem:[#allocation2 + $0x220] sm:$0xff] %vm681, %v648
  %751 = vst.msk [vmem:[#allocation2 + $0x228] sm:$0xff] %vm681, %v680
  %752 = vst.msk [vmem:[#allocation2 + $0x230] sm:$0xff] %vm681, 0
  %753 = vst.msk [vmem:[#allocation2 + $0x238] sm:$0xff] %vm681, 0
  %v754 = vld [vmem:[#allocation2] sm:$0xff]
  %v755 = vld [vmem:[#allocation2 + $0x10] sm:$0xff]
  %v756 = vld [vmem:[#allocation2 + $0x20] sm:$0xff]
  %v757 = vld [vmem:[#allocation2 + $0x30] sm:$0xff]
  %v758 = vld [vmem:[#allocation2 + $0x40] sm:$0xff]
  %v759 = vld [vmem:[#allocation2 + $0x50] sm:$0xff]
  %v760 = vld [vmem:[#allocation2 + $0x60] sm:$0xff]
  %v761 = vld [vmem:[#allocation2 + $0x70] sm:$0xff]
  %v762 = vld [vmem:[#allocation2 + $0x80] sm:$0xff]
  %v763 = vld [vmem:[#allocation2 + $0x90] sm:$0xff]
  %v764 = vld [vmem:[#allocation2 + $0xa0] sm:$0xff]
  %v765 = vld [vmem:[#allocation2 + $0xb0] sm:$0xff]
  %v766 = vld [vmem:[#allocation2 + $0xc0] sm:$0xff]
  %v767 = vld [vmem:[#allocation2 + $0xd0] sm:$0xff]
  %v768 = vld [vmem:[#allocation2 + $0xe0] sm:$0xff]
  %v769 = vld [vmem:[#allocation2 + $0xf0] sm:$0xff]
  %v770 = vld [vmem:[#allocation2 + $0x120] sm:$0xff]
  %v771 = vld [vmem:[#allocation2 + $0x130] sm:$0xff]
  %v772 = vld [vmem:[#allocation2 + $0x140] sm:$0xff]
  %v773 = vld [vmem:[#allocation2 + $0x150] sm:$0xff]
  %v774 = vld [vmem:[#allocation2 + $0x160] sm:$0xff]
  %v775 = vld [vmem:[#allocation2 + $0x170] sm:$0xff]
  %v776 = vld [vmem:[#allocation2 + $0x180] sm:$0xff]
  %v777 = vld [vmem:[#allocation2 + $0x190] sm:$0xff]
  %v778 = vld [vmem:[#allocation2 + $0x1a0] sm:$0xff]
  %v779 = vld [vmem:[#allocation2 + $0x1b0] sm:$0xff]
  %v780 = vld [vmem:[#allocation2 + $0x1c0] sm:$0xff]
  %v781 = vld [vmem:[#allocation2 + $0x1d0] sm:$0xff]
  %v782 = vld [vmem:[#allocation2 + $0x1e0] sm:$0xff]
  %v783 = vld [vmem:[#allocation2 + $0x1f0] sm:$0xff]
  %v784 = vld [vmem:[#allocation2 + $0x200] sm:$0xff]
  %v785 = vld [vmem:[#allocation2 + $0x210] sm:$0xff]
  %v786 = vld [vmem:[#allocation2 + $0x8] sm:$0x1]
  %v787 = vld [vmem:[#allocation2 + $0x18] sm:$0x1]
  %v788 = vld [vmem:[#allocation2 + $0x28] sm:$0x1]
  %v789 = vld [vmem:[#allocation2 + $0x38] sm:$0x1]
  %v790 = vld [vmem:[#allocation2 + $0x48] sm:$0x1]
  %v791 = vld [vmem:[#allocation2 + $0x58] sm:$0x1]
  %v792 = vld [vmem:[#allocation2 + $0x68] sm:$0x1]
  %v793 = vld [vmem:[#allocation2 + $0x78] sm:$0x1]
  %v794 = vld [vmem:[#allocation2 + $0x88] sm:$0x1]
  %v795 = vld [vmem:[#allocation2 + $0x98] sm:$0x1]
  %v796 = vld [vmem:[#allocation2 + $0xa8] sm:$0x1]
  %v797 = vld [vmem:[#allocation2 + $0xb8] sm:$0x1]
  %v798 = vld [vmem:[#allocation2 + $0xc8] sm:$0x1]
  %v799 = vld [vmem:[#allocation2 + $0xd8] sm:$0x1]
  %v800 = vld [vmem:[#allocation2 + $0xe8] sm:$0x1]
  %v801 = vld [vmem:[#allocation2 + $0xf8] sm:$0x1]
  %v802 = vld [vmem:[#allocation2 + $0x128] sm:$0x1]
  %v803 = vld [vmem:[#allocation2 + $0x138] sm:$0x1]
  %v804 = vld [vmem:[#allocation2 + $0x148] sm:$0x1]
  %v805 = vld [vmem:[#allocation2 + $0x158] sm:$0x1]
  %v806 = vld [vmem:[#allocation2 + $0x168] sm:$0x1]
  %v807 = vld [vmem:[#allocation2 + $0x178] sm:$0x1]
  %v808 = vld [vmem:[#allocation2 + $0x188] sm:$0x1]
  %v809 = vld [vmem:[#allocation2 + $0x198] sm:$0x1]
  %v810 = vld [vmem:[#allocation2 + $0x1a8] sm:$0x1]
  %v811 = vld [vmem:[#allocation2 + $0x1b8] sm:$0x1]
  %v812 = vld [vmem:[#allocation2 + $0x1c8] sm:$0x1]
  %v813 = vld [vmem:[#allocation2 + $0x1d8] sm:$0x1]
  %v814 = vld [vmem:[#allocation2 + $0x1e8] sm:$0x1]
  %v815 = vld [vmem:[#allocation2 + $0x1f8] sm:$0x1]
  %v816 = vld [vmem:[#allocation2 + $0x208] sm:$0x1]
  %v817 = vld [vmem:[#allocation2 + $0x218] sm:$0x1]
  %v818 = vld [vmem:[#allocation2] sm:$0xfe]
  %v819 = vld [vmem:[#allocation2 + $0x10] sm:$0xfe]
  %v820 = vld [vmem:[#allocation2 + $0x20] sm:$0xfe]
  %v821 = vld [vmem:[#allocation2 + $0x30] sm:$0xfe]
  %v822 = vld [vmem:[#allocation2 + $0x40] sm:$0xfe]
  %v823 = vld [vmem:[#allocation2 + $0x50] sm:$0xfe]
  %v824 = vld [vmem:[#allocation2 + $0x60] sm:$0xfe]
  %v825 = vld [vmem:[#allocation2 + $0x70] sm:$0xfe]
  %v826 = vld [vmem:[#allocation2 + $0x80] sm:$0xfe]
  %v827 = vld [vmem:[#allocation2 + $0x90] sm:$0xfe]
  %v828 = vld [vmem:[#allocation2 + $0xa0] sm:$0xfe]
  %v829 = vld [vmem:[#allocation2 + $0xb0] sm:$0xfe]
  %v830 = vld [vmem:[#allocation2 + $0xc0] sm:$0xfe]
  %v831 = vld [vmem:[#allocation2 + $0xd0] sm:$0xfe]
  %v832 = vld [vmem:[#allocation2 + $0xe0] sm:$0xfe]
  %v833 = vld [vmem:[#allocation2 + $0xf0] sm:$0xfe]
  %v834 = vld [vmem:[#allocation2 + $0x120] sm:$0xfe]
  %v835 = vld [vmem:[#allocation2 + $0x130] sm:$0xfe]
  %v836 = vld [vmem:[#allocation2 + $0x140] sm:$0xfe]
  %v837 = vld [vmem:[#allocation2 + $0x150] sm:$0xfe]
  %v838 = vld [vmem:[#allocation2 + $0x160] sm:$0xfe]
  %v839 = vld [vmem:[#allocation2 + $0x170] sm:$0xfe]
  %v840 = vld [vmem:[#allocation2 + $0x180] sm:$0xfe]
  %v841 = vld [vmem:[#allocation2 + $0x190] sm:$0xfe]
  %v842 = vld [vmem:[#allocation2 + $0x1a0] sm:$0xfe]
  %v843 = vld [vmem:[#allocation2 + $0x1b0] sm:$0xfe]
  %v844 = vld [vmem:[#allocation2 + $0x1c0] sm:$0xfe]
  %v845 = vld [vmem:[#allocation2 + $0x1d0] sm:$0xfe]
  %v846 = vld [vmem:[#allocation2 + $0x1e0] sm:$0xfe]
  %v847 = vld [vmem:[#allocation2 + $0x1f0] sm:$0xfe]
  %v848 = vld [vmem:[#allocation2 + $0x200] sm:$0xfe]
  %v849 = vld [vmem:[#allocation2 + $0x210] sm:$0xfe]
  %s850 = scalar_lea.vmem [#allocation2], 16
  %v851 = vld [vmem:[%s850] sm:$0xff]
  %v852 = vld [vmem:[%s850 + $0x10] sm:$0xff]
  %v853 = vld [vmem:[%s850 + $0x20] sm:$0xff]
  %v854 = vld [vmem:[%s850 + $0x30] sm:$0xff]
  %v855 = vld [vmem:[%s850 + $0x40] sm:$0xff]
  %v856 = vld [vmem:[%s850 + $0x50] sm:$0xff]
  %v857 = vld [vmem:[%s850 + $0x60] sm:$0xff]
  %v858 = vld [vmem:[%s850 + $0x70] sm:$0xff]
  %v859 = vld [vmem:[%s850 + $0x80] sm:$0xff]
  %v860 = vld [vmem:[%s850 + $0x90] sm:$0xff]
  %v861 = vld [vmem:[%s850 + $0xa0] sm:$0xff]
  %v862 = vld [vmem:[%s850 + $0xb0] sm:$0xff]
  %v863 = vld [vmem:[%s850 + $0xc0] sm:$0xff]
  %v864 = vld [vmem:[%s850 + $0xd0] sm:$0xff]
  %v865 = vld [vmem:[%s850 + $0xe0] sm:$0xff]
  %v866 = vld [vmem:[%s850 + $0xf0] sm:$0xff]
  %v867 = vld [vmem:[%s850 + $0x120] sm:$0xff]
  %v868 = vld [vmem:[%s850 + $0x130] sm:$0xff]
  %v869 = vld [vmem:[%s850 + $0x140] sm:$0xff]
  %v870 = vld [vmem:[%s850 + $0x150] sm:$0xff]
  %v871 = vld [vmem:[%s850 + $0x160] sm:$0xff]
  %v872 = vld [vmem:[%s850 + $0x170] sm:$0xff]
  %v873 = vld [vmem:[%s850 + $0x180] sm:$0xff]
  %v874 = vld [vmem:[%s850 + $0x190] sm:$0xff]
  %v875 = vld [vmem:[%s850 + $0x1a0] sm:$0xff]
  %v876 = vld [vmem:[%s850 + $0x1b0] sm:$0xff]
  %v877 = vld [vmem:[%s850 + $0x1c0] sm:$0xff]
  %v878 = vld [vmem:[%s850 + $0x1d0] sm:$0xff]
  %v879 = vld [vmem:[%s850 + $0x1e0] sm:$0xff]
  %v880 = vld [vmem:[%s850 + $0x1f0] sm:$0xff]
  %v881 = vld [vmem:[%s850 + $0x200] sm:$0xff]
  %v882 = vld [vmem:[%s850 + $0x210] sm:$0xff]
  %v883 = vld [vmem:[%s850 + $0x8] sm:$0x1]
  %v884 = vld [vmem:[%s850 + $0x18] sm:$0x1]
  %v885 = vld [vmem:[%s850 + $0x28] sm:$0x1]
  %v886 = vld [vmem:[%s850 + $0x38] sm:$0x1]
  %v887 = vld [vmem:[%s850 + $0x48] sm:$0x1]
  %v888 = vld [vmem:[%s850 + $0x58] sm:$0x1]
  %v889 = vld [vmem:[%s850 + $0x68] sm:$0x1]
  %v890 = vld [vmem:[%s850 + $0x78] sm:$0x1]
  %v891 = vld [vmem:[%s850 + $0x88] sm:$0x1]
  %v892 = vld [vmem:[%s850 + $0x98] sm:$0x1]
  %v893 = vld [vmem:[%s850 + $0xa8] sm:$0x1]
  %v894 = vld [vmem:[%s850 + $0xb8] sm:$0x1]
  %v895 = vld [vmem:[%s850 + $0xc8] sm:$0x1]
  %v896 = vld [vmem:[%s850 + $0xd8] sm:$0x1]
  %v897 = vld [vmem:[%s850 + $0xe8] sm:$0x1]
  %v898 = vld [vmem:[%s850 + $0xf8] sm:$0x1]
  %v899 = vld [vmem:[%s850 + $0x128] sm:$0x1]
  %v900 = vld [vmem:[%s850 + $0x138] sm:$0x1]
  %v901 = vld [vmem:[%s850 + $0x148] sm:$0x1]
  %v902 = vld [vmem:[%s850 + $0x158] sm:$0x1]
  %v903 = vld [vmem:[%s850 + $0x168] sm:$0x1]
  %v904 = vld [vmem:[%s850 + $0x178] sm:$0x1]
  %v905 = vld [vmem:[%s850 + $0x188] sm:$0x1]
  %v906 = vld [vmem:[%s850 + $0x198] sm:$0x1]
  %v907 = vld [vmem:[%s850 + $0x1a8] sm:$0x1]
  %v908 = vld [vmem:[%s850 + $0x1b8] sm:$0x1]
  %v909 = vld [vmem:[%s850 + $0x1c8] sm:$0x1]
  %v910 = vld [vmem:[%s850 + $0x1d8] sm:$0x1]
  %v911 = vld [vmem:[%s850 + $0x1e8] sm:$0x1]
  %v912 = vld [vmem:[%s850 + $0x1f8] sm:$0x1]
  %v913 = vld [vmem:[%s850 + $0x208] sm:$0x1]
  %v914 = vld [vmem:[%s850 + $0x218] sm:$0x1]
  %v915 = vld [vmem:[%s850] sm:$0xfe]
  %v916 = vld [vmem:[%s850 + $0x10] sm:$0xfe]
  %v917 = vld [vmem:[%s850 + $0x20] sm:$0xfe]
  %v918 = vld [vmem:[%s850 + $0x30] sm:$0xfe]
  %v919 = vld [vmem:[%s850 + $0x40] sm:$0xfe]
  %v920 = vld [vmem:[%s850 + $0x50] sm:$0xfe]
  %v921 = vld [vmem:[%s850 + $0x60] sm:$0xfe]
  %v922 = vld [vmem:[%s850 + $0x70] sm:$0xfe]
  %v923 = vld [vmem:[%s850 + $0x80] sm:$0xfe]
  %v924 = vld [vmem:[%s850 + $0x90] sm:$0xfe]
  %v925 = vld [vmem:[%s850 + $0xa0] sm:$0xfe]
  %v926 = vld [vmem:[%s850 + $0xb0] sm:$0xfe]
  %v927 = vld [vmem:[%s850 + $0xc0] sm:$0xfe]
  %v928 = vld [vmem:[%s850 + $0xd0] sm:$0xfe]
  %v929 = vld [vmem:[%s850 + $0xe0] sm:$0xfe]
  %v930 = vld [vmem:[%s850 + $0xf0] sm:$0xfe]
  %v931 = vld [vmem:[%s850 + $0x120] sm:$0xfe]
  %v932 = vld [vmem:[%s850 + $0x130] sm:$0xfe]
  %v933 = vld [vmem:[%s850 + $0x140] sm:$0xfe]
  %v934 = vld [vmem:[%s850 + $0x150] sm:$0xfe]
  %v935 = vld [vmem:[%s850 + $0x160] sm:$0xfe]
  %v936 = vld [vmem:[%s850 + $0x170] sm:$0xfe]
  %v937 = vld [vmem:[%s850 + $0x180] sm:$0xfe]
  %v938 = vld [vmem:[%s850 + $0x190] sm:$0xfe]
  %v939 = vld [vmem:[%s850 + $0x1a0] sm:$0xfe]
  %v940 = vld [vmem:[%s850 + $0x1b0] sm:$0xfe]
  %v941 = vld [vmem:[%s850 + $0x1c0] sm:$0xfe]
  %v942 = vld [vmem:[%s850 + $0x1d0] sm:$0xfe]
  %v943 = vld [vmem:[%s850 + $0x1e0] sm:$0xfe]
  %v944 = vld [vmem:[%s850 + $0x1f0] sm:$0xfe]
  %v945 = vld [vmem:[%s850 + $0x200] sm:$0xfe]
  %v946 = vld [vmem:[%s850 + $0x210] sm:$0xfe]
  %s947 = scalar_lea.vmem [#allocation2], 32
  %v948 = vld [vmem:[%s947] sm:$0xff]
  %v949 = vld [vmem:[%s947 + $0x10] sm:$0xff]
  %v950 = vld [vmem:[%s947 + $0x20] sm:$0xff]
  %v951 = vld [vmem:[%s947 + $0x30] sm:$0xff]
  %v952 = vld [vmem:[%s947 + $0x40] sm:$0xff]
  %v953 = vld [vmem:[%s947 + $0x50] sm:$0xff]
  %v954 = vld [vmem:[%s947 + $0x60] sm:$0xff]
  %v955 = vld [vmem:[%s947 + $0x70] sm:$0xff]
  %v956 = vld [vmem:[%s947 + $0x80] sm:$0xff]
  %v957 = vld [vmem:[%s947 + $0x90] sm:$0xff]
  %v958 = vld [vmem:[%s947 + $0xa0] sm:$0xff]
  %v959 = vld [vmem:[%s947 + $0xb0] sm:$0xff]
  %v960 = vld [vmem:[%s947 + $0xc0] sm:$0xff]
  %v961 = vld [vmem:[%s947 + $0xd0] sm:$0xff]
  %v962 = vld [vmem:[%s947 + $0xe0] sm:$0xff]
  %v963 = vld [vmem:[%s947 + $0xf0] sm:$0xff]
  %v964 = vld [vmem:[%s947 + $0x120] sm:$0xff]
  %v965 = vld [vmem:[%s947 + $0x130] sm:$0xff]
  %v966 = vld [vmem:[%s947 + $0x140] sm:$0xff]
  %v967 = vld [vmem:[%s947 + $0x150] sm:$0xff]
  %v968 = vld [vmem:[%s947 + $0x160] sm:$0xff]
  %v969 = vld [vmem:[%s947 + $0x170] sm:$0xff]
  %v970 = vld [vmem:[%s947 + $0x180] sm:$0xff]
  %v971 = vld [vmem:[%s947 + $0x190] sm:$0xff]
  %v972 = vld [vmem:[%s947 + $0x1a0] sm:$0xff]
  %v973 = vld [vmem:[%s947 + $0x1b0] sm:$0xff]
  %v974 = vld [vmem:[%s947 + $0x1c0] sm:$0xff]
  %v975 = vld [vmem:[%s947 + $0x1d0] sm:$0xff]
  %v976 = vld [vmem:[%s947 + $0x1e0] sm:$0xff]
  %v977 = vld [vmem:[%s947 + $0x1f0] sm:$0xff]
  %v978 = vld [vmem:[%s947 + $0x200] sm:$0xff]
  %v979 = vld [vmem:[%s947 + $0x210] sm:$0xff]
  %v980 = vld [vmem:[%s947 + $0x8] sm:$0x1]
  %v981 = vld [vmem:[%s947 + $0x18] sm:$0x1]
  %v982 = vld [vmem:[%s947 + $0x28] sm:$0x1]
  %v983 = vld [vmem:[%s947 + $0x38] sm:$0x1]
  %v984 = vld [vmem:[%s947 + $0x48] sm:$0x1]
  %v985 = vld [vmem:[%s947 + $0x58] sm:$0x1]
  %v986 = vld [vmem:[%s947 + $0x68] sm:$0x1]
  %v987 = vld [vmem:[%s947 + $0x78] sm:$0x1]
  %v988 = vld [vmem:[%s947 + $0x88] sm:$0x1]
  %v989 = vld [vmem:[%s947 + $0x98] sm:$0x1]
  %v990 = vld [vmem:[%s947 + $0xa8] sm:$0x1]
  %v991 = vld [vmem:[%s947 + $0xb8] sm:$0x1]
  %v992 = vld [vmem:[%s947 + $0xc8] sm:$0x1]
  %v993 = vld [vmem:[%s947 + $0xd8] sm:$0x1]
  %v994 = vld [vmem:[%s947 + $0xe8] sm:$0x1]
  %v995 = vld [vmem:[%s947 + $0xf8] sm:$0x1]
  %v996 = vld [vmem:[%s947 + $0x128] sm:$0x1]
  %v997 = vld [vmem:[%s947 + $0x138] sm:$0x1]
  %v998 = vld [vmem:[%s947 + $0x148] sm:$0x1]
  %v999 = vld [vmem:[%s947 + $0x158] sm:$0x1]
  %v1000 = vld [vmem:[%s947 + $0x168] sm:$0x1]
  %v1001 = vld [vmem:[%s947 + $0x178] sm:$0x1]
  %v1002 = vld [vmem:[%s947 + $0x188] sm:$0x1]
  %v1003 = vld [vmem:[%s947 + $0x198] sm:$0x1]
  %v1004 = vld [vmem:[%s947 + $0x1a8] sm:$0x1]
  %v1005 = vld [vmem:[%s947 + $0x1b8] sm:$0x1]
  %v1006 = vld [vmem:[%s947 + $0x1c8] sm:$0x1]
  %v1007 = vld [vmem:[%s947 + $0x1d8] sm:$0x1]
  %v1008 = vld [vmem:[%s947 + $0x1e8] sm:$0x1]
  %v1009 = vld [vmem:[%s947 + $0x1f8] sm:$0x1]
  %v1010 = vld [vmem:[%s947 + $0x208] sm:$0x1]
  %v1011 = vld [vmem:[%s947 + $0x218] sm:$0x1]
  %v1012 = vld [vmem:[%s947] sm:$0xfe]
  %v1013 = vld [vmem:[%s947 + $0x10] sm:$0xfe]
  %v1014 = vld [vmem:[%s947 + $0x20] sm:$0xfe]
  %v1015 = vld [vmem:[%s947 + $0x30] sm:$0xfe]
  %v1016 = vld [vmem:[%s947 + $0x40] sm:$0xfe]
  %v1017 = vld [vmem:[%s947 + $0x50] sm:$0xfe]
  %v1018 = vld [vmem:[%s947 + $0x60] sm:$0xfe]
  %v1019 = vld [vmem:[%s947 + $0x70] sm:$0xfe]
  %v1020 = vld [vmem:[%s947 + $0x80] sm:$0xfe]
  %v1021 = vld [vmem:[%s947 + $0x90] sm:$0xfe]
  %v1022 = vld [vmem:[%s947 + $0xa0] sm:$0xfe]
  %v1023 = vld [vmem:[%s947 + $0xb0] sm:$0xfe]
  %v1024 = vld [vmem:[%s947 + $0xc0] sm:$0xfe]
  %v1025 = vld [vmem:[%s947 + $0xd0] sm:$0xfe]
  %v1026 = vld [vmem:[%s947 + $0xe0] sm:$0xfe]
  %v1027 = vld [vmem:[%s947 + $0xf0] sm:$0xfe]
  %v1028 = vld [vmem:[%s947 + $0x120] sm:$0xfe]
  %v1029 = vld [vmem:[%s947 + $0x130] sm:$0xfe]
  %v1030 = vld [vmem:[%s947 + $0x140] sm:$0xfe]
  %v1031 = vld [vmem:[%s947 + $0x150] sm:$0xfe]
  %v1032 = vld [vmem:[%s947 + $0x160] sm:$0xfe]
  %v1033 = vld [vmem:[%s947 + $0x170] sm:$0xfe]
  %v1034 = vld [vmem:[%s947 + $0x180] sm:$0xfe]
  %v1035 = vld [vmem:[%s947 + $0x190] sm:$0xfe]
  %v1036 = vld [vmem:[%s947 + $0x1a0] sm:$0xfe]
  %v1037 = vld [vmem:[%s947 + $0x1b0] sm:$0xfe]
  %v1038 = vld [vmem:[%s947 + $0x1c0] sm:$0xfe]
  %v1039 = vld [vmem:[%s947 + $0x1d0] sm:$0xfe]
  %v1040 = vld [vmem:[%s947 + $0x1e0] sm:$0xfe]
  %v1041 = vld [vmem:[%s947 + $0x1f0] sm:$0xfe]
  %v1042 = vld [vmem:[%s947 + $0x200] sm:$0xfe]
  %v1043 = vld [vmem:[%s947 + $0x210] sm:$0xfe]
  %vm1044 = vsmask.f32 7424
  %v1046 = vshrl.u32 %v754, 16
  %v1048 = vshll.u32 %v754, 16
  %v1050 = vrot.slane %v1048, 1
  %v1051 = vor.u32 %v1046, %v1050
  %v1053 = vshll.u32 %v786, 16
  %v1055 = vrot.slane %v1053, 1
  %v1056 = vsel %vm1044, %v1051, %v1055
  %v1058 = vshrl.u32 %v755, 16
  %v1060 = vshll.u32 %v755, 16
  %v1062 = vrot.slane %v1060, 1
  %v1063 = vor.u32 %v1058, %v1062
  %v1065 = vshll.u32 %v787, 16
  %v1067 = vrot.slane %v1065, 1
  %v1068 = vsel %vm1044, %v1063, %v1067
  %v1070 = vshrl.u32 %v756, 16
  %v1072 = vshll.u32 %v756, 16
  %v1074 = vrot.slane %v1072, 1
  %v1075 = vor.u32 %v1070, %v1074
  %v1077 = vshll.u32 %v788, 16
  %v1079 = vrot.slane %v1077, 1
  %v1080 = vsel %vm1044, %v1075, %v1079
  %v1082 = vshrl.u32 %v757, 16
  %v1084 = vshll.u32 %v757, 16
  %v1086 = vrot.slane %v1084, 1
  %v1087 = vor.u32 %v1082, %v1086
  %v1089 = vshll.u32 %v789, 16
  %v1091 = vrot.slane %v1089, 1
  %v1092 = vsel %vm1044, %v1087, %v1091
  %v1094 = vshrl.u32 %v758, 16
  %v1096 = vshll.u32 %v758, 16
  %v1098 = vrot.slane %v1096, 1
  %v1099 = vor.u32 %v1094, %v1098
  %v1101 = vshll.u32 %v790, 16
  %v1103 = vrot.slane %v1101, 1
  %v1104 = vsel %vm1044, %v1099, %v1103
  %v1106 = vshrl.u32 %v759, 16
  %v1108 = vshll.u32 %v759, 16
  %v1110 = vrot.slane %v1108, 1
  %v1111 = vor.u32 %v1106, %v1110
  %v1113 = vshll.u32 %v791, 16
  %v1115 = vrot.slane %v1113, 1
  %v1116 = vsel %vm1044, %v1111, %v1115
  %v1118 = vshrl.u32 %v760, 16
  %v1120 = vshll.u32 %v760, 16
  %v1122 = vrot.slane %v1120, 1
  %v1123 = vor.u32 %v1118, %v1122
  %v1125 = vshll.u32 %v792, 16
  %v1127 = vrot.slane %v1125, 1
  %v1128 = vsel %vm1044, %v1123, %v1127
  %v1130 = vshrl.u32 %v761, 16
  %v1132 = vshll.u32 %v761, 16
  %v1134 = vrot.slane %v1132, 1
  %v1135 = vor.u32 %v1130, %v1134
  %v1137 = vshll.u32 %v793, 16
  %v1139 = vrot.slane %v1137, 1
  %v1140 = vsel %vm1044, %v1135, %v1139
  %v1142 = vshrl.u32 %v762, 16
  %v1144 = vshll.u32 %v762, 16
  %v1146 = vrot.slane %v1144, 1
  %v1147 = vor.u32 %v1142, %v1146
  %v1149 = vshll.u32 %v794, 16
  %v1151 = vrot.slane %v1149, 1
  %v1152 = vsel %vm1044, %v1147, %v1151
  %v1154 = vshrl.u32 %v763, 16
  %v1156 = vshll.u32 %v763, 16
  %v1158 = vrot.slane %v1156, 1
  %v1159 = vor.u32 %v1154, %v1158
  %v1161 = vshll.u32 %v795, 16
  %v1163 = vrot.slane %v1161, 1
  %v1164 = vsel %vm1044, %v1159, %v1163
  %v1166 = vshrl.u32 %v764, 16
  %v1168 = vshll.u32 %v764, 16
  %v1170 = vrot.slane %v1168, 1
  %v1171 = vor.u32 %v1166, %v1170
  %v1173 = vshll.u32 %v796, 16
  %v1175 = vrot.slane %v1173, 1
  %v1176 = vsel %vm1044, %v1171, %v1175
  %v1178 = vshrl.u32 %v765, 16
  %v1180 = vshll.u32 %v765, 16
  %v1182 = vrot.slane %v1180, 1
  %v1183 = vor.u32 %v1178, %v1182
  %v1185 = vshll.u32 %v797, 16
  %v1187 = vrot.slane %v1185, 1
  %v1188 = vsel %vm1044, %v1183, %v1187
  %v1190 = vshrl.u32 %v766, 16
  %v1192 = vshll.u32 %v766, 16
  %v1194 = vrot.slane %v1192, 1
  %v1195 = vor.u32 %v1190, %v1194
  %v1197 = vshll.u32 %v798, 16
  %v1199 = vrot.slane %v1197, 1
  %v1200 = vsel %vm1044, %v1195, %v1199
  %v1202 = vshrl.u32 %v767, 16
  %v1204 = vshll.u32 %v767, 16
  %v1206 = vrot.slane %v1204, 1
  %v1207 = vor.u32 %v1202, %v1206
  %v1209 = vshll.u32 %v799, 16
  %v1211 = vrot.slane %v1209, 1
  %v1212 = vsel %vm1044, %v1207, %v1211
  %v1214 = vshrl.u32 %v768, 16
  %v1216 = vshll.u32 %v768, 16
  %v1218 = vrot.slane %v1216, 1
  %v1219 = vor.u32 %v1214, %v1218
  %v1221 = vshll.u32 %v800, 16
  %v1223 = vrot.slane %v1221, 1
  %v1224 = vsel %vm1044, %v1219, %v1223
  %v1226 = vshrl.u32 %v769, 16
  %v1228 = vshll.u32 %v769, 16
  %v1230 = vrot.slane %v1228, 1
  %v1231 = vor.u32 %v1226, %v1230
  %v1233 = vshll.u32 %v801, 16
  %v1235 = vrot.slane %v1233, 1
  %v1236 = vsel %vm1044, %v1231, %v1235
  %v1238 = vshrl.u32 %v770, 16
  %v1240 = vshll.u32 %v770, 16
  %v1242 = vrot.slane %v1240, 1
  %v1243 = vor.u32 %v1238, %v1242
  %v1245 = vshll.u32 %v802, 16
  %v1247 = vrot.slane %v1245, 1
  %v1248 = vsel %vm1044, %v1243, %v1247
  %v1250 = vshrl.u32 %v771, 16
  %v1252 = vshll.u32 %v771, 16
  %v1254 = vrot.slane %v1252, 1
  %v1255 = vor.u32 %v1250, %v1254
  %v1257 = vshll.u32 %v803, 16
  %v1259 = vrot.slane %v1257, 1
  %v1260 = vsel %vm1044, %v1255, %v1259
  %v1262 = vshrl.u32 %v772, 16
  %v1264 = vshll.u32 %v772, 16
  %v1266 = vrot.slane %v1264, 1
  %v1267 = vor.u32 %v1262, %v1266
  %v1269 = vshll.u32 %v804, 16
  %v1271 = vrot.slane %v1269, 1
  %v1272 = vsel %vm1044, %v1267, %v1271
  %v1274 = vshrl.u32 %v773, 16
  %v1276 = vshll.u32 %v773, 16
  %v1278 = vrot.slane %v1276, 1
  %v1279 = vor.u32 %v1274, %v1278
  %v1281 = vshll.u32 %v805, 16
  %v1283 = vrot.slane %v1281, 1
  %v1284 = vsel %vm1044, %v1279, %v1283
  %v1286 = vshrl.u32 %v774, 16
  %v1288 = vshll.u32 %v774, 16
  %v1290 = vrot.slane %v1288, 1
  %v1291 = vor.u32 %v1286, %v1290
  %v1293 = vshll.u32 %v806, 16
  %v1295 = vrot.slane %v1293, 1
  %v1296 = vsel %vm1044, %v1291, %v1295
  %v1298 = vshrl.u32 %v775, 16
  %v1300 = vshll.u32 %v775, 16
  %v1302 = vrot.slane %v1300, 1
  %v1303 = vor.u32 %v1298, %v1302
  %v1305 = vshll.u32 %v807, 16
  %v1307 = vrot.slane %v1305, 1
  %v1308 = vsel %vm1044, %v1303, %v1307
  %v1310 = vshrl.u32 %v776, 16
  %v1312 = vshll.u32 %v776, 16
  %v1314 = vrot.slane %v1312, 1
  %v1315 = vor.u32 %v1310, %v1314
  %v1317 = vshll.u32 %v808, 16
  %v1319 = vrot.slane %v1317, 1
  %v1320 = vsel %vm1044, %v1315, %v1319
  %v1322 = vshrl.u32 %v777, 16
  %v1324 = vshll.u32 %v777, 16
  %v1326 = vrot.slane %v1324, 1
  %v1327 = vor.u32 %v1322, %v1326
  %v1329 = vshll.u32 %v809, 16
  %v1331 = vrot.slane %v1329, 1
  %v1332 = vsel %vm1044, %v1327, %v1331
  %v1334 = vshrl.u32 %v778, 16
  %v1336 = vshll.u32 %v778, 16
  %v1338 = vrot.slane %v1336, 1
  %v1339 = vor.u32 %v1334, %v1338
  %v1341 = vshll.u32 %v810, 16
  %v1343 = vrot.slane %v1341, 1
  %v1344 = vsel %vm1044, %v1339, %v1343
  %v1346 = vshrl.u32 %v779, 16
  %v1348 = vshll.u32 %v779, 16
  %v1350 = vrot.slane %v1348, 1
  %v1351 = vor.u32 %v1346, %v1350
  %v1353 = vshll.u32 %v811, 16
  %v1355 = vrot.slane %v1353, 1
  %v1356 = vsel %vm1044, %v1351, %v1355
  %v1358 = vshrl.u32 %v780, 16
  %v1360 = vshll.u32 %v780, 16
  %v1362 = vrot.slane %v1360, 1
  %v1363 = vor.u32 %v1358, %v1362
  %v1365 = vshll.u32 %v812, 16
  %v1367 = vrot.slane %v1365, 1
  %v1368 = vsel %vm1044, %v1363, %v1367
  %v1370 = vshrl.u32 %v781, 16
  %v1372 = vshll.u32 %v781, 16
  %v1374 = vrot.slane %v1372, 1
  %v1375 = vor.u32 %v1370, %v1374
  %v1377 = vshll.u32 %v813, 16
  %v1379 = vrot.slane %v1377, 1
  %v1380 = vsel %vm1044, %v1375, %v1379
  %v1382 = vshrl.u32 %v782, 16
  %v1384 = vshll.u32 %v782, 16
  %v1386 = vrot.slane %v1384, 1
  %v1387 = vor.u32 %v1382, %v1386
  %v1389 = vshll.u32 %v814, 16
  %v1391 = vrot.slane %v1389, 1
  %v1392 = vsel %vm1044, %v1387, %v1391
  %v1394 = vshrl.u32 %v783, 16
  %v1396 = vshll.u32 %v783, 16
  %v1398 = vrot.slane %v1396, 1
  %v1399 = vor.u32 %v1394, %v1398
  %v1401 = vshll.u32 %v815, 16
  %v1403 = vrot.slane %v1401, 1
  %v1404 = vsel %vm1044, %v1399, %v1403
  %v1406 = vshrl.u32 %v784, 16
  %v1408 = vshll.u32 %v784, 16
  %v1410 = vrot.slane %v1408, 1
  %v1411 = vor.u32 %v1406, %v1410
  %v1413 = vshll.u32 %v816, 16
  %v1415 = vrot.slane %v1413, 1
  %v1416 = vsel %vm1044, %v1411, %v1415
  %v1418 = vshrl.u32 %v785, 16
  %v1420 = vshll.u32 %v785, 16
  %v1422 = vrot.slane %v1420, 1
  %v1423 = vor.u32 %v1418, %v1422
  %v1425 = vshll.u32 %v817, 16
  %v1427 = vrot.slane %v1425, 1
  %v1428 = vsel %vm1044, %v1423, %v1427
  %1429 = vrot.lane.b32.xlu0 %v1056, 4
  %v1430 = vpop.permute.xlu0 %1429
  %1431 = vrot.lane.b32.xlu0 %v1068, 4
  %v1432 = vpop.permute.xlu0 %1431
  %1433 = vrot.lane.b32.xlu0 %v1080, 4
  %v1434 = vpop.permute.xlu0 %1433
  %1435 = vrot.lane.b32.xlu0 %v1092, 4
  %v1436 = vpop.permute.xlu0 %1435
  %1437 = vrot.lane.b32.xlu0 %v1104, 4
  %v1438 = vpop.permute.xlu0 %1437
  %1439 = vrot.lane.b32.xlu0 %v1116, 4
  %v1440 = vpop.permute.xlu0 %1439
  %1441 = vrot.lane.b32.xlu0 %v1128, 4
  %v1442 = vpop.permute.xlu0 %1441
  %1443 = vrot.lane.b32.xlu0 %v1140, 4
  %v1444 = vpop.permute.xlu0 %1443
  %1445 = vrot.lane.b32.xlu0 %v1152, 4
  %v1446 = vpop.permute.xlu0 %1445
  %1447 = vrot.lane.b32.xlu0 %v1164, 4
  %v1448 = vpop.permute.xlu0 %1447
  %1449 = vrot.lane.b32.xlu0 %v1176, 4
  %v1450 = vpop.permute.xlu0 %1449
  %1451 = vrot.lane.b32.xlu0 %v1188, 4
  %v1452 = vpop.permute.xlu0 %1451
  %1453 = vrot.lane.b32.xlu0 %v1200, 4
  %v1454 = vpop.permute.xlu0 %1453
  %1455 = vrot.lane.b32.xlu0 %v1212, 4
  %v1456 = vpop.permute.xlu0 %1455
  %1457 = vrot.lane.b32.xlu0 %v1224, 4
  %v1458 = vpop.permute.xlu0 %1457
  %1459 = vrot.lane.b32.xlu0 %v1236, 4
  %v1460 = vpop.permute.xlu0 %1459
  %1461 = vrot.lane.b32.xlu0 %v1248, 4
  %v1462 = vpop.permute.xlu0 %1461
  %1463 = vrot.lane.b32.xlu0 %v1260, 4
  %v1464 = vpop.permute.xlu0 %1463
  %1465 = vrot.lane.b32.xlu0 %v1272, 4
  %v1466 = vpop.permute.xlu0 %1465
  %1467 = vrot.lane.b32.xlu0 %v1284, 4
  %v1468 = vpop.permute.xlu0 %1467
  %1469 = vrot.lane.b32.xlu0 %v1296, 4
  %v1470 = vpop.permute.xlu0 %1469
  %1471 = vrot.lane.b32.xlu0 %v1308, 4
  %v1472 = vpop.permute.xlu0 %1471
  %1473 = vrot.lane.b32.xlu0 %v1320, 4
  %v1474 = vpop.permute.xlu0 %1473
  %1475 = vrot.lane.b32.xlu0 %v1332, 4
  %v1476 = vpop.permute.xlu0 %1475
  %1477 = vrot.lane.b32.xlu0 %v1344, 4
  %v1478 = vpop.permute.xlu0 %1477
  %1479 = vrot.lane.b32.xlu0 %v1356, 4
  %v1480 = vpop.permute.xlu0 %1479
  %1481 = vrot.lane.b32.xlu0 %v1368, 4
  %v1482 = vpop.permute.xlu0 %1481
  %1483 = vrot.lane.b32.xlu0 %v1380, 4
  %v1484 = vpop.permute.xlu0 %1483
  %1485 = vrot.lane.b32.xlu0 %v1392, 4
  %v1486 = vpop.permute.xlu0 %1485
  %1487 = vrot.lane.b32.xlu0 %v1404, 4
  %v1488 = vpop.permute.xlu0 %1487
  %1489 = vrot.lane.b32.xlu0 %v1416, 4
  %v1490 = vpop.permute.xlu0 %1489
  %1491 = vrot.lane.b32.xlu0 %v1428, 4
  %v1492 = vpop.permute.xlu0 %1491
  %vm1557 = vcmask 1046528
  %v1558 = vrot.slane %v818, 1
  %v1559 = vrot.slane %v786, 1
  %v1560 = vsel %vm1557, %v1558, %v1559
  %v1561 = vrot.slane %v819, 1
  %v1562 = vrot.slane %v787, 1
  %v1563 = vsel %vm1557, %v1561, %v1562
  %v1564 = vrot.slane %v820, 1
  %v1565 = vrot.slane %v788, 1
  %v1566 = vsel %vm1557, %v1564, %v1565
  %v1567 = vrot.slane %v821, 1
  %v1568 = vrot.slane %v789, 1
  %v1569 = vsel %vm1557, %v1567, %v1568
  %v1570 = vrot.slane %v822, 1
  %v1571 = vrot.slane %v790, 1
  %v1572 = vsel %vm1557, %v1570, %v1571
  %v1573 = vrot.slane %v823, 1
  %v1574 = vrot.slane %v791, 1
  %v1575 = vsel %vm1557, %v1573, %v1574
  %v1576 = vrot.slane %v824, 1
  %v1577 = vrot.slane %v792, 1
  %v1578 = vsel %vm1557, %v1576, %v1577
  %v1579 = vrot.slane %v825, 1
  %v1580 = vrot.slane %v793, 1
  %v1581 = vsel %vm1557, %v1579, %v1580
  %v1582 = vrot.slane %v826, 1
  %v1583 = vrot.slane %v794, 1
  %v1584 = vsel %vm1557, %v1582, %v1583
  %v1585 = vrot.slane %v827, 1
  %v1586 = vrot.slane %v795, 1
  %v1587 = vsel %vm1557, %v1585, %v1586
  %v1588 = vrot.slane %v828, 1
  %v1589 = vrot.slane %v796, 1
  %v1590 = vsel %vm1557, %v1588, %v1589
  %v1591 = vrot.slane %v829, 1
  %v1592 = vrot.slane %v797, 1
  %v1593 = vsel %vm1557, %v1591, %v1592
  %v1594 = vrot.slane %v830, 1
  %v1595 = vrot.slane %v798, 1
  %v1596 = vsel %vm1557, %v1594, %v1595
  %v1597 = vrot.slane %v831, 1
  %v1598 = vrot.slane %v799, 1
  %v1599 = vsel %vm1557, %v1597, %v1598
  %v1600 = vrot.slane %v832, 1
  %v1601 = vrot.slane %v800, 1
  %v1602 = vsel %vm1557, %v1600, %v1601
  %v1603 = vrot.slane %v833, 1
  %v1604 = vrot.slane %v801, 1
  %v1605 = vsel %vm1557, %v1603, %v1604
  %v1606 = vrot.slane %v834, 1
  %v1607 = vrot.slane %v802, 1
  %v1608 = vsel %vm1557, %v1606, %v1607
  %v1609 = vrot.slane %v835, 1
  %v1610 = vrot.slane %v803, 1
  %v1611 = vsel %vm1557, %v1609, %v1610
  %v1612 = vrot.slane %v836, 1
  %v1613 = vrot.slane %v804, 1
  %v1614 = vsel %vm1557, %v1612, %v1613
  %v1615 = vrot.slane %v837, 1
  %v1616 = vrot.slane %v805, 1
  %v1617 = vsel %vm1557, %v1615, %v1616
  %v1618 = vrot.slane %v838, 1
  %v1619 = vrot.slane %v806, 1
  %v1620 = vsel %vm1557, %v1618, %v1619
  %v1621 = vrot.slane %v839, 1
  %v1622 = vrot.slane %v807, 1
  %v1623 = vsel %vm1557, %v1621, %v1622
  %v1624 = vrot.slane %v840, 1
  %v1625 = vrot.slane %v808, 1
  %v1626 = vsel %vm1557, %v1624, %v1625
  %v1627 = vrot.slane %v841, 1
  %v1628 = vrot.slane %v809, 1
  %v1629 = vsel %vm1557, %v1627, %v1628
  %v1630 = vrot.slane %v842, 1
  %v1631 = vrot.slane %v810, 1
  %v1632 = vsel %vm1557, %v1630, %v1631
  %v1633 = vrot.slane %v843, 1
  %v1634 = vrot.slane %v811, 1
  %v1635 = vsel %vm1557, %v1633, %v1634
  %v1636 = vrot.slane %v844, 1
  %v1637 = vrot.slane %v812, 1
  %v1638 = vsel %vm1557, %v1636, %v1637
  %v1639 = vrot.slane %v845, 1
  %v1640 = vrot.slane %v813, 1
  %v1641 = vsel %vm1557, %v1639, %v1640
  %v1642 = vrot.slane %v846, 1
  %v1643 = vrot.slane %v814, 1
  %v1644 = vsel %vm1557, %v1642, %v1643
  %v1645 = vrot.slane %v847, 1
  %v1646 = vrot.slane %v815, 1
  %v1647 = vsel %vm1557, %v1645, %v1646
  %v1648 = vrot.slane %v848, 1
  %v1649 = vrot.slane %v816, 1
  %v1650 = vsel %vm1557, %v1648, %v1649
  %v1651 = vrot.slane %v849, 1
  %v1652 = vrot.slane %v817, 1
  %v1653 = vsel %vm1557, %v1651, %v1652
  %1654 = vrot.lane.b32.xlu0 %v1560, 8
  %v1655 = vpop.permute.xlu0 %1654
  %1656 = vrot.lane.b32.xlu0 %v1563, 8
  %v1657 = vpop.permute.xlu0 %1656
  %1658 = vrot.lane.b32.xlu0 %v1566, 8
  %v1659 = vpop.permute.xlu0 %1658
  %1660 = vrot.lane.b32.xlu0 %v1569, 8
  %v1661 = vpop.permute.xlu0 %1660
  %1662 = vrot.lane.b32.xlu0 %v1572, 8
  %v1663 = vpop.permute.xlu0 %1662
  %1664 = vrot.lane.b32.xlu0 %v1575, 8
  %v1665 = vpop.permute.xlu0 %1664
  %1666 = vrot.lane.b32.xlu0 %v1578, 8
  %v1667 = vpop.permute.xlu0 %1666
  %1668 = vrot.lane.b32.xlu0 %v1581, 8
  %v1669 = vpop.permute.xlu0 %1668
  %1670 = vrot.lane.b32.xlu0 %v1584, 8
  %v1671 = vpop.permute.xlu0 %1670
  %1672 = vrot.lane.b32.xlu0 %v1587, 8
  %v1673 = vpop.permute.xlu0 %1672
  %1674 = vrot.lane.b32.xlu0 %v1590, 8
  %v1675 = vpop.permute.xlu0 %1674
  %1676 = vrot.lane.b32.xlu0 %v1593, 8
  %v1677 = vpop.permute.xlu0 %1676
  %1678 = vrot.lane.b32.xlu0 %v1596, 8
  %v1679 = vpop.permute.xlu0 %1678
  %1680 = vrot.lane.b32.xlu0 %v1599, 8
  %v1681 = vpop.permute.xlu0 %1680
  %1682 = vrot.lane.b32.xlu0 %v1602, 8
  %v1683 = vpop.permute.xlu0 %1682
  %1684 = vrot.lane.b32.xlu0 %v1605, 8
  %v1685 = vpop.permute.xlu0 %1684
  %1686 = vrot.lane.b32.xlu0 %v1608, 8
  %v1687 = vpop.permute.xlu0 %1686
  %1688 = vrot.lane.b32.xlu0 %v1611, 8
  %v1689 = vpop.permute.xlu0 %1688
  %1690 = vrot.lane.b32.xlu0 %v1614, 8
  %v1691 = vpop.permute.xlu0 %1690
  %1692 = vrot.lane.b32.xlu0 %v1617, 8
  %v1693 = vpop.permute.xlu0 %1692
  %1694 = vrot.lane.b32.xlu0 %v1620, 8
  %v1695 = vpop.permute.xlu0 %1694
  %1696 = vrot.lane.b32.xlu0 %v1623, 8
  %v1697 = vpop.permute.xlu0 %1696
  %1698 = vrot.lane.b32.xlu0 %v1626, 8
  %v1699 = vpop.permute.xlu0 %1698
  %1700 = vrot.lane.b32.xlu0 %v1629, 8
  %v1701 = vpop.permute.xlu0 %1700
  %1702 = vrot.lane.b32.xlu0 %v1632, 8
  %v1703 = vpop.permute.xlu0 %1702
  %1704 = vrot.lane.b32.xlu0 %v1635, 8
  %v1705 = vpop.permute.xlu0 %1704
  %1706 = vrot.lane.b32.xlu0 %v1638, 8
  %v1707 = vpop.permute.xlu0 %1706
  %1708 = vrot.lane.b32.xlu0 %v1641, 8
  %v1709 = vpop.permute.xlu0 %1708
  %1710 = vrot.lane.b32.xlu0 %v1644, 8
  %v1711 = vpop.permute.xlu0 %1710
  %1712 = vrot.lane.b32.xlu0 %v1647, 8
  %v1713 = vpop.permute.xlu0 %1712
  %1714 = vrot.lane.b32.xlu0 %v1650, 8
  %v1715 = vpop.permute.xlu0 %1714
  %1716 = vrot.lane.b32.xlu0 %v1653, 8
  %v1717 = vpop.permute.xlu0 %1716
  %1750 = vrot.lane.b32.xlu0 %v851, 12
  %v1751 = vpop.permute.xlu0 %1750
  %1752 = vrot.lane.b32.xlu0 %v852, 12
  %v1753 = vpop.permute.xlu0 %1752
  %1754 = vrot.lane.b32.xlu0 %v853, 12
  %v1755 = vpop.permute.xlu0 %1754
  %1756 = vrot.lane.b32.xlu0 %v854, 12
  %v1757 = vpop.permute.xlu0 %1756
  %1758 = vrot.lane.b32.xlu0 %v855, 12
  %v1759 = vpop.permute.xlu0 %1758
  %1760 = vrot.lane.b32.xlu0 %v856, 12
  %v1761 = vpop.permute.xlu0 %1760
  %1762 = vrot.lane.b32.xlu0 %v857, 12
  %v1763 = vpop.permute.xlu0 %1762
  %1764 = vrot.lane.b32.xlu0 %v858, 12
  %v1765 = vpop.permute.xlu0 %1764
  %1766 = vrot.lane.b32.xlu0 %v859, 12
  %v1767 = vpop.permute.xlu0 %1766
  %1768 = vrot.lane.b32.xlu0 %v860, 12
  %v1769 = vpop.permute.xlu0 %1768
  %1770 = vrot.lane.b32.xlu0 %v861, 12
  %v1771 = vpop.permute.xlu0 %1770
  %1772 = vrot.lane.b32.xlu0 %v862, 12
  %v1773 = vpop.permute.xlu0 %1772
  %1774 = vrot.lane.b32.xlu0 %v863, 12
  %v1775 = vpop.permute.xlu0 %1774
  %1776 = vrot.lane.b32.xlu0 %v864, 12
  %v1777 = vpop.permute.xlu0 %1776
  %1778 = vrot.lane.b32.xlu0 %v865, 12
  %v1779 = vpop.permute.xlu0 %1778
  %1780 = vrot.lane.b32.xlu0 %v866, 12
  %v1781 = vpop.permute.xlu0 %1780
  %1782 = vrot.lane.b32.xlu0 %v867, 12
  %v1783 = vpop.permute.xlu0 %1782
  %1784 = vrot.lane.b32.xlu0 %v868, 12
  %v1785 = vpop.permute.xlu0 %1784
  %1786 = vrot.lane.b32.xlu0 %v869, 12
  %v1787 = vpop.permute.xlu0 %1786
  %1788 = vrot.lane.b32.xlu0 %v870, 12
  %v1789 = vpop.permute.xlu0 %1788
  %1790 = vrot.lane.b32.xlu0 %v871, 12
  %v1791 = vpop.permute.xlu0 %1790
  %1792 = vrot.lane.b32.xlu0 %v872, 12
  %v1793 = vpop.permute.xlu0 %1792
  %1794 = vrot.lane.b32.xlu0 %v873, 12
  %v1795 = vpop.permute.xlu0 %1794
  %1796 = vrot.lane.b32.xlu0 %v874, 12
  %v1797 = vpop.permute.xlu0 %1796
  %1798 = vrot.lane.b32.xlu0 %v875, 12
  %v1799 = vpop.permute.xlu0 %1798
  %1800 = vrot.lane.b32.xlu0 %v876, 12
  %v1801 = vpop.permute.xlu0 %1800
  %1802 = vrot.lane.b32.xlu0 %v877, 12
  %v1803 = vpop.permute.xlu0 %1802
  %1804 = vrot.lane.b32.xlu0 %v878, 12
  %v1805 = vpop.permute.xlu0 %1804
  %1806 = vrot.lane.b32.xlu0 %v879, 12
  %v1807 = vpop.permute.xlu0 %1806
  %1808 = vrot.lane.b32.xlu0 %v880, 12
  %v1809 = vpop.permute.xlu0 %1808
  %1810 = vrot.lane.b32.xlu0 %v881, 12
  %v1811 = vpop.permute.xlu0 %1810
  %1812 = vrot.lane.b32.xlu0 %v882, 12
  %v1813 = vpop.permute.xlu0 %1812
  %v1815 = vshrl.u32 %v851, 16
  %v1817 = vshll.u32 %v851, 16
  %v1819 = vrot.slane %v1817, 1
  %v1820 = vor.u32 %v1815, %v1819
  %v1822 = vshll.u32 %v883, 16
  %v1824 = vrot.slane %v1822, 1
  %v1825 = vsel %vm1044, %v1820, %v1824
  %v1827 = vshrl.u32 %v852, 16
  %v1829 = vshll.u32 %v852, 16
  %v1831 = vrot.slane %v1829, 1
  %v1832 = vor.u32 %v1827, %v1831
  %v1834 = vshll.u32 %v884, 16
  %v1836 = vrot.slane %v1834, 1
  %v1837 = vsel %vm1044, %v1832, %v1836
  %v1839 = vshrl.u32 %v853, 16
  %v1841 = vshll.u32 %v853, 16
  %v1843 = vrot.slane %v1841, 1
  %v1844 = vor.u32 %v1839, %v1843
  %v1846 = vshll.u32 %v885, 16
  %v1848 = vrot.slane %v1846, 1
  %v1849 = vsel %vm1044, %v1844, %v1848
  %v1851 = vshrl.u32 %v854, 16
  %v1853 = vshll.u32 %v854, 16
  %v1855 = vrot.slane %v1853, 1
  %v1856 = vor.u32 %v1851, %v1855
  %v1858 = vshll.u32 %v886, 16
  %v1860 = vrot.slane %v1858, 1
  %v1861 = vsel %vm1044, %v1856, %v1860
  %v1863 = vshrl.u32 %v855, 16
  %v1865 = vshll.u32 %v855, 16
  %v1867 = vrot.slane %v1865, 1
  %v1868 = vor.u32 %v1863, %v1867
  %v1870 = vshll.u32 %v887, 16
  %v1872 = vrot.slane %v1870, 1
  %v1873 = vsel %vm1044, %v1868, %v1872
  %v1875 = vshrl.u32 %v856, 16
  %v1877 = vshll.u32 %v856, 16
  %v1879 = vrot.slane %v1877, 1
  %v1880 = vor.u32 %v1875, %v1879
  %v1882 = vshll.u32 %v888, 16
  %v1884 = vrot.slane %v1882, 1
  %v1885 = vsel %vm1044, %v1880, %v1884
  %v1887 = vshrl.u32 %v857, 16
  %v1889 = vshll.u32 %v857, 16
  %v1891 = vrot.slane %v1889, 1
  %v1892 = vor.u32 %v1887, %v1891
  %v1894 = vshll.u32 %v889, 16
  %v1896 = vrot.slane %v1894, 1
  %v1897 = vsel %vm1044, %v1892, %v1896
  %v1899 = vshrl.u32 %v858, 16
  %v1901 = vshll.u32 %v858, 16
  %v1903 = vrot.slane %v1901, 1
  %v1904 = vor.u32 %v1899, %v1903
  %v1906 = vshll.u32 %v890, 16
  %v1908 = vrot.slane %v1906, 1
  %v1909 = vsel %vm1044, %v1904, %v1908
  %v1911 = vshrl.u32 %v859, 16
  %v1913 = vshll.u32 %v859, 16
  %v1915 = vrot.slane %v1913, 1
  %v1916 = vor.u32 %v1911, %v1915
  %v1918 = vshll.u32 %v891, 16
  %v1920 = vrot.slane %v1918, 1
  %v1921 = vsel %vm1044, %v1916, %v1920
  %v1923 = vshrl.u32 %v860, 16
  %v1925 = vshll.u32 %v860, 16
  %v1927 = vrot.slane %v1925, 1
  %v1928 = vor.u32 %v1923, %v1927
  %v1930 = vshll.u32 %v892, 16
  %v1932 = vrot.slane %v1930, 1
  %v1933 = vsel %vm1044, %v1928, %v1932
  %v1935 = vshrl.u32 %v861, 16
  %v1937 = vshll.u32 %v861, 16
  %v1939 = vrot.slane %v1937, 1
  %v1940 = vor.u32 %v1935, %v1939
  %v1942 = vshll.u32 %v893, 16
  %v1944 = vrot.slane %v1942, 1
  %v1945 = vsel %vm1044, %v1940, %v1944
  %v1947 = vshrl.u32 %v862, 16
  %v1949 = vshll.u32 %v862, 16
  %v1951 = vrot.slane %v1949, 1
  %v1952 = vor.u32 %v1947, %v1951
  %v1954 = vshll.u32 %v894, 16
  %v1956 = vrot.slane %v1954, 1
  %v1957 = vsel %vm1044, %v1952, %v1956
  %v1959 = vshrl.u32 %v863, 16
  %v1961 = vshll.u32 %v863, 16
  %v1963 = vrot.slane %v1961, 1
  %v1964 = vor.u32 %v1959, %v1963
  %v1966 = vshll.u32 %v895, 16
  %v1968 = vrot.slane %v1966, 1
  %v1969 = vsel %vm1044, %v1964, %v1968
  %v1971 = vshrl.u32 %v864, 16
  %v1973 = vshll.u32 %v864, 16
  %v1975 = vrot.slane %v1973, 1
  %v1976 = vor.u32 %v1971, %v1975
  %v1978 = vshll.u32 %v896, 16
  %v1980 = vrot.slane %v1978, 1
  %v1981 = vsel %vm1044, %v1976, %v1980
  %v1983 = vshrl.u32 %v865, 16
  %v1985 = vshll.u32 %v865, 16
  %v1987 = vrot.slane %v1985, 1
  %v1988 = vor.u32 %v1983, %v1987
  %v1990 = vshll.u32 %v897, 16
  %v1992 = vrot.slane %v1990, 1
  %v1993 = vsel %vm1044, %v1988, %v1992
  %v1995 = vshrl.u32 %v866, 16
  %v1997 = vshll.u32 %v866, 16
  %v1999 = vrot.slane %v1997, 1
  %v2000 = vor.u32 %v1995, %v1999
  %v2002 = vshll.u32 %v898, 16
  %v2004 = vrot.slane %v2002, 1
  %v2005 = vsel %vm1044, %v2000, %v2004
  %v2007 = vshrl.u32 %v867, 16
  %v2009 = vshll.u32 %v867, 16
  %v2011 = vrot.slane %v2009, 1
  %v2012 = vor.u32 %v2007, %v2011
  %v2014 = vshll.u32 %v899, 16
  %v2016 = vrot.slane %v2014, 1
  %v2017 = vsel %vm1044, %v2012, %v2016
  %v2019 = vshrl.u32 %v868, 16
  %v2021 = vshll.u32 %v868, 16
  %v2023 = vrot.slane %v2021, 1
  %v2024 = vor.u32 %v2019, %v2023
  %v2026 = vshll.u32 %v900, 16
  %v2028 = vrot.slane %v2026, 1
  %v2029 = vsel %vm1044, %v2024, %v2028
  %v2031 = vshrl.u32 %v869, 16
  %v2033 = vshll.u32 %v869, 16
  %v2035 = vrot.slane %v2033, 1
  %v2036 = vor.u32 %v2031, %v2035
  %v2038 = vshll.u32 %v901, 16
  %v2040 = vrot.slane %v2038, 1
  %v2041 = vsel %vm1044, %v2036, %v2040
  %v2043 = vshrl.u32 %v870, 16
  %v2045 = vshll.u32 %v870, 16
  %v2047 = vrot.slane %v2045, 1
  %v2048 = vor.u32 %v2043, %v2047
  %v2050 = vshll.u32 %v902, 16
  %v2052 = vrot.slane %v2050, 1
  %v2053 = vsel %vm1044, %v2048, %v2052
  %v2055 = vshrl.u32 %v871, 16
  %v2057 = vshll.u32 %v871, 16
  %v2059 = vrot.slane %v2057, 1
  %v2060 = vor.u32 %v2055, %v2059
  %v2062 = vshll.u32 %v903, 16
  %v2064 = vrot.slane %v2062, 1
  %v2065 = vsel %vm1044, %v2060, %v2064
  %v2067 = vshrl.u32 %v872, 16
  %v2069 = vshll.u32 %v872, 16
  %v2071 = vrot.slane %v2069, 1
  %v2072 = vor.u32 %v2067, %v2071
  %v2074 = vshll.u32 %v904, 16
  %v2076 = vrot.slane %v2074, 1
  %v2077 = vsel %vm1044, %v2072, %v2076
  %v2079 = vshrl.u32 %v873, 16
  %v2081 = vshll.u32 %v873, 16
  %v2083 = vrot.slane %v2081, 1
  %v2084 = vor.u32 %v2079, %v2083
  %v2086 = vshll.u32 %v905, 16
  %v2088 = vrot.slane %v2086, 1
  %v2089 = vsel %vm1044, %v2084, %v2088
  %v2091 = vshrl.u32 %v874, 16
  %v2093 = vshll.u32 %v874, 16
  %v2095 = vrot.slane %v2093, 1
  %v2096 = vor.u32 %v2091, %v2095
  %v2098 = vshll.u32 %v906, 16
  %v2100 = vrot.slane %v2098, 1
  %v2101 = vsel %vm1044, %v2096, %v2100
  %v2103 = vshrl.u32 %v875, 16
  %v2105 = vshll.u32 %v875, 16
  %v2107 = vrot.slane %v2105, 1
  %v2108 = vor.u32 %v2103, %v2107
  %v2110 = vshll.u32 %v907, 16
  %v2112 = vrot.slane %v2110, 1
  %v2113 = vsel %vm1044, %v2108, %v2112
  %v2115 = vshrl.u32 %v876, 16
  %v2117 = vshll.u32 %v876, 16
  %v2119 = vrot.slane %v2117, 1
  %v2120 = vor.u32 %v2115, %v2119
  %v2122 = vshll.u32 %v908, 16
  %v2124 = vrot.slane %v2122, 1
  %v2125 = vsel %vm1044, %v2120, %v2124
  %v2127 = vshrl.u32 %v877, 16
  %v2129 = vshll.u32 %v877, 16
  %v2131 = vrot.slane %v2129, 1
  %v2132 = vor.u32 %v2127, %v2131
  %v2134 = vshll.u32 %v909, 16
  %v2136 = vrot.slane %v2134, 1
  %v2137 = vsel %vm1044, %v2132, %v2136
  %v2139 = vshrl.u32 %v878, 16
  %v2141 = vshll.u32 %v878, 16
  %v2143 = vrot.slane %v2141, 1
  %v2144 = vor.u32 %v2139, %v2143
  %v2146 = vshll.u32 %v910, 16
  %v2148 = vrot.slane %v2146, 1
  %v2149 = vsel %vm1044, %v2144, %v2148
  %v2151 = vshrl.u32 %v879, 16
  %v2153 = vshll.u32 %v879, 16
  %v2155 = vrot.slane %v2153, 1
  %v2156 = vor.u32 %v2151, %v2155
  %v2158 = vshll.u32 %v911, 16
  %v2160 = vrot.slane %v2158, 1
  %v2161 = vsel %vm1044, %v2156, %v2160
  %v2163 = vshrl.u32 %v880, 16
  %v2165 = vshll.u32 %v880, 16
  %v2167 = vrot.slane %v2165, 1
  %v2168 = vor.u32 %v2163, %v2167
  %v2170 = vshll.u32 %v912, 16
  %v2172 = vrot.slane %v2170, 1
  %v2173 = vsel %vm1044, %v2168, %v2172
  %v2175 = vshrl.u32 %v881, 16
  %v2177 = vshll.u32 %v881, 16
  %v2179 = vrot.slane %v2177, 1
  %v2180 = vor.u32 %v2175, %v2179
  %v2182 = vshll.u32 %v913, 16
  %v2184 = vrot.slane %v2182, 1
  %v2185 = vsel %vm1044, %v2180, %v2184
  %v2187 = vshrl.u32 %v882, 16
  %v2189 = vshll.u32 %v882, 16
  %v2191 = vrot.slane %v2189, 1
  %v2192 = vor.u32 %v2187, %v2191
  %v2194 = vshll.u32 %v914, 16
  %v2196 = vrot.slane %v2194, 1
  %v2197 = vsel %vm1044, %v2192, %v2196
  %2198 = vrot.lane.b32.xlu0 %v1825, 16
  %v2199 = vpop.permute.xlu0 %2198
  %2200 = vrot.lane.b32.xlu0 %v1837, 16
  %v2201 = vpop.permute.xlu0 %2200
  %2202 = vrot.lane.b32.xlu0 %v1849, 16
  %v2203 = vpop.permute.xlu0 %2202
  %2204 = vrot.lane.b32.xlu0 %v1861, 16
  %v2205 = vpop.permute.xlu0 %2204
  %2206 = vrot.lane.b32.xlu0 %v1873, 16
  %v2207 = vpop.permute.xlu0 %2206
  %2208 = vrot.lane.b32.xlu0 %v1885, 16
  %v2209 = vpop.permute.xlu0 %2208
  %2210 = vrot.lane.b32.xlu0 %v1897, 16
  %v2211 = vpop.permute.xlu0 %2210
  %2212 = vrot.lane.b32.xlu0 %v1909, 16
  %v2213 = vpop.permute.xlu0 %2212
  %2214 = vrot.lane.b32.xlu0 %v1921, 16
  %v2215 = vpop.permute.xlu0 %2214
  %2216 = vrot.lane.b32.xlu0 %v1933, 16
  %v2217 = vpop.permute.xlu0 %2216
  %2218 = vrot.lane.b32.xlu0 %v1945, 16
  %v2219 = vpop.permute.xlu0 %2218
  %2220 = vrot.lane.b32.xlu0 %v1957, 16
  %v2221 = vpop.permute.xlu0 %2220
  %2222 = vrot.lane.b32.xlu0 %v1969, 16
  %v2223 = vpop.permute.xlu0 %2222
  %2224 = vrot.lane.b32.xlu0 %v1981, 16
  %v2225 = vpop.permute.xlu0 %2224
  %2226 = vrot.lane.b32.xlu0 %v1993, 16
  %v2227 = vpop.permute.xlu0 %2226
  %2228 = vrot.lane.b32.xlu0 %v2005, 16
  %v2229 = vpop.permute.xlu0 %2228
  %2230 = vrot.lane.b32.xlu0 %v2017, 16
  %v2231 = vpop.permute.xlu0 %2230
  %2232 = vrot.lane.b32.xlu0 %v2029, 16
  %v2233 = vpop.permute.xlu0 %2232
  %2234 = vrot.lane.b32.xlu0 %v2041, 16
  %v2235 = vpop.permute.xlu0 %2234
  %2236 = vrot.lane.b32.xlu0 %v2053, 16
  %v2237 = vpop.permute.xlu0 %2236
  %2238 = vrot.lane.b32.xlu0 %v2065, 16
  %v2239 = vpop.permute.xlu0 %2238
  %2240 = vrot.lane.b32.xlu0 %v2077, 16
  %v2241 = vpop.permute.xlu0 %2240
  %2242 = vrot.lane.b32.xlu0 %v2089, 16
  %v2243 = vpop.permute.xlu0 %2242
  %2244 = vrot.lane.b32.xlu0 %v2101, 16
  %v2245 = vpop.permute.xlu0 %2244
  %2246 = vrot.lane.b32.xlu0 %v2113, 16
  %v2247 = vpop.permute.xlu0 %2246
  %2248 = vrot.lane.b32.xlu0 %v2125, 16
  %v2249 = vpop.permute.xlu0 %2248
  %2250 = vrot.lane.b32.xlu0 %v2137, 16
  %v2251 = vpop.permute.xlu0 %2250
  %2252 = vrot.lane.b32.xlu0 %v2149, 16
  %v2253 = vpop.permute.xlu0 %2252
  %2254 = vrot.lane.b32.xlu0 %v2161, 16
  %v2255 = vpop.permute.xlu0 %2254
  %2256 = vrot.lane.b32.xlu0 %v2173, 16
  %v2257 = vpop.permute.xlu0 %2256
  %2258 = vrot.lane.b32.xlu0 %v2185, 16
  %v2259 = vpop.permute.xlu0 %2258
  %2260 = vrot.lane.b32.xlu0 %v2197, 16
  %v2261 = vpop.permute.xlu0 %2260
  %v2326 = vrot.slane %v915, 1
  %v2327 = vrot.slane %v883, 1
  %v2328 = vsel %vm1557, %v2326, %v2327
  %v2329 = vrot.slane %v916, 1
  %v2330 = vrot.slane %v884, 1
  %v2331 = vsel %vm1557, %v2329, %v2330
  %v2332 = vrot.slane %v917, 1
  %v2333 = vrot.slane %v885, 1
  %v2334 = vsel %vm1557, %v2332, %v2333
  %v2335 = vrot.slane %v918, 1
  %v2336 = vrot.slane %v886, 1
  %v2337 = vsel %vm1557, %v2335, %v2336
  %v2338 = vrot.slane %v919, 1
  %v2339 = vrot.slane %v887, 1
  %v2340 = vsel %vm1557, %v2338, %v2339
  %v2341 = vrot.slane %v920, 1
  %v2342 = vrot.slane %v888, 1
  %v2343 = vsel %vm1557, %v2341, %v2342
  %v2344 = vrot.slane %v921, 1
  %v2345 = vrot.slane %v889, 1
  %v2346 = vsel %vm1557, %v2344, %v2345
  %v2347 = vrot.slane %v922, 1
  %v2348 = vrot.slane %v890, 1
  %v2349 = vsel %vm1557, %v2347, %v2348
  %v2350 = vrot.slane %v923, 1
  %v2351 = vrot.slane %v891, 1
  %v2352 = vsel %vm1557, %v2350, %v2351
  %v2353 = vrot.slane %v924, 1
  %v2354 = vrot.slane %v892, 1
  %v2355 = vsel %vm1557, %v2353, %v2354
  %v2356 = vrot.slane %v925, 1
  %v2357 = vrot.slane %v893, 1
  %v2358 = vsel %vm1557, %v2356, %v2357
  %v2359 = vrot.slane %v926, 1
  %v2360 = vrot.slane %v894, 1
  %v2361 = vsel %vm1557, %v2359, %v2360
  %v2362 = vrot.slane %v927, 1
  %v2363 = vrot.slane %v895, 1
  %v2364 = vsel %vm1557, %v2362, %v2363
  %v2365 = vrot.slane %v928, 1
  %v2366 = vrot.slane %v896, 1
  %v2367 = vsel %vm1557, %v2365, %v2366
  %v2368 = vrot.slane %v929, 1
  %v2369 = vrot.slane %v897, 1
  %v2370 = vsel %vm1557, %v2368, %v2369
  %v2371 = vrot.slane %v930, 1
  %v2372 = vrot.slane %v898, 1
  %v2373 = vsel %vm1557, %v2371, %v2372
  %v2374 = vrot.slane %v931, 1
  %v2375 = vrot.slane %v899, 1
  %v2376 = vsel %vm1557, %v2374, %v2375
  %v2377 = vrot.slane %v932, 1
  %v2378 = vrot.slane %v900, 1
  %v2379 = vsel %vm1557, %v2377, %v2378
  %v2380 = vrot.slane %v933, 1
  %v2381 = vrot.slane %v901, 1
  %v2382 = vsel %vm1557, %v2380, %v2381
  %v2383 = vrot.slane %v934, 1
  %v2384 = vrot.slane %v902, 1
  %v2385 = vsel %vm1557, %v2383, %v2384
  %v2386 = vrot.slane %v935, 1
  %v2387 = vrot.slane %v903, 1
  %v2388 = vsel %vm1557, %v2386, %v2387
  %v2389 = vrot.slane %v936, 1
  %v2390 = vrot.slane %v904, 1
  %v2391 = vsel %vm1557, %v2389, %v2390
  %v2392 = vrot.slane %v937, 1
  %v2393 = vrot.slane %v905, 1
  %v2394 = vsel %vm1557, %v2392, %v2393
  %v2395 = vrot.slane %v938, 1
  %v2396 = vrot.slane %v906, 1
  %v2397 = vsel %vm1557, %v2395, %v2396
  %v2398 = vrot.slane %v939, 1
  %v2399 = vrot.slane %v907, 1
  %v2400 = vsel %vm1557, %v2398, %v2399
  %v2401 = vrot.slane %v940, 1
  %v2402 = vrot.slane %v908, 1
  %v2403 = vsel %vm1557, %v2401, %v2402
  %v2404 = vrot.slane %v941, 1
  %v2405 = vrot.slane %v909, 1
  %v2406 = vsel %vm1557, %v2404, %v2405
  %v2407 = vrot.slane %v942, 1
  %v2408 = vrot.slane %v910, 1
  %v2409 = vsel %vm1557, %v2407, %v2408
  %v2410 = vrot.slane %v943, 1
  %v2411 = vrot.slane %v911, 1
  %v2412 = vsel %vm1557, %v2410, %v2411
  %v2413 = vrot.slane %v944, 1
  %v2414 = vrot.slane %v912, 1
  %v2415 = vsel %vm1557, %v2413, %v2414
  %v2416 = vrot.slane %v945, 1
  %v2417 = vrot.slane %v913, 1
  %v2418 = vsel %vm1557, %v2416, %v2417
  %v2419 = vrot.slane %v946, 1
  %v2420 = vrot.slane %v914, 1
  %v2421 = vsel %vm1557, %v2419, %v2420
  %2422 = vrot.lane.b32.xlu0 %v2328, 20
  %v2423 = vpop.permute.xlu0 %2422
  %2424 = vrot.lane.b32.xlu0 %v2331, 20
  %v2425 = vpop.permute.xlu0 %2424
  %2426 = vrot.lane.b32.xlu0 %v2334, 20
  %v2427 = vpop.permute.xlu0 %2426
  %2428 = vrot.lane.b32.xlu0 %v2337, 20
  %v2429 = vpop.permute.xlu0 %2428
  %2430 = vrot.lane.b32.xlu0 %v2340, 20
  %v2431 = vpop.permute.xlu0 %2430
  %2432 = vrot.lane.b32.xlu0 %v2343, 20
  %v2433 = vpop.permute.xlu0 %2432
  %2434 = vrot.lane.b32.xlu0 %v2346, 20
  %v2435 = vpop.permute.xlu0 %2434
  %2436 = vrot.lane.b32.xlu0 %v2349, 20
  %v2437 = vpop.permute.xlu0 %2436
  %2438 = vrot.lane.b32.xlu0 %v2352, 20
  %v2439 = vpop.permute.xlu0 %2438
  %2440 = vrot.lane.b32.xlu0 %v2355, 20
  %v2441 = vpop.permute.xlu0 %2440
  %2442 = vrot.lane.b32.xlu0 %v2358, 20
  %v2443 = vpop.permute.xlu0 %2442
  %2444 = vrot.lane.b32.xlu0 %v2361, 20
  %v2445 = vpop.permute.xlu0 %2444
  %2446 = vrot.lane.b32.xlu0 %v2364, 20
  %v2447 = vpop.permute.xlu0 %2446
  %2448 = vrot.lane.b32.xlu0 %v2367, 20
  %v2449 = vpop.permute.xlu0 %2448
  %2450 = vrot.lane.b32.xlu0 %v2370, 20
  %v2451 = vpop.permute.xlu0 %2450
  %2452 = vrot.lane.b32.xlu0 %v2373, 20
  %v2453 = vpop.permute.xlu0 %2452
  %2454 = vrot.lane.b32.xlu0 %v2376, 20
  %v2455 = vpop.permute.xlu0 %2454
  %2456 = vrot.lane.b32.xlu0 %v2379, 20
  %v2457 = vpop.permute.xlu0 %2456
  %2458 = vrot.lane.b32.xlu0 %v2382, 20
  %v2459 = vpop.permute.xlu0 %2458
  %2460 = vrot.lane.b32.xlu0 %v2385, 20
  %v2461 = vpop.permute.xlu0 %2460
  %2462 = vrot.lane.b32.xlu0 %v2388, 20
  %v2463 = vpop.permute.xlu0 %2462
  %2464 = vrot.lane.b32.xlu0 %v2391, 20
  %v2465 = vpop.permute.xlu0 %2464
  %2466 = vrot.lane.b32.xlu0 %v2394, 20
  %v2467 = vpop.permute.xlu0 %2466
  %2468 = vrot.lane.b32.xlu0 %v2397, 20
  %v2469 = vpop.permute.xlu0 %2468
  %2470 = vrot.lane.b32.xlu0 %v2400, 20
  %v2471 = vpop.permute.xlu0 %2470
  %2472 = vrot.lane.b32.xlu0 %v2403, 20
  %v2473 = vpop.permute.xlu0 %2472
  %2474 = vrot.lane.b32.xlu0 %v2406, 20
  %v2475 = vpop.permute.xlu0 %2474
  %2476 = vrot.lane.b32.xlu0 %v2409, 20
  %v2477 = vpop.permute.xlu0 %2476
  %2478 = vrot.lane.b32.xlu0 %v2412, 20
  %v2479 = vpop.permute.xlu0 %2478
  %2480 = vrot.lane.b32.xlu0 %v2415, 20
  %v2481 = vpop.permute.xlu0 %2480
  %2482 = vrot.lane.b32.xlu0 %v2418, 20
  %v2483 = vpop.permute.xlu0 %2482
  %2484 = vrot.lane.b32.xlu0 %v2421, 20
  %v2485 = vpop.permute.xlu0 %2484
  %2518 = vrot.lane.b32.xlu0 %v948, 24
  %v2519 = vpop.permute.xlu0 %2518
  %2520 = vrot.lane.b32.xlu0 %v949, 24
  %v2521 = vpop.permute.xlu0 %2520
  %2522 = vrot.lane.b32.xlu0 %v950, 24
  %v2523 = vpop.permute.xlu0 %2522
  %2524 = vrot.lane.b32.xlu0 %v951, 24
  %v2525 = vpop.permute.xlu0 %2524
  %2526 = vrot.lane.b32.xlu0 %v952, 24
  %v2527 = vpop.permute.xlu0 %2526
  %2528 = vrot.lane.b32.xlu0 %v953, 24
  %v2529 = vpop.permute.xlu0 %2528
  %2530 = vrot.lane.b32.xlu0 %v954, 24
  %v2531 = vpop.permute.xlu0 %2530
  %2532 = vrot.lane.b32.xlu0 %v955, 24
  %v2533 = vpop.permute.xlu0 %2532
  %2534 = vrot.lane.b32.xlu0 %v956, 24
  %v2535 = vpop.permute.xlu0 %2534
  %2536 = vrot.lane.b32.xlu0 %v957, 24
  %v2537 = vpop.permute.xlu0 %2536
  %2538 = vrot.lane.b32.xlu0 %v958, 24
  %v2539 = vpop.permute.xlu0 %2538
  %2540 = vrot.lane.b32.xlu0 %v959, 24
  %v2541 = vpop.permute.xlu0 %2540
  %2542 = vrot.lane.b32.xlu0 %v960, 24
  %v2543 = vpop.permute.xlu0 %2542
  %2544 = vrot.lane.b32.xlu0 %v961, 24
  %v2545 = vpop.permute.xlu0 %2544
  %2546 = vrot.lane.b32.xlu0 %v962, 24
  %v2547 = vpop.permute.xlu0 %2546
  %2548 = vrot.lane.b32.xlu0 %v963, 24
  %v2549 = vpop.permute.xlu0 %2548
  %2550 = vrot.lane.b32.xlu0 %v964, 24
  %v2551 = vpop.permute.xlu0 %2550
  %2552 = vrot.lane.b32.xlu0 %v965, 24
  %v2553 = vpop.permute.xlu0 %2552
  %2554 = vrot.lane.b32.xlu0 %v966, 24
  %v2555 = vpop.permute.xlu0 %2554
  %2556 = vrot.lane.b32.xlu0 %v967, 24
  %v2557 = vpop.permute.xlu0 %2556
  %2558 = vrot.lane.b32.xlu0 %v968, 24
  %v2559 = vpop.permute.xlu0 %2558
  %2560 = vrot.lane.b32.xlu0 %v969, 24
  %v2561 = vpop.permute.xlu0 %2560
  %2562 = vrot.lane.b32.xlu0 %v970, 24
  %v2563 = vpop.permute.xlu0 %2562
  %2564 = vrot.lane.b32.xlu0 %v971, 24
  %v2565 = vpop.permute.xlu0 %2564
  %2566 = vrot.lane.b32.xlu0 %v972, 24
  %v2567 = vpop.permute.xlu0 %2566
  %2568 = vrot.lane.b32.xlu0 %v973, 24
  %v2569 = vpop.permute.xlu0 %2568
  %2570 = vrot.lane.b32.xlu0 %v974, 24
  %v2571 = vpop.permute.xlu0 %2570
  %2572 = vrot.lane.b32.xlu0 %v975, 24
  %v2573 = vpop.permute.xlu0 %2572
  %2574 = vrot.lane.b32.xlu0 %v976, 24
  %v2575 = vpop.permute.xlu0 %2574
  %2576 = vrot.lane.b32.xlu0 %v977, 24
  %v2577 = vpop.permute.xlu0 %2576
  %2578 = vrot.lane.b32.xlu0 %v978, 24
  %v2579 = vpop.permute.xlu0 %2578
  %2580 = vrot.lane.b32.xlu0 %v979, 24
  %v2581 = vpop.permute.xlu0 %2580
  %v2583 = vshrl.u32 %v948, 16
  %v2585 = vshll.u32 %v948, 16
  %v2587 = vrot.slane %v2585, 1
  %v2588 = vor.u32 %v2583, %v2587
  %v2590 = vshll.u32 %v980, 16
  %v2592 = vrot.slane %v2590, 1
  %v2593 = vsel %vm1044, %v2588, %v2592
  %v2595 = vshrl.u32 %v949, 16
  %v2597 = vshll.u32 %v949, 16
  %v2599 = vrot.slane %v2597, 1
  %v2600 = vor.u32 %v2595, %v2599
  %v2602 = vshll.u32 %v981, 16
  %v2604 = vrot.slane %v2602, 1
  %v2605 = vsel %vm1044, %v2600, %v2604
  %v2607 = vshrl.u32 %v950, 16
  %v2609 = vshll.u32 %v950, 16
  %v2611 = vrot.slane %v2609, 1
  %v2612 = vor.u32 %v2607, %v2611
  %v2614 = vshll.u32 %v982, 16
  %v2616 = vrot.slane %v2614, 1
  %v2617 = vsel %vm1044, %v2612, %v2616
  %v2619 = vshrl.u32 %v951, 16
  %v2621 = vshll.u32 %v951, 16
  %v2623 = vrot.slane %v2621, 1
  %v2624 = vor.u32 %v2619, %v2623
  %v2626 = vshll.u32 %v983, 16
  %v2628 = vrot.slane %v2626, 1
  %v2629 = vsel %vm1044, %v2624, %v2628
  %v2631 = vshrl.u32 %v952, 16
  %v2633 = vshll.u32 %v952, 16
  %v2635 = vrot.slane %v2633, 1
  %v2636 = vor.u32 %v2631, %v2635
  %v2638 = vshll.u32 %v984, 16
  %v2640 = vrot.slane %v2638, 1
  %v2641 = vsel %vm1044, %v2636, %v2640
  %v2643 = vshrl.u32 %v953, 16
  %v2645 = vshll.u32 %v953, 16
  %v2647 = vrot.slane %v2645, 1
  %v2648 = vor.u32 %v2643, %v2647
  %v2650 = vshll.u32 %v985, 16
  %v2652 = vrot.slane %v2650, 1
  %v2653 = vsel %vm1044, %v2648, %v2652
  %v2655 = vshrl.u32 %v954, 16
  %v2657 = vshll.u32 %v954, 16
  %v2659 = vrot.slane %v2657, 1
  %v2660 = vor.u32 %v2655, %v2659
  %v2662 = vshll.u32 %v986, 16
  %v2664 = vrot.slane %v2662, 1
  %v2665 = vsel %vm1044, %v2660, %v2664
  %v2667 = vshrl.u32 %v955, 16
  %v2669 = vshll.u32 %v955, 16
  %v2671 = vrot.slane %v2669, 1
  %v2672 = vor.u32 %v2667, %v2671
  %v2674 = vshll.u32 %v987, 16
  %v2676 = vrot.slane %v2674, 1
  %v2677 = vsel %vm1044, %v2672, %v2676
  %v2679 = vshrl.u32 %v956, 16
  %v2681 = vshll.u32 %v956, 16
  %v2683 = vrot.slane %v2681, 1
  %v2684 = vor.u32 %v2679, %v2683
  %v2686 = vshll.u32 %v988, 16
  %v2688 = vrot.slane %v2686, 1
  %v2689 = vsel %vm1044, %v2684, %v2688
  %v2691 = vshrl.u32 %v957, 16
  %v2693 = vshll.u32 %v957, 16
  %v2695 = vrot.slane %v2693, 1
  %v2696 = vor.u32 %v2691, %v2695
  %v2698 = vshll.u32 %v989, 16
  %v2700 = vrot.slane %v2698, 1
  %v2701 = vsel %vm1044, %v2696, %v2700
  %v2703 = vshrl.u32 %v958, 16
  %v2705 = vshll.u32 %v958, 16
  %v2707 = vrot.slane %v2705, 1
  %v2708 = vor.u32 %v2703, %v2707
  %v2710 = vshll.u32 %v990, 16
  %v2712 = vrot.slane %v2710, 1
  %v2713 = vsel %vm1044, %v2708, %v2712
  %v2715 = vshrl.u32 %v959, 16
  %v2717 = vshll.u32 %v959, 16
  %v2719 = vrot.slane %v2717, 1
  %v2720 = vor.u32 %v2715, %v2719
  %v2722 = vshll.u32 %v991, 16
  %v2724 = vrot.slane %v2722, 1
  %v2725 = vsel %vm1044, %v2720, %v2724
  %v2727 = vshrl.u32 %v960, 16
  %v2729 = vshll.u32 %v960, 16
  %v2731 = vrot.slane %v2729, 1
  %v2732 = vor.u32 %v2727, %v2731
  %v2734 = vshll.u32 %v992, 16
  %v2736 = vrot.slane %v2734, 1
  %v2737 = vsel %vm1044, %v2732, %v2736
  %v2739 = vshrl.u32 %v961, 16
  %v2741 = vshll.u32 %v961, 16
  %v2743 = vrot.slane %v2741, 1
  %v2744 = vor.u32 %v2739, %v2743
  %v2746 = vshll.u32 %v993, 16
  %v2748 = vrot.slane %v2746, 1
  %v2749 = vsel %vm1044, %v2744, %v2748
  %v2751 = vshrl.u32 %v962, 16
  %v2753 = vshll.u32 %v962, 16
  %v2755 = vrot.slane %v2753, 1
  %v2756 = vor.u32 %v2751, %v2755
  %v2758 = vshll.u32 %v994, 16
  %v2760 = vrot.slane %v2758, 1
  %v2761 = vsel %vm1044, %v2756, %v2760
  %v2763 = vshrl.u32 %v963, 16
  %v2765 = vshll.u32 %v963, 16
  %v2767 = vrot.slane %v2765, 1
  %v2768 = vor.u32 %v2763, %v2767
  %v2770 = vshll.u32 %v995, 16
  %v2772 = vrot.slane %v2770, 1
  %v2773 = vsel %vm1044, %v2768, %v2772
  %v2775 = vshrl.u32 %v964, 16
  %v2777 = vshll.u32 %v964, 16
  %v2779 = vrot.slane %v2777, 1
  %v2780 = vor.u32 %v2775, %v2779
  %v2782 = vshll.u32 %v996, 16
  %v2784 = vrot.slane %v2782, 1
  %v2785 = vsel %vm1044, %v2780, %v2784
  %v2787 = vshrl.u32 %v965, 16
  %v2789 = vshll.u32 %v965, 16
  %v2791 = vrot.slane %v2789, 1
  %v2792 = vor.u32 %v2787, %v2791
  %v2794 = vshll.u32 %v997, 16
  %v2796 = vrot.slane %v2794, 1
  %v2797 = vsel %vm1044, %v2792, %v2796
  %v2799 = vshrl.u32 %v966, 16
  %v2801 = vshll.u32 %v966, 16
  %v2803 = vrot.slane %v2801, 1
  %v2804 = vor.u32 %v2799, %v2803
  %v2806 = vshll.u32 %v998, 16
  %v2808 = vrot.slane %v2806, 1
  %v2809 = vsel %vm1044, %v2804, %v2808
  %v2811 = vshrl.u32 %v967, 16
  %v2813 = vshll.u32 %v967, 16
  %v2815 = vrot.slane %v2813, 1
  %v2816 = vor.u32 %v2811, %v2815
  %v2818 = vshll.u32 %v999, 16
  %v2820 = vrot.slane %v2818, 1
  %v2821 = vsel %vm1044, %v2816, %v2820
  %v2823 = vshrl.u32 %v968, 16
  %v2825 = vshll.u32 %v968, 16
  %v2827 = vrot.slane %v2825, 1
  %v2828 = vor.u32 %v2823, %v2827
  %v2830 = vshll.u32 %v1000, 16
  %v2832 = vrot.slane %v2830, 1
  %v2833 = vsel %vm1044, %v2828, %v2832
  %v2835 = vshrl.u32 %v969, 16
  %v2837 = vshll.u32 %v969, 16
  %v2839 = vrot.slane %v2837, 1
  %v2840 = vor.u32 %v2835, %v2839
  %v2842 = vshll.u32 %v1001, 16
  %v2844 = vrot.slane %v2842, 1
  %v2845 = vsel %vm1044, %v2840, %v2844
  %v2847 = vshrl.u32 %v970, 16
  %v2849 = vshll.u32 %v970, 16
  %v2851 = vrot.slane %v2849, 1
  %v2852 = vor.u32 %v2847, %v2851
  %v2854 = vshll.u32 %v1002, 16
  %v2856 = vrot.slane %v2854, 1
  %v2857 = vsel %vm1044, %v2852, %v2856
  %v2859 = vshrl.u32 %v971, 16
  %v2861 = vshll.u32 %v971, 16
  %v2863 = vrot.slane %v2861, 1
  %v2864 = vor.u32 %v2859, %v2863
  %v2866 = vshll.u32 %v1003, 16
  %v2868 = vrot.slane %v2866, 1
  %v2869 = vsel %vm1044, %v2864, %v2868
  %v2871 = vshrl.u32 %v972, 16
  %v2873 = vshll.u32 %v972, 16
  %v2875 = vrot.slane %v2873, 1
  %v2876 = vor.u32 %v2871, %v2875
  %v2878 = vshll.u32 %v1004, 16
  %v2880 = vrot.slane %v2878, 1
  %v2881 = vsel %vm1044, %v2876, %v2880
  %v2883 = vshrl.u32 %v973, 16
  %v2885 = vshll.u32 %v973, 16
  %v2887 = vrot.slane %v2885, 1
  %v2888 = vor.u32 %v2883, %v2887
  %v2890 = vshll.u32 %v1005, 16
  %v2892 = vrot.slane %v2890, 1
  %v2893 = vsel %vm1044, %v2888, %v2892
  %v2895 = vshrl.u32 %v974, 16
  %v2897 = vshll.u32 %v974, 16
  %v2899 = vrot.slane %v2897, 1
  %v2900 = vor.u32 %v2895, %v2899
  %v2902 = vshll.u32 %v1006, 16
  %v2904 = vrot.slane %v2902, 1
  %v2905 = vsel %vm1044, %v2900, %v2904
  %v2907 = vshrl.u32 %v975, 16
  %v2909 = vshll.u32 %v975, 16
  %v2911 = vrot.slane %v2909, 1
  %v2912 = vor.u32 %v2907, %v2911
  %v2914 = vshll.u32 %v1007, 16
  %v2916 = vrot.slane %v2914, 1
  %v2917 = vsel %vm1044, %v2912, %v2916
  %v2919 = vshrl.u32 %v976, 16
  %v2921 = vshll.u32 %v976, 16
  %v2923 = vrot.slane %v2921, 1
  %v2924 = vor.u32 %v2919, %v2923
  %v2926 = vshll.u32 %v1008, 16
  %v2928 = vrot.slane %v2926, 1
  %v2929 = vsel %vm1044, %v2924, %v2928
  %v2931 = vshrl.u32 %v977, 16
  %v2933 = vshll.u32 %v977, 16
  %v2935 = vrot.slane %v2933, 1
  %v2936 = vor.u32 %v2931, %v2935
  %v2938 = vshll.u32 %v1009, 16
  %v2940 = vrot.slane %v2938, 1
  %v2941 = vsel %vm1044, %v2936, %v2940
  %v2943 = vshrl.u32 %v978, 16
  %v2945 = vshll.u32 %v978, 16
  %v2947 = vrot.slane %v2945, 1
  %v2948 = vor.u32 %v2943, %v2947
  %v2950 = vshll.u32 %v1010, 16
  %v2952 = vrot.slane %v2950, 1
  %v2953 = vsel %vm1044, %v2948, %v2952
  %v2955 = vshrl.u32 %v979, 16
  %v2957 = vshll.u32 %v979, 16
  %v2959 = vrot.slane %v2957, 1
  %v2960 = vor.u32 %v2955, %v2959
  %v2962 = vshll.u32 %v1011, 16
  %v2964 = vrot.slane %v2962, 1
  %v2965 = vsel %vm1044, %v2960, %v2964
  %2966 = vrot.lane.b32.xlu0 %v2593, 28
  %v2967 = vpop.permute.xlu0 %2966
  %2968 = vrot.lane.b32.xlu0 %v2605, 28
  %v2969 = vpop.permute.xlu0 %2968
  %2970 = vrot.lane.b32.xlu0 %v2617, 28
  %v2971 = vpop.permute.xlu0 %2970
  %2972 = vrot.lane.b32.xlu0 %v2629, 28
  %v2973 = vpop.permute.xlu0 %2972
  %2974 = vrot.lane.b32.xlu0 %v2641, 28
  %v2975 = vpop.permute.xlu0 %2974
  %2976 = vrot.lane.b32.xlu0 %v2653, 28
  %v2977 = vpop.permute.xlu0 %2976
  %2978 = vrot.lane.b32.xlu0 %v2665, 28
  %v2979 = vpop.permute.xlu0 %2978
  %2980 = vrot.lane.b32.xlu0 %v2677, 28
  %v2981 = vpop.permute.xlu0 %2980
  %2982 = vrot.lane.b32.xlu0 %v2689, 28
  %v2983 = vpop.permute.xlu0 %2982
  %2984 = vrot.lane.b32.xlu0 %v2701, 28
  %v2985 = vpop.permute.xlu0 %2984
  %2986 = vrot.lane.b32.xlu0 %v2713, 28
  %v2987 = vpop.permute.xlu0 %2986
  %2988 = vrot.lane.b32.xlu0 %v2725, 28
  %v2989 = vpop.permute.xlu0 %2988
  %2990 = vrot.lane.b32.xlu0 %v2737, 28
  %v2991 = vpop.permute.xlu0 %2990
  %2992 = vrot.lane.b32.xlu0 %v2749, 28
  %v2993 = vpop.permute.xlu0 %2992
  %2994 = vrot.lane.b32.xlu0 %v2761, 28
  %v2995 = vpop.permute.xlu0 %2994
  %2996 = vrot.lane.b32.xlu0 %v2773, 28
  %v2997 = vpop.permute.xlu0 %2996
  %2998 = vrot.lane.b32.xlu0 %v2785, 28
  %v2999 = vpop.permute.xlu0 %2998
  %3000 = vrot.lane.b32.xlu0 %v2797, 28
  %v3001 = vpop.permute.xlu0 %3000
  %3002 = vrot.lane.b32.xlu0 %v2809, 28
  %v3003 = vpop.permute.xlu0 %3002
  %3004 = vrot.lane.b32.xlu0 %v2821, 28
  %v3005 = vpop.permute.xlu0 %3004
  %3006 = vrot.lane.b32.xlu0 %v2833, 28
  %v3007 = vpop.permute.xlu0 %3006
  %3008 = vrot.lane.b32.xlu0 %v2845, 28
  %v3009 = vpop.permute.xlu0 %3008
  %3010 = vrot.lane.b32.xlu0 %v2857, 28
  %v3011 = vpop.permute.xlu0 %3010
  %3012 = vrot.lane.b32.xlu0 %v2869, 28
  %v3013 = vpop.permute.xlu0 %3012
  %3014 = vrot.lane.b32.xlu0 %v2881, 28
  %v3015 = vpop.permute.xlu0 %3014
  %3016 = vrot.lane.b32.xlu0 %v2893, 28
  %v3017 = vpop.permute.xlu0 %3016
  %3018 = vrot.lane.b32.xlu0 %v2905, 28
  %v3019 = vpop.permute.xlu0 %3018
  %3020 = vrot.lane.b32.xlu0 %v2917, 28
  %v3021 = vpop.permute.xlu0 %3020
  %3022 = vrot.lane.b32.xlu0 %v2929, 28
  %v3023 = vpop.permute.xlu0 %3022
  %3024 = vrot.lane.b32.xlu0 %v2941, 28
  %v3025 = vpop.permute.xlu0 %3024
  %3026 = vrot.lane.b32.xlu0 %v2953, 28
  %v3027 = vpop.permute.xlu0 %3026
  %3028 = vrot.lane.b32.xlu0 %v2965, 28
  %v3029 = vpop.permute.xlu0 %3028
  %v3094 = vrot.slane %v1012, 1
  %v3095 = vrot.slane %v980, 1
  %v3096 = vsel %vm1557, %v3094, %v3095
  %v3097 = vrot.slane %v1013, 1
  %v3098 = vrot.slane %v981, 1
  %v3099 = vsel %vm1557, %v3097, %v3098
  %v3100 = vrot.slane %v1014, 1
  %v3101 = vrot.slane %v982, 1
  %v3102 = vsel %vm1557, %v3100, %v3101
  %v3103 = vrot.slane %v1015, 1
  %v3104 = vrot.slane %v983, 1
  %v3105 = vsel %vm1557, %v3103, %v3104
  %v3106 = vrot.slane %v1016, 1
  %v3107 = vrot.slane %v984, 1
  %v3108 = vsel %vm1557, %v3106, %v3107
  %v3109 = vrot.slane %v1017, 1
  %v3110 = vrot.slane %v985, 1
  %v3111 = vsel %vm1557, %v3109, %v3110
  %v3112 = vrot.slane %v1018, 1
  %v3113 = vrot.slane %v986, 1
  %v3114 = vsel %vm1557, %v3112, %v3113
  %v3115 = vrot.slane %v1019, 1
  %v3116 = vrot.slane %v987, 1
  %v3117 = vsel %vm1557, %v3115, %v3116
  %v3118 = vrot.slane %v1020, 1
  %v3119 = vrot.slane %v988, 1
  %v3120 = vsel %vm1557, %v3118, %v3119
  %v3121 = vrot.slane %v1021, 1
  %v3122 = vrot.slane %v989, 1
  %v3123 = vsel %vm1557, %v3121, %v3122
  %v3124 = vrot.slane %v1022, 1
  %v3125 = vrot.slane %v990, 1
  %v3126 = vsel %vm1557, %v3124, %v3125
  %v3127 = vrot.slane %v1023, 1
  %v3128 = vrot.slane %v991, 1
  %v3129 = vsel %vm1557, %v3127, %v3128
  %v3130 = vrot.slane %v1024, 1
  %v3131 = vrot.slane %v992, 1
  %v3132 = vsel %vm1557, %v3130, %v3131
  %v3133 = vrot.slane %v1025, 1
  %v3134 = vrot.slane %v993, 1
  %v3135 = vsel %vm1557, %v3133, %v3134
  %v3136 = vrot.slane %v1026, 1
  %v3137 = vrot.slane %v994, 1
  %v3138 = vsel %vm1557, %v3136, %v3137
  %v3139 = vrot.slane %v1027, 1
  %v3140 = vrot.slane %v995, 1
  %v3141 = vsel %vm1557, %v3139, %v3140
  %v3142 = vrot.slane %v1028, 1
  %v3143 = vrot.slane %v996, 1
  %v3144 = vsel %vm1557, %v3142, %v3143
  %v3145 = vrot.slane %v1029, 1
  %v3146 = vrot.slane %v997, 1
  %v3147 = vsel %vm1557, %v3145, %v3146
  %v3148 = vrot.slane %v1030, 1
  %v3149 = vrot.slane %v998, 1
  %v3150 = vsel %vm1557, %v3148, %v3149
  %v3151 = vrot.slane %v1031, 1
  %v3152 = vrot.slane %v999, 1
  %v3153 = vsel %vm1557, %v3151, %v3152
  %v3154 = vrot.slane %v1032, 1
  %v3155 = vrot.slane %v1000, 1
  %v3156 = vsel %vm1557, %v3154, %v3155
  %v3157 = vrot.slane %v1033, 1
  %v3158 = vrot.slane %v1001, 1
  %v3159 = vsel %vm1557, %v3157, %v3158
  %v3160 = vrot.slane %v1034, 1
  %v3161 = vrot.slane %v1002, 1
  %v3162 = vsel %vm1557, %v3160, %v3161
  %v3163 = vrot.slane %v1035, 1
  %v3164 = vrot.slane %v1003, 1
  %v3165 = vsel %vm1557, %v3163, %v3164
  %v3166 = vrot.slane %v1036, 1
  %v3167 = vrot.slane %v1004, 1
  %v3168 = vsel %vm1557, %v3166, %v3167
  %v3169 = vrot.slane %v1037, 1
  %v3170 = vrot.slane %v1005, 1
  %v3171 = vsel %vm1557, %v3169, %v3170
  %v3172 = vrot.slane %v1038, 1
  %v3173 = vrot.slane %v1006, 1
  %v3174 = vsel %vm1557, %v3172, %v3173
  %v3175 = vrot.slane %v1039, 1
  %v3176 = vrot.slane %v1007, 1
  %v3177 = vsel %vm1557, %v3175, %v3176
  %v3178 = vrot.slane %v1040, 1
  %v3179 = vrot.slane %v1008, 1
  %v3180 = vsel %vm1557, %v3178, %v3179
  %v3181 = vrot.slane %v1041, 1
  %v3182 = vrot.slane %v1009, 1
  %v3183 = vsel %vm1557, %v3181, %v3182
  %v3184 = vrot.slane %v1042, 1
  %v3185 = vrot.slane %v1010, 1
  %v3186 = vsel %vm1557, %v3184, %v3185
  %v3187 = vrot.slane %v1043, 1
  %v3188 = vrot.slane %v1011, 1
  %v3189 = vsel %vm1557, %v3187, %v3188
  %3190 = vrot.lane.b32.xlu0 %v3096, 32
  %v3191 = vpop.permute.xlu0 %3190
  %3192 = vrot.lane.b32.xlu0 %v3099, 32
  %v3193 = vpop.permute.xlu0 %3192
  %3194 = vrot.lane.b32.xlu0 %v3102, 32
  %v3195 = vpop.permute.xlu0 %3194
  %3196 = vrot.lane.b32.xlu0 %v3105, 32
  %v3197 = vpop.permute.xlu0 %3196
  %3198 = vrot.lane.b32.xlu0 %v3108, 32
  %v3199 = vpop.permute.xlu0 %3198
  %3200 = vrot.lane.b32.xlu0 %v3111, 32
  %v3201 = vpop.permute.xlu0 %3200
  %3202 = vrot.lane.b32.xlu0 %v3114, 32
  %v3203 = vpop.permute.xlu0 %3202
  %3204 = vrot.lane.b32.xlu0 %v3117, 32
  %v3205 = vpop.permute.xlu0 %3204
  %3206 = vrot.lane.b32.xlu0 %v3120, 32
  %v3207 = vpop.permute.xlu0 %3206
  %3208 = vrot.lane.b32.xlu0 %v3123, 32
  %v3209 = vpop.permute.xlu0 %3208
  %3210 = vrot.lane.b32.xlu0 %v3126, 32
  %v3211 = vpop.permute.xlu0 %3210
  %3212 = vrot.lane.b32.xlu0 %v3129, 32
  %v3213 = vpop.permute.xlu0 %3212
  %3214 = vrot.lane.b32.xlu0 %v3132, 32
  %v3215 = vpop.permute.xlu0 %3214
  %3216 = vrot.lane.b32.xlu0 %v3135, 32
  %v3217 = vpop.permute.xlu0 %3216
  %3218 = vrot.lane.b32.xlu0 %v3138, 32
  %v3219 = vpop.permute.xlu0 %3218
  %3220 = vrot.lane.b32.xlu0 %v3141, 32
  %v3221 = vpop.permute.xlu0 %3220
  %3222 = vrot.lane.b32.xlu0 %v3144, 32
  %v3223 = vpop.permute.xlu0 %3222
  %3224 = vrot.lane.b32.xlu0 %v3147, 32
  %v3225 = vpop.permute.xlu0 %3224
  %3226 = vrot.lane.b32.xlu0 %v3150, 32
  %v3227 = vpop.permute.xlu0 %3226
  %3228 = vrot.lane.b32.xlu0 %v3153, 32
  %v3229 = vpop.permute.xlu0 %3228
  %3230 = vrot.lane.b32.xlu0 %v3156, 32
  %v3231 = vpop.permute.xlu0 %3230
  %3232 = vrot.lane.b32.xlu0 %v3159, 32
  %v3233 = vpop.permute.xlu0 %3232
  %3234 = vrot.lane.b32.xlu0 %v3162, 32
  %v3235 = vpop.permute.xlu0 %3234
  %3236 = vrot.lane.b32.xlu0 %v3165, 32
  %v3237 = vpop.permute.xlu0 %3236
  %3238 = vrot.lane.b32.xlu0 %v3168, 32
  %v3239 = vpop.permute.xlu0 %3238
  %3240 = vrot.lane.b32.xlu0 %v3171, 32
  %v3241 = vpop.permute.xlu0 %3240
  %3242 = vrot.lane.b32.xlu0 %v3174, 32
  %v3243 = vpop.permute.xlu0 %3242
  %3244 = vrot.lane.b32.xlu0 %v3177, 32
  %v3245 = vpop.permute.xlu0 %3244
  %3246 = vrot.lane.b32.xlu0 %v3180, 32
  %v3247 = vpop.permute.xlu0 %3246
  %3248 = vrot.lane.b32.xlu0 %v3183, 32
  %v3249 = vpop.permute.xlu0 %3248
  %3250 = vrot.lane.b32.xlu0 %v3186, 32
  %v3251 = vpop.permute.xlu0 %3250
  %3252 = vrot.lane.b32.xlu0 %v3189, 32
  %v3253 = vpop.permute.xlu0 %3252
  %v3255 = vsel %vm681, %v754, %v1430
  %v3257 = vsel %vm681, %v755, %v1432
  %v3259 = vsel %vm681, %v756, %v1434
  %v3261 = vsel %vm681, %v757, %v1436
  %v3263 = vsel %vm681, %v758, %v1438
  %v3265 = vsel %vm681, %v759, %v1440
  %v3267 = vsel %vm681, %v760, %v1442
  %v3269 = vsel %vm681, %v761, %v1444
  %v3271 = vsel %vm681, %v762, %v1446
  %v3273 = vsel %vm681, %v763, %v1448
  %v3275 = vsel %vm681, %v764, %v1450
  %v3277 = vsel %vm681, %v765, %v1452
  %v3279 = vsel %vm681, %v766, %v1454
  %v3281 = vsel %vm681, %v767, %v1456
  %v3283 = vsel %vm681, %v768, %v1458
  %v3285 = vsel %vm681, %v769, %v1460
  %v3287 = vsel %vm681, %v770, %v1462
  %v3289 = vsel %vm681, %v771, %v1464
  %v3291 = vsel %vm681, %v772, %v1466
  %v3293 = vsel %vm681, %v773, %v1468
  %v3295 = vsel %vm681, %v774, %v1470
  %v3297 = vsel %vm681, %v775, %v1472
  %v3299 = vsel %vm681, %v776, %v1474
  %v3301 = vsel %vm681, %v777, %v1476
  %v3303 = vsel %vm681, %v778, %v1478
  %v3305 = vsel %vm681, %v779, %v1480
  %v3307 = vsel %vm681, %v780, %v1482
  %v3309 = vsel %vm681, %v781, %v1484
  %v3311 = vsel %vm681, %v782, %v1486
  %v3313 = vsel %vm681, %v783, %v1488
  %v3315 = vsel %vm681, %v784, %v1490
  %v3317 = vsel %vm681, %v785, %v1492
  %vm3318 = vcmask 64512
  %v3320 = vsel %vm3318, %v3255, %v1655
  %v3322 = vsel %vm3318, %v3257, %v1657
  %v3324 = vsel %vm3318, %v3259, %v1659
  %v3326 = vsel %vm3318, %v3261, %v1661
  %v3328 = vsel %vm3318, %v3263, %v1663
  %v3330 = vsel %vm3318, %v3265, %v1665
  %v3332 = vsel %vm3318, %v3267, %v1667
  %v3334 = vsel %vm3318, %v3269, %v1669
  %v3336 = vsel %vm3318, %v3271, %v1671
  %v3338 = vsel %vm3318, %v3273, %v1673
  %v3340 = vsel %vm3318, %v3275, %v1675
  %v3342 = vsel %vm3318, %v3277, %v1677
  %v3344 = vsel %vm3318, %v3279, %v1679
  %v3346 = vsel %vm3318, %v3281, %v1681
  %v3348 = vsel %vm3318, %v3283, %v1683
  %v3350 = vsel %vm3318, %v3285, %v1685
  %v3352 = vsel %vm3318, %v3287, %v1687
  %v3354 = vsel %vm3318, %v3289, %v1689
  %v3356 = vsel %vm3318, %v3291, %v1691
  %v3358 = vsel %vm3318, %v3293, %v1693
  %v3360 = vsel %vm3318, %v3295, %v1695
  %v3362 = vsel %vm3318, %v3297, %v1697
  %v3364 = vsel %vm3318, %v3299, %v1699
  %v3366 = vsel %vm3318, %v3301, %v1701
  %v3368 = vsel %vm3318, %v3303, %v1703
  %v3370 = vsel %vm3318, %v3305, %v1705
  %v3372 = vsel %vm3318, %v3307, %v1707
  %v3374 = vsel %vm3318, %v3309, %v1709
  %v3376 = vsel %vm3318, %v3311, %v1711
  %v3378 = vsel %vm3318, %v3313, %v1713
  %v3380 = vsel %vm3318, %v3315, %v1715
  %v3382 = vsel %vm3318, %v3317, %v1717
  %vm3383 = vcmask 97280
  %v3385 = vsel %vm3383, %v3320, %v1751
  %v3387 = vsel %vm3383, %v3322, %v1753
  %v3389 = vsel %vm3383, %v3324, %v1755
  %v3391 = vsel %vm3383, %v3326, %v1757
  %v3393 = vsel %vm3383, %v3328, %v1759
  %v3395 = vsel %vm3383, %v3330, %v1761
  %v3397 = vsel %vm3383, %v3332, %v1763
  %v3399 = vsel %vm3383, %v3334, %v1765
  %v3401 = vsel %vm3383, %v3336, %v1767
  %v3403 = vsel %vm3383, %v3338, %v1769
  %v3405 = vsel %vm3383, %v3340, %v1771
  %v3407 = vsel %vm3383, %v3342, %v1773
  %v3409 = vsel %vm3383, %v3344, %v1775
  %v3411 = vsel %vm3383, %v3346, %v1777
  %v3413 = vsel %vm3383, %v3348, %v1779
  %v3415 = vsel %vm3383, %v3350, %v1781
  %v3417 = vsel %vm3383, %v3352, %v1783
  %v3419 = vsel %vm3383, %v3354, %v1785
  %v3421 = vsel %vm3383, %v3356, %v1787
  %v3423 = vsel %vm3383, %v3358, %v1789
  %v3425 = vsel %vm3383, %v3360, %v1791
  %v3427 = vsel %vm3383, %v3362, %v1793
  %v3429 = vsel %vm3383, %v3364, %v1795
  %v3431 = vsel %vm3383, %v3366, %v1797
  %v3433 = vsel %vm3383, %v3368, %v1799
  %v3435 = vsel %vm3383, %v3370, %v1801
  %v3437 = vsel %vm3383, %v3372, %v1803
  %v3439 = vsel %vm3383, %v3374, %v1805
  %v3441 = vsel %vm3383, %v3376, %v1807
  %v3443 = vsel %vm3383, %v3378, %v1809
  %v3445 = vsel %vm3383, %v3380, %v1811
  %v3447 = vsel %vm3383, %v3382, %v1813
  %vm3448 = vcmask 130048
  %v3450 = vsel %vm3448, %v3385, %v2199
  %v3452 = vsel %vm3448, %v3387, %v2201
  %v3454 = vsel %vm3448, %v3389, %v2203
  %v3456 = vsel %vm3448, %v3391, %v2205
  %v3458 = vsel %vm3448, %v3393, %v2207
  %v3460 = vsel %vm3448, %v3395, %v2209
  %v3462 = vsel %vm3448, %v3397, %v2211
  %v3464 = vsel %vm3448, %v3399, %v2213
  %v3466 = vsel %vm3448, %v3401, %v2215
  %v3468 = vsel %vm3448, %v3403, %v2217
  %v3470 = vsel %vm3448, %v3405, %v2219
  %v3472 = vsel %vm3448, %v3407, %v2221
  %v3474 = vsel %vm3448, %v3409, %v2223
  %v3476 = vsel %vm3448, %v3411, %v2225
  %v3478 = vsel %vm3448, %v3413, %v2227
  %v3480 = vsel %vm3448, %v3415, %v2229
  %v3482 = vsel %vm3448, %v3417, %v2231
  %v3484 = vsel %vm3448, %v3419, %v2233
  %v3486 = vsel %vm3448, %v3421, %v2235
  %v3488 = vsel %vm3448, %v3423, %v2237
  %v3490 = vsel %vm3448, %v3425, %v2239
  %v3492 = vsel %vm3448, %v3427, %v2241
  %v3494 = vsel %vm3448, %v3429, %v2243
  %v3496 = vsel %vm3448, %v3431, %v2245
  %v3498 = vsel %vm3448, %v3433, %v2247
  %v3500 = vsel %vm3448, %v3435, %v2249
  %v3502 = vsel %vm3448, %v3437, %v2251
  %v3504 = vsel %vm3448, %v3439, %v2253
  %v3506 = vsel %vm3448, %v3441, %v2255
  %v3508 = vsel %vm3448, %v3443, %v2257
  %v3510 = vsel %vm3448, %v3445, %v2259
  %v3512 = vsel %vm3448, %v3447, %v2261
  %vm3513 = vcmask 162816
  %v3515 = vsel %vm3513, %v3450, %v2423
  %v3517 = vsel %vm3513, %v3452, %v2425
  %v3519 = vsel %vm3513, %v3454, %v2427
  %v3521 = vsel %vm3513, %v3456, %v2429
  %v3523 = vsel %vm3513, %v3458, %v2431
  %v3525 = vsel %vm3513, %v3460, %v2433
  %v3527 = vsel %vm3513, %v3462, %v2435
  %v3529 = vsel %vm3513, %v3464, %v2437
  %v3531 = vsel %vm3513, %v3466, %v2439
  %v3533 = vsel %vm3513, %v3468, %v2441
  %v3535 = vsel %vm3513, %v3470, %v2443
  %v3537 = vsel %vm3513, %v3472, %v2445
  %v3539 = vsel %vm3513, %v3474, %v2447
  %v3541 = vsel %vm3513, %v3476, %v2449
  %v3543 = vsel %vm3513, %v3478, %v2451
  %v3545 = vsel %vm3513, %v3480, %v2453
  %v3547 = vsel %vm3513, %v3482, %v2455
  %v3549 = vsel %vm3513, %v3484, %v2457
  %v3551 = vsel %vm3513, %v3486, %v2459
  %v3553 = vsel %vm3513, %v3488, %v2461
  %v3555 = vsel %vm3513, %v3490, %v2463
  %v3557 = vsel %vm3513, %v3492, %v2465
  %v3559 = vsel %vm3513, %v3494, %v2467
  %v3561 = vsel %vm3513, %v3496, %v2469
  %v3563 = vsel %vm3513, %v3498, %v2471
  %v3565 = vsel %vm3513, %v3500, %v2473
  %v3567 = vsel %vm3513, %v3502, %v2475
  %v3569 = vsel %vm3513, %v3504, %v2477
  %v3571 = vsel %vm3513, %v3506, %v2479
  %v3573 = vsel %vm3513, %v3508, %v2481
  %v3575 = vsel %vm3513, %v3510, %v2483
  %v3577 = vsel %vm3513, %v3512, %v2485
  %vm3578 = vcmask 195584
  %v3580 = vsel %vm3578, %v3515, %v2519
  %v3582 = vsel %vm3578, %v3517, %v2521
  %v3584 = vsel %vm3578, %v3519, %v2523
  %v3586 = vsel %vm3578, %v3521, %v2525
  %v3588 = vsel %vm3578, %v3523, %v2527
  %v3590 = vsel %vm3578, %v3525, %v2529
  %v3592 = vsel %vm3578, %v3527, %v2531
  %v3594 = vsel %vm3578, %v3529, %v2533
  %v3596 = vsel %vm3578, %v3531, %v2535
  %v3598 = vsel %vm3578, %v3533, %v2537
  %v3600 = vsel %vm3578, %v3535, %v2539
  %v3602 = vsel %vm3578, %v3537, %v2541
  %v3604 = vsel %vm3578, %v3539, %v2543
  %v3606 = vsel %vm3578, %v3541, %v2545
  %v3608 = vsel %vm3578, %v3543, %v2547
  %v3610 = vsel %vm3578, %v3545, %v2549
  %v3612 = vsel %vm3578, %v3547, %v2551
  %v3614 = vsel %vm3578, %v3549, %v2553
  %v3616 = vsel %vm3578, %v3551, %v2555
  %v3618 = vsel %vm3578, %v3553, %v2557
  %v3620 = vsel %vm3578, %v3555, %v2559
  %v3622 = vsel %vm3578, %v3557, %v2561
  %v3624 = vsel %vm3578, %v3559, %v2563
  %v3626 = vsel %vm3578, %v3561, %v2565
  %v3628 = vsel %vm3578, %v3563, %v2567
  %v3630 = vsel %vm3578, %v3565, %v2569
  %v3632 = vsel %vm3578, %v3567, %v2571
  %v3634 = vsel %vm3578, %v3569, %v2573
  %v3636 = vsel %vm3578, %v3571, %v2575
  %v3638 = vsel %vm3578, %v3573, %v2577
  %v3640 = vsel %vm3578, %v3575, %v2579
  %v3642 = vsel %vm3578, %v3577, %v2581
  %vm3643 = vcmask 228352
  %v3645 = vsel %vm3643, %v3580, %v2967
  %v3647 = vsel %vm3643, %v3582, %v2969
  %v3649 = vsel %vm3643, %v3584, %v2971
  %v3651 = vsel %vm3643, %v3586, %v2973
  %v3653 = vsel %vm3643, %v3588, %v2975
  %v3655 = vsel %vm3643, %v3590, %v2977
  %v3657 = vsel %vm3643, %v3592, %v2979
  %v3659 = vsel %vm3643, %v3594, %v2981
  %v3661 = vsel %vm3643, %v3596, %v2983
  %v3663 = vsel %vm3643, %v3598, %v2985
  %v3665 = vsel %vm3643, %v3600, %v2987
  %v3667 = vsel %vm3643, %v3602, %v2989
  %v3669 = vsel %vm3643, %v3604, %v2991
  %v3671 = vsel %vm3643, %v3606, %v2993
  %v3673 = vsel %vm3643, %v3608, %v2995
  %v3675 = vsel %vm3643, %v3610, %v2997
  %v3677 = vsel %vm3643, %v3612, %v2999
  %v3679 = vsel %vm3643, %v3614, %v3001
  %v3681 = vsel %vm3643, %v3616, %v3003
  %v3683 = vsel %vm3643, %v3618, %v3005
  %v3685 = vsel %vm3643, %v3620, %v3007
  %v3687 = vsel %vm3643, %v3622, %v3009
  %v3689 = vsel %vm3643, %v3624, %v3011
  %v3691 = vsel %vm3643, %v3626, %v3013
  %v3693 = vsel %vm3643, %v3628, %v3015
  %v3695 = vsel %vm3643, %v3630, %v3017
  %v3697 = vsel %vm3643, %v3632, %v3019
  %v3699 = vsel %vm3643, %v3634, %v3021
  %v3701 = vsel %vm3643, %v3636, %v3023
  %v3703 = vsel %vm3643, %v3638, %v3025
  %v3705 = vsel %vm3643, %v3640, %v3027
  %v3707 = vsel %vm3643, %v3642, %v3029
  %vm3708 = vcmask 261120
  %v3710 = vsel %vm3708, %v3645, %v3191
  %v3712 = vsel %vm3708, %v3647, %v3193
  %v3714 = vsel %vm3708, %v3649, %v3195
  %v3716 = vsel %vm3708, %v3651, %v3197
  %v3718 = vsel %vm3708, %v3653, %v3199
  %v3720 = vsel %vm3708, %v3655, %v3201
  %v3722 = vsel %vm3708, %v3657, %v3203
  %v3724 = vsel %vm3708, %v3659, %v3205
  %v3726 = vsel %vm3708, %v3661, %v3207
  %v3728 = vsel %vm3708, %v3663, %v3209
  %v3730 = vsel %vm3708, %v3665, %v3211
  %v3732 = vsel %vm3708, %v3667, %v3213
  %v3734 = vsel %vm3708, %v3669, %v3215
  %v3736 = vsel %vm3708, %v3671, %v3217
  %v3738 = vsel %vm3708, %v3673, %v3219
  %v3740 = vsel %vm3708, %v3675, %v3221
  %v3742 = vsel %vm3708, %v3677, %v3223
  %v3744 = vsel %vm3708, %v3679, %v3225
  %v3746 = vsel %vm3708, %v3681, %v3227
  %v3748 = vsel %vm3708, %v3683, %v3229
  %v3750 = vsel %vm3708, %v3685, %v3231
  %v3752 = vsel %vm3708, %v3687, %v3233
  %v3754 = vsel %vm3708, %v3689, %v3235
  %v3756 = vsel %vm3708, %v3691, %v3237
  %v3758 = vsel %vm3708, %v3693, %v3239
  %v3760 = vsel %vm3708, %v3695, %v3241
  %v3762 = vsel %vm3708, %v3697, %v3243
  %v3764 = vsel %vm3708, %v3699, %v3245
  %v3766 = vsel %vm3708, %v3701, %v3247
  %v3768 = vsel %vm3708, %v3703, %v3249
  %v3770 = vsel %vm3708, %v3705, %v3251
  %v3772 = vsel %vm3708, %v3707, %v3253
  %v3773 = vld [vmem:[%s3] sm:$0xf]
  %v3774 = vld [vmem:[%s3 + $0x4] sm:$0xf]
  %v3775 = vld [vmem:[%s3 + $0x8] sm:$0xf]
  %v3776 = vld [vmem:[%s3 + $0xc] sm:$0xf]
  %v3777 = vld [vmem:[%s3 + $0x10] sm:$0x3]
  %v3783 = vunpack.c.l.b16 %v3773
  %v3784 = vunpack.c.l.b16 %v3774
  %v3785 = vunpack.c.l.b16 %v3775
  %v3786 = vunpack.c.l.b16 %v3776
  %v3787 = vunpack.c.l.b16 %v3777
  %v3788 = vpack.c.b16 %v3784, %v3783
  %v3789 = vpack.c.b16 %v3786, %v3785
  %v3790 = vpack.c.b16 %v3787, %v3787
  %vm3793 = vcmask 293888
  %v3794 = vsel %vm3793, %v3710, 0
  %v3796 = vsel %vm3793, %v3712, 0
  %v3798 = vsel %vm3793, %v3714, 0
  %v3800 = vsel %vm3793, %v3716, 0
  %v3802 = vsel %vm3793, %v3718, 0
  %v3804 = vsel %vm3793, %v3720, 0
  %v3806 = vsel %vm3793, %v3722, 0
  %v3808 = vsel %vm3793, %v3724, 0
  %v3810 = vsel %vm3793, %v3726, 0
  %v3812 = vsel %vm3793, %v3728, 0
  %v3814 = vsel %vm3793, %v3730, 0
  %v3816 = vsel %vm3793, %v3732, 0
  %v3818 = vsel %vm3793, %v3734, 0
  %v3820 = vsel %vm3793, %v3736, 0
  %v3822 = vsel %vm3793, %v3738, 0
  %v3824 = vsel %vm3793, %v3740, 0
  %v3826 = vsel %vm3793, %v3742, 0
  %v3828 = vsel %vm3793, %v3744, 0
  %v3830 = vsel %vm3793, %v3746, 0
  %v3832 = vsel %vm3793, %v3748, 0
  %v3834 = vsel %vm3793, %v3750, 0
  %v3836 = vsel %vm3793, %v3752, 0
  %v3838 = vsel %vm3793, %v3754, 0
  %v3840 = vsel %vm3793, %v3756, 0
  %v3842 = vsel %vm3793, %v3758, 0
  %v3844 = vsel %vm3793, %v3760, 0
  %v3846 = vsel %vm3793, %v3762, 0
  %v3848 = vsel %vm3793, %v3764, 0
  %v3850 = vsel %vm3793, %v3766, 0
  %v3852 = vsel %vm3793, %v3768, 0
  %v3854 = vsel %vm3793, %v3770, 0
  %v3856 = vsel %vm3793, %v3772, 0
  %vm3858 = vcmask 1041408
  %v3860 = vsel %vm3858, %v3790, 0
  %3862 = vmatprep.subr.bf16.mxu0 0
  %3863 = vmatpush1.bf16.msra.mxu0 %v3788
  %3864 = vmatprep.subr.bf16.mxu0 0
  %3865 = vmatpush1.bf16.msra.mxu0 %v3789
  %3866 = vmatprep.subr.bf16.mxu0 0
  %3867 = vmatpush1.bf16.msra.mxu0 %v3860
  %3868 = vmatprep.subr.bf16.mxu0 0
  %3869 = vmatpush1.bf16.msra.mxu0 0
  %3870 = vmatprep.subr.bf16.mxu0 0
  %3871 = vmatpush1.bf16.msra.mxu0 0
  %3872 = vmatprep.subr.bf16.mxu0 0
  %3873 = vmatpush1.bf16.msra.mxu0 0
  %3874 = vmatprep.subr.bf16.mxu0 0
  %3875 = vmatpush1.bf16.msra.mxu0 0
  %3876 = vmatprep.subr.bf16.mxu0 0
  %3877 = vmatpush1.bf16.msra.mxu0 0
  %3878 = vmatprep.subr.bf16.mxu0 0
  %3879 = vmatpush1.bf16.msra.mxu0 0
  %3880 = vmatprep.subr.bf16.mxu0 0
  %3881 = vmatpush1.bf16.msra.mxu0 0
  %3882 = vmatprep.subr.bf16.mxu0 0
  %3883 = vmatpush1.bf16.msra.mxu0 0
  %3884 = vmatprep.subr.bf16.mxu0 0
  %3885 = vmatpush1.bf16.msra.mxu0 0
  %3886 = vmatprep.subr.bf16.mxu0 0
  %3887 = vmatpush1.bf16.msra.mxu0 0
  %3888 = vmatprep.subr.bf16.mxu0 0
  %3889 = vmatpush1.bf16.msra.mxu0 0
  %3890 = vmatprep.subr.bf16.mxu0 0
  %3891 = vmatpush1.bf16.msra.mxu0 0
  %3892 = vmatprep.subr.bf16.mxu0 0
  %3893 = vmatpush1.bf16.msra.mxu0 0
  %3894 = vmatprep.mubr.bf16.mxu0 0
  %3895 = vmatmul.mubr.bf16.gmra.mrb[0].mxu0 %v3794
  %v3896 = vpop.f32.mrb[0].mxu0
  %v3897 = vadd.f32 0.0, %v3896
  %v3898 = vpop.f32.mrb[0].mxu0
  %v3899 = vpop.f32.mrb[0].mxu0
  %v3900 = vadd.f32 0.0, %v3899
  %v3901 = vpop.f32.mrb[0].mxu0
  %3902 = vmatprep.mubr.bf16.mxu0 0
  %3903 = vmatmul.mubr.bf16.gmra.mrb[0].mxu0 %v3796
  %v3904 = vpop.f32.mrb[0].mxu0
  %v3905 = vadd.f32 0.0, %v3904
  %v3906 = vpop.f32.mrb[0].mxu0
  %v3907 = vpop.f32.mrb[0].mxu0
  %v3908 = vadd.f32 0.0, %v3907
  %v3909 = vpop.f32.mrb[0].mxu0
  %3910 = vmatprep.mubr.bf16.mxu0 0
  %3911 = vmatmul.mubr.bf16.gmra.mrb[0].mxu0 %v3798
  %v3912 = vpop.f32.mrb[0].mxu0
  %v3913 = vadd.f32 0.0, %v3912
  %v3914 = vpop.f32.mrb[0].mxu0
  %v3915 = vpop.f32.mrb[0].mxu0
  %v3916 = vadd.f32 0.0, %v3915
  %v3917 = vpop.f32.mrb[0].mxu0
  %3918 = vmatprep.mubr.bf16.mxu0 0
  %3919 = vmatmul.mubr.bf16.gmra.mrb[0].mxu0 %v3800
  %v3920 = vpop.f32.mrb[0].mxu0
  %v3921 = vadd.f32 0.0, %v3920
  %v3922 = vpop.f32.mrb[0].mxu0
  %v3923 = vpop.f32.mrb[0].mxu0
  %v3924 = vadd.f32 0.0, %v3923
  %v3925 = vpop.f32.mrb[0].mxu0
  %3926 = vmatprep.mubr.bf16.mxu0 0
  %3927 = vmatmul.mubr.bf16.gmra.mrb[0].mxu0 %v3802
  %v3928 = vpop.f32.mrb[0].mxu0
  %v3929 = vadd.f32 0.0, %v3928
  %v3930 = vpop.f32.mrb[0].mxu0
  %v3931 = vpop.f32.mrb[0].mxu0
  %v3932 = vadd.f32 0.0, %v3931
  %v3933 = vpop.f32.mrb[0].mxu0
  %3934 = vmatprep.mubr.bf16.mxu0 0
  %3935 = vmatmul.mubr.bf16.gmra.mrb[0].mxu0 %v3804
  %v3936 = vpop.f32.mrb[0].mxu0
  %v3937 = vadd.f32 0.0, %v3936
  %v3938 = vpop.f32.mrb[0].mxu0
  %v3939 = vpop.f32.mrb[0].mxu0
  %v3940 = vadd.f32 0.0, %v3939
  %v3941 = vpop.f32.mrb[0].mxu0
  %3942 = vmatprep.mubr.bf16.mxu0 0
  %3943 = vmatmul.mubr.bf16.gmra.mrb[0].mxu0 %v3806
  %v3944 = vpop.f32.mrb[0].mxu0
  %v3945 = vadd.f32 0.0, %v3944
  %v3946 = vpop.f32.mrb[0].mxu0
  %v3947 = vpop.f32.mrb[0].mxu0
  %v3948 = vadd.f32 0.0, %v3947
  %v3949 = vpop.f32.mrb[0].mxu0
  %3950 = vmatprep.mubr.bf16.mxu0 0
  %3951 = vmatmul.mubr.bf16.gmra.mrb[0].mxu0 %v3808
  %v3952 = vpop.f32.mrb[0].mxu0
  %v3953 = vadd.f32 0.0, %v3952
  %v3954 = vpop.f32.mrb[0].mxu0
  %v3955 = vpop.f32.mrb[0].mxu0
  %v3956 = vadd.f32 0.0, %v3955
  %v3957 = vpop.f32.mrb[0].mxu0
  %3958 = vmatprep.mubr.bf16.mxu0 0
  %3959 = vmatmul.mubr.bf16.gmra.mrb[0].mxu0 %v3810
  %v3960 = vpop.f32.mrb[0].mxu0
  %v3961 = vadd.f32 0.0, %v3960
  %v3962 = vpop.f32.mrb[0].mxu0
  %v3963 = vpop.f32.mrb[0].mxu0
  %v3964 = vadd.f32 0.0, %v3963
  %v3965 = vpop.f32.mrb[0].mxu0
  %3966 = vmatprep.mubr.bf16.mxu0 0
  %3967 = vmatmul.mubr.bf16.gmra.mrb[0].mxu0 %v3812
  %v3968 = vpop.f32.mrb[0].mxu0
  %v3969 = vadd.f32 0.0, %v3968
  %v3970 = vpop.f32.mrb[0].mxu0
  %v3971 = vpop.f32.mrb[0].mxu0
  %v3972 = vadd.f32 0.0, %v3971
  %v3973 = vpop.f32.mrb[0].mxu0
  %3974 = vmatprep.mubr.bf16.mxu0 0
  %3975 = vmatmul.mubr.bf16.gmra.mrb[0].mxu0 %v3814
  %v3976 = vpop.f32.mrb[0].mxu0
  %v3977 = vadd.f32 0.0, %v3976
  %v3978 = vpop.f32.mrb[0].mxu0
  %v3979 = vpop.f32.mrb[0].mxu0
  %v3980 = vadd.f32 0.0, %v3979
  %v3981 = vpop.f32.mrb[0].mxu0
  %3982 = vmatprep.mubr.bf16.mxu0 0
  %3983 = vmatmul.mubr.bf16.gmra.mrb[0].mxu0 %v3816
  %v3984 = vpop.f32.mrb[0].mxu0
  %v3985 = vadd.f32 0.0, %v3984
  %v3986 = vpop.f32.mrb[0].mxu0
  %v3987 = vpop.f32.mrb[0].mxu0
  %v3988 = vadd.f32 0.0, %v3987
  %v3989 = vpop.f32.mrb[0].mxu0
  %3990 = vmatprep.mubr.bf16.mxu0 0
  %3991 = vmatmul.mubr.bf16.gmra.mrb[0].mxu0 %v3818
  %v3992 = vpop.f32.mrb[0].mxu0
  %v3993 = vadd.f32 0.0, %v3992
  %v3994 = vpop.f32.mrb[0].mxu0
  %v3995 = vpop.f32.mrb[0].mxu0
  %v3996 = vadd.f32 0.0, %v3995
  %v3997 = vpop.f32.mrb[0].mxu0
  %3998 = vmatprep.mubr.bf16.mxu0 0
  %3999 = vmatmul.mubr.bf16.gmra.mrb[0].mxu0 %v3820
  %v4000 = vpop.f32.mrb[0].mxu0
  %v4001 = vadd.f32 0.0, %v4000
  %v4002 = vpop.f32.mrb[0].mxu0
  %v4003 = vpop.f32.mrb[0].mxu0
  %v4004 = vadd.f32 0.0, %v4003
  %v4005 = vpop.f32.mrb[0].mxu0
  %4006 = vmatprep.mubr.bf16.mxu0 0
  %4007 = vmatmul.mubr.bf16.gmra.mrb[0].mxu0 %v3822
  %v4008 = vpop.f32.mrb[0].mxu0
  %v4009 = vadd.f32 0.0, %v4008
  %v4010 = vpop.f32.mrb[0].mxu0
  %v4011 = vpop.f32.mrb[0].mxu0
  %v4012 = vadd.f32 0.0, %v4011
  %v4013 = vpop.f32.mrb[0].mxu0
  %4014 = vmatprep.mubr.bf16.mxu0 0
  %4015 = vmatmul.mubr.bf16.gmra.mrb[0].mxu0 %v3824
  %v4016 = vpop.f32.mrb[0].mxu0
  %v4017 = vadd.f32 0.0, %v4016
  %v4018 = vpop.f32.mrb[0].mxu0
  %v4019 = vpop.f32.mrb[0].mxu0
  %v4020 = vadd.f32 0.0, %v4019
  %v4021 = vpop.f32.mrb[0].mxu0
  %4022 = vmatprep.mubr.bf16.mxu0 0
  %4023 = vmatmul.mubr.bf16.gmra.mrb[0].mxu0 %v3826
  %v4024 = vpop.f32.mrb[0].mxu0
  %v4025 = vadd.f32 0.0, %v4024
  %v4026 = vpop.f32.mrb[0].mxu0
  %v4027 = vpop.f32.mrb[0].mxu0
  %v4028 = vadd.f32 0.0, %v4027
  %v4029 = vpop.f32.mrb[0].mxu0
  %4030 = vmatprep.mubr.bf16.mxu0 0
  %4031 = vmatmul.mubr.bf16.gmra.mrb[0].mxu0 %v3828
  %v4032 = vpop.f32.mrb[0].mxu0
  %v4033 = vadd.f32 0.0, %v4032
  %v4034 = vpop.f32.mrb[0].mxu0
  %v4035 = vpop.f32.mrb[0].mxu0
  %v4036 = vadd.f32 0.0, %v4035
  %v4037 = vpop.f32.mrb[0].mxu0
  %4038 = vmatprep.mubr.bf16.mxu0 0
  %4039 = vmatmul.mubr.bf16.gmra.mrb[0].mxu0 %v3830
  %v4040 = vpop.f32.mrb[0].mxu0
  %v4041 = vadd.f32 0.0, %v4040
  %v4042 = vpop.f32.mrb[0].mxu0
  %v4043 = vpop.f32.mrb[0].mxu0
  %v4044 = vadd.f32 0.0, %v4043
  %v4045 = vpop.f32.mrb[0].mxu0
  %4046 = vmatprep.mubr.bf16.mxu0 0
  %4047 = vmatmul.mubr.bf16.gmra.mrb[0].mxu0 %v3832
  %v4048 = vpop.f32.mrb[0].mxu0
  %v4049 = vadd.f32 0.0, %v4048
  %v4050 = vpop.f32.mrb[0].mxu0
  %v4051 = vpop.f32.mrb[0].mxu0
  %v4052 = vadd.f32 0.0, %v4051
  %v4053 = vpop.f32.mrb[0].mxu0
  %4054 = vmatprep.mubr.bf16.mxu0 0
  %4055 = vmatmul.mubr.bf16.gmra.mrb[0].mxu0 %v3834
  %v4056 = vpop.f32.mrb[0].mxu0
  %v4057 = vadd.f32 0.0, %v4056
  %v4058 = vpop.f32.mrb[0].mxu0
  %v4059 = vpop.f32.mrb[0].mxu0
  %v4060 = vadd.f32 0.0, %v4059
  %v4061 = vpop.f32.mrb[0].mxu0
  %4062 = vmatprep.mubr.bf16.mxu0 0
  %4063 = vmatmul.mubr.bf16.gmra.mrb[0].mxu0 %v3836
  %v4064 = vpop.f32.mrb[0].mxu0
  %v4065 = vadd.f32 0.0, %v4064
  %v4066 = vpop.f32.mrb[0].mxu0
  %v4067 = vpop.f32.mrb[0].mxu0
  %v4068 = vadd.f32 0.0, %v4067
  %v4069 = vpop.f32.mrb[0].mxu0
  %4070 = vmatprep.mubr.bf16.mxu0 0
  %4071 = vmatmul.mubr.bf16.gmra.mrb[0].mxu0 %v3838
  %v4072 = vpop.f32.mrb[0].mxu0
  %v4073 = vadd.f32 0.0, %v4072
  %v4074 = vpop.f32.mrb[0].mxu0
  %v4075 = vpop.f32.mrb[0].mxu0
  %v4076 = vadd.f32 0.0, %v4075
  %v4077 = vpop.f32.mrb[0].mxu0
  %4078 = vmatprep.mubr.bf16.mxu0 0
  %4079 = vmatmul.mubr.bf16.gmra.mrb[0].mxu0 %v3840
  %v4080 = vpop.f32.mrb[0].mxu0
  %v4081 = vadd.f32 0.0, %v4080
  %v4082 = vpop.f32.mrb[0].mxu0
  %v4083 = vpop.f32.mrb[0].mxu0
  %v4084 = vadd.f32 0.0, %v4083
  %v4085 = vpop.f32.mrb[0].mxu0
  %4086 = vmatprep.mubr.bf16.mxu0 0
  %4087 = vmatmul.mubr.bf16.gmra.mrb[0].mxu0 %v3842
  %v4088 = vpop.f32.mrb[0].mxu0
  %v4089 = vadd.f32 0.0, %v4088
  %v4090 = vpop.f32.mrb[0].mxu0
  %v4091 = vpop.f32.mrb[0].mxu0
  %v4092 = vadd.f32 0.0, %v4091
  %v4093 = vpop.f32.mrb[0].mxu0
  %4094 = vmatprep.mubr.bf16.mxu0 0
  %4095 = vmatmul.mubr.bf16.gmra.mrb[0].mxu0 %v3844
  %v4096 = vpop.f32.mrb[0].mxu0
  %v4097 = vadd.f32 0.0, %v4096
  %v4098 = vpop.f32.mrb[0].mxu0
  %v4099 = vpop.f32.mrb[0].mxu0
  %v4100 = vadd.f32 0.0, %v4099
  %v4101 = vpop.f32.mrb[0].mxu0
  %4102 = vmatprep.mubr.bf16.mxu0 0
  %4103 = vmatmul.mubr.bf16.gmra.mrb[0].mxu0 %v3846
  %v4104 = vpop.f32.mrb[0].mxu0
  %v4105 = vadd.f32 0.0, %v4104
  %v4106 = vpop.f32.mrb[0].mxu0
  %v4107 = vpop.f32.mrb[0].mxu0
  %v4108 = vadd.f32 0.0, %v4107
  %v4109 = vpop.f32.mrb[0].mxu0
  %4110 = vmatprep.mubr.bf16.mxu0 0
  %4111 = vmatmul.mubr.bf16.gmra.mrb[0].mxu0 %v3848
  %v4112 = vpop.f32.mrb[0].mxu0
  %v4113 = vadd.f32 0.0, %v4112
  %v4114 = vpop.f32.mrb[0].mxu0
  %v4115 = vpop.f32.mrb[0].mxu0
  %v4116 = vadd.f32 0.0, %v4115
  %v4117 = vpop.f32.mrb[0].mxu0
  %4118 = vmatprep.mubr.bf16.mxu0 0
  %4119 = vmatmul.mubr.bf16.gmra.mrb[0].mxu0 %v3850
  %v4120 = vpop.f32.mrb[0].mxu0
  %v4121 = vadd.f32 0.0, %v4120
  %v4122 = vpop.f32.mrb[0].mxu0
  %v4123 = vpop.f32.mrb[0].mxu0
  %v4124 = vadd.f32 0.0, %v4123
  %v4125 = vpop.f32.mrb[0].mxu0
  %4126 = vmatprep.mubr.bf16.mxu0 0
  %4127 = vmatmul.mubr.bf16.gmra.mrb[0].mxu0 %v3852
  %v4128 = vpop.f32.mrb[0].mxu0
  %v4129 = vadd.f32 0.0, %v4128
  %v4130 = vpop.f32.mrb[0].mxu0
  %v4131 = vpop.f32.mrb[0].mxu0
  %v4132 = vadd.f32 0.0, %v4131
  %v4133 = vpop.f32.mrb[0].mxu0
  %4134 = vmatprep.mubr.bf16.mxu0 0
  %4135 = vmatmul.mubr.bf16.gmra.mrb[0].mxu0 %v3854
  %v4136 = vpop.f32.mrb[0].mxu0
  %v4137 = vadd.f32 0.0, %v4136
  %v4138 = vpop.f32.mrb[0].mxu0
  %v4139 = vpop.f32.mrb[0].mxu0
  %v4140 = vadd.f32 0.0, %v4139
  %v4141 = vpop.f32.mrb[0].mxu0
  %4142 = vmatprep.mubr.bf16.mxu0 0
  %4143 = vmatmul.mubr.bf16.gmra.mrb[0].mxu0 %v3856
  %v4144 = vpop.f32.mrb[0].mxu0
  %v4145 = vadd.f32 0.0, %v4144
  %v4146 = vpop.f32.mrb[0].mxu0
  %v4147 = vpop.f32.mrb[0].mxu0
  %v4148 = vadd.f32 0.0, %v4147
  %v4149 = vpop.f32.mrb[0].mxu0
  %4150 = vdwg.mxu0
  %v4151 = vld [vmem:[%s4] sm:$0x1]
  %v4153 = vlaneseq
  %v4154 = vshrl.u32 %v4153, 7
  %v4155 = vsub.s32 0, %v4154
  %v4156 = vrot.slane %v4151, %v4155
  %v4158 = vadd.f32 %v3897, %v4156
  %v4159 = vadd.f32 %v3900, %v4156
  %v4160 = vadd.f32 %v3905, %v4156
  %v4161 = vadd.f32 %v3908, %v4156
  %v4162 = vadd.f32 %v3913, %v4156
  %v4163 = vadd.f32 %v3916, %v4156
  %v4164 = vadd.f32 %v3921, %v4156
  %v4165 = vadd.f32 %v3924, %v4156
  %v4166 = vadd.f32 %v3929, %v4156
  %v4167 = vadd.f32 %v3932, %v4156
  %v4168 = vadd.f32 %v3937, %v4156
  %v4169 = vadd.f32 %v3940, %v4156
  %v4170 = vadd.f32 %v3945, %v4156
  %v4171 = vadd.f32 %v3948, %v4156
  %v4172 = vadd.f32 %v3953, %v4156
  %v4173 = vadd.f32 %v3956, %v4156
  %v4174 = vadd.f32 %v3961, %v4156
  %v4175 = vadd.f32 %v3964, %v4156
  %v4176 = vadd.f32 %v3969, %v4156
  %v4177 = vadd.f32 %v3972, %v4156
  %v4178 = vadd.f32 %v3977, %v4156
  %v4179 = vadd.f32 %v3980, %v4156
  %v4180 = vadd.f32 %v3985, %v4156
  %v4181 = vadd.f32 %v3988, %v4156
  %v4182 = vadd.f32 %v3993, %v4156
  %v4183 = vadd.f32 %v3996, %v4156
  %v4184 = vadd.f32 %v4001, %v4156
  %v4185 = vadd.f32 %v4004, %v4156
  %v4186 = vadd.f32 %v4009, %v4156
  %v4187 = vadd.f32 %v4012, %v4156
  %v4188 = vadd.f32 %v4017, %v4156
  %v4189 = vadd.f32 %v4020, %v4156
  %v4190 = vadd.f32 %v4025, %v4156
  %v4191 = vadd.f32 %v4028, %v4156
  %v4192 = vadd.f32 %v4033, %v4156
  %v4193 = vadd.f32 %v4036, %v4156
  %v4194 = vadd.f32 %v4041, %v4156
  %v4195 = vadd.f32 %v4044, %v4156
  %v4196 = vadd.f32 %v4049, %v4156
  %v4197 = vadd.f32 %v4052, %v4156
  %v4198 = vadd.f32 %v4057, %v4156
  %v4199 = vadd.f32 %v4060, %v4156
  %v4200 = vadd.f32 %v4065, %v4156
  %v4201 = vadd.f32 %v4068, %v4156
  %v4202 = vadd.f32 %v4073, %v4156
  %v4203 = vadd.f32 %v4076, %v4156
  %v4204 = vadd.f32 %v4081, %v4156
  %v4205 = vadd.f32 %v4084, %v4156
  %v4206 = vadd.f32 %v4089, %v4156
  %v4207 = vadd.f32 %v4092, %v4156
  %v4208 = vadd.f32 %v4097, %v4156
  %v4209 = vadd.f32 %v4100, %v4156
  %v4210 = vadd.f32 %v4105, %v4156
  %v4211 = vadd.f32 %v4108, %v4156
  %v4212 = vadd.f32 %v4113, %v4156
  %v4213 = vadd.f32 %v4116, %v4156
  %v4214 = vadd.f32 %v4121, %v4156
  %v4215 = vadd.f32 %v4124, %v4156
  %v4216 = vadd.f32 %v4129, %v4156
  %v4217 = vadd.f32 %v4132, %v4156
  %v4218 = vadd.f32 %v4137, %v4156
  %v4219 = vadd.f32 %v4140, %v4156
  %v4220 = vadd.f32 %v4145, %v4156
  %v4221 = vadd.f32 %v4148, %v4156
  %v4222 = vmax.f32 %v4158, 0.0
  %v4223 = vmax.f32 %v4159, 0.0
  %v4224 = vmax.f32 %v4160, 0.0
  %v4225 = vmax.f32 %v4161, 0.0
  %v4226 = vmax.f32 %v4162, 0.0
  %v4227 = vmax.f32 %v4163, 0.0
  %v4228 = vmax.f32 %v4164, 0.0
  %v4229 = vmax.f32 %v4165, 0.0
  %v4230 = vmax.f32 %v4166, 0.0
  %v4231 = vmax.f32 %v4167, 0.0
  %v4232 = vmax.f32 %v4168, 0.0
  %v4233 = vmax.f32 %v4169, 0.0
  %v4234 = vmax.f32 %v4170, 0.0
  %v4235 = vmax.f32 %v4171, 0.0
  %v4236 = vmax.f32 %v4172, 0.0
  %v4237 = vmax.f32 %v4173, 0.0
  %v4238 = vmax.f32 %v4174, 0.0
  %v4239 = vmax.f32 %v4175, 0.0
  %v4240 = vmax.f32 %v4176, 0.0
  %v4241 = vmax.f32 %v4177, 0.0
  %v4242 = vmax.f32 %v4178, 0.0
  %v4243 = vmax.f32 %v4179, 0.0
  %v4244 = vmax.f32 %v4180, 0.0
  %v4245 = vmax.f32 %v4181, 0.0
  %v4246 = vmax.f32 %v4182, 0.0
  %v4247 = vmax.f32 %v4183, 0.0
  %v4248 = vmax.f32 %v4184, 0.0
  %v4249 = vmax.f32 %v4185, 0.0
  %v4250 = vmax.f32 %v4186, 0.0
  %v4251 = vmax.f32 %v4187, 0.0
  %v4252 = vmax.f32 %v4188, 0.0
  %v4253 = vmax.f32 %v4189, 0.0
  %v4254 = vmax.f32 %v4190, 0.0
  %v4255 = vmax.f32 %v4191, 0.0
  %v4256 = vmax.f32 %v4192, 0.0
  %v4257 = vmax.f32 %v4193, 0.0
  %v4258 = vmax.f32 %v4194, 0.0
  %v4259 = vmax.f32 %v4195, 0.0
  %v4260 = vmax.f32 %v4196, 0.0
  %v4261 = vmax.f32 %v4197, 0.0
  %v4262 = vmax.f32 %v4198, 0.0
  %v4263 = vmax.f32 %v4199, 0.0
  %v4264 = vmax.f32 %v4200, 0.0
  %v4265 = vmax.f32 %v4201, 0.0
  %v4266 = vmax.f32 %v4202, 0.0
  %v4267 = vmax.f32 %v4203, 0.0
  %v4268 = vmax.f32 %v4204, 0.0
  %v4269 = vmax.f32 %v4205, 0.0
  %v4270 = vmax.f32 %v4206, 0.0
  %v4271 = vmax.f32 %v4207, 0.0
  %v4272 = vmax.f32 %v4208, 0.0
  %v4273 = vmax.f32 %v4209, 0.0
  %v4274 = vmax.f32 %v4210, 0.0
  %v4275 = vmax.f32 %v4211, 0.0
  %v4276 = vmax.f32 %v4212, 0.0
  %v4277 = vmax.f32 %v4213, 0.0
  %v4278 = vmax.f32 %v4214, 0.0
  %v4279 = vmax.f32 %v4215, 0.0
  %v4280 = vmax.f32 %v4216, 0.0
  %v4281 = vmax.f32 %v4217, 0.0
  %v4282 = vmax.f32 %v4218, 0.0
  %v4283 = vmax.f32 %v4219, 0.0
  %v4284 = vmax.f32 %v4220, 0.0
  %v4285 = vmax.f32 %v4221, 0.0
  %v4286 = vpack.c.bf16 %v4223, %v4222
  %v4287 = vpack.c.bf16 %v4225, %v4224
  %v4288 = vpack.c.bf16 %v4227, %v4226
  %v4289 = vpack.c.bf16 %v4229, %v4228
  %v4290 = vpack.c.bf16 %v4231, %v4230
  %v4291 = vpack.c.bf16 %v4233, %v4232
  %v4292 = vpack.c.bf16 %v4235, %v4234
  %v4293 = vpack.c.bf16 %v4237, %v4236
  %v4294 = vpack.c.bf16 %v4239, %v4238
  %v4295 = vpack.c.bf16 %v4241, %v4240
  %v4296 = vpack.c.bf16 %v4243, %v4242
  %v4297 = vpack.c.bf16 %v4245, %v4244
  %v4298 = vpack.c.bf16 %v4247, %v4246
  %v4299 = vpack.c.bf16 %v4249, %v4248
  %v4300 = vpack.c.bf16 %v4251, %v4250
  %v4301 = vpack.c.bf16 %v4253, %v4252
  %v4302 = vpack.c.bf16 %v4255, %v4254
  %v4303 = vpack.c.bf16 %v4257, %v4256
  %v4304 = vpack.c.bf16 %v4259, %v4258
  %v4305 = vpack.c.bf16 %v4261, %v4260
  %v4306 = vpack.c.bf16 %v4263, %v4262
  %v4307 = vpack.c.bf16 %v4265, %v4264
  %v4308 = vpack.c.bf16 %v4267, %v4266
  %v4309 = vpack.c.bf16 %v4269, %v4268
  %v4310 = vpack.c.bf16 %v4271, %v4270
  %v4311 = vpack.c.bf16 %v4273, %v4272
  %v4312 = vpack.c.bf16 %v4275, %v4274
  %v4313 = vpack.c.bf16 %v4277, %v4276
  %v4314 = vpack.c.bf16 %v4279, %v4278
  %v4315 = vpack.c.bf16 %v4281, %v4280
  %v4316 = vpack.c.bf16 %v4283, %v4282
  %v4317 = vpack.c.bf16 %v4285, %v4284
  %v4319 = vshrl.u32 %v4286, 16
  %v4321 = vrot.slane %v4319, 7
  %v4322 = vshll.u32 %v4286, 16
  %v4324 = vor.u32 %v4321, %v4322
  %v4326 = vshrl.u32 %v4287, 16
  %v4328 = vrot.slane %v4326, 7
  %v4329 = vshll.u32 %v4287, 16
  %v4331 = vor.u32 %v4328, %v4329
  %v4333 = vshrl.u32 %v4288, 16
  %v4335 = vrot.slane %v4333, 7
  %v4336 = vshll.u32 %v4288, 16
  %v4338 = vor.u32 %v4335, %v4336
  %v4340 = vshrl.u32 %v4289, 16
  %v4342 = vrot.slane %v4340, 7
  %v4343 = vshll.u32 %v4289, 16
  %v4345 = vor.u32 %v4342, %v4343
  %v4347 = vshrl.u32 %v4290, 16
  %v4349 = vrot.slane %v4347, 7
  %v4350 = vshll.u32 %v4290, 16
  %v4352 = vor.u32 %v4349, %v4350
  %v4354 = vshrl.u32 %v4291, 16
  %v4356 = vrot.slane %v4354, 7
  %v4357 = vshll.u32 %v4291, 16
  %v4359 = vor.u32 %v4356, %v4357
  %v4361 = vshrl.u32 %v4292, 16
  %v4363 = vrot.slane %v4361, 7
  %v4364 = vshll.u32 %v4292, 16
  %v4366 = vor.u32 %v4363, %v4364
  %v4368 = vshrl.u32 %v4293, 16
  %v4370 = vrot.slane %v4368, 7
  %v4371 = vshll.u32 %v4293, 16
  %v4373 = vor.u32 %v4370, %v4371
  %v4375 = vshrl.u32 %v4294, 16
  %v4377 = vrot.slane %v4375, 7
  %v4378 = vshll.u32 %v4294, 16
  %v4380 = vor.u32 %v4377, %v4378
  %v4382 = vshrl.u32 %v4295, 16
  %v4384 = vrot.slane %v4382, 7
  %v4385 = vshll.u32 %v4295, 16
  %v4387 = vor.u32 %v4384, %v4385
  %v4389 = vshrl.u32 %v4296, 16
  %v4391 = vrot.slane %v4389, 7
  %v4392 = vshll.u32 %v4296, 16
  %v4394 = vor.u32 %v4391, %v4392
  %v4396 = vshrl.u32 %v4297, 16
  %v4398 = vrot.slane %v4396, 7
  %v4399 = vshll.u32 %v4297, 16
  %v4401 = vor.u32 %v4398, %v4399
  %v4403 = vshrl.u32 %v4298, 16
  %v4405 = vrot.slane %v4403, 7
  %v4406 = vshll.u32 %v4298, 16
  %v4408 = vor.u32 %v4405, %v4406
  %v4410 = vshrl.u32 %v4299, 16
  %v4412 = vrot.slane %v4410, 7
  %v4413 = vshll.u32 %v4299, 16
  %v4415 = vor.u32 %v4412, %v4413
  %v4417 = vshrl.u32 %v4300, 16
  %v4419 = vrot.slane %v4417, 7
  %v4420 = vshll.u32 %v4300, 16
  %v4422 = vor.u32 %v4419, %v4420
  %v4424 = vshrl.u32 %v4301, 16
  %v4426 = vrot.slane %v4424, 7
  %v4427 = vshll.u32 %v4301, 16
  %v4429 = vor.u32 %v4426, %v4427
  %v4431 = vshrl.u32 %v4302, 16
  %v4433 = vrot.slane %v4431, 7
  %v4434 = vshll.u32 %v4302, 16
  %v4436 = vor.u32 %v4433, %v4434
  %v4438 = vshrl.u32 %v4303, 16
  %v4440 = vrot.slane %v4438, 7
  %v4441 = vshll.u32 %v4303, 16
  %v4443 = vor.u32 %v4440, %v4441
  %v4445 = vshrl.u32 %v4304, 16
  %v4447 = vrot.slane %v4445, 7
  %v4448 = vshll.u32 %v4304, 16
  %v4450 = vor.u32 %v4447, %v4448
  %v4452 = vshrl.u32 %v4305, 16
  %v4454 = vrot.slane %v4452, 7
  %v4455 = vshll.u32 %v4305, 16
  %v4457 = vor.u32 %v4454, %v4455
  %v4459 = vshrl.u32 %v4306, 16
  %v4461 = vrot.slane %v4459, 7
  %v4462 = vshll.u32 %v4306, 16
  %v4464 = vor.u32 %v4461, %v4462
  %v4466 = vshrl.u32 %v4307, 16
  %v4468 = vrot.slane %v4466, 7
  %v4469 = vshll.u32 %v4307, 16
  %v4471 = vor.u32 %v4468, %v4469
  %v4473 = vshrl.u32 %v4308, 16
  %v4475 = vrot.slane %v4473, 7
  %v4476 = vshll.u32 %v4308, 16
  %v4478 = vor.u32 %v4475, %v4476
  %v4480 = vshrl.u32 %v4309, 16
  %v4482 = vrot.slane %v4480, 7
  %v4483 = vshll.u32 %v4309, 16
  %v4485 = vor.u32 %v4482, %v4483
  %v4487 = vshrl.u32 %v4310, 16
  %v4489 = vrot.slane %v4487, 7
  %v4490 = vshll.u32 %v4310, 16
  %v4492 = vor.u32 %v4489, %v4490
  %v4494 = vshrl.u32 %v4311, 16
  %v4496 = vrot.slane %v4494, 7
  %v4497 = vshll.u32 %v4311, 16
  %v4499 = vor.u32 %v4496, %v4497
  %v4501 = vshrl.u32 %v4312, 16
  %v4503 = vrot.slane %v4501, 7
  %v4504 = vshll.u32 %v4312, 16
  %v4506 = vor.u32 %v4503, %v4504
  %v4508 = vshrl.u32 %v4313, 16
  %v4510 = vrot.slane %v4508, 7
  %v4511 = vshll.u32 %v4313, 16
  %v4513 = vor.u32 %v4510, %v4511
  %v4515 = vshrl.u32 %v4314, 16
  %v4517 = vrot.slane %v4515, 7
  %v4518 = vshll.u32 %v4314, 16
  %v4520 = vor.u32 %v4517, %v4518
  %v4522 = vshrl.u32 %v4315, 16
  %v4524 = vrot.slane %v4522, 7
  %v4525 = vshll.u32 %v4315, 16
  %v4527 = vor.u32 %v4524, %v4525
  %v4529 = vshrl.u32 %v4316, 16
  %v4531 = vrot.slane %v4529, 7
  %v4532 = vshll.u32 %v4316, 16
  %v4534 = vor.u32 %v4531, %v4532
  %v4536 = vshrl.u32 %v4317, 16
  %v4538 = vrot.slane %v4536, 7
  %v4539 = vshll.u32 %v4317, 16
  %v4541 = vor.u32 %v4538, %v4539
  %v4606 = vsel %vm616, 0, %v4324
  %v4607 = vsel %vm616, 0, %v4331
  %v4608 = vsel %vm616, 0, %v4338
  %v4609 = vsel %vm616, 0, %v4345
  %v4610 = vsel %vm616, 0, %v4352
  %v4611 = vsel %vm616, 0, %v4359
  %v4612 = vsel %vm616, 0, %v4366
  %v4613 = vsel %vm616, 0, %v4373
  %v4614 = vsel %vm616, 0, %v4380
  %v4615 = vsel %vm616, 0, %v4387
  %v4616 = vsel %vm616, 0, %v4394
  %v4617 = vsel %vm616, 0, %v4401
  %v4618 = vsel %vm616, 0, %v4408
  %v4619 = vsel %vm616, 0, %v4415
  %v4620 = vsel %vm616, 0, %v4422
  %v4621 = vsel %vm616, 0, %v4429
  %v4622 = vsel %vm616, 0, %v4436
  %v4623 = vsel %vm616, 0, %v4443
  %v4624 = vsel %vm616, 0, %v4450
  %v4625 = vsel %vm616, 0, %v4457
  %v4626 = vsel %vm616, 0, %v4464
  %v4627 = vsel %vm616, 0, %v4471
  %v4628 = vsel %vm616, 0, %v4478
  %v4629 = vsel %vm616, 0, %v4485
  %v4630 = vsel %vm616, 0, %v4492
  %v4631 = vsel %vm616, 0, %v4499
  %v4632 = vsel %vm616, 0, %v4506
  %v4633 = vsel %vm616, 0, %v4513
  %v4634 = vsel %vm616, 0, %v4520
  %v4635 = vsel %vm616, 0, %v4527
  %v4636 = vsel %vm616, 0, %v4534
  %v4637 = vsel %vm616, 0, %v4541
  %v4638 = vsel %vm616, %v4321, 0
  %v4639 = vsel %vm616, %v4328, 0
  %v4640 = vsel %vm616, %v4335, 0
  %v4641 = vsel %vm616, %v4342, 0
  %v4642 = vsel %vm616, %v4349, 0
  %v4643 = vsel %vm616, %v4356, 0
  %v4644 = vsel %vm616, %v4363, 0
  %v4645 = vsel %vm616, %v4370, 0
  %v4646 = vsel %vm616, %v4377, 0
  %v4647 = vsel %vm616, %v4384, 0
  %v4648 = vsel %vm616, %v4391, 0
  %v4649 = vsel %vm616, %v4398, 0
  %v4650 = vsel %vm616, %v4405, 0
  %v4651 = vsel %vm616, %v4412, 0
  %v4652 = vsel %vm616, %v4419, 0
  %v4653 = vsel %vm616, %v4426, 0
  %v4654 = vsel %vm616, %v4433, 0
  %v4655 = vsel %vm616, %v4440, 0
  %v4656 = vsel %vm616, %v4447, 0
  %v4657 = vsel %vm616, %v4454, 0
  %v4658 = vsel %vm616, %v4461, 0
  %v4659 = vsel %vm616, %v4468, 0
  %v4660 = vsel %vm616, %v4475, 0
  %v4661 = vsel %vm616, %v4482, 0
  %v4662 = vsel %vm616, %v4489, 0
  %v4663 = vsel %vm616, %v4496, 0
  %v4664 = vsel %vm616, %v4503, 0
  %v4665 = vsel %vm616, %v4510, 0
  %v4666 = vsel %vm616, %v4517, 0
  %v4667 = vsel %vm616, %v4524, 0
  %v4668 = vsel %vm616, %v4531, 0
  %v4669 = vsel %vm616, %v4538, 0
  %4670 = vst.msk [vmem:[#allocation2] sm:$0xff] %vm681, 0
  %4671 = vst.msk [vmem:[#allocation2 + $0x8] sm:$0xff] %vm681, 0
  %4672 = vst.msk [vmem:[#allocation2 + $0x10] sm:$0xff] %vm681, %v4606
  %4673 = vst.msk [vmem:[#allocation2 + $0x18] sm:$0xff] %vm681, %v4638
  %4674 = vst.msk [vmem:[#allocation2 + $0x20] sm:$0xff] %vm681, %v4607
  %4675 = vst.msk [vmem:[#allocation2 + $0x28] sm:$0xff] %vm681, %v4639
  %4676 = vst.msk [vmem:[#allocation2 + $0x30] sm:$0xff] %vm681, %v4608
  %4677 = vst.msk [vmem:[#allocation2 + $0x38] sm:$0xff] %vm681, %v4640
  %4678 = vst.msk [vmem:[#allocation2 + $0x40] sm:$0xff] %vm681, %v4609
  %4679 = vst.msk [vmem:[#allocation2 + $0x48] sm:$0xff] %vm681, %v4641
  %4680 = vst.msk [vmem:[#allocation2 + $0x50] sm:$0xff] %vm681, %v4610
  %4681 = vst.msk [vmem:[#allocation2 + $0x58] sm:$0xff] %vm681, %v4642
  %4682 = vst.msk [vmem:[#allocation2 + $0x60] sm:$0xff] %vm681, %v4611
  %4683 = vst.msk [vmem:[#allocation2 + $0x68] sm:$0xff] %vm681, %v4643
  %4684 = vst.msk [vmem:[#allocation2 + $0x70] sm:$0xff] %vm681, %v4612
  %4685 = vst.msk [vmem:[#allocation2 + $0x78] sm:$0xff] %vm681, %v4644
  %4686 = vst.msk [vmem:[#allocation2 + $0x80] sm:$0xff] %vm681, %v4613
  %4687 = vst.msk [vmem:[#allocation2 + $0x88] sm:$0xff] %vm681, %v4645
  %4688 = vst.msk [vmem:[#allocation2 + $0x90] sm:$0xff] %vm681, %v4614
  %4689 = vst.msk [vmem:[#allocation2 + $0x98] sm:$0xff] %vm681, %v4646
  %4690 = vst.msk [vmem:[#allocation2 + $0xa0] sm:$0xff] %vm681, %v4615
  %4691 = vst.msk [vmem:[#allocation2 + $0xa8] sm:$0xff] %vm681, %v4647
  %4692 = vst.msk [vmem:[#allocation2 + $0xb0] sm:$0xff] %vm681, %v4616
  %4693 = vst.msk [vmem:[#allocation2 + $0xb8] sm:$0xff] %vm681, %v4648
  %4694 = vst.msk [vmem:[#allocation2 + $0xc0] sm:$0xff] %vm681, %v4617
  %4695 = vst.msk [vmem:[#allocation2 + $0xc8] sm:$0xff] %vm681, %v4649
  %4696 = vst.msk [vmem:[#allocation2 + $0xd0] sm:$0xff] %vm681, %v4618
  %4697 = vst.msk [vmem:[#allocation2 + $0xd8] sm:$0xff] %vm681, %v4650
  %4698 = vst.msk [vmem:[#allocation2 + $0xe0] sm:$0xff] %vm681, %v4619
  %4699 = vst.msk [vmem:[#allocation2 + $0xe8] sm:$0xff] %vm681, %v4651
  %4700 = vst.msk [vmem:[#allocation2 + $0xf0] sm:$0xff] %vm681, %v4620
  %4701 = vst.msk [vmem:[#allocation2 + $0xf8] sm:$0xff] %vm681, %v4652
  %4702 = vst.msk [vmem:[#allocation2 + $0x100] sm:$0xff] %vm681, %v4621
  %4703 = vst.msk [vmem:[#allocation2 + $0x108] sm:$0xff] %vm681, %v4653
  %4704 = vst.msk [vmem:[#allocation2 + $0x110] sm:$0xff] %vm681, 0
  %4705 = vst.msk [vmem:[#allocation2 + $0x118] sm:$0xff] %vm681, 0
  %4706 = vst.msk [vmem:[#allocation2 + $0x120] sm:$0xff] %vm681, 0
  %4707 = vst.msk [vmem:[#allocation2 + $0x128] sm:$0xff] %vm681, 0
  %4708 = vst.msk [vmem:[#allocation2 + $0x130] sm:$0xff] %vm681, %v4622
  %4709 = vst.msk [vmem:[#allocation2 + $0x138] sm:$0xff] %vm681, %v4654
  %4710 = vst.msk [vmem:[#allocation2 + $0x140] sm:$0xff] %vm681, %v4623
  %4711 = vst.msk [vmem:[#allocation2 + $0x148] sm:$0xff] %vm681, %v4655
  %4712 = vst.msk [vmem:[#allocation2 + $0x150] sm:$0xff] %vm681, %v4624
  %4713 = vst.msk [vmem:[#allocation2 + $0x158] sm:$0xff] %vm681, %v4656
  %4714 = vst.msk [vmem:[#allocation2 + $0x160] sm:$0xff] %vm681, %v4625
  %4715 = vst.msk [vmem:[#allocation2 + $0x168] sm:$0xff] %vm681, %v4657
  %4716 = vst.msk [vmem:[#allocation2 + $0x170] sm:$0xff] %vm681, %v4626
  %4717 = vst.msk [vmem:[#allocation2 + $0x178] sm:$0xff] %vm681, %v4658
  %4718 = vst.msk [vmem:[#allocation2 + $0x180] sm:$0xff] %vm681, %v4627
  %4719 = vst.msk [vmem:[#allocation2 + $0x188] sm:$0xff] %vm681, %v4659
  %4720 = vst.msk [vmem:[#allocation2 + $0x190] sm:$0xff] %vm681, %v4628
  %4721 = vst.msk [vmem:[#allocation2 + $0x198] sm:$0xff] %vm681, %v4660
  %4722 = vst.msk [vmem:[#allocation2 + $0x1a0] sm:$0xff] %vm681, %v4629
  %4723 = vst.msk [vmem:[#allocation2 + $0x1a8] sm:$0xff] %vm681, %v4661
  %4724 = vst.msk [vmem:[#allocation2 + $0x1b0] sm:$0xff] %vm681, %v4630
  %4725 = vst.msk [vmem:[#allocation2 + $0x1b8] sm:$0xff] %vm681, %v4662
  %4726 = vst.msk [vmem:[#allocation2 + $0x1c0] sm:$0xff] %vm681, %v4631
  %4727 = vst.msk [vmem:[#allocation2 + $0x1c8] sm:$0xff] %vm681, %v4663
  %4728 = vst.msk [vmem:[#allocation2 + $0x1d0] sm:$0xff] %vm681, %v4632
  %4729 = vst.msk [vmem:[#allocation2 + $0x1d8] sm:$0xff] %vm681, %v4664
  %4730 = vst.msk [vmem:[#allocation2 + $0x1e0] sm:$0xff] %vm681, %v4633
  %4731 = vst.msk [vmem:[#allocation2 + $0x1e8] sm:$0xff] %vm681, %v4665
  %4732 = vst.msk [vmem:[#allocation2 + $0x1f0] sm:$0xff] %vm681, %v4634
  %4733 = vst.msk [vmem:[#allocation2 + $0x1f8] sm:$0xff] %vm681, %v4666
  %4734 = vst.msk [vmem:[#allocation2 + $0x200] sm:$0xff] %vm681, %v4635
  %4735 = vst.msk [vmem:[#allocation2 + $0x208] sm:$0xff] %vm681, %v4667
  %4736 = vst.msk [vmem:[#allocation2 + $0x210] sm:$0xff] %vm681, %v4636
  %4737 = vst.msk [vmem:[#allocation2 + $0x218] sm:$0xff] %vm681, %v4668
  %4738 = vst.msk [vmem:[#allocation2 + $0x220] sm:$0xff] %vm681, %v4637
  %4739 = vst.msk [vmem:[#allocation2 + $0x228] sm:$0xff] %vm681, %v4669
  %4740 = vst.msk [vmem:[#allocation2 + $0x230] sm:$0xff] %vm681, 0
  %4741 = vst.msk [vmem:[#allocation2 + $0x238] sm:$0xff] %vm681, 0
  %v4742 = vld [vmem:[#allocation2] sm:$0xff]
  %v4743 = vld [vmem:[#allocation2 + $0x10] sm:$0xff]
  %v4744 = vld [vmem:[#allocation2 + $0x20] sm:$0xff]
  %v4745 = vld [vmem:[#allocation2 + $0x30] sm:$0xff]
  %v4746 = vld [vmem:[#allocation2 + $0x40] sm:$0xff]
  %v4747 = vld [vmem:[#allocation2 + $0x50] sm:$0xff]
  %v4748 = vld [vmem:[#allocation2 + $0x60] sm:$0xff]
  %v4749 = vld [vmem:[#allocation2 + $0x70] sm:$0xff]
  %v4750 = vld [vmem:[#allocation2 + $0x80] sm:$0xff]
  %v4751 = vld [vmem:[#allocation2 + $0x90] sm:$0xff]
  %v4752 = vld [vmem:[#allocation2 + $0xa0] sm:$0xff]
  %v4753 = vld [vmem:[#allocation2 + $0xb0] sm:$0xff]
  %v4754 = vld [vmem:[#allocation2 + $0xc0] sm:$0xff]
  %v4755 = vld [vmem:[#allocation2 + $0xd0] sm:$0xff]
  %v4756 = vld [vmem:[#allocation2 + $0xe0] sm:$0xff]
  %v4757 = vld [vmem:[#allocation2 + $0xf0] sm:$0xff]
  %v4758 = vld [vmem:[#allocation2 + $0x120] sm:$0xff]
  %v4759 = vld [vmem:[#allocation2 + $0x130] sm:$0xff]
  %v4760 = vld [vmem:[#allocation2 + $0x140] sm:$0xff]
  %v4761 = vld [vmem:[#allocation2 + $0x150] sm:$0xff]
  %v4762 = vld [vmem:[#allocation2 + $0x160] sm:$0xff]
  %v4763 = vld [vmem:[#allocation2 + $0x170] sm:$0xff]
  %v4764 = vld [vmem:[#allocation2 + $0x180] sm:$0xff]
  %v4765 = vld [vmem:[#allocation2 + $0x190] sm:$0xff]
  %v4766 = vld [vmem:[#allocation2 + $0x1a0] sm:$0xff]
  %v4767 = vld [vmem:[#allocation2 + $0x1b0] sm:$0xff]
  %v4768 = vld [vmem:[#allocation2 + $0x1c0] sm:$0xff]
  %v4769 = vld [vmem:[#allocation2 + $0x1d0] sm:$0xff]
  %v4770 = vld [vmem:[#allocation2 + $0x1e0] sm:$0xff]
  %v4771 = vld [vmem:[#allocation2 + $0x1f0] sm:$0xff]
  %v4772 = vld [vmem:[#allocation2 + $0x200] sm:$0xff]
  %v4773 = vld [vmem:[#allocation2 + $0x210] sm:$0xff]
  %v4774 = vld [vmem:[#allocation2 + $0x8] sm:$0x1]
  %v4775 = vld [vmem:[#allocation2 + $0x18] sm:$0x1]
  %v4776 = vld [vmem:[#allocation2 + $0x28] sm:$0x1]
  %v4777 = vld [vmem:[#allocation2 + $0x38] sm:$0x1]
  %v4778 = vld [vmem:[#allocation2 + $0x48] sm:$0x1]
  %v4779 = vld [vmem:[#allocation2 + $0x58] sm:$0x1]
  %v4780 = vld [vmem:[#allocation2 + $0x68] sm:$0x1]
  %v4781 = vld [vmem:[#allocation2 + $0x78] sm:$0x1]
  %v4782 = vld [vmem:[#allocation2 + $0x88] sm:$0x1]
  %v4783 = vld [vmem:[#allocation2 + $0x98] sm:$0x1]
  %v4784 = vld [vmem:[#allocation2 + $0xa8] sm:$0x1]
  %v4785 = vld [vmem:[#allocation2 + $0xb8] sm:$0x1]
  %v4786 = vld [vmem:[#allocation2 + $0xc8] sm:$0x1]
  %v4787 = vld [vmem:[#allocation2 + $0xd8] sm:$0x1]
  %v4788 = vld [vmem:[#allocation2 + $0xe8] sm:$0x1]
  %v4789 = vld [vmem:[#allocation2 + $0xf8] sm:$0x1]
  %v4790 = vld [vmem:[#allocation2 + $0x128] sm:$0x1]
  %v4791 = vld [vmem:[#allocation2 + $0x138] sm:$0x1]
  %v4792 = vld [vmem:[#allocation2 + $0x148] sm:$0x1]
  %v4793 = vld [vmem:[#allocation2 + $0x158] sm:$0x1]
  %v4794 = vld [vmem:[#allocation2 + $0x168] sm:$0x1]
  %v4795 = vld [vmem:[#allocation2 + $0x178] sm:$0x1]
  %v4796 = vld [vmem:[#allocation2 + $0x188] sm:$0x1]
  %v4797 = vld [vmem:[#allocation2 + $0x198] sm:$0x1]
  %v4798 = vld [vmem:[#allocation2 + $0x1a8] sm:$0x1]
  %v4799 = vld [vmem:[#allocation2 + $0x1b8] sm:$0x1]
  %v4800 = vld [vmem:[#allocation2 + $0x1c8] sm:$0x1]
  %v4801 = vld [vmem:[#allocation2 + $0x1d8] sm:$0x1]
  %v4802 = vld [vmem:[#allocation2 + $0x1e8] sm:$0x1]
  %v4803 = vld [vmem:[#allocation2 + $0x1f8] sm:$0x1]
  %v4804 = vld [vmem:[#allocation2 + $0x208] sm:$0x1]
  %v4805 = vld [vmem:[#allocation2 + $0x218] sm:$0x1]
  %v4806 = vld [vmem:[#allocation2] sm:$0xfe]
  %v4807 = vld [vmem:[#allocation2 + $0x10] sm:$0xfe]
  %v4808 = vld [vmem:[#allocation2 + $0x20] sm:$0xfe]
  %v4809 = vld [vmem:[#allocation2 + $0x30] sm:$0xfe]
  %v4810 = vld [vmem:[#allocation2 + $0x40] sm:$0xfe]
  %v4811 = vld [vmem:[#allocation2 + $0x50] sm:$0xfe]
  %v4812 = vld [vmem:[#allocation2 + $0x60] sm:$0xfe]
  %v4813 = vld [vmem:[#allocation2 + $0x70] sm:$0xfe]
  %v4814 = vld [vmem:[#allocation2 + $0x80] sm:$0xfe]
  %v4815 = vld [vmem:[#allocation2 + $0x90] sm:$0xfe]
  %v4816 = vld [vmem:[#allocation2 + $0xa0] sm:$0xfe]
  %v4817 = vld [vmem:[#allocation2 + $0xb0] sm:$0xfe]
  %v4818 = vld [vmem:[#allocation2 + $0xc0] sm:$0xfe]
  %v4819 = vld [vmem:[#allocation2 + $0xd0] sm:$0xfe]
  %v4820 = vld [vmem:[#allocation2 + $0xe0] sm:$0xfe]
  %v4821 = vld [vmem:[#allocation2 + $0xf0] sm:$0xfe]
  %v4822 = vld [vmem:[#allocation2 + $0x120] sm:$0xfe]
  %v4823 = vld [vmem:[#allocation2 + $0x130] sm:$0xfe]
  %v4824 = vld [vmem:[#allocation2 + $0x140] sm:$0xfe]
  %v4825 = vld [vmem:[#allocation2 + $0x150] sm:$0xfe]
  %v4826 = vld [vmem:[#allocation2 + $0x160] sm:$0xfe]
  %v4827 = vld [vmem:[#allocation2 + $0x170] sm:$0xfe]
  %v4828 = vld [vmem:[#allocation2 + $0x180] sm:$0xfe]
  %v4829 = vld [vmem:[#allocation2 + $0x190] sm:$0xfe]
  %v4830 = vld [vmem:[#allocation2 + $0x1a0] sm:$0xfe]
  %v4831 = vld [vmem:[#allocation2 + $0x1b0] sm:$0xfe]
  %v4832 = vld [vmem:[#allocation2 + $0x1c0] sm:$0xfe]
  %v4833 = vld [vmem:[#allocation2 + $0x1d0] sm:$0xfe]
  %v4834 = vld [vmem:[#allocation2 + $0x1e0] sm:$0xfe]
  %v4835 = vld [vmem:[#allocation2 + $0x1f0] sm:$0xfe]
  %v4836 = vld [vmem:[#allocation2 + $0x200] sm:$0xfe]
  %v4837 = vld [vmem:[#allocation2 + $0x210] sm:$0xfe]
  %v4838 = vld [vmem:[%s850] sm:$0xff]
  %v4839 = vld [vmem:[%s850 + $0x10] sm:$0xff]
  %v4840 = vld [vmem:[%s850 + $0x20] sm:$0xff]
  %v4841 = vld [vmem:[%s850 + $0x30] sm:$0xff]
  %v4842 = vld [vmem:[%s850 + $0x40] sm:$0xff]
  %v4843 = vld [vmem:[%s850 + $0x50] sm:$0xff]
  %v4844 = vld [vmem:[%s850 + $0x60] sm:$0xff]
  %v4845 = vld [vmem:[%s850 + $0x70] sm:$0xff]
  %v4846 = vld [vmem:[%s850 + $0x80] sm:$0xff]
  %v4847 = vld [vmem:[%s850 + $0x90] sm:$0xff]
  %v4848 = vld [vmem:[%s850 + $0xa0] sm:$0xff]
  %v4849 = vld [vmem:[%s850 + $0xb0] sm:$0xff]
  %v4850 = vld [vmem:[%s850 + $0xc0] sm:$0xff]
  %v4851 = vld [vmem:[%s850 + $0xd0] sm:$0xff]
  %v4852 = vld [vmem:[%s850 + $0xe0] sm:$0xff]
  %v4853 = vld [vmem:[%s850 + $0xf0] sm:$0xff]
  %v4854 = vld [vmem:[%s850 + $0x120] sm:$0xff]
  %v4855 = vld [vmem:[%s850 + $0x130] sm:$0xff]
  %v4856 = vld [vmem:[%s850 + $0x140] sm:$0xff]
  %v4857 = vld [vmem:[%s850 + $0x150] sm:$0xff]
  %v4858 = vld [vmem:[%s850 + $0x160] sm:$0xff]
  %v4859 = vld [vmem:[%s850 + $0x170] sm:$0xff]
  %v4860 = vld [vmem:[%s850 + $0x180] sm:$0xff]
  %v4861 = vld [vmem:[%s850 + $0x190] sm:$0xff]
  %v4862 = vld [vmem:[%s850 + $0x1a0] sm:$0xff]
  %v4863 = vld [vmem:[%s850 + $0x1b0] sm:$0xff]
  %v4864 = vld [vmem:[%s850 + $0x1c0] sm:$0xff]
  %v4865 = vld [vmem:[%s850 + $0x1d0] sm:$0xff]
  %v4866 = vld [vmem:[%s850 + $0x1e0] sm:$0xff]
  %v4867 = vld [vmem:[%s850 + $0x1f0] sm:$0xff]
  %v4868 = vld [vmem:[%s850 + $0x200] sm:$0xff]
  %v4869 = vld [vmem:[%s850 + $0x210] sm:$0xff]
  %v4870 = vld [vmem:[%s850 + $0x8] sm:$0x1]
  %v4871 = vld [vmem:[%s850 + $0x18] sm:$0x1]
  %v4872 = vld [vmem:[%s850 + $0x28] sm:$0x1]
  %v4873 = vld [vmem:[%s850 + $0x38] sm:$0x1]
  %v4874 = vld [vmem:[%s850 + $0x48] sm:$0x1]
  %v4875 = vld [vmem:[%s850 + $0x58] sm:$0x1]
  %v4876 = vld [vmem:[%s850 + $0x68] sm:$0x1]
  %v4877 = vld [vmem:[%s850 + $0x78] sm:$0x1]
  %v4878 = vld [vmem:[%s850 + $0x88] sm:$0x1]
  %v4879 = vld [vmem:[%s850 + $0x98] sm:$0x1]
  %v4880 = vld [vmem:[%s850 + $0xa8] sm:$0x1]
  %v4881 = vld [vmem:[%s850 + $0xb8] sm:$0x1]
  %v4882 = vld [vmem:[%s850 + $0xc8] sm:$0x1]
  %v4883 = vld [vmem:[%s850 + $0xd8] sm:$0x1]
  %v4884 = vld [vmem:[%s850 + $0xe8] sm:$0x1]
  %v4885 = vld [vmem:[%s850 + $0xf8] sm:$0x1]
  %v4886 = vld [vmem:[%s850 + $0x128] sm:$0x1]
  %v4887 = vld [vmem:[%s850 + $0x138] sm:$0x1]
  %v4888 = vld [vmem:[%s850 + $0x148] sm:$0x1]
  %v4889 = vld [vmem:[%s850 + $0x158] sm:$0x1]
  %v4890 = vld [vmem:[%s850 + $0x168] sm:$0x1]
  %v4891 = vld [vmem:[%s850 + $0x178] sm:$0x1]
  %v4892 = vld [vmem:[%s850 + $0x188] sm:$0x1]
  %v4893 = vld [vmem:[%s850 + $0x198] sm:$0x1]
  %v4894 = vld [vmem:[%s850 + $0x1a8] sm:$0x1]
  %v4895 = vld [vmem:[%s850 + $0x1b8] sm:$0x1]
  %v4896 = vld [vmem:[%s850 + $0x1c8] sm:$0x1]
  %v4897 = vld [vmem:[%s850 + $0x1d8] sm:$0x1]
  %v4898 = vld [vmem:[%s850 + $0x1e8] sm:$0x1]
  %v4899 = vld [vmem:[%s850 + $0x1f8] sm:$0x1]
  %v4900 = vld [vmem:[%s850 + $0x208] sm:$0x1]
  %v4901 = vld [vmem:[%s850 + $0x218] sm:$0x1]
  %v4902 = vld [vmem:[%s850] sm:$0xfe]
  %v4903 = vld [vmem:[%s850 + $0x10] sm:$0xfe]
  %v4904 = vld [vmem:[%s850 + $0x20] sm:$0xfe]
  %v4905 = vld [vmem:[%s850 + $0x30] sm:$0xfe]
  %v4906 = vld [vmem:[%s850 + $0x40] sm:$0xfe]
  %v4907 = vld [vmem:[%s850 + $0x50] sm:$0xfe]
  %v4908 = vld [vmem:[%s850 + $0x60] sm:$0xfe]
  %v4909 = vld [vmem:[%s850 + $0x70] sm:$0xfe]
  %v4910 = vld [vmem:[%s850 + $0x80] sm:$0xfe]
  %v4911 = vld [vmem:[%s850 + $0x90] sm:$0xfe]
  %v4912 = vld [vmem:[%s850 + $0xa0] sm:$0xfe]
  %v4913 = vld [vmem:[%s850 + $0xb0] sm:$0xfe]
  %v4914 = vld [vmem:[%s850 + $0xc0] sm:$0xfe]
  %v4915 = vld [vmem:[%s850 + $0xd0] sm:$0xfe]
  %v4916 = vld [vmem:[%s850 + $0xe0] sm:$0xfe]
  %v4917 = vld [vmem:[%s850 + $0xf0] sm:$0xfe]
  %v4918 = vld [vmem:[%s850 + $0x120] sm:$0xfe]
  %v4919 = vld [vmem:[%s850 + $0x130] sm:$0xfe]
  %v4920 = vld [vmem:[%s850 + $0x140] sm:$0xfe]
  %v4921 = vld [vmem:[%s850 + $0x150] sm:$0xfe]
  %v4922 = vld [vmem:[%s850 + $0x160] sm:$0xfe]
  %v4923 = vld [vmem:[%s850 + $0x170] sm:$0xfe]
  %v4924 = vld [vmem:[%s850 + $0x180] sm:$0xfe]
  %v4925 = vld [vmem:[%s850 + $0x190] sm:$0xfe]
  %v4926 = vld [vmem:[%s850 + $0x1a0] sm:$0xfe]
  %v4927 = vld [vmem:[%s850 + $0x1b0] sm:$0xfe]
  %v4928 = vld [vmem:[%s850 + $0x1c0] sm:$0xfe]
  %v4929 = vld [vmem:[%s850 + $0x1d0] sm:$0xfe]
  %v4930 = vld [vmem:[%s850 + $0x1e0] sm:$0xfe]
  %v4931 = vld [vmem:[%s850 + $0x1f0] sm:$0xfe]
  %v4932 = vld [vmem:[%s850 + $0x200] sm:$0xfe]
  %v4933 = vld [vmem:[%s850 + $0x210] sm:$0xfe]
  %v4934 = vld [vmem:[%s947] sm:$0xff]
  %v4935 = vld [vmem:[%s947 + $0x10] sm:$0xff]
  %v4936 = vld [vmem:[%s947 + $0x20] sm:$0xff]
  %v4937 = vld [vmem:[%s947 + $0x30] sm:$0xff]
  %v4938 = vld [vmem:[%s947 + $0x40] sm:$0xff]
  %v4939 = vld [vmem:[%s947 + $0x50] sm:$0xff]
  %v4940 = vld [vmem:[%s947 + $0x60] sm:$0xff]
  %v4941 = vld [vmem:[%s947 + $0x70] sm:$0xff]
  %v4942 = vld [vmem:[%s947 + $0x80] sm:$0xff]
  %v4943 = vld [vmem:[%s947 + $0x90] sm:$0xff]
  %v4944 = vld [vmem:[%s947 + $0xa0] sm:$0xff]
  %v4945 = vld [vmem:[%s947 + $0xb0] sm:$0xff]
  %v4946 = vld [vmem:[%s947 + $0xc0] sm:$0xff]
  %v4947 = vld [vmem:[%s947 + $0xd0] sm:$0xff]
  %v4948 = vld [vmem:[%s947 + $0xe0] sm:$0xff]
  %v4949 = vld [vmem:[%s947 + $0xf0] sm:$0xff]
  %v4950 = vld [vmem:[%s947 + $0x120] sm:$0xff]
  %v4951 = vld [vmem:[%s947 + $0x130] sm:$0xff]
  %v4952 = vld [vmem:[%s947 + $0x140] sm:$0xff]
  %v4953 = vld [vmem:[%s947 + $0x150] sm:$0xff]
  %v4954 = vld [vmem:[%s947 + $0x160] sm:$0xff]
  %v4955 = vld [vmem:[%s947 + $0x170] sm:$0xff]
  %v4956 = vld [vmem:[%s947 + $0x180] sm:$0xff]
  %v4957 = vld [vmem:[%s947 + $0x190] sm:$0xff]
  %v4958 = vld [vmem:[%s947 + $0x1a0] sm:$0xff]
  %v4959 = vld [vmem:[%s947 + $0x1b0] sm:$0xff]
  %v4960 = vld [vmem:[%s947 + $0x1c0] sm:$0xff]
  %v4961 = vld [vmem:[%s947 + $0x1d0] sm:$0xff]
  %v4962 = vld [vmem:[%s947 + $0x1e0] sm:$0xff]
  %v4963 = vld [vmem:[%s947 + $0x1f0] sm:$0xff]
  %v4964 = vld [vmem:[%s947 + $0x200] sm:$0xff]
  %v4965 = vld [vmem:[%s947 + $0x210] sm:$0xff]
  %v4966 = vld [vmem:[%s947 + $0x8] sm:$0x1]
  %v4967 = vld [vmem:[%s947 + $0x18] sm:$0x1]
  %v4968 = vld [vmem:[%s947 + $0x28] sm:$0x1]
  %v4969 = vld [vmem:[%s947 + $0x38] sm:$0x1]
  %v4970 = vld [vmem:[%s947 + $0x48] sm:$0x1]
  %v4971 = vld [vmem:[%s947 + $0x58] sm:$0x1]
  %v4972 = vld [vmem:[%s947 + $0x68] sm:$0x1]
  %v4973 = vld [vmem:[%s947 + $0x78] sm:$0x1]
  %v4974 = vld [vmem:[%s947 + $0x88] sm:$0x1]
  %v4975 = vld [vmem:[%s947 + $0x98] sm:$0x1]
  %v4976 = vld [vmem:[%s947 + $0xa8] sm:$0x1]
  %v4977 = vld [vmem:[%s947 + $0xb8] sm:$0x1]
  %v4978 = vld [vmem:[%s947 + $0xc8] sm:$0x1]
  %v4979 = vld [vmem:[%s947 + $0xd8] sm:$0x1]
  %v4980 = vld [vmem:[%s947 + $0xe8] sm:$0x1]
  %v4981 = vld [vmem:[%s947 + $0xf8] sm:$0x1]
  %v4982 = vld [vmem:[%s947 + $0x128] sm:$0x1]
  %v4983 = vld [vmem:[%s947 + $0x138] sm:$0x1]
  %v4984 = vld [vmem:[%s947 + $0x148] sm:$0x1]
  %v4985 = vld [vmem:[%s947 + $0x158] sm:$0x1]
  %v4986 = vld [vmem:[%s947 + $0x168] sm:$0x1]
  %v4987 = vld [vmem:[%s947 + $0x178] sm:$0x1]
  %v4988 = vld [vmem:[%s947 + $0x188] sm:$0x1]
  %v4989 = vld [vmem:[%s947 + $0x198] sm:$0x1]
  %v4990 = vld [vmem:[%s947 + $0x1a8] sm:$0x1]
  %v4991 = vld [vmem:[%s947 + $0x1b8] sm:$0x1]
  %v4992 = vld [vmem:[%s947 + $0x1c8] sm:$0x1]
  %v4993 = vld [vmem:[%s947 + $0x1d8] sm:$0x1]
  %v4994 = vld [vmem:[%s947 + $0x1e8] sm:$0x1]
  %v4995 = vld [vmem:[%s947 + $0x1f8] sm:$0x1]
  %v4996 = vld [vmem:[%s947 + $0x208] sm:$0x1]
  %v4997 = vld [vmem:[%s947 + $0x218] sm:$0x1]
  %v4998 = vld [vmem:[%s947] sm:$0xfe]
  %v4999 = vld [vmem:[%s947 + $0x10] sm:$0xfe]
  %v5000 = vld [vmem:[%s947 + $0x20] sm:$0xfe]
  %v5001 = vld [vmem:[%s947 + $0x30] sm:$0xfe]
  %v5002 = vld [vmem:[%s947 + $0x40] sm:$0xfe]
  %v5003 = vld [vmem:[%s947 + $0x50] sm:$0xfe]
  %v5004 = vld [vmem:[%s947 + $0x60] sm:$0xfe]
  %v5005 = vld [vmem:[%s947 + $0x70] sm:$0xfe]
  %v5006 = vld [vmem:[%s947 + $0x80] sm:$0xfe]
  %v5007 = vld [vmem:[%s947 + $0x90] sm:$0xfe]
  %v5008 = vld [vmem:[%s947 + $0xa0] sm:$0xfe]
  %v5009 = vld [vmem:[%s947 + $0xb0] sm:$0xfe]
  %v5010 = vld [vmem:[%s947 + $0xc0] sm:$0xfe]
  %v5011 = vld [vmem:[%s947 + $0xd0] sm:$0xfe]
  %v5012 = vld [vmem:[%s947 + $0xe0] sm:$0xfe]
  %v5013 = vld [vmem:[%s947 + $0xf0] sm:$0xfe]
  %v5014 = vld [vmem:[%s947 + $0x120] sm:$0xfe]
  %v5015 = vld [vmem:[%s947 + $0x130] sm:$0xfe]
  %v5016 = vld [vmem:[%s947 + $0x140] sm:$0xfe]
  %v5017 = vld [vmem:[%s947 + $0x150] sm:$0xfe]
  %v5018 = vld [vmem:[%s947 + $0x160] sm:$0xfe]
  %v5019 = vld [vmem:[%s947 + $0x170] sm:$0xfe]
  %v5020 = vld [vmem:[%s947 + $0x180] sm:$0xfe]
  %v5021 = vld [vmem:[%s947 + $0x190] sm:$0xfe]
  %v5022 = vld [vmem:[%s947 + $0x1a0] sm:$0xfe]
  %v5023 = vld [vmem:[%s947 + $0x1b0] sm:$0xfe]
  %v5024 = vld [vmem:[%s947 + $0x1c0] sm:$0xfe]
  %v5025 = vld [vmem:[%s947 + $0x1d0] sm:$0xfe]
  %v5026 = vld [vmem:[%s947 + $0x1e0] sm:$0xfe]
  %v5027 = vld [vmem:[%s947 + $0x1f0] sm:$0xfe]
  %v5028 = vld [vmem:[%s947 + $0x200] sm:$0xfe]
  %v5029 = vld [vmem:[%s947 + $0x210] sm:$0xfe]
  %v5031 = vshrl.u32 %v4742, 16
  %v5033 = vshll.u32 %v4742, 16
  %v5035 = vrot.slane %v5033, 1
  %v5036 = vor.u32 %v5031, %v5035
  %v5038 = vshll.u32 %v4774, 16
  %v5040 = vrot.slane %v5038, 1
  %v5041 = vsel %vm1044, %v5036, %v5040
  %v5043 = vshrl.u32 %v4743, 16
  %v5045 = vshll.u32 %v4743, 16
  %v5047 = vrot.slane %v5045, 1
  %v5048 = vor.u32 %v5043, %v5047
  %v5050 = vshll.u32 %v4775, 16
  %v5052 = vrot.slane %v5050, 1
  %v5053 = vsel %vm1044, %v5048, %v5052
  %v5055 = vshrl.u32 %v4744, 16
  %v5057 = vshll.u32 %v4744, 16
  %v5059 = vrot.slane %v5057, 1
  %v5060 = vor.u32 %v5055, %v5059
  %v5062 = vshll.u32 %v4776, 16
  %v5064 = vrot.slane %v5062, 1
  %v5065 = vsel %vm1044, %v5060, %v5064
  %v5067 = vshrl.u32 %v4745, 16
  %v5069 = vshll.u32 %v4745, 16
  %v5071 = vrot.slane %v5069, 1
  %v5072 = vor.u32 %v5067, %v5071
  %v5074 = vshll.u32 %v4777, 16
  %v5076 = vrot.slane %v5074, 1
  %v5077 = vsel %vm1044, %v5072, %v5076
  %v5079 = vshrl.u32 %v4746, 16
  %v5081 = vshll.u32 %v4746, 16
  %v5083 = vrot.slane %v5081, 1
  %v5084 = vor.u32 %v5079, %v5083
  %v5086 = vshll.u32 %v4778, 16
  %v5088 = vrot.slane %v5086, 1
  %v5089 = vsel %vm1044, %v5084, %v5088
  %v5091 = vshrl.u32 %v4747, 16
  %v5093 = vshll.u32 %v4747, 16
  %v5095 = vrot.slane %v5093, 1
  %v5096 = vor.u32 %v5091, %v5095
  %v5098 = vshll.u32 %v4779, 16
  %v5100 = vrot.slane %v5098, 1
  %v5101 = vsel %vm1044, %v5096, %v5100
  %v5103 = vshrl.u32 %v4748, 16
  %v5105 = vshll.u32 %v4748, 16
  %v5107 = vrot.slane %v5105, 1
  %v5108 = vor.u32 %v5103, %v5107
  %v5110 = vshll.u32 %v4780, 16
  %v5112 = vrot.slane %v5110, 1
  %v5113 = vsel %vm1044, %v5108, %v5112
  %v5115 = vshrl.u32 %v4749, 16
  %v5117 = vshll.u32 %v4749, 16
  %v5119 = vrot.slane %v5117, 1
  %v5120 = vor.u32 %v5115, %v5119
  %v5122 = vshll.u32 %v4781, 16
  %v5124 = vrot.slane %v5122, 1
  %v5125 = vsel %vm1044, %v5120, %v5124
  %v5127 = vshrl.u32 %v4750, 16
  %v5129 = vshll.u32 %v4750, 16
  %v5131 = vrot.slane %v5129, 1
  %v5132 = vor.u32 %v5127, %v5131
  %v5134 = vshll.u32 %v4782, 16
  %v5136 = vrot.slane %v5134, 1
  %v5137 = vsel %vm1044, %v5132, %v5136
  %v5139 = vshrl.u32 %v4751, 16
  %v5141 = vshll.u32 %v4751, 16
  %v5143 = vrot.slane %v5141, 1
  %v5144 = vor.u32 %v5139, %v5143
  %v5146 = vshll.u32 %v4783, 16
  %v5148 = vrot.slane %v5146, 1
  %v5149 = vsel %vm1044, %v5144, %v5148
  %v5151 = vshrl.u32 %v4752, 16
  %v5153 = vshll.u32 %v4752, 16
  %v5155 = vrot.slane %v5153, 1
  %v5156 = vor.u32 %v5151, %v5155
  %v5158 = vshll.u32 %v4784, 16
  %v5160 = vrot.slane %v5158, 1
  %v5161 = vsel %vm1044, %v5156, %v5160
  %v5163 = vshrl.u32 %v4753, 16
  %v5165 = vshll.u32 %v4753, 16
  %v5167 = vrot.slane %v5165, 1
  %v5168 = vor.u32 %v5163, %v5167
  %v5170 = vshll.u32 %v4785, 16
  %v5172 = vrot.slane %v5170, 1
  %v5173 = vsel %vm1044, %v5168, %v5172
  %v5175 = vshrl.u32 %v4754, 16
  %v5177 = vshll.u32 %v4754, 16
  %v5179 = vrot.slane %v5177, 1
  %v5180 = vor.u32 %v5175, %v5179
  %v5182 = vshll.u32 %v4786, 16
  %v5184 = vrot.slane %v5182, 1
  %v5185 = vsel %vm1044, %v5180, %v5184
  %v5187 = vshrl.u32 %v4755, 16
  %v5189 = vshll.u32 %v4755, 16
  %v5191 = vrot.slane %v5189, 1
  %v5192 = vor.u32 %v5187, %v5191
  %v5194 = vshll.u32 %v4787, 16
  %v5196 = vrot.slane %v5194, 1
  %v5197 = vsel %vm1044, %v5192, %v5196
  %v5199 = vshrl.u32 %v4756, 16
  %v5201 = vshll.u32 %v4756, 16
  %v5203 = vrot.slane %v5201, 1
  %v5204 = vor.u32 %v5199, %v5203
  %v5206 = vshll.u32 %v4788, 16
  %v5208 = vrot.slane %v5206, 1
  %v5209 = vsel %vm1044, %v5204, %v5208
  %v5211 = vshrl.u32 %v4757, 16
  %v5213 = vshll.u32 %v4757, 16
  %v5215 = vrot.slane %v5213, 1
  %v5216 = vor.u32 %v5211, %v5215
  %v5218 = vshll.u32 %v4789, 16
  %v5220 = vrot.slane %v5218, 1
  %v5221 = vsel %vm1044, %v5216, %v5220
  %v5223 = vshrl.u32 %v4758, 16
  %v5225 = vshll.u32 %v4758, 16
  %v5227 = vrot.slane %v5225, 1
  %v5228 = vor.u32 %v5223, %v5227
  %v5230 = vshll.u32 %v4790, 16
  %v5232 = vrot.slane %v5230, 1
  %v5233 = vsel %vm1044, %v5228, %v5232
  %v5235 = vshrl.u32 %v4759, 16
  %v5237 = vshll.u32 %v4759, 16
  %v5239 = vrot.slane %v5237, 1
  %v5240 = vor.u32 %v5235, %v5239
  %v5242 = vshll.u32 %v4791, 16
  %v5244 = vrot.slane %v5242, 1
  %v5245 = vsel %vm1044, %v5240, %v5244
  %v5247 = vshrl.u32 %v4760, 16
  %v5249 = vshll.u32 %v4760, 16
  %v5251 = vrot.slane %v5249, 1
  %v5252 = vor.u32 %v5247, %v5251
  %v5254 = vshll.u32 %v4792, 16
  %v5256 = vrot.slane %v5254, 1
  %v5257 = vsel %vm1044, %v5252, %v5256
  %v5259 = vshrl.u32 %v4761, 16
  %v5261 = vshll.u32 %v4761, 16
  %v5263 = vrot.slane %v5261, 1
  %v5264 = vor.u32 %v5259, %v5263
  %v5266 = vshll.u32 %v4793, 16
  %v5268 = vrot.slane %v5266, 1
  %v5269 = vsel %vm1044, %v5264, %v5268
  %v5271 = vshrl.u32 %v4762, 16
  %v5273 = vshll.u32 %v4762, 16
  %v5275 = vrot.slane %v5273, 1
  %v5276 = vor.u32 %v5271, %v5275
  %v5278 = vshll.u32 %v4794, 16
  %v5280 = vrot.slane %v5278, 1
  %v5281 = vsel %vm1044, %v5276, %v5280
  %v5283 = vshrl.u32 %v4763, 16
  %v5285 = vshll.u32 %v4763, 16
  %v5287 = vrot.slane %v5285, 1
  %v5288 = vor.u32 %v5283, %v5287
  %v5290 = vshll.u32 %v4795, 16
  %v5292 = vrot.slane %v5290, 1
  %v5293 = vsel %vm1044, %v5288, %v5292
  %v5295 = vshrl.u32 %v4764, 16
  %v5297 = vshll.u32 %v4764, 16
  %v5299 = vrot.slane %v5297, 1
  %v5300 = vor.u32 %v5295, %v5299
  %v5302 = vshll.u32 %v4796, 16
  %v5304 = vrot.slane %v5302, 1
  %v5305 = vsel %vm1044, %v5300, %v5304
  %v5307 = vshrl.u32 %v4765, 16
  %v5309 = vshll.u32 %v4765, 16
  %v5311 = vrot.slane %v5309, 1
  %v5312 = vor.u32 %v5307, %v5311
  %v5314 = vshll.u32 %v4797, 16
  %v5316 = vrot.slane %v5314, 1
  %v5317 = vsel %vm1044, %v5312, %v5316
  %v5319 = vshrl.u32 %v4766, 16
  %v5321 = vshll.u32 %v4766, 16
  %v5323 = vrot.slane %v5321, 1
  %v5324 = vor.u32 %v5319, %v5323
  %v5326 = vshll.u32 %v4798, 16
  %v5328 = vrot.slane %v5326, 1
  %v5329 = vsel %vm1044, %v5324, %v5328
  %v5331 = vshrl.u32 %v4767, 16
  %v5333 = vshll.u32 %v4767, 16
  %v5335 = vrot.slane %v5333, 1
  %v5336 = vor.u32 %v5331, %v5335
  %v5338 = vshll.u32 %v4799, 16
  %v5340 = vrot.slane %v5338, 1
  %v5341 = vsel %vm1044, %v5336, %v5340
  %v5343 = vshrl.u32 %v4768, 16
  %v5345 = vshll.u32 %v4768, 16
  %v5347 = vrot.slane %v5345, 1
  %v5348 = vor.u32 %v5343, %v5347
  %v5350 = vshll.u32 %v4800, 16
  %v5352 = vrot.slane %v5350, 1
  %v5353 = vsel %vm1044, %v5348, %v5352
  %v5355 = vshrl.u32 %v4769, 16
  %v5357 = vshll.u32 %v4769, 16
  %v5359 = vrot.slane %v5357, 1
  %v5360 = vor.u32 %v5355, %v5359
  %v5362 = vshll.u32 %v4801, 16
  %v5364 = vrot.slane %v5362, 1
  %v5365 = vsel %vm1044, %v5360, %v5364
  %v5367 = vshrl.u32 %v4770, 16
  %v5369 = vshll.u32 %v4770, 16
  %v5371 = vrot.slane %v5369, 1
  %v5372 = vor.u32 %v5367, %v5371
  %v5374 = vshll.u32 %v4802, 16
  %v5376 = vrot.slane %v5374, 1
  %v5377 = vsel %vm1044, %v5372, %v5376
  %v5379 = vshrl.u32 %v4771, 16
  %v5381 = vshll.u32 %v4771, 16
  %v5383 = vrot.slane %v5381, 1
  %v5384 = vor.u32 %v5379, %v5383
  %v5386 = vshll.u32 %v4803, 16
  %v5388 = vrot.slane %v5386, 1
  %v5389 = vsel %vm1044, %v5384, %v5388
  %v5391 = vshrl.u32 %v4772, 16
  %v5393 = vshll.u32 %v4772, 16
  %v5395 = vrot.slane %v5393, 1
  %v5396 = vor.u32 %v5391, %v5395
  %v5398 = vshll.u32 %v4804, 16
  %v5400 = vrot.slane %v5398, 1
  %v5401 = vsel %vm1044, %v5396, %v5400
  %v5403 = vshrl.u32 %v4773, 16
  %v5405 = vshll.u32 %v4773, 16
  %v5407 = vrot.slane %v5405, 1
  %v5408 = vor.u32 %v5403, %v5407
  %v5410 = vshll.u32 %v4805, 16
  %v5412 = vrot.slane %v5410, 1
  %v5413 = vsel %vm1044, %v5408, %v5412
  %5414 = vrot.lane.b32.xlu0 %v5041, 4
  %v5415 = vpop.permute.xlu0 %5414
  %5416 = vrot.lane.b32.xlu0 %v5053, 4
  %v5417 = vpop.permute.xlu0 %5416
  %5418 = vrot.lane.b32.xlu0 %v5065, 4
  %v5419 = vpop.permute.xlu0 %5418
  %5420 = vrot.lane.b32.xlu0 %v5077, 4
  %v5421 = vpop.permute.xlu0 %5420
  %5422 = vrot.lane.b32.xlu0 %v5089, 4
  %v5423 = vpop.permute.xlu0 %5422
  %5424 = vrot.lane.b32.xlu0 %v5101, 4
  %v5425 = vpop.permute.xlu0 %5424
  %5426 = vrot.lane.b32.xlu0 %v5113, 4
  %v5427 = vpop.permute.xlu0 %5426
  %5428 = vrot.lane.b32.xlu0 %v5125, 4
  %v5429 = vpop.permute.xlu0 %5428
  %5430 = vrot.lane.b32.xlu0 %v5137, 4
  %v5431 = vpop.permute.xlu0 %5430
  %5432 = vrot.lane.b32.xlu0 %v5149, 4
  %v5433 = vpop.permute.xlu0 %5432
  %5434 = vrot.lane.b32.xlu0 %v5161, 4
  %v5435 = vpop.permute.xlu0 %5434
  %5436 = vrot.lane.b32.xlu0 %v5173, 4
  %v5437 = vpop.permute.xlu0 %5436
  %5438 = vrot.lane.b32.xlu0 %v5185, 4
  %v5439 = vpop.permute.xlu0 %5438
  %5440 = vrot.lane.b32.xlu0 %v5197, 4
  %v5441 = vpop.permute.xlu0 %5440
  %5442 = vrot.lane.b32.xlu0 %v5209, 4
  %v5443 = vpop.permute.xlu0 %5442
  %5444 = vrot.lane.b32.xlu0 %v5221, 4
  %v5445 = vpop.permute.xlu0 %5444
  %5446 = vrot.lane.b32.xlu0 %v5233, 4
  %v5447 = vpop.permute.xlu0 %5446
  %5448 = vrot.lane.b32.xlu0 %v5245, 4
  %v5449 = vpop.permute.xlu0 %5448
  %5450 = vrot.lane.b32.xlu0 %v5257, 4
  %v5451 = vpop.permute.xlu0 %5450
  %5452 = vrot.lane.b32.xlu0 %v5269, 4
  %v5453 = vpop.permute.xlu0 %5452
  %5454 = vrot.lane.b32.xlu0 %v5281, 4
  %v5455 = vpop.permute.xlu0 %5454
  %5456 = vrot.lane.b32.xlu0 %v5293, 4
  %v5457 = vpop.permute.xlu0 %5456
  %5458 = vrot.lane.b32.xlu0 %v5305, 4
  %v5459 = vpop.permute.xlu0 %5458
  %5460 = vrot.lane.b32.xlu0 %v5317, 4
  %v5461 = vpop.permute.xlu0 %5460
  %5462 = vrot.lane.b32.xlu0 %v5329, 4
  %v5463 = vpop.permute.xlu0 %5462
  %5464 = vrot.lane.b32.xlu0 %v5341, 4
  %v5465 = vpop.permute.xlu0 %5464
  %5466 = vrot.lane.b32.xlu0 %v5353, 4
  %v5467 = vpop.permute.xlu0 %5466
  %5468 = vrot.lane.b32.xlu0 %v5365, 4
  %v5469 = vpop.permute.xlu0 %5468
  %5470 = vrot.lane.b32.xlu0 %v5377, 4
  %v5471 = vpop.permute.xlu0 %5470
  %5472 = vrot.lane.b32.xlu0 %v5389, 4
  %v5473 = vpop.permute.xlu0 %5472
  %5474 = vrot.lane.b32.xlu0 %v5401, 4
  %v5475 = vpop.permute.xlu0 %5474
  %5476 = vrot.lane.b32.xlu0 %v5413, 4
  %v5477 = vpop.permute.xlu0 %5476
  %v5542 = vrot.slane %v4806, 1
  %v5543 = vrot.slane %v4774, 1
  %v5544 = vsel %vm1557, %v5542, %v5543
  %v5545 = vrot.slane %v4807, 1
  %v5546 = vrot.slane %v4775, 1
  %v5547 = vsel %vm1557, %v5545, %v5546
  %v5548 = vrot.slane %v4808, 1
  %v5549 = vrot.slane %v4776, 1
  %v5550 = vsel %vm1557, %v5548, %v5549
  %v5551 = vrot.slane %v4809, 1
  %v5552 = vrot.slane %v4777, 1
  %v5553 = vsel %vm1557, %v5551, %v5552
  %v5554 = vrot.slane %v4810, 1
  %v5555 = vrot.slane %v4778, 1
  %v5556 = vsel %vm1557, %v5554, %v5555
  %v5557 = vrot.slane %v4811, 1
  %v5558 = vrot.slane %v4779, 1
  %v5559 = vsel %vm1557, %v5557, %v5558
  %v5560 = vrot.slane %v4812, 1
  %v5561 = vrot.slane %v4780, 1
  %v5562 = vsel %vm1557, %v5560, %v5561
  %v5563 = vrot.slane %v4813, 1
  %v5564 = vrot.slane %v4781, 1
  %v5565 = vsel %vm1557, %v5563, %v5564
  %v5566 = vrot.slane %v4814, 1
  %v5567 = vrot.slane %v4782, 1
  %v5568 = vsel %vm1557, %v5566, %v5567
  %v5569 = vrot.slane %v4815, 1
  %v5570 = vrot.slane %v4783, 1
  %v5571 = vsel %vm1557, %v5569, %v5570
  %v5572 = vrot.slane %v4816, 1
  %v5573 = vrot.slane %v4784, 1
  %v5574 = vsel %vm1557, %v5572, %v5573
  %v5575 = vrot.slane %v4817, 1
  %v5576 = vrot.slane %v4785, 1
  %v5577 = vsel %vm1557, %v5575, %v5576
  %v5578 = vrot.slane %v4818, 1
  %v5579 = vrot.slane %v4786, 1
  %v5580 = vsel %vm1557, %v5578, %v5579
  %v5581 = vrot.slane %v4819, 1
  %v5582 = vrot.slane %v4787, 1
  %v5583 = vsel %vm1557, %v5581, %v5582
  %v5584 = vrot.slane %v4820, 1
  %v5585 = vrot.slane %v4788, 1
  %v5586 = vsel %vm1557, %v5584, %v5585
  %v5587 = vrot.slane %v4821, 1
  %v5588 = vrot.slane %v4789, 1
  %v5589 = vsel %vm1557, %v5587, %v5588
  %v5590 = vrot.slane %v4822, 1
  %v5591 = vrot.slane %v4790, 1
  %v5592 = vsel %vm1557, %v5590, %v5591
  %v5593 = vrot.slane %v4823, 1
  %v5594 = vrot.slane %v4791, 1
  %v5595 = vsel %vm1557, %v5593, %v5594
  %v5596 = vrot.slane %v4824, 1
  %v5597 = vrot.slane %v4792, 1
  %v5598 = vsel %vm1557, %v5596, %v5597
  %v5599 = vrot.slane %v4825, 1
  %v5600 = vrot.slane %v4793, 1
  %v5601 = vsel %vm1557, %v5599, %v5600
  %v5602 = vrot.slane %v4826, 1
  %v5603 = vrot.slane %v4794, 1
  %v5604 = vsel %vm1557, %v5602, %v5603
  %v5605 = vrot.slane %v4827, 1
  %v5606 = vrot.slane %v4795, 1
  %v5607 = vsel %vm1557, %v5605, %v5606
  %v5608 = vrot.slane %v4828, 1
  %v5609 = vrot.slane %v4796, 1
  %v5610 = vsel %vm1557, %v5608, %v5609
  %v5611 = vrot.slane %v4829, 1
  %v5612 = vrot.slane %v4797, 1
  %v5613 = vsel %vm1557, %v5611, %v5612
  %v5614 = vrot.slane %v4830, 1
  %v5615 = vrot.slane %v4798, 1
  %v5616 = vsel %vm1557, %v5614, %v5615
  %v5617 = vrot.slane %v4831, 1
  %v5618 = vrot.slane %v4799, 1
  %v5619 = vsel %vm1557, %v5617, %v5618
  %v5620 = vrot.slane %v4832, 1
  %v5621 = vrot.slane %v4800, 1
  %v5622 = vsel %vm1557, %v5620, %v5621
  %v5623 = vrot.slane %v4833, 1
  %v5624 = vrot.slane %v4801, 1
  %v5625 = vsel %vm1557, %v5623, %v5624
  %v5626 = vrot.slane %v4834, 1
  %v5627 = vrot.slane %v4802, 1
  %v5628 = vsel %vm1557, %v5626, %v5627
  %v5629 = vrot.slane %v4835, 1
  %v5630 = vrot.slane %v4803, 1
  %v5631 = vsel %vm1557, %v5629, %v5630
  %v5632 = vrot.slane %v4836, 1
  %v5633 = vrot.slane %v4804, 1
  %v5634 = vsel %vm1557, %v5632, %v5633
  %v5635 = vrot.slane %v4837, 1
  %v5636 = vrot.slane %v4805, 1
  %v5637 = vsel %vm1557, %v5635, %v5636
  %5638 = vrot.lane.b32.xlu0 %v5544, 8
  %v5639 = vpop.permute.xlu0 %5638
  %5640 = vrot.lane.b32.xlu0 %v5547, 8
  %v5641 = vpop.permute.xlu0 %5640
  %5642 = vrot.lane.b32.xlu0 %v5550, 8
  %v5643 = vpop.permute.xlu0 %5642
  %5644 = vrot.lane.b32.xlu0 %v5553, 8
  %v5645 = vpop.permute.xlu0 %5644
  %5646 = vrot.lane.b32.xlu0 %v5556, 8
  %v5647 = vpop.permute.xlu0 %5646
  %5648 = vrot.lane.b32.xlu0 %v5559, 8
  %v5649 = vpop.permute.xlu0 %5648
  %5650 = vrot.lane.b32.xlu0 %v5562, 8
  %v5651 = vpop.permute.xlu0 %5650
  %5652 = vrot.lane.b32.xlu0 %v5565, 8
  %v5653 = vpop.permute.xlu0 %5652
  %5654 = vrot.lane.b32.xlu0 %v5568, 8
  %v5655 = vpop.permute.xlu0 %5654
  %5656 = vrot.lane.b32.xlu0 %v5571, 8
  %v5657 = vpop.permute.xlu0 %5656
  %5658 = vrot.lane.b32.xlu0 %v5574, 8
  %v5659 = vpop.permute.xlu0 %5658
  %5660 = vrot.lane.b32.xlu0 %v5577, 8
  %v5661 = vpop.permute.xlu0 %5660
  %5662 = vrot.lane.b32.xlu0 %v5580, 8
  %v5663 = vpop.permute.xlu0 %5662
  %5664 = vrot.lane.b32.xlu0 %v5583, 8
  %v5665 = vpop.permute.xlu0 %5664
  %5666 = vrot.lane.b32.xlu0 %v5586, 8
  %v5667 = vpop.permute.xlu0 %5666
  %5668 = vrot.lane.b32.xlu0 %v5589, 8
  %v5669 = vpop.permute.xlu0 %5668
  %5670 = vrot.lane.b32.xlu0 %v5592, 8
  %v5671 = vpop.permute.xlu0 %5670
  %5672 = vrot.lane.b32.xlu0 %v5595, 8
  %v5673 = vpop.permute.xlu0 %5672
  %5674 = vrot.lane.b32.xlu0 %v5598, 8
  %v5675 = vpop.permute.xlu0 %5674
  %5676 = vrot.lane.b32.xlu0 %v5601, 8
  %v5677 = vpop.permute.xlu0 %5676
  %5678 = vrot.lane.b32.xlu0 %v5604, 8
  %v5679 = vpop.permute.xlu0 %5678
  %5680 = vrot.lane.b32.xlu0 %v5607, 8
  %v5681 = vpop.permute.xlu0 %5680
  %5682 = vrot.lane.b32.xlu0 %v5610, 8
  %v5683 = vpop.permute.xlu0 %5682
  %5684 = vrot.lane.b32.xlu0 %v5613, 8
  %v5685 = vpop.permute.xlu0 %5684
  %5686 = vrot.lane.b32.xlu0 %v5616, 8
  %v5687 = vpop.permute.xlu0 %5686
  %5688 = vrot.lane.b32.xlu0 %v5619, 8
  %v5689 = vpop.permute.xlu0 %5688
  %5690 = vrot.lane.b32.xlu0 %v5622, 8
  %v5691 = vpop.permute.xlu0 %5690
  %5692 = vrot.lane.b32.xlu0 %v5625, 8
  %v5693 = vpop.permute.xlu0 %5692
  %5694 = vrot.lane.b32.xlu0 %v5628, 8
  %v5695 = vpop.permute.xlu0 %5694
  %5696 = vrot.lane.b32.xlu0 %v5631, 8
  %v5697 = vpop.permute.xlu0 %5696
  %5698 = vrot.lane.b32.xlu0 %v5634, 8
  %v5699 = vpop.permute.xlu0 %5698
  %5700 = vrot.lane.b32.xlu0 %v5637, 8
  %v5701 = vpop.permute.xlu0 %5700
  %5734 = vrot.lane.b32.xlu0 %v4838, 12
  %v5735 = vpop.permute.xlu0 %5734
  %5736 = vrot.lane.b32.xlu0 %v4839, 12
  %v5737 = vpop.permute.xlu0 %5736
  %5738 = vrot.lane.b32.xlu0 %v4840, 12
  %v5739 = vpop.permute.xlu0 %5738
  %5740 = vrot.lane.b32.xlu0 %v4841, 12
  %v5741 = vpop.permute.xlu0 %5740
  %5742 = vrot.lane.b32.xlu0 %v4842, 12
  %v5743 = vpop.permute.xlu0 %5742
  %5744 = vrot.lane.b32.xlu0 %v4843, 12
  %v5745 = vpop.permute.xlu0 %5744
  %5746 = vrot.lane.b32.xlu0 %v4844, 12
  %v5747 = vpop.permute.xlu0 %5746
  %5748 = vrot.lane.b32.xlu0 %v4845, 12
  %v5749 = vpop.permute.xlu0 %5748
  %5750 = vrot.lane.b32.xlu0 %v4846, 12
  %v5751 = vpop.permute.xlu0 %5750
  %5752 = vrot.lane.b32.xlu0 %v4847, 12
  %v5753 = vpop.permute.xlu0 %5752
  %5754 = vrot.lane.b32.xlu0 %v4848, 12
  %v5755 = vpop.permute.xlu0 %5754
  %5756 = vrot.lane.b32.xlu0 %v4849, 12
  %v5757 = vpop.permute.xlu0 %5756
  %5758 = vrot.lane.b32.xlu0 %v4850, 12
  %v5759 = vpop.permute.xlu0 %5758
  %5760 = vrot.lane.b32.xlu0 %v4851, 12
  %v5761 = vpop.permute.xlu0 %5760
  %5762 = vrot.lane.b32.xlu0 %v4852, 12
  %v5763 = vpop.permute.xlu0 %5762
  %5764 = vrot.lane.b32.xlu0 %v4853, 12
  %v5765 = vpop.permute.xlu0 %5764
  %5766 = vrot.lane.b32.xlu0 %v4854, 12
  %v5767 = vpop.permute.xlu0 %5766
  %5768 = vrot.lane.b32.xlu0 %v4855, 12
  %v5769 = vpop.permute.xlu0 %5768
  %5770 = vrot.lane.b32.xlu0 %v4856, 12
  %v5771 = vpop.permute.xlu0 %5770
  %5772 = vrot.lane.b32.xlu0 %v4857, 12
  %v5773 = vpop.permute.xlu0 %5772
  %5774 = vrot.lane.b32.xlu0 %v4858, 12
  %v5775 = vpop.permute.xlu0 %5774
  %5776 = vrot.lane.b32.xlu0 %v4859, 12
  %v5777 = vpop.permute.xlu0 %5776
  %5778 = vrot.lane.b32.xlu0 %v4860, 12
  %v5779 = vpop.permute.xlu0 %5778
  %5780 = vrot.lane.b32.xlu0 %v4861, 12
  %v5781 = vpop.permute.xlu0 %5780
  %5782 = vrot.lane.b32.xlu0 %v4862, 12
  %v5783 = vpop.permute.xlu0 %5782
  %5784 = vrot.lane.b32.xlu0 %v4863, 12
  %v5785 = vpop.permute.xlu0 %5784
  %5786 = vrot.lane.b32.xlu0 %v4864, 12
  %v5787 = vpop.permute.xlu0 %5786
  %5788 = vrot.lane.b32.xlu0 %v4865, 12
  %v5789 = vpop.permute.xlu0 %5788
  %5790 = vrot.lane.b32.xlu0 %v4866, 12
  %v5791 = vpop.permute.xlu0 %5790
  %5792 = vrot.lane.b32.xlu0 %v4867, 12
  %v5793 = vpop.permute.xlu0 %5792
  %5794 = vrot.lane.b32.xlu0 %v4868, 12
  %v5795 = vpop.permute.xlu0 %5794
  %5796 = vrot.lane.b32.xlu0 %v4869, 12
  %v5797 = vpop.permute.xlu0 %5796
  %v5799 = vshrl.u32 %v4838, 16
  %v5801 = vshll.u32 %v4838, 16
  %v5803 = vrot.slane %v5801, 1
  %v5804 = vor.u32 %v5799, %v5803
  %v5806 = vshll.u32 %v4870, 16
  %v5808 = vrot.slane %v5806, 1
  %v5809 = vsel %vm1044, %v5804, %v5808
  %v5811 = vshrl.u32 %v4839, 16
  %v5813 = vshll.u32 %v4839, 16
  %v5815 = vrot.slane %v5813, 1
  %v5816 = vor.u32 %v5811, %v5815
  %v5818 = vshll.u32 %v4871, 16
  %v5820 = vrot.slane %v5818, 1
  %v5821 = vsel %vm1044, %v5816, %v5820
  %v5823 = vshrl.u32 %v4840, 16
  %v5825 = vshll.u32 %v4840, 16
  %v5827 = vrot.slane %v5825, 1
  %v5828 = vor.u32 %v5823, %v5827
  %v5830 = vshll.u32 %v4872, 16
  %v5832 = vrot.slane %v5830, 1
  %v5833 = vsel %vm1044, %v5828, %v5832
  %v5835 = vshrl.u32 %v4841, 16
  %v5837 = vshll.u32 %v4841, 16
  %v5839 = vrot.slane %v5837, 1
  %v5840 = vor.u32 %v5835, %v5839
  %v5842 = vshll.u32 %v4873, 16
  %v5844 = vrot.slane %v5842, 1
  %v5845 = vsel %vm1044, %v5840, %v5844
  %v5847 = vshrl.u32 %v4842, 16
  %v5849 = vshll.u32 %v4842, 16
  %v5851 = vrot.slane %v5849, 1
  %v5852 = vor.u32 %v5847, %v5851
  %v5854 = vshll.u32 %v4874, 16
  %v5856 = vrot.slane %v5854, 1
  %v5857 = vsel %vm1044, %v5852, %v5856
  %v5859 = vshrl.u32 %v4843, 16
  %v5861 = vshll.u32 %v4843, 16
  %v5863 = vrot.slane %v5861, 1
  %v5864 = vor.u32 %v5859, %v5863
  %v5866 = vshll.u32 %v4875, 16
  %v5868 = vrot.slane %v5866, 1
  %v5869 = vsel %vm1044, %v5864, %v5868
  %v5871 = vshrl.u32 %v4844, 16
  %v5873 = vshll.u32 %v4844, 16
  %v5875 = vrot.slane %v5873, 1
  %v5876 = vor.u32 %v5871, %v5875
  %v5878 = vshll.u32 %v4876, 16
  %v5880 = vrot.slane %v5878, 1
  %v5881 = vsel %vm1044, %v5876, %v5880
  %v5883 = vshrl.u32 %v4845, 16
  %v5885 = vshll.u32 %v4845, 16
  %v5887 = vrot.slane %v5885, 1
  %v5888 = vor.u32 %v5883, %v5887
  %v5890 = vshll.u32 %v4877, 16
  %v5892 = vrot.slane %v5890, 1
  %v5893 = vsel %vm1044, %v5888, %v5892
  %v5895 = vshrl.u32 %v4846, 16
  %v5897 = vshll.u32 %v4846, 16
  %v5899 = vrot.slane %v5897, 1
  %v5900 = vor.u32 %v5895, %v5899
  %v5902 = vshll.u32 %v4878, 16
  %v5904 = vrot.slane %v5902, 1
  %v5905 = vsel %vm1044, %v5900, %v5904
  %v5907 = vshrl.u32 %v4847, 16
  %v5909 = vshll.u32 %v4847, 16
  %v5911 = vrot.slane %v5909, 1
  %v5912 = vor.u32 %v5907, %v5911
  %v5914 = vshll.u32 %v4879, 16
  %v5916 = vrot.slane %v5914, 1
  %v5917 = vsel %vm1044, %v5912, %v5916
  %v5919 = vshrl.u32 %v4848, 16
  %v5921 = vshll.u32 %v4848, 16
  %v5923 = vrot.slane %v5921, 1
  %v5924 = vor.u32 %v5919, %v5923
  %v5926 = vshll.u32 %v4880, 16
  %v5928 = vrot.slane %v5926, 1
  %v5929 = vsel %vm1044, %v5924, %v5928
  %v5931 = vshrl.u32 %v4849, 16
  %v5933 = vshll.u32 %v4849, 16
  %v5935 = vrot.slane %v5933, 1
  %v5936 = vor.u32 %v5931, %v5935
  %v5938 = vshll.u32 %v4881, 16
  %v5940 = vrot.slane %v5938, 1
  %v5941 = vsel %vm1044, %v5936, %v5940
  %v5943 = vshrl.u32 %v4850, 16
  %v5945 = vshll.u32 %v4850, 16
  %v5947 = vrot.slane %v5945, 1
  %v5948 = vor.u32 %v5943, %v5947
  %v5950 = vshll.u32 %v4882, 16
  %v5952 = vrot.slane %v5950, 1
  %v5953 = vsel %vm1044, %v5948, %v5952
  %v5955 = vshrl.u32 %v4851, 16
  %v5957 = vshll.u32 %v4851, 16
  %v5959 = vrot.slane %v5957, 1
  %v5960 = vor.u32 %v5955, %v5959
  %v5962 = vshll.u32 %v4883, 16
  %v5964 = vrot.slane %v5962, 1
  %v5965 = vsel %vm1044, %v5960, %v5964
  %v5967 = vshrl.u32 %v4852, 16
  %v5969 = vshll.u32 %v4852, 16
  %v5971 = vrot.slane %v5969, 1
  %v5972 = vor.u32 %v5967, %v5971
  %v5974 = vshll.u32 %v4884, 16
  %v5976 = vrot.slane %v5974, 1
  %v5977 = vsel %vm1044, %v5972, %v5976
  %v5979 = vshrl.u32 %v4853, 16
  %v5981 = vshll.u32 %v4853, 16
  %v5983 = vrot.slane %v5981, 1
  %v5984 = vor.u32 %v5979, %v5983
  %v5986 = vshll.u32 %v4885, 16
  %v5988 = vrot.slane %v5986, 1
  %v5989 = vsel %vm1044, %v5984, %v5988
  %v5991 = vshrl.u32 %v4854, 16
  %v5993 = vshll.u32 %v4854, 16
  %v5995 = vrot.slane %v5993, 1
  %v5996 = vor.u32 %v5991, %v5995
  %v5998 = vshll.u32 %v4886, 16
  %v6000 = vrot.slane %v5998, 1
  %v6001 = vsel %vm1044, %v5996, %v6000
  %v6003 = vshrl.u32 %v4855, 16
  %v6005 = vshll.u32 %v4855, 16
  %v6007 = vrot.slane %v6005, 1
  %v6008 = vor.u32 %v6003, %v6007
  %v6010 = vshll.u32 %v4887, 16
  %v6012 = vrot.slane %v6010, 1
  %v6013 = vsel %vm1044, %v6008, %v6012
  %v6015 = vshrl.u32 %v4856, 16
  %v6017 = vshll.u32 %v4856, 16
  %v6019 = vrot.slane %v6017, 1
  %v6020 = vor.u32 %v6015, %v6019
  %v6022 = vshll.u32 %v4888, 16
  %v6024 = vrot.slane %v6022, 1
  %v6025 = vsel %vm1044, %v6020, %v6024
  %v6027 = vshrl.u32 %v4857, 16
  %v6029 = vshll.u32 %v4857, 16
  %v6031 = vrot.slane %v6029, 1
  %v6032 = vor.u32 %v6027, %v6031
  %v6034 = vshll.u32 %v4889, 16
  %v6036 = vrot.slane %v6034, 1
  %v6037 = vsel %vm1044, %v6032, %v6036
  %v6039 = vshrl.u32 %v4858, 16
  %v6041 = vshll.u32 %v4858, 16
  %v6043 = vrot.slane %v6041, 1
  %v6044 = vor.u32 %v6039, %v6043
  %v6046 = vshll.u32 %v4890, 16
  %v6048 = vrot.slane %v6046, 1
  %v6049 = vsel %vm1044, %v6044, %v6048
  %v6051 = vshrl.u32 %v4859, 16
  %v6053 = vshll.u32 %v4859, 16
  %v6055 = vrot.slane %v6053, 1
  %v6056 = vor.u32 %v6051, %v6055
  %v6058 = vshll.u32 %v4891, 16
  %v6060 = vrot.slane %v6058, 1
  %v6061 = vsel %vm1044, %v6056, %v6060
  %v6063 = vshrl.u32 %v4860, 16
  %v6065 = vshll.u32 %v4860, 16
  %v6067 = vrot.slane %v6065, 1
  %v6068 = vor.u32 %v6063, %v6067
  %v6070 = vshll.u32 %v4892, 16
  %v6072 = vrot.slane %v6070, 1
  %v6073 = vsel %vm1044, %v6068, %v6072
  %v6075 = vshrl.u32 %v4861, 16
  %v6077 = vshll.u32 %v4861, 16
  %v6079 = vrot.slane %v6077, 1
  %v6080 = vor.u32 %v6075, %v6079
  %v6082 = vshll.u32 %v4893, 16
  %v6084 = vrot.slane %v6082, 1
  %v6085 = vsel %vm1044, %v6080, %v6084
  %v6087 = vshrl.u32 %v4862, 16
  %v6089 = vshll.u32 %v4862, 16
  %v6091 = vrot.slane %v6089, 1
  %v6092 = vor.u32 %v6087, %v6091
  %v6094 = vshll.u32 %v4894, 16
  %v6096 = vrot.slane %v6094, 1
  %v6097 = vsel %vm1044, %v6092, %v6096
  %v6099 = vshrl.u32 %v4863, 16
  %v6101 = vshll.u32 %v4863, 16
  %v6103 = vrot.slane %v6101, 1
  %v6104 = vor.u32 %v6099, %v6103
  %v6106 = vshll.u32 %v4895, 16
  %v6108 = vrot.slane %v6106, 1
  %v6109 = vsel %vm1044, %v6104, %v6108
  %v6111 = vshrl.u32 %v4864, 16
  %v6113 = vshll.u32 %v4864, 16
  %v6115 = vrot.slane %v6113, 1
  %v6116 = vor.u32 %v6111, %v6115
  %v6118 = vshll.u32 %v4896, 16
  %v6120 = vrot.slane %v6118, 1
  %v6121 = vsel %vm1044, %v6116, %v6120
  %v6123 = vshrl.u32 %v4865, 16
  %v6125 = vshll.u32 %v4865, 16
  %v6127 = vrot.slane %v6125, 1
  %v6128 = vor.u32 %v6123, %v6127
  %v6130 = vshll.u32 %v4897, 16
  %v6132 = vrot.slane %v6130, 1
  %v6133 = vsel %vm1044, %v6128, %v6132
  %v6135 = vshrl.u32 %v4866, 16
  %v6137 = vshll.u32 %v4866, 16
  %v6139 = vrot.slane %v6137, 1
  %v6140 = vor.u32 %v6135, %v6139
  %v6142 = vshll.u32 %v4898, 16
  %v6144 = vrot.slane %v6142, 1
  %v6145 = vsel %vm1044, %v6140, %v6144
  %v6147 = vshrl.u32 %v4867, 16
  %v6149 = vshll.u32 %v4867, 16
  %v6151 = vrot.slane %v6149, 1
  %v6152 = vor.u32 %v6147, %v6151
  %v6154 = vshll.u32 %v4899, 16
  %v6156 = vrot.slane %v6154, 1
  %v6157 = vsel %vm1044, %v6152, %v6156
  %v6159 = vshrl.u32 %v4868, 16
  %v6161 = vshll.u32 %v4868, 16
  %v6163 = vrot.slane %v6161, 1
  %v6164 = vor.u32 %v6159, %v6163
  %v6166 = vshll.u32 %v4900, 16
  %v6168 = vrot.slane %v6166, 1
  %v6169 = vsel %vm1044, %v6164, %v6168
  %v6171 = vshrl.u32 %v4869, 16
  %v6173 = vshll.u32 %v4869, 16
  %v6175 = vrot.slane %v6173, 1
  %v6176 = vor.u32 %v6171, %v6175
  %v6178 = vshll.u32 %v4901, 16
  %v6180 = vrot.slane %v6178, 1
  %v6181 = vsel %vm1044, %v6176, %v6180
  %6182 = vrot.lane.b32.xlu0 %v5809, 16
  %v6183 = vpop.permute.xlu0 %6182
  %6184 = vrot.lane.b32.xlu0 %v5821, 16
  %v6185 = vpop.permute.xlu0 %6184
  %6186 = vrot.lane.b32.xlu0 %v5833, 16
  %v6187 = vpop.permute.xlu0 %6186
  %6188 = vrot.lane.b32.xlu0 %v5845, 16
  %v6189 = vpop.permute.xlu0 %6188
  %6190 = vrot.lane.b32.xlu0 %v5857, 16
  %v6191 = vpop.permute.xlu0 %6190
  %6192 = vrot.lane.b32.xlu0 %v5869, 16
  %v6193 = vpop.permute.xlu0 %6192
  %6194 = vrot.lane.b32.xlu0 %v5881, 16
  %v6195 = vpop.permute.xlu0 %6194
  %6196 = vrot.lane.b32.xlu0 %v5893, 16
  %v6197 = vpop.permute.xlu0 %6196
  %6198 = vrot.lane.b32.xlu0 %v5905, 16
  %v6199 = vpop.permute.xlu0 %6198
  %6200 = vrot.lane.b32.xlu0 %v5917, 16
  %v6201 = vpop.permute.xlu0 %6200
  %6202 = vrot.lane.b32.xlu0 %v5929, 16
  %v6203 = vpop.permute.xlu0 %6202
  %6204 = vrot.lane.b32.xlu0 %v5941, 16
  %v6205 = vpop.permute.xlu0 %6204
  %6206 = vrot.lane.b32.xlu0 %v5953, 16
  %v6207 = vpop.permute.xlu0 %6206
  %6208 = vrot.lane.b32.xlu0 %v5965, 16
  %v6209 = vpop.permute.xlu0 %6208
  %6210 = vrot.lane.b32.xlu0 %v5977, 16
  %v6211 = vpop.permute.xlu0 %6210
  %6212 = vrot.lane.b32.xlu0 %v5989, 16
  %v6213 = vpop.permute.xlu0 %6212
  %6214 = vrot.lane.b32.xlu0 %v6001, 16
  %v6215 = vpop.permute.xlu0 %6214
  %6216 = vrot.lane.b32.xlu0 %v6013, 16
  %v6217 = vpop.permute.xlu0 %6216
  %6218 = vrot.lane.b32.xlu0 %v6025, 16
  %v6219 = vpop.permute.xlu0 %6218
  %6220 = vrot.lane.b32.xlu0 %v6037, 16
  %v6221 = vpop.permute.xlu0 %6220
  %6222 = vrot.lane.b32.xlu0 %v6049, 16
  %v6223 = vpop.permute.xlu0 %6222
  %6224 = vrot.lane.b32.xlu0 %v6061, 16
  %v6225 = vpop.permute.xlu0 %6224
  %6226 = vrot.lane.b32.xlu0 %v6073, 16
  %v6227 = vpop.permute.xlu0 %6226
  %6228 = vrot.lane.b32.xlu0 %v6085, 16
  %v6229 = vpop.permute.xlu0 %6228
  %6230 = vrot.lane.b32.xlu0 %v6097, 16
  %v6231 = vpop.permute.xlu0 %6230
  %6232 = vrot.lane.b32.xlu0 %v6109, 16
  %v6233 = vpop.permute.xlu0 %6232
  %6234 = vrot.lane.b32.xlu0 %v6121, 16
  %v6235 = vpop.permute.xlu0 %6234
  %6236 = vrot.lane.b32.xlu0 %v6133, 16
  %v6237 = vpop.permute.xlu0 %6236
  %6238 = vrot.lane.b32.xlu0 %v6145, 16
  %v6239 = vpop.permute.xlu0 %6238
  %6240 = vrot.lane.b32.xlu0 %v6157, 16
  %v6241 = vpop.permute.xlu0 %6240
  %6242 = vrot.lane.b32.xlu0 %v6169, 16
  %v6243 = vpop.permute.xlu0 %6242
  %6244 = vrot.lane.b32.xlu0 %v6181, 16
  %v6245 = vpop.permute.xlu0 %6244
  %v6310 = vrot.slane %v4902, 1
  %v6311 = vrot.slane %v4870, 1
  %v6312 = vsel %vm1557, %v6310, %v6311
  %v6313 = vrot.slane %v4903, 1
  %v6314 = vrot.slane %v4871, 1
  %v6315 = vsel %vm1557, %v6313, %v6314
  %v6316 = vrot.slane %v4904, 1
  %v6317 = vrot.slane %v4872, 1
  %v6318 = vsel %vm1557, %v6316, %v6317
  %v6319 = vrot.slane %v4905, 1
  %v6320 = vrot.slane %v4873, 1
  %v6321 = vsel %vm1557, %v6319, %v6320
  %v6322 = vrot.slane %v4906, 1
  %v6323 = vrot.slane %v4874, 1
  %v6324 = vsel %vm1557, %v6322, %v6323
  %v6325 = vrot.slane %v4907, 1
  %v6326 = vrot.slane %v4875, 1
  %v6327 = vsel %vm1557, %v6325, %v6326
  %v6328 = vrot.slane %v4908, 1
  %v6329 = vrot.slane %v4876, 1
  %v6330 = vsel %vm1557, %v6328, %v6329
  %v6331 = vrot.slane %v4909, 1
  %v6332 = vrot.slane %v4877, 1
  %v6333 = vsel %vm1557, %v6331, %v6332
  %v6334 = vrot.slane %v4910, 1
  %v6335 = vrot.slane %v4878, 1
  %v6336 = vsel %vm1557, %v6334, %v6335
  %v6337 = vrot.slane %v4911, 1
  %v6338 = vrot.slane %v4879, 1
  %v6339 = vsel %vm1557, %v6337, %v6338
  %v6340 = vrot.slane %v4912, 1
  %v6341 = vrot.slane %v4880, 1
  %v6342 = vsel %vm1557, %v6340, %v6341
  %v6343 = vrot.slane %v4913, 1
  %v6344 = vrot.slane %v4881, 1
  %v6345 = vsel %vm1557, %v6343, %v6344
  %v6346 = vrot.slane %v4914, 1
  %v6347 = vrot.slane %v4882, 1
  %v6348 = vsel %vm1557, %v6346, %v6347
  %v6349 = vrot.slane %v4915, 1
  %v6350 = vrot.slane %v4883, 1
  %v6351 = vsel %vm1557, %v6349, %v6350
  %v6352 = vrot.slane %v4916, 1
  %v6353 = vrot.slane %v4884, 1
  %v6354 = vsel %vm1557, %v6352, %v6353
  %v6355 = vrot.slane %v4917, 1
  %v6356 = vrot.slane %v4885, 1
  %v6357 = vsel %vm1557, %v6355, %v6356
  %v6358 = vrot.slane %v4918, 1
  %v6359 = vrot.slane %v4886, 1
  %v6360 = vsel %vm1557, %v6358, %v6359
  %v6361 = vrot.slane %v4919, 1
  %v6362 = vrot.slane %v4887, 1
  %v6363 = vsel %vm1557, %v6361, %v6362
  %v6364 = vrot.slane %v4920, 1
  %v6365 = vrot.slane %v4888, 1
  %v6366 = vsel %vm1557, %v6364, %v6365
  %v6367 = vrot.slane %v4921, 1
  %v6368 = vrot.slane %v4889, 1
  %v6369 = vsel %vm1557, %v6367, %v6368
  %v6370 = vrot.slane %v4922, 1
  %v6371 = vrot.slane %v4890, 1
  %v6372 = vsel %vm1557, %v6370, %v6371
  %v6373 = vrot.slane %v4923, 1
  %v6374 = vrot.slane %v4891, 1
  %v6375 = vsel %vm1557, %v6373, %v6374
  %v6376 = vrot.slane %v4924, 1
  %v6377 = vrot.slane %v4892, 1
  %v6378 = vsel %vm1557, %v6376, %v6377
  %v6379 = vrot.slane %v4925, 1
  %v6380 = vrot.slane %v4893, 1
  %v6381 = vsel %vm1557, %v6379, %v6380
  %v6382 = vrot.slane %v4926, 1
  %v6383 = vrot.slane %v4894, 1
  %v6384 = vsel %vm1557, %v6382, %v6383
  %v6385 = vrot.slane %v4927, 1
  %v6386 = vrot.slane %v4895, 1
  %v6387 = vsel %vm1557, %v6385, %v6386
  %v6388 = vrot.slane %v4928, 1
  %v6389 = vrot.slane %v4896, 1
  %v6390 = vsel %vm1557, %v6388, %v6389
  %v6391 = vrot.slane %v4929, 1
  %v6392 = vrot.slane %v4897, 1
  %v6393 = vsel %vm1557, %v6391, %v6392
  %v6394 = vrot.slane %v4930, 1
  %v6395 = vrot.slane %v4898, 1
  %v6396 = vsel %vm1557, %v6394, %v6395
  %v6397 = vrot.slane %v4931, 1
  %v6398 = vrot.slane %v4899, 1
  %v6399 = vsel %vm1557, %v6397, %v6398
  %v6400 = vrot.slane %v4932, 1
  %v6401 = vrot.slane %v4900, 1
  %v6402 = vsel %vm1557, %v6400, %v6401
  %v6403 = vrot.slane %v4933, 1
  %v6404 = vrot.slane %v4901, 1
  %v6405 = vsel %vm1557, %v6403, %v6404
  %6406 = vrot.lane.b32.xlu0 %v6312, 20
  %v6407 = vpop.permute.xlu0 %6406
  %6408 = vrot.lane.b32.xlu0 %v6315, 20
  %v6409 = vpop.permute.xlu0 %6408
  %6410 = vrot.lane.b32.xlu0 %v6318, 20
  %v6411 = vpop.permute.xlu0 %6410
  %6412 = vrot.lane.b32.xlu0 %v6321, 20
  %v6413 = vpop.permute.xlu0 %6412
  %6414 = vrot.lane.b32.xlu0 %v6324, 20
  %v6415 = vpop.permute.xlu0 %6414
  %6416 = vrot.lane.b32.xlu0 %v6327, 20
  %v6417 = vpop.permute.xlu0 %6416
  %6418 = vrot.lane.b32.xlu0 %v6330, 20
  %v6419 = vpop.permute.xlu0 %6418
  %6420 = vrot.lane.b32.xlu0 %v6333, 20
  %v6421 = vpop.permute.xlu0 %6420
  %6422 = vrot.lane.b32.xlu0 %v6336, 20
  %v6423 = vpop.permute.xlu0 %6422
  %6424 = vrot.lane.b32.xlu0 %v6339, 20
  %v6425 = vpop.permute.xlu0 %6424
  %6426 = vrot.lane.b32.xlu0 %v6342, 20
  %v6427 = vpop.permute.xlu0 %6426
  %6428 = vrot.lane.b32.xlu0 %v6345, 20
  %v6429 = vpop.permute.xlu0 %6428
  %6430 = vrot.lane.b32.xlu0 %v6348, 20
  %v6431 = vpop.permute.xlu0 %6430
  %6432 = vrot.lane.b32.xlu0 %v6351, 20
  %v6433 = vpop.permute.xlu0 %6432
  %6434 = vrot.lane.b32.xlu0 %v6354, 20
  %v6435 = vpop.permute.xlu0 %6434
  %6436 = vrot.lane.b32.xlu0 %v6357, 20
  %v6437 = vpop.permute.xlu0 %6436
  %6438 = vrot.lane.b32.xlu0 %v6360, 20
  %v6439 = vpop.permute.xlu0 %6438
  %6440 = vrot.lane.b32.xlu0 %v6363, 20
  %v6441 = vpop.permute.xlu0 %6440
  %6442 = vrot.lane.b32.xlu0 %v6366, 20
  %v6443 = vpop.permute.xlu0 %6442
  %6444 = vrot.lane.b32.xlu0 %v6369, 20
  %v6445 = vpop.permute.xlu0 %6444
  %6446 = vrot.lane.b32.xlu0 %v6372, 20
  %v6447 = vpop.permute.xlu0 %6446
  %6448 = vrot.lane.b32.xlu0 %v6375, 20
  %v6449 = vpop.permute.xlu0 %6448
  %6450 = vrot.lane.b32.xlu0 %v6378, 20
  %v6451 = vpop.permute.xlu0 %6450
  %6452 = vrot.lane.b32.xlu0 %v6381, 20
  %v6453 = vpop.permute.xlu0 %6452
  %6454 = vrot.lane.b32.xlu0 %v6384, 20
  %v6455 = vpop.permute.xlu0 %6454
  %6456 = vrot.lane.b32.xlu0 %v6387, 20
  %v6457 = vpop.permute.xlu0 %6456
  %6458 = vrot.lane.b32.xlu0 %v6390, 20
  %v6459 = vpop.permute.xlu0 %6458
  %6460 = vrot.lane.b32.xlu0 %v6393, 20
  %v6461 = vpop.permute.xlu0 %6460
  %6462 = vrot.lane.b32.xlu0 %v6396, 20
  %v6463 = vpop.permute.xlu0 %6462
  %6464 = vrot.lane.b32.xlu0 %v6399, 20
  %v6465 = vpop.permute.xlu0 %6464
  %6466 = vrot.lane.b32.xlu0 %v6402, 20
  %v6467 = vpop.permute.xlu0 %6466
  %6468 = vrot.lane.b32.xlu0 %v6405, 20
  %v6469 = vpop.permute.xlu0 %6468
  %6502 = vrot.lane.b32.xlu0 %v4934, 24
  %v6503 = vpop.permute.xlu0 %6502
  %6504 = vrot.lane.b32.xlu0 %v4935, 24
  %v6505 = vpop.permute.xlu0 %6504
  %6506 = vrot.lane.b32.xlu0 %v4936, 24
  %v6507 = vpop.permute.xlu0 %6506
  %6508 = vrot.lane.b32.xlu0 %v4937, 24
  %v6509 = vpop.permute.xlu0 %6508
  %6510 = vrot.lane.b32.xlu0 %v4938, 24
  %v6511 = vpop.permute.xlu0 %6510
  %6512 = vrot.lane.b32.xlu0 %v4939, 24
  %v6513 = vpop.permute.xlu0 %6512
  %6514 = vrot.lane.b32.xlu0 %v4940, 24
  %v6515 = vpop.permute.xlu0 %6514
  %6516 = vrot.lane.b32.xlu0 %v4941, 24
  %v6517 = vpop.permute.xlu0 %6516
  %6518 = vrot.lane.b32.xlu0 %v4942, 24
  %v6519 = vpop.permute.xlu0 %6518
  %6520 = vrot.lane.b32.xlu0 %v4943, 24
  %v6521 = vpop.permute.xlu0 %6520
  %6522 = vrot.lane.b32.xlu0 %v4944, 24
  %v6523 = vpop.permute.xlu0 %6522
  %6524 = vrot.lane.b32.xlu0 %v4945, 24
  %v6525 = vpop.permute.xlu0 %6524
  %6526 = vrot.lane.b32.xlu0 %v4946, 24
  %v6527 = vpop.permute.xlu0 %6526
  %6528 = vrot.lane.b32.xlu0 %v4947, 24
  %v6529 = vpop.permute.xlu0 %6528
  %6530 = vrot.lane.b32.xlu0 %v4948, 24
  %v6531 = vpop.permute.xlu0 %6530
  %6532 = vrot.lane.b32.xlu0 %v4949, 24
  %v6533 = vpop.permute.xlu0 %6532
  %6534 = vrot.lane.b32.xlu0 %v4950, 24
  %v6535 = vpop.permute.xlu0 %6534
  %6536 = vrot.lane.b32.xlu0 %v4951, 24
  %v6537 = vpop.permute.xlu0 %6536
  %6538 = vrot.lane.b32.xlu0 %v4952, 24
  %v6539 = vpop.permute.xlu0 %6538
  %6540 = vrot.lane.b32.xlu0 %v4953, 24
  %v6541 = vpop.permute.xlu0 %6540
  %6542 = vrot.lane.b32.xlu0 %v4954, 24
  %v6543 = vpop.permute.xlu0 %6542
  %6544 = vrot.lane.b32.xlu0 %v4955, 24
  %v6545 = vpop.permute.xlu0 %6544
  %6546 = vrot.lane.b32.xlu0 %v4956, 24
  %v6547 = vpop.permute.xlu0 %6546
  %6548 = vrot.lane.b32.xlu0 %v4957, 24
  %v6549 = vpop.permute.xlu0 %6548
  %6550 = vrot.lane.b32.xlu0 %v4958, 24
  %v6551 = vpop.permute.xlu0 %6550
  %6552 = vrot.lane.b32.xlu0 %v4959, 24
  %v6553 = vpop.permute.xlu0 %6552
  %6554 = vrot.lane.b32.xlu0 %v4960, 24
  %v6555 = vpop.permute.xlu0 %6554
  %6556 = vrot.lane.b32.xlu0 %v4961, 24
  %v6557 = vpop.permute.xlu0 %6556
  %6558 = vrot.lane.b32.xlu0 %v4962, 24
  %v6559 = vpop.permute.xlu0 %6558
  %6560 = vrot.lane.b32.xlu0 %v4963, 24
  %v6561 = vpop.permute.xlu0 %6560
  %6562 = vrot.lane.b32.xlu0 %v4964, 24
  %v6563 = vpop.permute.xlu0 %6562
  %6564 = vrot.lane.b32.xlu0 %v4965, 24
  %v6565 = vpop.permute.xlu0 %6564
  %v6567 = vshrl.u32 %v4934, 16
  %v6569 = vshll.u32 %v4934, 16
  %v6571 = vrot.slane %v6569, 1
  %v6572 = vor.u32 %v6567, %v6571
  %v6574 = vshll.u32 %v4966, 16
  %v6576 = vrot.slane %v6574, 1
  %v6577 = vsel %vm1044, %v6572, %v6576
  %v6579 = vshrl.u32 %v4935, 16
  %v6581 = vshll.u32 %v4935, 16
  %v6583 = vrot.slane %v6581, 1
  %v6584 = vor.u32 %v6579, %v6583
  %v6586 = vshll.u32 %v4967, 16
  %v6588 = vrot.slane %v6586, 1
  %v6589 = vsel %vm1044, %v6584, %v6588
  %v6591 = vshrl.u32 %v4936, 16
  %v6593 = vshll.u32 %v4936, 16
  %v6595 = vrot.slane %v6593, 1
  %v6596 = vor.u32 %v6591, %v6595
  %v6598 = vshll.u32 %v4968, 16
  %v6600 = vrot.slane %v6598, 1
  %v6601 = vsel %vm1044, %v6596, %v6600
  %v6603 = vshrl.u32 %v4937, 16
  %v6605 = vshll.u32 %v4937, 16
  %v6607 = vrot.slane %v6605, 1
  %v6608 = vor.u32 %v6603, %v6607
  %v6610 = vshll.u32 %v4969, 16
  %v6612 = vrot.slane %v6610, 1
  %v6613 = vsel %vm1044, %v6608, %v6612
  %v6615 = vshrl.u32 %v4938, 16
  %v6617 = vshll.u32 %v4938, 16
  %v6619 = vrot.slane %v6617, 1
  %v6620 = vor.u32 %v6615, %v6619
  %v6622 = vshll.u32 %v4970, 16
  %v6624 = vrot.slane %v6622, 1
  %v6625 = vsel %vm1044, %v6620, %v6624
  %v6627 = vshrl.u32 %v4939, 16
  %v6629 = vshll.u32 %v4939, 16
  %v6631 = vrot.slane %v6629, 1
  %v6632 = vor.u32 %v6627, %v6631
  %v6634 = vshll.u32 %v4971, 16
  %v6636 = vrot.slane %v6634, 1
  %v6637 = vsel %vm1044, %v6632, %v6636
  %v6639 = vshrl.u32 %v4940, 16
  %v6641 = vshll.u32 %v4940, 16
  %v6643 = vrot.slane %v6641, 1
  %v6644 = vor.u32 %v6639, %v6643
  %v6646 = vshll.u32 %v4972, 16
  %v6648 = vrot.slane %v6646, 1
  %v6649 = vsel %vm1044, %v6644, %v6648
  %v6651 = vshrl.u32 %v4941, 16
  %v6653 = vshll.u32 %v4941, 16
  %v6655 = vrot.slane %v6653, 1
  %v6656 = vor.u32 %v6651, %v6655
  %v6658 = vshll.u32 %v4973, 16
  %v6660 = vrot.slane %v6658, 1
  %v6661 = vsel %vm1044, %v6656, %v6660
  %v6663 = vshrl.u32 %v4942, 16
  %v6665 = vshll.u32 %v4942, 16
  %v6667 = vrot.slane %v6665, 1
  %v6668 = vor.u32 %v6663, %v6667
  %v6670 = vshll.u32 %v4974, 16
  %v6672 = vrot.slane %v6670, 1
  %v6673 = vsel %vm1044, %v6668, %v6672
  %v6675 = vshrl.u32 %v4943, 16
  %v6677 = vshll.u32 %v4943, 16
  %v6679 = vrot.slane %v6677, 1
  %v6680 = vor.u32 %v6675, %v6679
  %v6682 = vshll.u32 %v4975, 16
  %v6684 = vrot.slane %v6682, 1
  %v6685 = vsel %vm1044, %v6680, %v6684
  %v6687 = vshrl.u32 %v4944, 16
  %v6689 = vshll.u32 %v4944, 16
  %v6691 = vrot.slane %v6689, 1
  %v6692 = vor.u32 %v6687, %v6691
  %v6694 = vshll.u32 %v4976, 16
  %v6696 = vrot.slane %v6694, 1
  %v6697 = vsel %vm1044, %v6692, %v6696
  %v6699 = vshrl.u32 %v4945, 16
  %v6701 = vshll.u32 %v4945, 16
  %v6703 = vrot.slane %v6701, 1
  %v6704 = vor.u32 %v6699, %v6703
  %v6706 = vshll.u32 %v4977, 16
  %v6708 = vrot.slane %v6706, 1
  %v6709 = vsel %vm1044, %v6704, %v6708
  %v6711 = vshrl.u32 %v4946, 16
  %v6713 = vshll.u32 %v4946, 16
  %v6715 = vrot.slane %v6713, 1
  %v6716 = vor.u32 %v6711, %v6715
  %v6718 = vshll.u32 %v4978, 16
  %v6720 = vrot.slane %v6718, 1
  %v6721 = vsel %vm1044, %v6716, %v6720
  %v6723 = vshrl.u32 %v4947, 16
  %v6725 = vshll.u32 %v4947, 16
  %v6727 = vrot.slane %v6725, 1
  %v6728 = vor.u32 %v6723, %v6727
  %v6730 = vshll.u32 %v4979, 16
  %v6732 = vrot.slane %v6730, 1
  %v6733 = vsel %vm1044, %v6728, %v6732
  %v6735 = vshrl.u32 %v4948, 16
  %v6737 = vshll.u32 %v4948, 16
  %v6739 = vrot.slane %v6737, 1
  %v6740 = vor.u32 %v6735, %v6739
  %v6742 = vshll.u32 %v4980, 16
  %v6744 = vrot.slane %v6742, 1
  %v6745 = vsel %vm1044, %v6740, %v6744
  %v6747 = vshrl.u32 %v4949, 16
  %v6749 = vshll.u32 %v4949, 16
  %v6751 = vrot.slane %v6749, 1
  %v6752 = vor.u32 %v6747, %v6751
  %v6754 = vshll.u32 %v4981, 16
  %v6756 = vrot.slane %v6754, 1
  %v6757 = vsel %vm1044, %v6752, %v6756
  %v6759 = vshrl.u32 %v4950, 16
  %v6761 = vshll.u32 %v4950, 16
  %v6763 = vrot.slane %v6761, 1
  %v6764 = vor.u32 %v6759, %v6763
  %v6766 = vshll.u32 %v4982, 16
  %v6768 = vrot.slane %v6766, 1
  %v6769 = vsel %vm1044, %v6764, %v6768
  %v6771 = vshrl.u32 %v4951, 16
  %v6773 = vshll.u32 %v4951, 16
  %v6775 = vrot.slane %v6773, 1
  %v6776 = vor.u32 %v6771, %v6775
  %v6778 = vshll.u32 %v4983, 16
  %v6780 = vrot.slane %v6778, 1
  %v6781 = vsel %vm1044, %v6776, %v6780
  %v6783 = vshrl.u32 %v4952, 16
  %v6785 = vshll.u32 %v4952, 16
  %v6787 = vrot.slane %v6785, 1
  %v6788 = vor.u32 %v6783, %v6787
  %v6790 = vshll.u32 %v4984, 16
  %v6792 = vrot.slane %v6790, 1
  %v6793 = vsel %vm1044, %v6788, %v6792
  %v6795 = vshrl.u32 %v4953, 16
  %v6797 = vshll.u32 %v4953, 16
  %v6799 = vrot.slane %v6797, 1
  %v6800 = vor.u32 %v6795, %v6799
  %v6802 = vshll.u32 %v4985, 16
  %v6804 = vrot.slane %v6802, 1
  %v6805 = vsel %vm1044, %v6800, %v6804
  %v6807 = vshrl.u32 %v4954, 16
  %v6809 = vshll.u32 %v4954, 16
  %v6811 = vrot.slane %v6809, 1
  %v6812 = vor.u32 %v6807, %v6811
  %v6814 = vshll.u32 %v4986, 16
  %v6816 = vrot.slane %v6814, 1
  %v6817 = vsel %vm1044, %v6812, %v6816
  %v6819 = vshrl.u32 %v4955, 16
  %v6821 = vshll.u32 %v4955, 16
  %v6823 = vrot.slane %v6821, 1
  %v6824 = vor.u32 %v6819, %v6823
  %v6826 = vshll.u32 %v4987, 16
  %v6828 = vrot.slane %v6826, 1
  %v6829 = vsel %vm1044, %v6824, %v6828
  %v6831 = vshrl.u32 %v4956, 16
  %v6833 = vshll.u32 %v4956, 16
  %v6835 = vrot.slane %v6833, 1
  %v6836 = vor.u32 %v6831, %v6835
  %v6838 = vshll.u32 %v4988, 16
  %v6840 = vrot.slane %v6838, 1
  %v6841 = vsel %vm1044, %v6836, %v6840
  %v6843 = vshrl.u32 %v4957, 16
  %v6845 = vshll.u32 %v4957, 16
  %v6847 = vrot.slane %v6845, 1
  %v6848 = vor.u32 %v6843, %v6847
  %v6850 = vshll.u32 %v4989, 16
  %v6852 = vrot.slane %v6850, 1
  %v6853 = vsel %vm1044, %v6848, %v6852
  %v6855 = vshrl.u32 %v4958, 16
  %v6857 = vshll.u32 %v4958, 16
  %v6859 = vrot.slane %v6857, 1
  %v6860 = vor.u32 %v6855, %v6859
  %v6862 = vshll.u32 %v4990, 16
  %v6864 = vrot.slane %v6862, 1
  %v6865 = vsel %vm1044, %v6860, %v6864
  %v6867 = vshrl.u32 %v4959, 16
  %v6869 = vshll.u32 %v4959, 16
  %v6871 = vrot.slane %v6869, 1
  %v6872 = vor.u32 %v6867, %v6871
  %v6874 = vshll.u32 %v4991, 16
  %v6876 = vrot.slane %v6874, 1
  %v6877 = vsel %vm1044, %v6872, %v6876
  %v6879 = vshrl.u32 %v4960, 16
  %v6881 = vshll.u32 %v4960, 16
  %v6883 = vrot.slane %v6881, 1
  %v6884 = vor.u32 %v6879, %v6883
  %v6886 = vshll.u32 %v4992, 16
  %v6888 = vrot.slane %v6886, 1
  %v6889 = vsel %vm1044, %v6884, %v6888
  %v6891 = vshrl.u32 %v4961, 16
  %v6893 = vshll.u32 %v4961, 16
  %v6895 = vrot.slane %v6893, 1
  %v6896 = vor.u32 %v6891, %v6895
  %v6898 = vshll.u32 %v4993, 16
  %v6900 = vrot.slane %v6898, 1
  %v6901 = vsel %vm1044, %v6896, %v6900
  %v6903 = vshrl.u32 %v4962, 16
  %v6905 = vshll.u32 %v4962, 16
  %v6907 = vrot.slane %v6905, 1
  %v6908 = vor.u32 %v6903, %v6907
  %v6910 = vshll.u32 %v4994, 16
  %v6912 = vrot.slane %v6910, 1
  %v6913 = vsel %vm1044, %v6908, %v6912
  %v6915 = vshrl.u32 %v4963, 16
  %v6917 = vshll.u32 %v4963, 16
  %v6919 = vrot.slane %v6917, 1
  %v6920 = vor.u32 %v6915, %v6919
  %v6922 = vshll.u32 %v4995, 16
  %v6924 = vrot.slane %v6922, 1
  %v6925 = vsel %vm1044, %v6920, %v6924
  %v6927 = vshrl.u32 %v4964, 16
  %v6929 = vshll.u32 %v4964, 16
  %v6931 = vrot.slane %v6929, 1
  %v6932 = vor.u32 %v6927, %v6931
  %v6934 = vshll.u32 %v4996, 16
  %v6936 = vrot.slane %v6934, 1
  %v6937 = vsel %vm1044, %v6932, %v6936
  %v6939 = vshrl.u32 %v4965, 16
  %v6941 = vshll.u32 %v4965, 16
  %v6943 = vrot.slane %v6941, 1
  %v6944 = vor.u32 %v6939, %v6943
  %v6946 = vshll.u32 %v4997, 16
  %v6948 = vrot.slane %v6946, 1
  %v6949 = vsel %vm1044, %v6944, %v6948
  %6950 = vrot.lane.b32.xlu0 %v6577, 28
  %v6951 = vpop.permute.xlu0 %6950
  %6952 = vrot.lane.b32.xlu0 %v6589, 28
  %v6953 = vpop.permute.xlu0 %6952
  %6954 = vrot.lane.b32.xlu0 %v6601, 28
  %v6955 = vpop.permute.xlu0 %6954
  %6956 = vrot.lane.b32.xlu0 %v6613, 28
  %v6957 = vpop.permute.xlu0 %6956
  %6958 = vrot.lane.b32.xlu0 %v6625, 28
  %v6959 = vpop.permute.xlu0 %6958
  %6960 = vrot.lane.b32.xlu0 %v6637, 28
  %v6961 = vpop.permute.xlu0 %6960
  %6962 = vrot.lane.b32.xlu0 %v6649, 28
  %v6963 = vpop.permute.xlu0 %6962
  %6964 = vrot.lane.b32.xlu0 %v6661, 28
  %v6965 = vpop.permute.xlu0 %6964
  %6966 = vrot.lane.b32.xlu0 %v6673, 28
  %v6967 = vpop.permute.xlu0 %6966
  %6968 = vrot.lane.b32.xlu0 %v6685, 28
  %v6969 = vpop.permute.xlu0 %6968
  %6970 = vrot.lane.b32.xlu0 %v6697, 28
  %v6971 = vpop.permute.xlu0 %6970
  %6972 = vrot.lane.b32.xlu0 %v6709, 28
  %v6973 = vpop.permute.xlu0 %6972
  %6974 = vrot.lane.b32.xlu0 %v6721, 28
  %v6975 = vpop.permute.xlu0 %6974
  %6976 = vrot.lane.b32.xlu0 %v6733, 28
  %v6977 = vpop.permute.xlu0 %6976
  %6978 = vrot.lane.b32.xlu0 %v6745, 28
  %v6979 = vpop.permute.xlu0 %6978
  %6980 = vrot.lane.b32.xlu0 %v6757, 28
  %v6981 = vpop.permute.xlu0 %6980
  %6982 = vrot.lane.b32.xlu0 %v6769, 28
  %v6983 = vpop.permute.xlu0 %6982
  %6984 = vrot.lane.b32.xlu0 %v6781, 28
  %v6985 = vpop.permute.xlu0 %6984
  %6986 = vrot.lane.b32.xlu0 %v6793, 28
  %v6987 = vpop.permute.xlu0 %6986
  %6988 = vrot.lane.b32.xlu0 %v6805, 28
  %v6989 = vpop.permute.xlu0 %6988
  %6990 = vrot.lane.b32.xlu0 %v6817, 28
  %v6991 = vpop.permute.xlu0 %6990
  %6992 = vrot.lane.b32.xlu0 %v6829, 28
  %v6993 = vpop.permute.xlu0 %6992
  %6994 = vrot.lane.b32.xlu0 %v6841, 28
  %v6995 = vpop.permute.xlu0 %6994
  %6996 = vrot.lane.b32.xlu0 %v6853, 28
  %v6997 = vpop.permute.xlu0 %6996
  %6998 = vrot.lane.b32.xlu0 %v6865, 28
  %v6999 = vpop.permute.xlu0 %6998
  %7000 = vrot.lane.b32.xlu0 %v6877, 28
  %v7001 = vpop.permute.xlu0 %7000
  %7002 = vrot.lane.b32.xlu0 %v6889, 28
  %v7003 = vpop.permute.xlu0 %7002
  %7004 = vrot.lane.b32.xlu0 %v6901, 28
  %v7005 = vpop.permute.xlu0 %7004
  %7006 = vrot.lane.b32.xlu0 %v6913, 28
  %v7007 = vpop.permute.xlu0 %7006
  %7008 = vrot.lane.b32.xlu0 %v6925, 28
  %v7009 = vpop.permute.xlu0 %7008
  %7010 = vrot.lane.b32.xlu0 %v6937, 28
  %v7011 = vpop.permute.xlu0 %7010
  %7012 = vrot.lane.b32.xlu0 %v6949, 28
  %v7013 = vpop.permute.xlu0 %7012
  %v7078 = vrot.slane %v4998, 1
  %v7079 = vrot.slane %v4966, 1
  %v7080 = vsel %vm1557, %v7078, %v7079
  %v7081 = vrot.slane %v4999, 1
  %v7082 = vrot.slane %v4967, 1
  %v7083 = vsel %vm1557, %v7081, %v7082
  %v7084 = vrot.slane %v5000, 1
  %v7085 = vrot.slane %v4968, 1
  %v7086 = vsel %vm1557, %v7084, %v7085
  %v7087 = vrot.slane %v5001, 1
  %v7088 = vrot.slane %v4969, 1
  %v7089 = vsel %vm1557, %v7087, %v7088
  %v7090 = vrot.slane %v5002, 1
  %v7091 = vrot.slane %v4970, 1
  %v7092 = vsel %vm1557, %v7090, %v7091
  %v7093 = vrot.slane %v5003, 1
  %v7094 = vrot.slane %v4971, 1
  %v7095 = vsel %vm1557, %v7093, %v7094
  %v7096 = vrot.slane %v5004, 1
  %v7097 = vrot.slane %v4972, 1
  %v7098 = vsel %vm1557, %v7096, %v7097
  %v7099 = vrot.slane %v5005, 1
  %v7100 = vrot.slane %v4973, 1
  %v7101 = vsel %vm1557, %v7099, %v7100
  %v7102 = vrot.slane %v5006, 1
  %v7103 = vrot.slane %v4974, 1
  %v7104 = vsel %vm1557, %v7102, %v7103
  %v7105 = vrot.slane %v5007, 1
  %v7106 = vrot.slane %v4975, 1
  %v7107 = vsel %vm1557, %v7105, %v7106
  %v7108 = vrot.slane %v5008, 1
  %v7109 = vrot.slane %v4976, 1
  %v7110 = vsel %vm1557, %v7108, %v7109
  %v7111 = vrot.slane %v5009, 1
  %v7112 = vrot.slane %v4977, 1
  %v7113 = vsel %vm1557, %v7111, %v7112
  %v7114 = vrot.slane %v5010, 1
  %v7115 = vrot.slane %v4978, 1
  %v7116 = vsel %vm1557, %v7114, %v7115
  %v7117 = vrot.slane %v5011, 1
  %v7118 = vrot.slane %v4979, 1
  %v7119 = vsel %vm1557, %v7117, %v7118
  %v7120 = vrot.slane %v5012, 1
  %v7121 = vrot.slane %v4980, 1
  %v7122 = vsel %vm1557, %v7120, %v7121
  %v7123 = vrot.slane %v5013, 1
  %v7124 = vrot.slane %v4981, 1
  %v7125 = vsel %vm1557, %v7123, %v7124
  %v7126 = vrot.slane %v5014, 1
  %v7127 = vrot.slane %v4982, 1
  %v7128 = vsel %vm1557, %v7126, %v7127
  %v7129 = vrot.slane %v5015, 1
  %v7130 = vrot.slane %v4983, 1
  %v7131 = vsel %vm1557, %v7129, %v7130
  %v7132 = vrot.slane %v5016, 1
  %v7133 = vrot.slane %v4984, 1
  %v7134 = vsel %vm1557, %v7132, %v7133
  %v7135 = vrot.slane %v5017, 1
  %v7136 = vrot.slane %v4985, 1
  %v7137 = vsel %vm1557, %v7135, %v7136
  %v7138 = vrot.slane %v5018, 1
  %v7139 = vrot.slane %v4986, 1
  %v7140 = vsel %vm1557, %v7138, %v7139
  %v7141 = vrot.slane %v5019, 1
  %v7142 = vrot.slane %v4987, 1
  %v7143 = vsel %vm1557, %v7141, %v7142
  %v7144 = vrot.slane %v5020, 1
  %v7145 = vrot.slane %v4988, 1
  %v7146 = vsel %vm1557, %v7144, %v7145
  %v7147 = vrot.slane %v5021, 1
  %v7148 = vrot.slane %v4989, 1
  %v7149 = vsel %vm1557, %v7147, %v7148
  %v7150 = vrot.slane %v5022, 1
  %v7151 = vrot.slane %v4990, 1
  %v7152 = vsel %vm1557, %v7150, %v7151
  %v7153 = vrot.slane %v5023, 1
  %v7154 = vrot.slane %v4991, 1
  %v7155 = vsel %vm1557, %v7153, %v7154
  %v7156 = vrot.slane %v5024, 1
  %v7157 = vrot.slane %v4992, 1
  %v7158 = vsel %vm1557, %v7156, %v7157
  %v7159 = vrot.slane %v5025, 1
  %v7160 = vrot.slane %v4993, 1
  %v7161 = vsel %vm1557, %v7159, %v7160
  %v7162 = vrot.slane %v5026, 1
  %v7163 = vrot.slane %v4994, 1
  %v7164 = vsel %vm1557, %v7162, %v7163
  %v7165 = vrot.slane %v5027, 1
  %v7166 = vrot.slane %v4995, 1
  %v7167 = vsel %vm1557, %v7165, %v7166
  %v7168 = vrot.slane %v5028, 1
  %v7169 = vrot.slane %v4996, 1
  %v7170 = vsel %vm1557, %v7168, %v7169
  %v7171 = vrot.slane %v5029, 1
  %v7172 = vrot.slane %v4997, 1
  %v7173 = vsel %vm1557, %v7171, %v7172
  %7174 = vrot.lane.b32.xlu0 %v7080, 32
  %v7175 = vpop.permute.xlu0 %7174
  %7176 = vrot.lane.b32.xlu0 %v7083, 32
  %v7177 = vpop.permute.xlu0 %7176
  %7178 = vrot.lane.b32.xlu0 %v7086, 32
  %v7179 = vpop.permute.xlu0 %7178
  %7180 = vrot.lane.b32.xlu0 %v7089, 32
  %v7181 = vpop.permute.xlu0 %7180
  %7182 = vrot.lane.b32.xlu0 %v7092, 32
  %v7183 = vpop.permute.xlu0 %7182
  %7184 = vrot.lane.b32.xlu0 %v7095, 32
  %v7185 = vpop.permute.xlu0 %7184
  %7186 = vrot.lane.b32.xlu0 %v7098, 32
  %v7187 = vpop.permute.xlu0 %7186
  %7188 = vrot.lane.b32.xlu0 %v7101, 32
  %v7189 = vpop.permute.xlu0 %7188
  %7190 = vrot.lane.b32.xlu0 %v7104, 32
  %v7191 = vpop.permute.xlu0 %7190
  %7192 = vrot.lane.b32.xlu0 %v7107, 32
  %v7193 = vpop.permute.xlu0 %7192
  %7194 = vrot.lane.b32.xlu0 %v7110, 32
  %v7195 = vpop.permute.xlu0 %7194
  %7196 = vrot.lane.b32.xlu0 %v7113, 32
  %v7197 = vpop.permute.xlu0 %7196
  %7198 = vrot.lane.b32.xlu0 %v7116, 32
  %v7199 = vpop.permute.xlu0 %7198
  %7200 = vrot.lane.b32.xlu0 %v7119, 32
  %v7201 = vpop.permute.xlu0 %7200
  %7202 = vrot.lane.b32.xlu0 %v7122, 32
  %v7203 = vpop.permute.xlu0 %7202
  %7204 = vrot.lane.b32.xlu0 %v7125, 32
  %v7205 = vpop.permute.xlu0 %7204
  %7206 = vrot.lane.b32.xlu0 %v7128, 32
  %v7207 = vpop.permute.xlu0 %7206
  %7208 = vrot.lane.b32.xlu0 %v7131, 32
  %v7209 = vpop.permute.xlu0 %7208
  %7210 = vrot.lane.b32.xlu0 %v7134, 32
  %v7211 = vpop.permute.xlu0 %7210
  %7212 = vrot.lane.b32.xlu0 %v7137, 32
  %v7213 = vpop.permute.xlu0 %7212
  %7214 = vrot.lane.b32.xlu0 %v7140, 32
  %v7215 = vpop.permute.xlu0 %7214
  %7216 = vrot.lane.b32.xlu0 %v7143, 32
  %v7217 = vpop.permute.xlu0 %7216
  %7218 = vrot.lane.b32.xlu0 %v7146, 32
  %v7219 = vpop.permute.xlu0 %7218
  %7220 = vrot.lane.b32.xlu0 %v7149, 32
  %v7221 = vpop.permute.xlu0 %7220
  %7222 = vrot.lane.b32.xlu0 %v7152, 32
  %v7223 = vpop.permute.xlu0 %7222
  %7224 = vrot.lane.b32.xlu0 %v7155, 32
  %v7225 = vpop.permute.xlu0 %7224
  %7226 = vrot.lane.b32.xlu0 %v7158, 32
  %v7227 = vpop.permute.xlu0 %7226
  %7228 = vrot.lane.b32.xlu0 %v7161, 32
  %v7229 = vpop.permute.xlu0 %7228
  %7230 = vrot.lane.b32.xlu0 %v7164, 32
  %v7231 = vpop.permute.xlu0 %7230
  %7232 = vrot.lane.b32.xlu0 %v7167, 32
  %v7233 = vpop.permute.xlu0 %7232
  %7234 = vrot.lane.b32.xlu0 %v7170, 32
  %v7235 = vpop.permute.xlu0 %7234
  %7236 = vrot.lane.b32.xlu0 %v7173, 32
  %v7237 = vpop.permute.xlu0 %7236
  %v7239 = vsel %vm681, %v4742, %v5415
  %v7241 = vsel %vm681, %v4743, %v5417
  %v7243 = vsel %vm681, %v4744, %v5419
  %v7245 = vsel %vm681, %v4745, %v5421
  %v7247 = vsel %vm681, %v4746, %v5423
  %v7249 = vsel %vm681, %v4747, %v5425
  %v7251 = vsel %vm681, %v4748, %v5427
  %v7253 = vsel %vm681, %v4749, %v5429
  %v7255 = vsel %vm681, %v4750, %v5431
  %v7257 = vsel %vm681, %v4751, %v5433
  %v7259 = vsel %vm681, %v4752, %v5435
  %v7261 = vsel %vm681, %v4753, %v5437
  %v7263 = vsel %vm681, %v4754, %v5439
  %v7265 = vsel %vm681, %v4755, %v5441
  %v7267 = vsel %vm681, %v4756, %v5443
  %v7269 = vsel %vm681, %v4757, %v5445
  %v7271 = vsel %vm681, %v4758, %v5447
  %v7273 = vsel %vm681, %v4759, %v5449
  %v7275 = vsel %vm681, %v4760, %v5451
  %v7277 = vsel %vm681, %v4761, %v5453
  %v7279 = vsel %vm681, %v4762, %v5455
  %v7281 = vsel %vm681, %v4763, %v5457
  %v7283 = vsel %vm681, %v4764, %v5459
  %v7285 = vsel %vm681, %v4765, %v5461
  %v7287 = vsel %vm681, %v4766, %v5463
  %v7289 = vsel %vm681, %v4767, %v5465
  %v7291 = vsel %vm681, %v4768, %v5467
  %v7293 = vsel %vm681, %v4769, %v5469
  %v7295 = vsel %vm681, %v4770, %v5471
  %v7297 = vsel %vm681, %v4771, %v5473
  %v7299 = vsel %vm681, %v4772, %v5475
  %v7301 = vsel %vm681, %v4773, %v5477
  %v7303 = vsel %vm3318, %v7239, %v5639
  %v7305 = vsel %vm3318, %v7241, %v5641
  %v7307 = vsel %vm3318, %v7243, %v5643
  %v7309 = vsel %vm3318, %v7245, %v5645
  %v7311 = vsel %vm3318, %v7247, %v5647
  %v7313 = vsel %vm3318, %v7249, %v5649
  %v7315 = vsel %vm3318, %v7251, %v5651
  %v7317 = vsel %vm3318, %v7253, %v5653
  %v7319 = vsel %vm3318, %v7255, %v5655
  %v7321 = vsel %vm3318, %v7257, %v5657
  %v7323 = vsel %vm3318, %v7259, %v5659
  %v7325 = vsel %vm3318, %v7261, %v5661
  %v7327 = vsel %vm3318, %v7263, %v5663
  %v7329 = vsel %vm3318, %v7265, %v5665
  %v7331 = vsel %vm3318, %v7267, %v5667
  %v7333 = vsel %vm3318, %v7269, %v5669
  %v7335 = vsel %vm3318, %v7271, %v5671
  %v7337 = vsel %vm3318, %v7273, %v5673
  %v7339 = vsel %vm3318, %v7275, %v5675
  %v7341 = vsel %vm3318, %v7277, %v5677
  %v7343 = vsel %vm3318, %v7279, %v5679
  %v7345 = vsel %vm3318, %v7281, %v5681
  %v7347 = vsel %vm3318, %v7283, %v5683
  %v7349 = vsel %vm3318, %v7285, %v5685
  %v7351 = vsel %vm3318, %v7287, %v5687
  %v7353 = vsel %vm3318, %v7289, %v5689
  %v7355 = vsel %vm3318, %v7291, %v5691
  %v7357 = vsel %vm3318, %v7293, %v5693
  %v7359 = vsel %vm3318, %v7295, %v5695
  %v7361 = vsel %vm3318, %v7297, %v5697
  %v7363 = vsel %vm3318, %v7299, %v5699
  %v7365 = vsel %vm3318, %v7301, %v5701
  %v7367 = vsel %vm3383, %v7303, %v5735
  %v7369 = vsel %vm3383, %v7305, %v5737
  %v7371 = vsel %vm3383, %v7307, %v5739
  %v7373 = vsel %vm3383, %v7309, %v5741
  %v7375 = vsel %vm3383, %v7311, %v5743
  %v7377 = vsel %vm3383, %v7313, %v5745
  %v7379 = vsel %vm3383, %v7315, %v5747
  %v7381 = vsel %vm3383, %v7317, %v5749
  %v7383 = vsel %vm3383, %v7319, %v5751
  %v7385 = vsel %vm3383, %v7321, %v5753
  %v7387 = vsel %vm3383, %v7323, %v5755
  %v7389 = vsel %vm3383, %v7325, %v5757
  %v7391 = vsel %vm3383, %v7327, %v5759
  %v7393 = vsel %vm3383, %v7329, %v5761
  %v7395 = vsel %vm3383, %v7331, %v5763
  %v7397 = vsel %vm3383, %v7333, %v5765
  %v7399 = vsel %vm3383, %v7335, %v5767
  %v7401 = vsel %vm3383, %v7337, %v5769
  %v7403 = vsel %vm3383, %v7339, %v5771
  %v7405 = vsel %vm3383, %v7341, %v5773
  %v7407 = vsel %vm3383, %v7343, %v5775
  %v7409 = vsel %vm3383, %v7345, %v5777
  %v7411 = vsel %vm3383, %v7347, %v5779
  %v7413 = vsel %vm3383, %v7349, %v5781
  %v7415 = vsel %vm3383, %v7351, %v5783
  %v7417 = vsel %vm3383, %v7353, %v5785
  %v7419 = vsel %vm3383, %v7355, %v5787
  %v7421 = vsel %vm3383, %v7357, %v5789
  %v7423 = vsel %vm3383, %v7359, %v5791
  %v7425 = vsel %vm3383, %v7361, %v5793
  %v7427 = vsel %vm3383, %v7363, %v5795
  %v7429 = vsel %vm3383, %v7365, %v5797
  %v7431 = vsel %vm3448, %v7367, %v6183
  %v7433 = vsel %vm3448, %v7369, %v6185
  %v7435 = vsel %vm3448, %v7371, %v6187
  %v7437 = vsel %vm3448, %v7373, %v6189
  %v7439 = vsel %vm3448, %v7375, %v6191
  %v7441 = vsel %vm3448, %v7377, %v6193
  %v7443 = vsel %vm3448, %v7379, %v6195
  %v7445 = vsel %vm3448, %v7381, %v6197
  %v7447 = vsel %vm3448, %v7383, %v6199
  %v7449 = vsel %vm3448, %v7385, %v6201
  %v7451 = vsel %vm3448, %v7387, %v6203
  %v7453 = vsel %vm3448, %v7389, %v6205
  %v7455 = vsel %vm3448, %v7391, %v6207
  %v7457 = vsel %vm3448, %v7393, %v6209
  %v7459 = vsel %vm3448, %v7395, %v6211
  %v7461 = vsel %vm3448, %v7397, %v6213
  %v7463 = vsel %vm3448, %v7399, %v6215
  %v7465 = vsel %vm3448, %v7401, %v6217
  %v7467 = vsel %vm3448, %v7403, %v6219
  %v7469 = vsel %vm3448, %v7405, %v6221
  %v7471 = vsel %vm3448, %v7407, %v6223
  %v7473 = vsel %vm3448, %v7409, %v6225
  %v7475 = vsel %vm3448, %v7411, %v6227
  %v7477 = vsel %vm3448, %v7413, %v6229
  %v7479 = vsel %vm3448, %v7415, %v6231
  %v7481 = vsel %vm3448, %v7417, %v6233
  %v7483 = vsel %vm3448, %v7419, %v6235
  %v7485 = vsel %vm3448, %v7421, %v6237
  %v7487 = vsel %vm3448, %v7423, %v6239
  %v7489 = vsel %vm3448, %v7425, %v6241
  %v7491 = vsel %vm3448, %v7427, %v6243
  %v7493 = vsel %vm3448, %v7429, %v6245
  %v7495 = vsel %vm3513, %v7431, %v6407
  %v7497 = vsel %vm3513, %v7433, %v6409
  %v7499 = vsel %vm3513, %v7435, %v6411
  %v7501 = vsel %vm3513, %v7437, %v6413
  %v7503 = vsel %vm3513, %v7439, %v6415
  %v7505 = vsel %vm3513, %v7441, %v6417
  %v7507 = vsel %vm3513, %v7443, %v6419
  %v7509 = vsel %vm3513, %v7445, %v6421
  %v7511 = vsel %vm3513, %v7447, %v6423
  %v7513 = vsel %vm3513, %v7449, %v6425
  %v7515 = vsel %vm3513, %v7451, %v6427
  %v7517 = vsel %vm3513, %v7453, %v6429
  %v7519 = vsel %vm3513, %v7455, %v6431
  %v7521 = vsel %vm3513, %v7457, %v6433
  %v7523 = vsel %vm3513, %v7459, %v6435
  %v7525 = vsel %vm3513, %v7461, %v6437
  %v7527 = vsel %vm3513, %v7463, %v6439
  %v7529 = vsel %vm3513, %v7465, %v6441
  %v7531 = vsel %vm3513, %v7467, %v6443
  %v7533 = vsel %vm3513, %v7469, %v6445
  %v7535 = vsel %vm3513, %v7471, %v6447
  %v7537 = vsel %vm3513, %v7473, %v6449
  %v7539 = vsel %vm3513, %v7475, %v6451
  %v7541 = vsel %vm3513, %v7477, %v6453
  %v7543 = vsel %vm3513, %v7479, %v6455
  %v7545 = vsel %vm3513, %v7481, %v6457
  %v7547 = vsel %vm3513, %v7483, %v6459
  %v7549 = vsel %vm3513, %v7485, %v6461
  %v7551 = vsel %vm3513, %v7487, %v6463
  %v7553 = vsel %vm3513, %v7489, %v6465
  %v7555 = vsel %vm3513, %v7491, %v6467
  %v7557 = vsel %vm3513, %v7493, %v6469
  %v7559 = vsel %vm3578, %v7495, %v6503
  %v7561 = vsel %vm3578, %v7497, %v6505
  %v7563 = vsel %vm3578, %v7499, %v6507
  %v7565 = vsel %vm3578, %v7501, %v6509
  %v7567 = vsel %vm3578, %v7503, %v6511
  %v7569 = vsel %vm3578, %v7505, %v6513
  %v7571 = vsel %vm3578, %v7507, %v6515
  %v7573 = vsel %vm3578, %v7509, %v6517
  %v7575 = vsel %vm3578, %v7511, %v6519
  %v7577 = vsel %vm3578, %v7513, %v6521
  %v7579 = vsel %vm3578, %v7515, %v6523
  %v7581 = vsel %vm3578, %v7517, %v6525
  %v7583 = vsel %vm3578, %v7519, %v6527
  %v7585 = vsel %vm3578, %v7521, %v6529
  %v7587 = vsel %vm3578, %v7523, %v6531
  %v7589 = vsel %vm3578, %v7525, %v6533
  %v7591 = vsel %vm3578, %v7527, %v6535
  %v7593 = vsel %vm3578, %v7529, %v6537
  %v7595 = vsel %vm3578, %v7531, %v6539
  %v7597 = vsel %vm3578, %v7533, %v6541
  %v7599 = vsel %vm3578, %v7535, %v6543
  %v7601 = vsel %vm3578, %v7537, %v6545
  %v7603 = vsel %vm3578, %v7539, %v6547
  %v7605 = vsel %vm3578, %v7541, %v6549
  %v7607 = vsel %vm3578, %v7543, %v6551
  %v7609 = vsel %vm3578, %v7545, %v6553
  %v7611 = vsel %vm3578, %v7547, %v6555
  %v7613 = vsel %vm3578, %v7549, %v6557
  %v7615 = vsel %vm3578, %v7551, %v6559
  %v7617 = vsel %vm3578, %v7553, %v6561
  %v7619 = vsel %vm3578, %v7555, %v6563
  %v7621 = vsel %vm3578, %v7557, %v6565
  %v7623 = vsel %vm3643, %v7559, %v6951
  %v7625 = vsel %vm3643, %v7561, %v6953
  %v7627 = vsel %vm3643, %v7563, %v6955
  %v7629 = vsel %vm3643, %v7565, %v6957
  %v7631 = vsel %vm3643, %v7567, %v6959
  %v7633 = vsel %vm3643, %v7569, %v6961
  %v7635 = vsel %vm3643, %v7571, %v6963
  %v7637 = vsel %vm3643, %v7573, %v6965
  %v7639 = vsel %vm3643, %v7575, %v6967
  %v7641 = vsel %vm3643, %v7577, %v6969
  %v7643 = vsel %vm3643, %v7579, %v6971
  %v7645 = vsel %vm3643, %v7581, %v6973
  %v7647 = vsel %vm3643, %v7583, %v6975
  %v7649 = vsel %vm3643, %v7585, %v6977
  %v7651 = vsel %vm3643, %v7587, %v6979
  %v7653 = vsel %vm3643, %v7589, %v6981
  %v7655 = vsel %vm3643, %v7591, %v6983
  %v7657 = vsel %vm3643, %v7593, %v6985
  %v7659 = vsel %vm3643, %v7595, %v6987
  %v7661 = vsel %vm3643, %v7597, %v6989
  %v7663 = vsel %vm3643, %v7599, %v6991
  %v7665 = vsel %vm3643, %v7601, %v6993
  %v7667 = vsel %vm3643, %v7603, %v6995
  %v7669 = vsel %vm3643, %v7605, %v6997
  %v7671 = vsel %vm3643, %v7607, %v6999
  %v7673 = vsel %vm3643, %v7609, %v7001
  %v7675 = vsel %vm3643, %v7611, %v7003
  %v7677 = vsel %vm3643, %v7613, %v7005
  %v7679 = vsel %vm3643, %v7615, %v7007
  %v7681 = vsel %vm3643, %v7617, %v7009
  %v7683 = vsel %vm3643, %v7619, %v7011
  %v7685 = vsel %vm3643, %v7621, %v7013
  %v7687 = vsel %vm3708, %v7623, %v7175
  %v7689 = vsel %vm3708, %v7625, %v7177
  %v7691 = vsel %vm3708, %v7627, %v7179
  %v7693 = vsel %vm3708, %v7629, %v7181
  %v7695 = vsel %vm3708, %v7631, %v7183
  %v7697 = vsel %vm3708, %v7633, %v7185
  %v7699 = vsel %vm3708, %v7635, %v7187
  %v7701 = vsel %vm3708, %v7637, %v7189
  %v7703 = vsel %vm3708, %v7639, %v7191
  %v7705 = vsel %vm3708, %v7641, %v7193
  %v7707 = vsel %vm3708, %v7643, %v7195
  %v7709 = vsel %vm3708, %v7645, %v7197
  %v7711 = vsel %vm3708, %v7647, %v7199
  %v7713 = vsel %vm3708, %v7649, %v7201
  %v7715 = vsel %vm3708, %v7651, %v7203
  %v7717 = vsel %vm3708, %v7653, %v7205
  %v7719 = vsel %vm3708, %v7655, %v7207
  %v7721 = vsel %vm3708, %v7657, %v7209
  %v7723 = vsel %vm3708, %v7659, %v7211
  %v7725 = vsel %vm3708, %v7661, %v7213
  %v7727 = vsel %vm3708, %v7663, %v7215
  %v7729 = vsel %vm3708, %v7665, %v7217
  %v7731 = vsel %vm3708, %v7667, %v7219
  %v7733 = vsel %vm3708, %v7669, %v7221
  %v7735 = vsel %vm3708, %v7671, %v7223
  %v7737 = vsel %vm3708, %v7673, %v7225
  %v7739 = vsel %vm3708, %v7675, %v7227
  %v7741 = vsel %vm3708, %v7677, %v7229
  %v7743 = vsel %vm3708, %v7679, %v7231
  %v7745 = vsel %vm3708, %v7681, %v7233
  %v7747 = vsel %vm3708, %v7683, %v7235
  %v7749 = vsel %vm3708, %v7685, %v7237
  %v7750 = vld [vmem:[%s5] sm:$0xf]
  %v7751 = vld [vmem:[%s5 + $0x4] sm:$0xf]
  %v7752 = vld [vmem:[%s5 + $0x8] sm:$0xf]
  %v7753 = vld [vmem:[%s5 + $0xc] sm:$0xf]
  %v7754 = vld [vmem:[%s5 + $0x10] sm:$0x3]
  %v7760 = vunpack.c.l.b16 %v7750
  %v7761 = vunpack.c.l.b16 %v7751
  %v7762 = vunpack.c.l.b16 %v7752
  %v7763 = vunpack.c.l.b16 %v7753
  %v7764 = vunpack.c.l.b16 %v7754
  %v7765 = vpack.c.b16 %v7761, %v7760
  %v7766 = vpack.c.b16 %v7763, %v7762
  %v7767 = vpack.c.b16 %v7764, %v7764
  %v7770 = vsel %vm3793, %v7687, 0
  %v7772 = vsel %vm3793, %v7689, 0
  %v7774 = vsel %vm3793, %v7691, 0
  %v7776 = vsel %vm3793, %v7693, 0
  %v7778 = vsel %vm3793, %v7695, 0
  %v7780 = vsel %vm3793, %v7697, 0
  %v7782 = vsel %vm3793, %v7699, 0
  %v7784 = vsel %vm3793, %v7701, 0
  %v7786 = vsel %vm3793, %v7703, 0
  %v7788 = vsel %vm3793, %v7705, 0
  %v7790 = vsel %vm3793, %v7707, 0
  %v7792 = vsel %vm3793, %v7709, 0
  %v7794 = vsel %vm3793, %v7711, 0
  %v7796 = vsel %vm3793, %v7713, 0
  %v7798 = vsel %vm3793, %v7715, 0
  %v7800 = vsel %vm3793, %v7717, 0
  %v7802 = vsel %vm3793, %v7719, 0
  %v7804 = vsel %vm3793, %v7721, 0
  %v7806 = vsel %vm3793, %v7723, 0
  %v7808 = vsel %vm3793, %v7725, 0
  %v7810 = vsel %vm3793, %v7727, 0
  %v7812 = vsel %vm3793, %v7729, 0
  %v7814 = vsel %vm3793, %v7731, 0
  %v7816 = vsel %vm3793, %v7733, 0
  %v7818 = vsel %vm3793, %v7735, 0
  %v7820 = vsel %vm3793, %v7737, 0
  %v7822 = vsel %vm3793, %v7739, 0
  %v7824 = vsel %vm3793, %v7741, 0
  %v7826 = vsel %vm3793, %v7743, 0
  %v7828 = vsel %vm3793, %v7745, 0
  %v7830 = vsel %vm3793, %v7747, 0
  %v7832 = vsel %vm3793, %v7749, 0
  %v7835 = vsel %vm3858, %v7767, 0
  %7837 = vmatprep.subr.bf16.mxu0 0
  %7838 = vmatpush1.bf16.msra.mxu0 %v7765
  %7839 = vmatprep.subr.bf16.mxu0 0
  %7840 = vmatpush1.bf16.msra.mxu0 %v7766
  %7841 = vmatprep.subr.bf16.mxu0 0
  %7842 = vmatpush1.bf16.msra.mxu0 %v7835
  %7843 = vmatprep.subr.bf16.mxu0 0
  %7844 = vmatpush1.bf16.msra.mxu0 0
  %7845 = vmatprep.subr.bf16.mxu0 0
  %7846 = vmatpush1.bf16.msra.mxu0 0
  %7847 = vmatprep.subr.bf16.mxu0 0
  %7848 = vmatpush1.bf16.msra.mxu0 0
  %7849 = vmatprep.subr.bf16.mxu0 0
  %7850 = vmatpush1.bf16.msra.mxu0 0
  %7851 = vmatprep.subr.bf16.mxu0 0
  %7852 = vmatpush1.bf16.msra.mxu0 0
  %7853 = vmatprep.subr.bf16.mxu0 0
  %7854 = vmatpush1.bf16.msra.mxu0 0
  %7855 = vmatprep.subr.bf16.mxu0 0
  %7856 = vmatpush1.bf16.msra.mxu0 0
  %7857 = vmatprep.subr.bf16.mxu0 0
  %7858 = vmatpush1.bf16.msra.mxu0 0
  %7859 = vmatprep.subr.bf16.mxu0 0
  %7860 = vmatpush1.bf16.msra.mxu0 0
  %7861 = vmatprep.subr.bf16.mxu0 0
  %7862 = vmatpush1.bf16.msra.mxu0 0
  %7863 = vmatprep.subr.bf16.mxu0 0
  %7864 = vmatpush1.bf16.msra.mxu0 0
  %7865 = vmatprep.subr.bf16.mxu0 0
  %7866 = vmatpush1.bf16.msra.mxu0 0
  %7867 = vmatprep.subr.bf16.mxu0 0
  %7868 = vmatpush1.bf16.msra.mxu0 0
  %7869 = vmatprep.mubr.bf16.mxu0 0
  %7870 = vmatmul.mubr.bf16.gmra.mrb[0].mxu0 %v7770
  %v7871 = vpop.f32.mrb[0].mxu0
  %v7872 = vadd.f32 0.0, %v7871
  %v7873 = vpop.f32.mrb[0].mxu0
  %v7874 = vpop.f32.mrb[0].mxu0
  %v7875 = vadd.f32 0.0, %v7874
  %v7876 = vpop.f32.mrb[0].mxu0
  %7877 = vmatprep.mubr.bf16.mxu0 0
  %7878 = vmatmul.mubr.bf16.gmra.mrb[0].mxu0 %v7772
  %v7879 = vpop.f32.mrb[0].mxu0
  %v7880 = vadd.f32 0.0, %v7879
  %v7881 = vpop.f32.mrb[0].mxu0
  %v7882 = vpop.f32.mrb[0].mxu0
  %v7883 = vadd.f32 0.0, %v7882
  %v7884 = vpop.f32.mrb[0].mxu0
  %7885 = vmatprep.mubr.bf16.mxu0 0
  %7886 = vmatmul.mubr.bf16.gmra.mrb[0].mxu0 %v7774
  %v7887 = vpop.f32.mrb[0].mxu0
  %v7888 = vadd.f32 0.0, %v7887
  %v7889 = vpop.f32.mrb[0].mxu0
  %v7890 = vpop.f32.mrb[0].mxu0
  %v7891 = vadd.f32 0.0, %v7890
  %v7892 = vpop.f32.mrb[0].mxu0
  %7893 = vmatprep.mubr.bf16.mxu0 0
  %7894 = vmatmul.mubr.bf16.gmra.mrb[0].mxu0 %v7776
  %v7895 = vpop.f32.mrb[0].mxu0
  %v7896 = vadd.f32 0.0, %v7895
  %v7897 = vpop.f32.mrb[0].mxu0
  %v7898 = vpop.f32.mrb[0].mxu0
  %v7899 = vadd.f32 0.0, %v7898
  %v7900 = vpop.f32.mrb[0].mxu0
  %7901 = vmatprep.mubr.bf16.mxu0 0
  %7902 = vmatmul.mubr.bf16.gmra.mrb[0].mxu0 %v7778
  %v7903 = vpop.f32.mrb[0].mxu0
  %v7904 = vadd.f32 0.0, %v7903
  %v7905 = vpop.f32.mrb[0].mxu0
  %v7906 = vpop.f32.mrb[0].mxu0
  %v7907 = vadd.f32 0.0, %v7906
  %v7908 = vpop.f32.mrb[0].mxu0
  %7909 = vmatprep.mubr.bf16.mxu0 0
  %7910 = vmatmul.mubr.bf16.gmra.mrb[0].mxu0 %v7780
  %v7911 = vpop.f32.mrb[0].mxu0
  %v7912 = vadd.f32 0.0, %v7911
  %v7913 = vpop.f32.mrb[0].mxu0
  %v7914 = vpop.f32.mrb[0].mxu0
  %v7915 = vadd.f32 0.0, %v7914
  %v7916 = vpop.f32.mrb[0].mxu0
  %7917 = vmatprep.mubr.bf16.mxu0 0
  %7918 = vmatmul.mubr.bf16.gmra.mrb[0].mxu0 %v7782
  %v7919 = vpop.f32.mrb[0].mxu0
  %v7920 = vadd.f32 0.0, %v7919
  %v7921 = vpop.f32.mrb[0].mxu0
  %v7922 = vpop.f32.mrb[0].mxu0
  %v7923 = vadd.f32 0.0, %v7922
  %v7924 = vpop.f32.mrb[0].mxu0
  %7925 = vmatprep.mubr.bf16.mxu0 0
  %7926 = vmatmul.mubr.bf16.gmra.mrb[0].mxu0 %v7784
  %v7927 = vpop.f32.mrb[0].mxu0
  %v7928 = vadd.f32 0.0, %v7927
  %v7929 = vpop.f32.mrb[0].mxu0
  %v7930 = vpop.f32.mrb[0].mxu0
  %v7931 = vadd.f32 0.0, %v7930
  %v7932 = vpop.f32.mrb[0].mxu0
  %7933 = vmatprep.mubr.bf16.mxu0 0
  %7934 = vmatmul.mubr.bf16.gmra.mrb[0].mxu0 %v7786
  %v7935 = vpop.f32.mrb[0].mxu0
  %v7936 = vadd.f32 0.0, %v7935
  %v7937 = vpop.f32.mrb[0].mxu0
  %v7938 = vpop.f32.mrb[0].mxu0
  %v7939 = vadd.f32 0.0, %v7938
  %v7940 = vpop.f32.mrb[0].mxu0
  %7941 = vmatprep.mubr.bf16.mxu0 0
  %7942 = vmatmul.mubr.bf16.gmra.mrb[0].mxu0 %v7788
  %v7943 = vpop.f32.mrb[0].mxu0
  %v7944 = vadd.f32 0.0, %v7943
  %v7945 = vpop.f32.mrb[0].mxu0
  %v7946 = vpop.f32.mrb[0].mxu0
  %v7947 = vadd.f32 0.0, %v7946
  %v7948 = vpop.f32.mrb[0].mxu0
  %7949 = vmatprep.mubr.bf16.mxu0 0
  %7950 = vmatmul.mubr.bf16.gmra.mrb[0].mxu0 %v7790
  %v7951 = vpop.f32.mrb[0].mxu0
  %v7952 = vadd.f32 0.0, %v7951
  %v7953 = vpop.f32.mrb[0].mxu0
  %v7954 = vpop.f32.mrb[0].mxu0
  %v7955 = vadd.f32 0.0, %v7954
  %v7956 = vpop.f32.mrb[0].mxu0
  %7957 = vmatprep.mubr.bf16.mxu0 0
  %7958 = vmatmul.mubr.bf16.gmra.mrb[0].mxu0 %v7792
  %v7959 = vpop.f32.mrb[0].mxu0
  %v7960 = vadd.f32 0.0, %v7959
  %v7961 = vpop.f32.mrb[0].mxu0
  %v7962 = vpop.f32.mrb[0].mxu0
  %v7963 = vadd.f32 0.0, %v7962
  %v7964 = vpop.f32.mrb[0].mxu0
  %7965 = vmatprep.mubr.bf16.mxu0 0
  %7966 = vmatmul.mubr.bf16.gmra.mrb[0].mxu0 %v7794
  %v7967 = vpop.f32.mrb[0].mxu0
  %v7968 = vadd.f32 0.0, %v7967
  %v7969 = vpop.f32.mrb[0].mxu0
  %v7970 = vpop.f32.mrb[0].mxu0
  %v7971 = vadd.f32 0.0, %v7970
  %v7972 = vpop.f32.mrb[0].mxu0
  %7973 = vmatprep.mubr.bf16.mxu0 0
  %7974 = vmatmul.mubr.bf16.gmra.mrb[0].mxu0 %v7796
  %v7975 = vpop.f32.mrb[0].mxu0
  %v7976 = vadd.f32 0.0, %v7975
  %v7977 = vpop.f32.mrb[0].mxu0
  %v7978 = vpop.f32.mrb[0].mxu0
  %v7979 = vadd.f32 0.0, %v7978
  %v7980 = vpop.f32.mrb[0].mxu0
  %7981 = vmatprep.mubr.bf16.mxu0 0
  %7982 = vmatmul.mubr.bf16.gmra.mrb[0].mxu0 %v7798
  %v7983 = vpop.f32.mrb[0].mxu0
  %v7984 = vadd.f32 0.0, %v7983
  %v7985 = vpop.f32.mrb[0].mxu0
  %v7986 = vpop.f32.mrb[0].mxu0
  %v7987 = vadd.f32 0.0, %v7986
  %v7988 = vpop.f32.mrb[0].mxu0
  %7989 = vmatprep.mubr.bf16.mxu0 0
  %7990 = vmatmul.mubr.bf16.gmra.mrb[0].mxu0 %v7800
  %v7991 = vpop.f32.mrb[0].mxu0
  %v7992 = vadd.f32 0.0, %v7991
  %v7993 = vpop.f32.mrb[0].mxu0
  %v7994 = vpop.f32.mrb[0].mxu0
  %v7995 = vadd.f32 0.0, %v7994
  %v7996 = vpop.f32.mrb[0].mxu0
  %7997 = vmatprep.mubr.bf16.mxu0 0
  %7998 = vmatmul.mubr.bf16.gmra.mrb[0].mxu0 %v7802
  %v7999 = vpop.f32.mrb[0].mxu0
  %v8000 = vadd.f32 0.0, %v7999
  %v8001 = vpop.f32.mrb[0].mxu0
  %v8002 = vpop.f32.mrb[0].mxu0
  %v8003 = vadd.f32 0.0, %v8002
  %v8004 = vpop.f32.mrb[0].mxu0
  %8005 = vmatprep.mubr.bf16.mxu0 0
  %8006 = vmatmul.mubr.bf16.gmra.mrb[0].mxu0 %v7804
  %v8007 = vpop.f32.mrb[0].mxu0
  %v8008 = vadd.f32 0.0, %v8007
  %v8009 = vpop.f32.mrb[0].mxu0
  %v8010 = vpop.f32.mrb[0].mxu0
  %v8011 = vadd.f32 0.0, %v8010
  %v8012 = vpop.f32.mrb[0].mxu0
  %8013 = vmatprep.mubr.bf16.mxu0 0
  %8014 = vmatmul.mubr.bf16.gmra.mrb[0].mxu0 %v7806
  %v8015 = vpop.f32.mrb[0].mxu0
  %v8016 = vadd.f32 0.0, %v8015
  %v8017 = vpop.f32.mrb[0].mxu0
  %v8018 = vpop.f32.mrb[0].mxu0
  %v8019 = vadd.f32 0.0, %v8018
  %v8020 = vpop.f32.mrb[0].mxu0
  %8021 = vmatprep.mubr.bf16.mxu0 0
  %8022 = vmatmul.mubr.bf16.gmra.mrb[0].mxu0 %v7808
  %v8023 = vpop.f32.mrb[0].mxu0
  %v8024 = vadd.f32 0.0, %v8023
  %v8025 = vpop.f32.mrb[0].mxu0
  %v8026 = vpop.f32.mrb[0].mxu0
  %v8027 = vadd.f32 0.0, %v8026
  %v8028 = vpop.f32.mrb[0].mxu0
  %8029 = vmatprep.mubr.bf16.mxu0 0
  %8030 = vmatmul.mubr.bf16.gmra.mrb[0].mxu0 %v7810
  %v8031 = vpop.f32.mrb[0].mxu0
  %v8032 = vadd.f32 0.0, %v8031
  %v8033 = vpop.f32.mrb[0].mxu0
  %v8034 = vpop.f32.mrb[0].mxu0
  %v8035 = vadd.f32 0.0, %v8034
  %v8036 = vpop.f32.mrb[0].mxu0
  %8037 = vmatprep.mubr.bf16.mxu0 0
  %8038 = vmatmul.mubr.bf16.gmra.mrb[0].mxu0 %v7812
  %v8039 = vpop.f32.mrb[0].mxu0
  %v8040 = vadd.f32 0.0, %v8039
  %v8041 = vpop.f32.mrb[0].mxu0
  %v8042 = vpop.f32.mrb[0].mxu0
  %v8043 = vadd.f32 0.0, %v8042
  %v8044 = vpop.f32.mrb[0].mxu0
  %8045 = vmatprep.mubr.bf16.mxu0 0
  %8046 = vmatmul.mubr.bf16.gmra.mrb[0].mxu0 %v7814
  %v8047 = vpop.f32.mrb[0].mxu0
  %v8048 = vadd.f32 0.0, %v8047
  %v8049 = vpop.f32.mrb[0].mxu0
  %v8050 = vpop.f32.mrb[0].mxu0
  %v8051 = vadd.f32 0.0, %v8050
  %v8052 = vpop.f32.mrb[0].mxu0
  %8053 = vmatprep.mubr.bf16.mxu0 0
  %8054 = vmatmul.mubr.bf16.gmra.mrb[0].mxu0 %v7816
  %v8055 = vpop.f32.mrb[0].mxu0
  %v8056 = vadd.f32 0.0, %v8055
  %v8057 = vpop.f32.mrb[0].mxu0
  %v8058 = vpop.f32.mrb[0].mxu0
  %v8059 = vadd.f32 0.0, %v8058
  %v8060 = vpop.f32.mrb[0].mxu0
  %8061 = vmatprep.mubr.bf16.mxu0 0
  %8062 = vmatmul.mubr.bf16.gmra.mrb[0].mxu0 %v7818
  %v8063 = vpop.f32.mrb[0].mxu0
  %v8064 = vadd.f32 0.0, %v8063
  %v8065 = vpop.f32.mrb[0].mxu0
  %v8066 = vpop.f32.mrb[0].mxu0
  %v8067 = vadd.f32 0.0, %v8066
  %v8068 = vpop.f32.mrb[0].mxu0
  %8069 = vmatprep.mubr.bf16.mxu0 0
  %8070 = vmatmul.mubr.bf16.gmra.mrb[0].mxu0 %v7820
  %v8071 = vpop.f32.mrb[0].mxu0
  %v8072 = vadd.f32 0.0, %v8071
  %v8073 = vpop.f32.mrb[0].mxu0
  %v8074 = vpop.f32.mrb[0].mxu0
  %v8075 = vadd.f32 0.0, %v8074
  %v8076 = vpop.f32.mrb[0].mxu0
  %8077 = vmatprep.mubr.bf16.mxu0 0
  %8078 = vmatmul.mubr.bf16.gmra.mrb[0].mxu0 %v7822
  %v8079 = vpop.f32.mrb[0].mxu0
  %v8080 = vadd.f32 0.0, %v8079
  %v8081 = vpop.f32.mrb[0].mxu0
  %v8082 = vpop.f32.mrb[0].mxu0
  %v8083 = vadd.f32 0.0, %v8082
  %v8084 = vpop.f32.mrb[0].mxu0
  %8085 = vmatprep.mubr.bf16.mxu0 0
  %8086 = vmatmul.mubr.bf16.gmra.mrb[0].mxu0 %v7824
  %v8087 = vpop.f32.mrb[0].mxu0
  %v8088 = vadd.f32 0.0, %v8087
  %v8089 = vpop.f32.mrb[0].mxu0
  %v8090 = vpop.f32.mrb[0].mxu0
  %v8091 = vadd.f32 0.0, %v8090
  %v8092 = vpop.f32.mrb[0].mxu0
  %8093 = vmatprep.mubr.bf16.mxu0 0
  %8094 = vmatmul.mubr.bf16.gmra.mrb[0].mxu0 %v7826
  %v8095 = vpop.f32.mrb[0].mxu0
  %v8096 = vadd.f32 0.0, %v8095
  %v8097 = vpop.f32.mrb[0].mxu0
  %v8098 = vpop.f32.mrb[0].mxu0
  %v8099 = vadd.f32 0.0, %v8098
  %v8100 = vpop.f32.mrb[0].mxu0
  %8101 = vmatprep.mubr.bf16.mxu0 0
  %8102 = vmatmul.mubr.bf16.gmra.mrb[0].mxu0 %v7828
  %v8103 = vpop.f32.mrb[0].mxu0
  %v8104 = vadd.f32 0.0, %v8103
  %v8105 = vpop.f32.mrb[0].mxu0
  %v8106 = vpop.f32.mrb[0].mxu0
  %v8107 = vadd.f32 0.0, %v8106
  %v8108 = vpop.f32.mrb[0].mxu0
  %8109 = vmatprep.mubr.bf16.mxu0 0
  %8110 = vmatmul.mubr.bf16.gmra.mrb[0].mxu0 %v7830
  %v8111 = vpop.f32.mrb[0].mxu0
  %v8112 = vadd.f32 0.0, %v8111
  %v8113 = vpop.f32.mrb[0].mxu0
  %v8114 = vpop.f32.mrb[0].mxu0
  %v8115 = vadd.f32 0.0, %v8114
  %v8116 = vpop.f32.mrb[0].mxu0
  %8117 = vmatprep.mubr.bf16.mxu0 0
  %8118 = vmatmul.mubr.bf16.gmra.mrb[0].mxu0 %v7832
  %v8119 = vpop.f32.mrb[0].mxu0
  %v8120 = vadd.f32 0.0, %v8119
  %v8121 = vpop.f32.mrb[0].mxu0
  %v8122 = vpop.f32.mrb[0].mxu0
  %v8123 = vadd.f32 0.0, %v8122
  %v8124 = vpop.f32.mrb[0].mxu0
  %8125 = vdwg.mxu0
  %v8126 = vld [vmem:[%s0] sm:$0xff]
  %v8127 = vld [vmem:[%s0 + $0x8] sm:$0xff]
  %v8128 = vld [vmem:[%s0 + $0x10] sm:$0xff]
  %v8129 = vld [vmem:[%s0 + $0x18] sm:$0xff]
  %v8130 = vld [vmem:[%s0 + $0x20] sm:$0xff]
  %v8131 = vld [vmem:[%s0 + $0x28] sm:$0xff]
  %v8132 = vld [vmem:[%s0 + $0x30] sm:$0xff]
  %v8133 = vld [vmem:[%s0 + $0x38] sm:$0xff]
  %v8134 = vld [vmem:[%s0 + $0x40] sm:$0xff]
  %v8135 = vld [vmem:[%s0 + $0x48] sm:$0xff]
  %v8136 = vld [vmem:[%s0 + $0x50] sm:$0xff]
  %v8137 = vld [vmem:[%s0 + $0x58] sm:$0xff]
  %v8138 = vld [vmem:[%s0 + $0x60] sm:$0xff]
  %v8139 = vld [vmem:[%s0 + $0x68] sm:$0xff]
  %v8140 = vld [vmem:[%s0 + $0x70] sm:$0xff]
  %v8141 = vld [vmem:[%s0 + $0x78] sm:$0xff]
  %v8142 = vld [vmem:[%s0 + $0x80] sm:$0xff]
  %v8143 = vld [vmem:[%s0 + $0x88] sm:$0xff]
  %v8144 = vld [vmem:[%s0 + $0x90] sm:$0xff]
  %v8145 = vld [vmem:[%s0 + $0x98] sm:$0xff]
  %v8146 = vld [vmem:[%s0 + $0xa0] sm:$0xff]
  %v8147 = vld [vmem:[%s0 + $0xa8] sm:$0xff]
  %v8148 = vld [vmem:[%s0 + $0xb0] sm:$0xff]
  %v8149 = vld [vmem:[%s0 + $0xb8] sm:$0xff]
  %v8150 = vld [vmem:[%s0 + $0xc0] sm:$0xff]
  %v8151 = vld [vmem:[%s0 + $0xc8] sm:$0xff]
  %v8152 = vld [vmem:[%s0 + $0xd0] sm:$0xff]
  %v8153 = vld [vmem:[%s0 + $0xd8] sm:$0xff]
  %v8154 = vld [vmem:[%s0 + $0xe0] sm:$0xff]
  %v8155 = vld [vmem:[%s0 + $0xe8] sm:$0xff]
  %v8156 = vld [vmem:[%s0 + $0xf0] sm:$0xff]
  %v8157 = vld [vmem:[%s0 + $0xf8] sm:$0xff]
  %v8158 = vld [vmem:[%s0 + $0x100] sm:$0xff]
  %v8159 = vld [vmem:[%s0 + $0x108] sm:$0xff]
  %v8160 = vld [vmem:[%s0 + $0x110] sm:$0xff]
  %v8161 = vld [vmem:[%s0 + $0x118] sm:$0xff]
  %v8162 = vld [vmem:[%s0 + $0x120] sm:$0xff]
  %v8163 = vld [vmem:[%s0 + $0x128] sm:$0xff]
  %v8164 = vld [vmem:[%s0 + $0x130] sm:$0xff]
  %v8165 = vld [vmem:[%s0 + $0x138] sm:$0xff]
  %v8166 = vld [vmem:[%s0 + $0x140] sm:$0xff]
  %v8167 = vld [vmem:[%s0 + $0x148] sm:$0xff]
  %v8168 = vld [vmem:[%s0 + $0x150] sm:$0xff]
  %v8169 = vld [vmem:[%s0 + $0x158] sm:$0xff]
  %v8170 = vld [vmem:[%s0 + $0x160] sm:$0xff]
  %v8171 = vld [vmem:[%s0 + $0x168] sm:$0xff]
  %v8172 = vld [vmem:[%s0 + $0x170] sm:$0xff]
  %v8173 = vld [vmem:[%s0 + $0x178] sm:$0xff]
  %v8174 = vld [vmem:[%s0 + $0x180] sm:$0xff]
  %v8175 = vld [vmem:[%s0 + $0x188] sm:$0xff]
  %v8176 = vld [vmem:[%s0 + $0x190] sm:$0xff]
  %v8177 = vld [vmem:[%s0 + $0x198] sm:$0xff]
  %v8178 = vld [vmem:[%s0 + $0x1a0] sm:$0xff]
  %v8179 = vld [vmem:[%s0 + $0x1a8] sm:$0xff]
  %v8180 = vld [vmem:[%s0 + $0x1b0] sm:$0xff]
  %v8181 = vld [vmem:[%s0 + $0x1b8] sm:$0xff]
  %v8182 = vld [vmem:[%s0 + $0x1c0] sm:$0xff]
  %v8183 = vld [vmem:[%s0 + $0x1c8] sm:$0xff]
  %v8184 = vld [vmem:[%s0 + $0x1d0] sm:$0xff]
  %v8185 = vld [vmem:[%s0 + $0x1d8] sm:$0xff]
  %v8186 = vld [vmem:[%s0 + $0x1e0] sm:$0xff]
  %v8187 = vld [vmem:[%s0 + $0x1e8] sm:$0xff]
  %v8188 = vld [vmem:[%s0 + $0x1f0] sm:$0xff]
  %v8189 = vld [vmem:[%s0 + $0x1f8] sm:$0xff]
  %v8190 = vadd.f32 %v7872, %v8126
  %v8191 = vadd.f32 %v7875, %v8127
  %v8192 = vadd.f32 %v7880, %v8128
  %v8193 = vadd.f32 %v7883, %v8129
  %v8194 = vadd.f32 %v7888, %v8130
  %v8195 = vadd.f32 %v7891, %v8131
  %v8196 = vadd.f32 %v7896, %v8132
  %v8197 = vadd.f32 %v7899, %v8133
  %v8198 = vadd.f32 %v7904, %v8134
  %v8199 = vadd.f32 %v7907, %v8135
  %v8200 = vadd.f32 %v7912, %v8136
  %v8201 = vadd.f32 %v7915, %v8137
  %v8202 = vadd.f32 %v7920, %v8138
  %v8203 = vadd.f32 %v7923, %v8139
  %v8204 = vadd.f32 %v7928, %v8140
  %v8205 = vadd.f32 %v7931, %v8141
  %v8206 = vadd.f32 %v7936, %v8142
  %v8207 = vadd.f32 %v7939, %v8143
  %v8208 = vadd.f32 %v7944, %v8144
  %v8209 = vadd.f32 %v7947, %v8145
  %v8210 = vadd.f32 %v7952, %v8146
  %v8211 = vadd.f32 %v7955, %v8147
  %v8212 = vadd.f32 %v7960, %v8148
  %v8213 = vadd.f32 %v7963, %v8149
  %v8214 = vadd.f32 %v7968, %v8150
  %v8215 = vadd.f32 %v7971, %v8151
  %v8216 = vadd.f32 %v7976, %v8152
  %v8217 = vadd.f32 %v7979, %v8153
  %v8218 = vadd.f32 %v7984, %v8154
  %v8219 = vadd.f32 %v7987, %v8155
  %v8220 = vadd.f32 %v7992, %v8156
  %v8221 = vadd.f32 %v7995, %v8157
  %v8222 = vadd.f32 %v8000, %v8158
  %v8223 = vadd.f32 %v8003, %v8159
  %v8224 = vadd.f32 %v8008, %v8160
  %v8225 = vadd.f32 %v8011, %v8161
  %v8226 = vadd.f32 %v8016, %v8162
  %v8227 = vadd.f32 %v8019, %v8163
  %v8228 = vadd.f32 %v8024, %v8164
  %v8229 = vadd.f32 %v8027, %v8165
  %v8230 = vadd.f32 %v8032, %v8166
  %v8231 = vadd.f32 %v8035, %v8167
  %v8232 = vadd.f32 %v8040, %v8168
  %v8233 = vadd.f32 %v8043, %v8169
  %v8234 = vadd.f32 %v8048, %v8170
  %v8235 = vadd.f32 %v8051, %v8171
  %v8236 = vadd.f32 %v8056, %v8172
  %v8237 = vadd.f32 %v8059, %v8173
  %v8238 = vadd.f32 %v8064, %v8174
  %v8239 = vadd.f32 %v8067, %v8175
  %v8240 = vadd.f32 %v8072, %v8176
  %v8241 = vadd.f32 %v8075, %v8177
  %v8242 = vadd.f32 %v8080, %v8178
  %v8243 = vadd.f32 %v8083, %v8179
  %v8244 = vadd.f32 %v8088, %v8180
  %v8245 = vadd.f32 %v8091, %v8181
  %v8246 = vadd.f32 %v8096, %v8182
  %v8247 = vadd.f32 %v8099, %v8183
  %v8248 = vadd.f32 %v8104, %v8184
  %v8249 = vadd.f32 %v8107, %v8185
  %v8250 = vadd.f32 %v8112, %v8186
  %v8251 = vadd.f32 %v8115, %v8187
  %v8252 = vadd.f32 %v8120, %v8188
  %v8253 = vadd.f32 %v8123, %v8189
  %v8254 = vmax.f32 %v8190, 0.0
  %v8255 = vmax.f32 %v8191, 0.0
  %v8256 = vmax.f32 %v8192, 0.0
  %v8257 = vmax.f32 %v8193, 0.0
  %v8258 = vmax.f32 %v8194, 0.0
  %v8259 = vmax.f32 %v8195, 0.0
  %v8260 = vmax.f32 %v8196, 0.0
  %v8261 = vmax.f32 %v8197, 0.0
  %v8262 = vmax.f32 %v8198, 0.0
  %v8263 = vmax.f32 %v8199, 0.0
  %v8264 = vmax.f32 %v8200, 0.0
  %v8265 = vmax.f32 %v8201, 0.0
  %v8266 = vmax.f32 %v8202, 0.0
  %v8267 = vmax.f32 %v8203, 0.0
  %v8268 = vmax.f32 %v8204, 0.0
  %v8269 = vmax.f32 %v8205, 0.0
  %v8270 = vmax.f32 %v8206, 0.0
  %v8271 = vmax.f32 %v8207, 0.0
  %v8272 = vmax.f32 %v8208, 0.0
  %v8273 = vmax.f32 %v8209, 0.0
  %v8274 = vmax.f32 %v8210, 0.0
  %v8275 = vmax.f32 %v8211, 0.0
  %v8276 = vmax.f32 %v8212, 0.0
  %v8277 = vmax.f32 %v8213, 0.0
  %v8278 = vmax.f32 %v8214, 0.0
  %v8279 = vmax.f32 %v8215, 0.0
  %v8280 = vmax.f32 %v8216, 0.0
  %v8281 = vmax.f32 %v8217, 0.0
  %v8282 = vmax.f32 %v8218, 0.0
  %v8283 = vmax.f32 %v8219, 0.0
  %v8284 = vmax.f32 %v8220, 0.0
  %v8285 = vmax.f32 %v8221, 0.0
  %v8286 = vmax.f32 %v8222, 0.0
  %v8287 = vmax.f32 %v8223, 0.0
  %v8288 = vmax.f32 %v8224, 0.0
  %v8289 = vmax.f32 %v8225, 0.0
  %v8290 = vmax.f32 %v8226, 0.0
  %v8291 = vmax.f32 %v8227, 0.0
  %v8292 = vmax.f32 %v8228, 0.0
  %v8293 = vmax.f32 %v8229, 0.0
  %v8294 = vmax.f32 %v8230, 0.0
  %v8295 = vmax.f32 %v8231, 0.0
  %v8296 = vmax.f32 %v8232, 0.0
  %v8297 = vmax.f32 %v8233, 0.0
  %v8298 = vmax.f32 %v8234, 0.0
  %v8299 = vmax.f32 %v8235, 0.0
  %v8300 = vmax.f32 %v8236, 0.0
  %v8301 = vmax.f32 %v8237, 0.0
  %v8302 = vmax.f32 %v8238, 0.0
  %v8303 = vmax.f32 %v8239, 0.0
  %v8304 = vmax.f32 %v8240, 0.0
  %v8305 = vmax.f32 %v8241, 0.0
  %v8306 = vmax.f32 %v8242, 0.0
  %v8307 = vmax.f32 %v8243, 0.0
  %v8308 = vmax.f32 %v8244, 0.0
  %v8309 = vmax.f32 %v8245, 0.0
  %v8310 = vmax.f32 %v8246, 0.0
  %v8311 = vmax.f32 %v8247, 0.0
  %v8312 = vmax.f32 %v8248, 0.0
  %v8313 = vmax.f32 %v8249, 0.0
  %v8314 = vmax.f32 %v8250, 0.0
  %v8315 = vmax.f32 %v8251, 0.0
  %v8316 = vmax.f32 %v8252, 0.0
  %v8317 = vmax.f32 %v8253, 0.0
  %8318 = vst.msk [vmem:[%s6] sm:$0xff] %vm681, %v8254
  %8319 = vst.msk [vmem:[%s6 + $0x8] sm:$0xff] %vm681, %v8255
  %8320 = vst.msk [vmem:[%s6 + $0x10] sm:$0xff] %vm681, %v8256
  %8321 = vst.msk [vmem:[%s6 + $0x18] sm:$0xff] %vm681, %v8257
  %8322 = vst.msk [vmem:[%s6 + $0x20] sm:$0xff] %vm681, %v8258
  %8323 = vst.msk [vmem:[%s6 + $0x28] sm:$0xff] %vm681, %v8259
  %8324 = vst.msk [vmem:[%s6 + $0x30] sm:$0xff] %vm681, %v8260
  %8325 = vst.msk [vmem:[%s6 + $0x38] sm:$0xff] %vm681, %v8261
  %8326 = vst.msk [vmem:[%s6 + $0x40] sm:$0xff] %vm681, %v8262
  %8327 = vst.msk [vmem:[%s6 + $0x48] sm:$0xff] %vm681, %v8263
  %8328 = vst.msk [vmem:[%s6 + $0x50] sm:$0xff] %vm681, %v8264
  %8329 = vst.msk [vmem:[%s6 + $0x58] sm:$0xff] %vm681, %v8265
  %8330 = vst.msk [vmem:[%s6 + $0x60] sm:$0xff] %vm681, %v8266
  %8331 = vst.msk [vmem:[%s6 + $0x68] sm:$0xff] %vm681, %v8267
  %8332 = vst.msk [vmem:[%s6 + $0x70] sm:$0xff] %vm681, %v8268
  %8333 = vst.msk [vmem:[%s6 + $0x78] sm:$0xff] %vm681, %v8269
  %8334 = vst.msk [vmem:[%s6 + $0x80] sm:$0xff] %vm681, %v8270
  %8335 = vst.msk [vmem:[%s6 + $0x88] sm:$0xff] %vm681, %v8271
  %8336 = vst.msk [vmem:[%s6 + $0x90] sm:$0xff] %vm681, %v8272
  %8337 = vst.msk [vmem:[%s6 + $0x98] sm:$0xff] %vm681, %v8273
  %8338 = vst.msk [vmem:[%s6 + $0xa0] sm:$0xff] %vm681, %v8274
  %8339 = vst.msk [vmem:[%s6 + $0xa8] sm:$0xff] %vm681, %v8275
  %8340 = vst.msk [vmem:[%s6 + $0xb0] sm:$0xff] %vm681, %v8276
  %8341 = vst.msk [vmem:[%s6 + $0xb8] sm:$0xff] %vm681, %v8277
  %8342 = vst.msk [vmem:[%s6 + $0xc0] sm:$0xff] %vm681, %v8278
  %8343 = vst.msk [vmem:[%s6 + $0xc8] sm:$0xff] %vm681, %v8279
  %8344 = vst.msk [vmem:[%s6 + $0xd0] sm:$0xff] %vm681, %v8280
  %8345 = vst.msk [vmem:[%s6 + $0xd8] sm:$0xff] %vm681, %v8281
  %8346 = vst.msk [vmem:[%s6 + $0xe0] sm:$0xff] %vm681, %v8282
  %8347 = vst.msk [vmem:[%s6 + $0xe8] sm:$0xff] %vm681, %v8283
  %8348 = vst.msk [vmem:[%s6 + $0xf0] sm:$0xff] %vm681, %v8284
  %8349 = vst.msk [vmem:[%s6 + $0xf8] sm:$0xff] %vm681, %v8285
  %8350 = vst.msk [vmem:[%s6 + $0x100] sm:$0xff] %vm681, %v8286
  %8351 = vst.msk [vmem:[%s6 + $0x108] sm:$0xff] %vm681, %v8287
  %8352 = vst.msk [vmem:[%s6 + $0x110] sm:$0xff] %vm681, %v8288
  %8353 = vst.msk [vmem:[%s6 + $0x118] sm:$0xff] %vm681, %v8289
  %8354 = vst.msk [vmem:[%s6 + $0x120] sm:$0xff] %vm681, %v8290
  %8355 = vst.msk [vmem:[%s6 + $0x128] sm:$0xff] %vm681, %v8291
  %8356 = vst.msk [vmem:[%s6 + $0x130] sm:$0xff] %vm681, %v8292
  %8357 = vst.msk [vmem:[%s6 + $0x138] sm:$0xff] %vm681, %v8293
  %8358 = vst.msk [vmem:[%s6 + $0x140] sm:$0xff] %vm681, %v8294
  %8359 = vst.msk [vmem:[%s6 + $0x148] sm:$0xff] %vm681, %v8295
  %8360 = vst.msk [vmem:[%s6 + $0x150] sm:$0xff] %vm681, %v8296
  %8361 = vst.msk [vmem:[%s6 + $0x158] sm:$0xff] %vm681, %v8297
  %8362 = vst.msk [vmem:[%s6 + $0x160] sm:$0xff] %vm681, %v8298
  %8363 = vst.msk [vmem:[%s6 + $0x168] sm:$0xff] %vm681, %v8299
  %8364 = vst.msk [vmem:[%s6 + $0x170] sm:$0xff] %vm681, %v8300
  %8365 = vst.msk [vmem:[%s6 + $0x178] sm:$0xff] %vm681, %v8301
  %8366 = vst.msk [vmem:[%s6 + $0x180] sm:$0xff] %vm681, %v8302
  %8367 = vst.msk [vmem:[%s6 + $0x188] sm:$0xff] %vm681, %v8303
  %8368 = vst.msk [vmem:[%s6 + $0x190] sm:$0xff] %vm681, %v8304
  %8369 = vst.msk [vmem:[%s6 + $0x198] sm:$0xff] %vm681, %v8305
  %8370 = vst.msk [vmem:[%s6 + $0x1a0] sm:$0xff] %vm681, %v8306
  %8371 = vst.msk [vmem:[%s6 + $0x1a8] sm:$0xff] %vm681, %v8307
  %8372 = vst.msk [vmem:[%s6 + $0x1b0] sm:$0xff] %vm681, %v8308
  %8373 = vst.msk [vmem:[%s6 + $0x1b8] sm:$0xff] %vm681, %v8309
  %8374 = vst.msk [vmem:[%s6 + $0x1c0] sm:$0xff] %vm681, %v8310
  %8375 = vst.msk [vmem:[%s6 + $0x1c8] sm:$0xff] %vm681, %v8311
  %8376 = vst.msk [vmem:[%s6 + $0x1d0] sm:$0xff] %vm681, %v8312
  %8377 = vst.msk [vmem:[%s6 + $0x1d8] sm:$0xff] %vm681, %v8313
  %8378 = vst.msk [vmem:[%s6 + $0x1e0] sm:$0xff] %vm681, %v8314
  %8379 = vst.msk [vmem:[%s6 + $0x1e8] sm:$0xff] %vm681, %v8315
  %8380 = vst.msk [vmem:[%s6 + $0x1f0] sm:$0xff] %vm681, %v8316
  %8381 = vst.msk [vmem:[%s6 + $0x1f8] sm:$0xff] %vm681, %v8317
  // Predicated region
  $region26: #{tpu_custom_call.1} parent=0 // pred_check
    _
  $region27: #{tpu_custom_call.1} parent=0 // pred_check_branch
    %8383 = sbr.rel (0) target = $region29
  $region28: #{tpu_custom_call.1} parent=0 // pred_region
    _
  $region29: #{tpu_custom_call.1} parent=0 // pred_fallthru
    _
  // Predicated region
  $region30: #{tpu_custom_call.1} parent=0 // pred_check
    _
  $region31: #{tpu_custom_call.1} parent=0 // pred_check_branch
    %8385 = sbr.rel (0) target = $region33
  $region32: #{tpu_custom_call.1} parent=0 // pred_region
    _
  $region33: #{tpu_custom_call.1} parent=0 // pred_fallthru
    _

</llo_original>
